<compile_context>
chip_gen: v6e
topology: v6e:2x2x1
jax: 0.10.0
libtpu: 0.0.40
codegen_flags: <defaults>
</compile_context>

<pallas_src>
import math
import functools

import jax
import jax.numpy as jnp
from jax.experimental import pallas as pl
from jax.experimental.pallas import tpu as pltpu


# ----------------------------- shared helpers -----------------------------

def _layernorm(y, gamma, beta, eps=1e-5):
    mu = jnp.mean(y, axis=-1, keepdims=True)
    var = jnp.mean((y - mu) ** 2, axis=-1, keepdims=True)
    return (y - mu) * jax.lax.rsqrt(var + eps) * gamma + beta


def positional_encoding(seq_len, d_model):
    # assumes even d_model (true for the module's defaults)
    position = jnp.arange(seq_len, dtype=jnp.float32)[:, None]
    div_term = jnp.exp(jnp.arange(0, d_model, 2, dtype=jnp.float32)
                       * (-math.log(10000.0) / d_model))
    pe = jnp.zeros((seq_len, d_model), jnp.float32)
    pe = pe.at[:, 0::2].set(jnp.sin(position * div_term))
    pe = pe.at[:, 1::2].set(jnp.cos(position * div_term))
    return pe                                           # (S, E)


# ----------------------------- Pallas kernel -----------------------------

def decoder_kernel(src_ref, z_ref, tgtb_ref, memb_ref,
                   packS_ref, segS_ref, packM_ref, segM_ref,
                   wl_ref, bl_ref,
                   sqw_ref, sqb_ref, skw_ref, skb_ref, svw_ref, svb_ref,
                   sow_ref, sob_ref,
                   cqw_ref, cqb_ref, ckw_ref, ckb_ref, cvw_ref, cvb_ref,
                   cow_ref, cob_ref,
                   w1_ref, b1_ref, w2_ref, b2_ref,
                   g1_ref, be1_ref, g2_ref, be2_ref, g3_ref, be3_ref,
                   wvoc_ref, bvoc_ref,
                   out_ref, *, nhead, num_layers, causal, has_mem_mask):
    """Whole decoder stack + vocab projection for Bb batch elements per grid step."""
    Bb, S, E = src_ref.shape
    M = z_ref.shape[1]
    hd = E // nhead
    scale = 1.0 / math.sqrt(hd)
    f32 = jnp.float32
    dot = functools.partial(jnp.dot, preferred_element_type=f32)

    # flattened row blocks -> every projection / FFN / vocab matmul sees Bb*S rows
    x = src_ref[...].astype(f32).reshape(Bb * S, E)            # (Bb*S, E)
    zf = z_ref[...].astype(f32).reshape(Bb * M, -1)            # (Bb*M, Lz)
    mem = dot(zf, wl_ref[...]) + bl_ref[...]                   # (Bb*M, E) latent_to_embedding

    tgt_bias = tgtb_ref[...]                                   # (S, H*S)  precomputed causal bias
    pack_s, seg_s = packS_ref[...], segS_ref[...]              # head-pack mask / per-head sum matrix
    pack_m, seg_m = packM_ref[...], segM_ref[...]

    def attend(q_all, k_all, v_all, Sk, pack, seg, bias_of_b, clamp):
        """Block-diagonal head-packed attention (contraction depth E, no per-head slices)."""
        outs = []
        for b in range(Bb):                                    # attention mixes only within a batch element
            q = q_all[b * S:(b + 1) * S, :]                    # (S, E)   sublane-aligned slices
            k = k_all[b * Sk:(b + 1) * Sk, :]                  # (Sk, E)
            v = v_all[b * Sk:(b + 1) * Sk, :]
            kp = jnp.tile(k, (nhead, 1)) * pack                # (H*Sk, E) block-diagonal pack
            vp = jnp.tile(v, (nhead, 1)) * pack
            s = jnp.einsum('qd,kd->qk', q, kp,
                           preferred_element_type=f32) * scale  # (S, H*Sk), one E-deep matmul
            if bias_of_b is not None:
                s = s + bias_of_b(b)
            # full-row max is a valid shift for every head segment (softmax shift-invariance)
            p = jnp.exp(s - jnp.max(s, axis=-1, keepdims=True))
            denom = dot(p, seg)                                # per-head sums, broadcast across lanes
            if clamp:
                denom = jnp.maximum(denom, 1e-30)              # guard fully-padded memory rows
            inv = pl.reciprocal(denom, approx=True)            # EUP seed ...
            inv = inv * (2.0 - denom * inv)                    # ... + one Newton step (f32-accurate)
            outs.append(dot(p * inv, vp))                      # (S, E), heads already packed for W_o
        return jnp.concatenate(outs, axis=0) if Bb > 1 else outs[0]

    # All layers fused; static unroll is fine for L=2 (use lax.fori_loop for deep stacks).
    for li in range(num_layers):
        # --- causal self attention + LN1 ---
        q = dot(x, sqw_ref[li]) + sqb_ref[li]
        k = dot(x, skw_ref[li]) + skb_ref[li]
        v = dot(x, svw_ref[li]) + svb_ref[li]
        a = attend(q, k, v, S, pack_s, seg_s,
                   (lambda b: tgt_bias) if causal else None, False)
        x = _layernorm(x + dot(a, sow_ref[li]) + sob_ref[li], g1_ref[li], be1_ref[li])

        # --- cross attention to memory + LN2 ---
        q = dot(x, cqw_ref[li]) + cqb_ref[li]
        k = dot(mem, ckw_ref[li]) + ckb_ref[li]
        v = dot(mem, cvw_ref[li]) + cvb_ref[li]
        a = attend(q, k, v, M, pack_m, seg_m,
                   (lambda b: memb_ref[b]) if has_mem_mask else None, has_mem_mask)
        x = _layernorm(x + dot(a, cow_ref[li]) + cob_ref[li], g2_ref[li], be2_ref[li])

        # --- feed-forward (ReLU) + LN3 ---
        h1 = jnp.maximum(dot(x, w1_ref[li]) + b1_ref[li], 0.0)
        x = _layernorm(x + dot(h1, w2_ref[li]) + b2_ref[li], g3_ref[li], be3_ref[li])

    # outputs2vocab -> lane-dense (vocab multiple of 128) store
    logits = dot(x, wvoc_ref[...]) + bvoc_ref[...]             # (Bb*S, V)
    for b in range(Bb):
        out_ref[b] = logits[b * S:(b + 1) * S, :].astype(out_ref.dtype)


# ----------------------------- pallas_call wrapper -----------------------------

def _rep_spec(arr):
    """Full-array block, replicated across the batch grid (fetched once, stays in VMEM)."""
    nd = arr.ndim
    return pl.BlockSpec(arr.shape, lambda b, nd=nd: (0,) * nd)


def transformer_decoder_forward(z, dec_input_ids, params, nhead,
                                memory_key_padding_mask=None, causal=True):
    """AttentionTransformerDecoder.forward (eval mode)."""
    B, S = dec_input_ids.shape
    M, Lz = z.shape[1], z.shape[2]
    E = params['embedding'].shape[1]
    V = params['wvoc'].shape[1]
    hd = E // nhead
    num_layers = params['sa_wq'].shape[0]

    # Batch sub-blocking: pack Bb*S rows into each matmul but keep >=2 grid steps so
    # dimension_semantics=("parallel",) can split work across both v7x TensorCores
    # (single-TC v5e/v6e simply run the steps back-to-back).
    if B == 1:
        Bb = 1
    else:
        Bb = max(d for d in range(1, B) if B % d == 0 and B // d >= 2)
    n_steps = B // Bb

    # JAX glue: embedding gather + positional encoding (dropout is identity in eval
    # mode; word_dropout_rate = 0).
    # TODO(synk): tgt_key_padding_mask (defaults to None in the module) is not wired in.
    emb = jnp.take(params['embedding'], dec_input_ids, axis=0)          # (B, S, E)
    src = emb + positional_encoding(S, E)[None]                         # (B, S, E)

    # ---- hoisted constants: score biases + head-packing helpers (built once, passed
    # as replicated inputs; nothing is re-derived per grid step / per layer). ----
    if causal:
        row = jnp.arange(S)[:, None]
        col = jnp.arange(S)[None, :]
        tgt_bias = jnp.where(col <= row, 0.0, -1e30).astype(jnp.float32)
    else:
        tgt_bias = jnp.zeros((S, S), jnp.float32)
    tgt_bias_packed = jnp.tile(tgt_bias, (1, nhead))                    # (S, H*S)

    has_mem_mask = memory_key_padding_mask is not None
    if has_mem_mask:  # True = padded key -> -inf score
        mb = jnp.where(memory_key_padding_mask, -1e30, 0.0).astype(jnp.float32)
    else:
        mb = jnp.zeros((B, M), jnp.float32)    # never read in the kernel (add is skipped)
    mem_bias_packed = jnp.tile(mb, (1, nhead))[:, None, :]              # (B, 1, H*M)

    def head_pack_mask(Sk):    # (H*Sk, E): packed row h*Sk+j keeps only head-h columns
        r = jnp.arange(nhead * Sk)[:, None] // Sk
        c = jnp.arange(E)[None, :] // hd
        return (r == c).astype(jnp.float32)

    def seg_ones(Sk):          # (H*Sk, H*Sk): block-diag ones -> per-head softmax denominators
        r = jnp.arange(nhead * Sk)[:, None] // Sk
        c = jnp.arange(nhead * Sk)[None, :] // Sk
        return (r == c).astype(jnp.float32)

    pack_s, seg_s = head_pack_mask(S), seg_ones(S)
    pack_m, seg_m = head_pack_mask(M), seg_ones(M)

    p = params
    weights = [p['wl'], p['bl'],
               p['sa_wq'], p['sa_bq'], p['sa_wk'], p['sa_bk'],
               p['sa_wv'], p['sa_bv'], p['sa_wo'], p['sa_bo'],
               p['ca_wq'], p['ca_bq'], p['ca_wk'], p['ca_bk'],
               p['ca_wv'], p['ca_bv'], p['ca_wo'], p['ca_bo'],
               p['w1'], p['b1'], p['w2'], p['b2'],
               p['g1'], p['be1'], p['g2'], p['be2'], p['g3'], p['be3'],
               p['wvoc'], p['bvoc']]

    in_specs = ([pl.BlockSpec((Bb, S, E), lambda b: (b, 0, 0)),
                 pl.BlockSpec((Bb, M, Lz), lambda b: (b, 0, 0)),
                 _rep_spec(tgt_bias_packed),
                 pl.BlockSpec((Bb, 1, nhead * M), lambda b: (b, 0, 0)),
                 _rep_spec(pack_s), _rep_spec(seg_s),
                 _rep_spec(pack_m), _rep_spec(seg_m)]
                + [_rep_spec(w) for w in weights])

    return pl.pallas_call(
        functools.partial(decoder_kernel, nhead=nhead, num_layers=num_layers,
                          causal=causal, has_mem_mask=has_mem_mask),
        out_shape=jax.ShapeDtypeStruct((B, S, V), src.dtype),
        grid=(n_steps,),
        in_specs=in_specs,
        out_specs=pl.BlockSpec((Bb, S, V), lambda b: (b, 0, 0)),
        compiler_params=pltpu.CompilerParams(
            dimension_semantics=("parallel",),
            vmem_limit_bytes=32 * 1024 * 1024),
    )(src, z, tgt_bias_packed, mem_bias_packed, pack_s, seg_s, pack_m, seg_m, *weights)


# ----------------------------- pure-JAX reference (validation) -----------------------------

def _ref_mha(xq, xkv, wq, bq, wk, bk, wv, bv, wo, bo, bias, nhead):
    B, Sq, E = xq.shape
    Sk = xkv.shape[1]
    hd = E // nhead
    q = (xq @ wq + bq).reshape(B, Sq, nhead, hd).transpose(0, 2, 1, 3)
    k = (xkv @ wk + bk).reshape(B, Sk, nhead, hd).transpose(0, 2, 1, 3)
    v = (xkv @ wv + bv).reshape(B, Sk, nhead, hd).transpose(0, 2, 1, 3)
    s = jnp.einsum('bhqd,bhkd->bhqk', q, k) / math.sqrt(hd) + bias
    a = jax.nn.softmax(s, axis=-1)
    o = jnp.einsum('bhqk,bhkd->bhqd', a, v).transpose(0, 2, 1, 3).reshape(B, Sq, E)
    return o @ wo + bo


def reference_forward(z, dec_input_ids, params, nhead,
                      memory_key_padding_mask=None, causal=True):
    B, S = dec_input_ids.shape
    M = z.shape[1]
    E = params['embedding'].shape[1]
    emb = jnp.take(params['embedding'], dec_input_ids, axis=0)
    x = emb + positional_encoding(S, E)[None]
    mem = z @ params['wl'] + params['bl']
    if causal:
        row = jnp.arange(S)[:, None]
        col = jnp.arange(S)[None, :]
        tgt_bias = jnp.where(col <= row, 0.0, -1e30).astype(jnp.float32)
    else:
        tgt_bias = jnp.zeros((S, S), jnp.float32)
    if memory_key_padding_mask is None:
        mem_bias = jnp.zeros((B, 1, 1, M), jnp.float32)
    else:
        mem_bias = jnp.where(memory_key_padding_mask, -1e30, 0.0
                             ).astype(jnp.float32)[:, None, None, :]
    L = params['sa_wq'].shape[0]
    for li in range(L):
        sa = _ref_mha(x, x,
                      params['sa_wq'][li], params['sa_bq'][li],
                      params['sa_wk'][li], params['sa_bk'][li],
                      params['sa_wv'][li], params['sa_bv'][li],
                      params['sa_wo'][li], params['sa_bo'][li], tgt_bias, nhead)
        x = _layernorm(x + sa, params['g1'][li], params['be1'][li])
        ca = _ref_mha(x, mem,
                      params['ca_wq'][li], params['ca_bq'][li],
                      params['ca_wk'][li], params['ca_bk'][li],
                      params['ca_wv'][li], params['ca_bv'][li],
                      params['ca_wo'][li], params['ca_bo'][li], mem_bias, nhead)
        x = _layernorm(x + ca, params['g2'][li], params['be2'][li])
        h1 = jax.nn.relu(x @ params['w1'][li] + params['b1'][li])
        x = _layernorm(x + h1 @ params['w2'][li] + params['b2'][li],
                       params['g3'][li], params['be3'][li])
    return x @ params['wvoc'] + params['bvoc']


# ----------------------------- deterministic parameter init -----------------------------

def _xavier(key, shape):
    fan_in, fan_out = shape[-2], shape[-1]
    limit = math.sqrt(6.0 / (fan_in + fan_out))
    return jax.random.uniform(key, shape, jnp.float32, -limit, limit)


def init_params(key, vocab_size, E, H, Lz, num_layers, nhead):
    ks = jax.random.split(key, 4)
    L = num_layers
    p = {}
    # nn.Embedding: uniform(-0.001, 0.001) per _init_weights
    p['embedding'] = jax.random.uniform(ks[0], (vocab_size, E), jnp.float32, -0.001, 0.001)
    # latent_to_embedding (nn.Linear -> xavier weight, bias 0.01)
    p['wl'] = _xavier(ks[1], (Lz, E))
    p['bl'] = jnp.full((1, E), 0.01, jnp.float32)

    lk = jax.random.split(ks[2], 10)
    # attention in-proj: xavier weight, zero bias; out_proj (nn.Linear): bias 0.01
    p['sa_wq'] = _xavier(lk[0], (L, E, E)); p['sa_bq'] = jnp.zeros((L, 1, E), jnp.float32)
    p['sa_wk'] = _xavier(lk[1], (L, E, E)); p['sa_bk'] = jnp.zeros((L, 1, E), jnp.float32)
    p['sa_wv'] = _xavier(lk[2], (L, E, E)); p['sa_bv'] = jnp.zeros((L, 1, E), jnp.float32)
    p['sa_wo'] = _xavier(lk[3], (L, E, E)); p['sa_bo'] = jnp.full((L, 1, E), 0.01, jnp.float32)
    p['ca_wq'] = _xavier(lk[4], (L, E, E)); p['ca_bq'] = jnp.zeros((L, 1, E), jnp.float32)
    p['ca_wk'] = _xavier(lk[5], (L, E, E)); p['ca_bk'] = jnp.zeros((L, 1, E), jnp.float32)
    p['ca_wv'] = _xavier(lk[6], (L, E, E)); p['ca_bv'] = jnp.zeros((L, 1, E), jnp.float32)
    p['ca_wo'] = _xavier(lk[7], (L, E, E)); p['ca_bo'] = jnp.full((L, 1, E), 0.01, jnp.float32)
    # feed-forward
    p['w1'] = _xavier(lk[8], (L, E, H)); p['b1'] = jnp.full((L, 1, H), 0.01, jnp.float32)
    p['w2'] = _xavier(lk[9], (L, H, E)); p['b2'] = jnp.full((L, 1, E), 0.01, jnp.float32)
    # layer norms
    for n in ('1', '2', '3'):
        p['g' + n] = jnp.ones((L, 1, E), jnp.float32)
        p['be' + n] = jnp.zeros((L, 1, E), jnp.float32)
    # outputs2vocab
    p['wvoc'] = _xavier(ks[3], (E, vocab_size))
    p['bvoc'] = jnp.full((1, vocab_size), 0.01, jnp.float32)
    return p


# ----------------------------- main -----------------------------

if __name__ == "__main__":
    # small shapes consistent with the module; vocab chosen lane-dense (multiple of 128)
    vocab_size, E, H, Lz = 128, 32, 64, 16
    num_layers, nhead = 2, 4
    B, S, M = 4, 8, 8          # B=4 -> 2 batch elements (16 rows) per grid step, 2 grid steps

    key = jax.random.PRNGKey(0)
    pkey, ikey, zkey = jax.random.split(key, 3)
    params = init_params(pkey, vocab_size, E, H, Lz, num_layers, nhead)
    dec_input_ids = jax.random.randint(ikey, (B, S), 0, vocab_size, dtype=jnp.int32)
    z = jax.random.normal(zkey, (B, M, Lz), jnp.float32)

    logits = transformer_decoder_forward(z, dec_input_ids, params, nhead,
                                         memory_key_padding_mask=None, causal=True)
    logits = jax.block_until_ready(logits)
    assert logits.shape == (B, S, vocab_size)

    # validate against a pure-JAX reference at tight tolerance
    with jax.default_matmul_precision("highest"):
        ref = reference_forward(z, dec_input_ids, params, nhead,
                                memory_key_padding_mask=None, causal=True)
        ref = jax.block_until_ready(ref)
    max_err = float(jnp.max(jnp.abs(logits - ref)))
    assert jnp.allclose(logits, ref, atol=5e-4, rtol=5e-4), max_err

    print("KERNEL_OK")
</pallas_src>

<mosaic_0001>
module attributes {stable_mosaic.version = 11 : i64} {
  func.func @decoder_kernel(%arg0: i32, %arg1: memref<2x8x32xf32, #tpu.memory_space<vmem>>, %arg2: memref<2x8x16xf32, #tpu.memory_space<vmem>>, %arg3: memref<8x32xf32, #tpu.memory_space<vmem>>, %arg4: memref<2x1x32xf32, #tpu.memory_space<vmem>>, %arg5: memref<32x32xf32, #tpu.memory_space<vmem>>, %arg6: memref<32x32xf32, #tpu.memory_space<vmem>>, %arg7: memref<32x32xf32, #tpu.memory_space<vmem>>, %arg8: memref<32x32xf32, #tpu.memory_space<vmem>>, %arg9: memref<16x32xf32, #tpu.memory_space<vmem>>, %arg10: memref<1x32xf32, #tpu.memory_space<vmem>>, %arg11: memref<2x32x32xf32, #tpu.memory_space<vmem>>, %arg12: memref<2x1x32xf32, #tpu.memory_space<vmem>>, %arg13: memref<2x32x32xf32, #tpu.memory_space<vmem>>, %arg14: memref<2x1x32xf32, #tpu.memory_space<vmem>>, %arg15: memref<2x32x32xf32, #tpu.memory_space<vmem>>, %arg16: memref<2x1x32xf32, #tpu.memory_space<vmem>>, %arg17: memref<2x32x32xf32, #tpu.memory_space<vmem>>, %arg18: memref<2x1x32xf32, #tpu.memory_space<vmem>>, %arg19: memref<2x32x32xf32, #tpu.memory_space<vmem>>, %arg20: memref<2x1x32xf32, #tpu.memory_space<vmem>>, %arg21: memref<2x32x32xf32, #tpu.memory_space<vmem>>, %arg22: memref<2x1x32xf32, #tpu.memory_space<vmem>>, %arg23: memref<2x32x32xf32, #tpu.memory_space<vmem>>, %arg24: memref<2x1x32xf32, #tpu.memory_space<vmem>>, %arg25: memref<2x32x32xf32, #tpu.memory_space<vmem>>, %arg26: memref<2x1x32xf32, #tpu.memory_space<vmem>>, %arg27: memref<2x32x64xf32, #tpu.memory_space<vmem>>, %arg28: memref<2x1x64xf32, #tpu.memory_space<vmem>>, %arg29: memref<2x64x32xf32, #tpu.memory_space<vmem>>, %arg30: memref<2x1x32xf32, #tpu.memory_space<vmem>>, %arg31: memref<2x1x32xf32, #tpu.memory_space<vmem>>, %arg32: memref<2x1x32xf32, #tpu.memory_space<vmem>>, %arg33: memref<2x1x32xf32, #tpu.memory_space<vmem>>, %arg34: memref<2x1x32xf32, #tpu.memory_space<vmem>>, %arg35: memref<2x1x32xf32, #tpu.memory_space<vmem>>, %arg36: memref<2x1x32xf32, #tpu.memory_space<vmem>>, %arg37: memref<32x128xf32, #tpu.memory_space<vmem>>, %arg38: memref<1x128xf32, #tpu.memory_space<vmem>>, %arg39: memref<2x8x128xf32, #tpu.memory_space<vmem>>) attributes {dimension_semantics = [#tpu.dimension_semantics<parallel>], iteration_bounds = array<i64: 2>, scalar_prefetch = 0 : i64, scratch_operands = 0 : i64, tpu.core_type = #tpu.core_type<tc>, window_params = [{transform_indices = @transform_0, window_bounds = array<i64: 2, 8, 32>}, {transform_indices = @transform_1, window_bounds = array<i64: 2, 8, 16>}, {pipeline_mode = #tpu.pipeline_mode<synchronous>, transform_indices = @transform_2, window_bounds = array<i64: 8, 32>}, {transform_indices = @transform_3, window_bounds = array<i64: 2, 1, 32>}, {pipeline_mode = #tpu.pipeline_mode<synchronous>, transform_indices = @transform_4, window_bounds = array<i64: 32, 32>}, {pipeline_mode = #tpu.pipeline_mode<synchronous>, transform_indices = @transform_5, window_bounds = array<i64: 32, 32>}, {pipeline_mode = #tpu.pipeline_mode<synchronous>, transform_indices = @transform_6, window_bounds = array<i64: 32, 32>}, {pipeline_mode = #tpu.pipeline_mode<synchronous>, transform_indices = @transform_7, window_bounds = array<i64: 32, 32>}, {pipeline_mode = #tpu.pipeline_mode<synchronous>, transform_indices = @transform_8, window_bounds = array<i64: 16, 32>}, {pipeline_mode = #tpu.pipeline_mode<synchronous>, transform_indices = @transform_9, window_bounds = array<i64: 1, 32>}, {pipeline_mode = #tpu.pipeline_mode<synchronous>, transform_indices = @transform_10, window_bounds = array<i64: 2, 32, 32>}, {pipeline_mode = #tpu.pipeline_mode<synchronous>, transform_indices = @transform_11, window_bounds = array<i64: 2, 1, 32>}, {pipeline_mode = #tpu.pipeline_mode<synchronous>, transform_indices = @transform_12, window_bounds = array<i64: 2, 32, 32>}, {pipeline_mode = #tpu.pipeline_mode<synchronous>, transform_indices = @transform_13, window_bounds = array<i64: 2, 1, 32>}, {pipeline_mode = #tpu.pipeline_mode<synchronous>, transform_indices = @transform_14, window_bounds = array<i64: 2, 32, 32>}, {pipeline_mode = #tpu.pipeline_mode<synchronous>, transform_indices = @transform_15, window_bounds = array<i64: 2, 1, 32>}, {pipeline_mode = #tpu.pipeline_mode<synchronous>, transform_indices = @transform_16, window_bounds = array<i64: 2, 32, 32>}, {pipeline_mode = #tpu.pipeline_mode<synchronous>, transform_indices = @transform_17, window_bounds = array<i64: 2, 1, 32>}, {pipeline_mode = #tpu.pipeline_mode<synchronous>, transform_indices = @transform_18, window_bounds = array<i64: 2, 32, 32>}, {pipeline_mode = #tpu.pipeline_mode<synchronous>, transform_indices = @transform_19, window_bounds = array<i64: 2, 1, 32>}, {pipeline_mode = #tpu.pipeline_mode<synchronous>, transform_indices = @transform_20, window_bounds = array<i64: 2, 32, 32>}, {pipeline_mode = #tpu.pipeline_mode<synchronous>, transform_indices = @transform_21, window_bounds = array<i64: 2, 1, 32>}, {pipeline_mode = #tpu.pipeline_mode<synchronous>, transform_indices = @transform_22, window_bounds = array<i64: 2, 32, 32>}, {pipeline_mode = #tpu.pipeline_mode<synchronous>, transform_indices = @transform_23, window_bounds = array<i64: 2, 1, 32>}, {pipeline_mode = #tpu.pipeline_mode<synchronous>, transform_indices = @transform_24, window_bounds = array<i64: 2, 32, 32>}, {pipeline_mode = #tpu.pipeline_mode<synchronous>, transform_indices = @transform_25, window_bounds = array<i64: 2, 1, 32>}, {pipeline_mode = #tpu.pipeline_mode<synchronous>, transform_indices = @transform_26, window_bounds = array<i64: 2, 32, 64>}, {pipeline_mode = #tpu.pipeline_mode<synchronous>, transform_indices = @transform_27, window_bounds = array<i64: 2, 1, 64>}, {pipeline_mode = #tpu.pipeline_mode<synchronous>, transform_indices = @transform_28, window_bounds = array<i64: 2, 64, 32>}, {pipeline_mode = #tpu.pipeline_mode<synchronous>, transform_indices = @transform_29, window_bounds = array<i64: 2, 1, 32>}, {pipeline_mode = #tpu.pipeline_mode<synchronous>, transform_indices = @transform_30, window_bounds = array<i64: 2, 1, 32>}, {pipeline_mode = #tpu.pipeline_mode<synchronous>, transform_indices = @transform_31, window_bounds = array<i64: 2, 1, 32>}, {pipeline_mode = #tpu.pipeline_mode<synchronous>, transform_indices = @transform_32, window_bounds = array<i64: 2, 1, 32>}, {pipeline_mode = #tpu.pipeline_mode<synchronous>, transform_indices = @transform_33, window_bounds = array<i64: 2, 1, 32>}, {pipeline_mode = #tpu.pipeline_mode<synchronous>, transform_indices = @transform_34, window_bounds = array<i64: 2, 1, 32>}, {pipeline_mode = #tpu.pipeline_mode<synchronous>, transform_indices = @transform_35, window_bounds = array<i64: 2, 1, 32>}, {pipeline_mode = #tpu.pipeline_mode<synchronous>, transform_indices = @transform_36, window_bounds = array<i64: 32, 128>}, {pipeline_mode = #tpu.pipeline_mode<synchronous>, transform_indices = @transform_37, window_bounds = array<i64: 1, 128>}, {transform_indices = @transform_38, window_bounds = array<i64: 2, 8, 128>}]} {
    %c0 = arith.constant 0 : index
    %c0_0 = arith.constant 0 : index
    %c0_1 = arith.constant 0 : index
    %0 = vector.load %arg1[%c0, %c0_0, %c0_1] : memref<2x8x32xf32, #tpu.memory_space<vmem>>, vector<2x8x32xf32>
    %1 = vector.shape_cast %0 : vector<2x8x32xf32> to vector<16x32xf32>
    %c0_2 = arith.constant 0 : index
    %c0_3 = arith.constant 0 : index
    %c0_4 = arith.constant 0 : index
    %2 = vector.load %arg2[%c0_2, %c0_3, %c0_4] : memref<2x8x16xf32, #tpu.memory_space<vmem>>, vector<2x8x16xf32>
    %3 = vector.shape_cast %2 : vector<2x8x16xf32> to vector<16x16xf32>
    %c0_5 = arith.constant 0 : index
    %c0_6 = arith.constant 0 : index
    %4 = vector.load %arg9[%c0_5, %c0_6] : memref<16x32xf32, #tpu.memory_space<vmem>>, vector<16x32xf32>
    %cst = arith.constant dense<0.000000e+00> : vector<16x32xf32>
    %5 = tpu.matmul %3, %4, %cst {dimension_numbers = #tpu.dot_dimension_numbers<[1], [0], [0], [1], [0, 0, 1, 1], [], []>} : vector<16x16xf32>, vector<16x32xf32>, vector<16x32xf32> -> vector<16x32xf32>
    %c0_7 = arith.constant 0 : index
    %c0_8 = arith.constant 0 : index
    %6 = vector.load %arg10[%c0_7, %c0_8] : memref<1x32xf32, #tpu.memory_space<vmem>>, vector<1x32xf32>
    %7 = vector.broadcast %6 : vector<1x32xf32> to vector<16x32xf32>
    %8 = arith.addf %5, %7 : vector<16x32xf32>
    %c0_9 = arith.constant 0 : index
    %c0_10 = arith.constant 0 : index
    %9 = vector.load %arg3[%c0_9, %c0_10] : memref<8x32xf32, #tpu.memory_space<vmem>>, vector<8x32xf32>
    %c0_11 = arith.constant 0 : index
    %c0_12 = arith.constant 0 : index
    %10 = vector.load %arg5[%c0_11, %c0_12] : memref<32x32xf32, #tpu.memory_space<vmem>>, vector<32x32xf32>
    %c0_13 = arith.constant 0 : index
    %c0_14 = arith.constant 0 : index
    %11 = vector.load %arg6[%c0_13, %c0_14] : memref<32x32xf32, #tpu.memory_space<vmem>>, vector<32x32xf32>
    %c0_15 = arith.constant 0 : index
    %c0_16 = arith.constant 0 : index
    %12 = vector.load %arg7[%c0_15, %c0_16] : memref<32x32xf32, #tpu.memory_space<vmem>>, vector<32x32xf32>
    %c0_17 = arith.constant 0 : index
    %c0_18 = arith.constant 0 : index
    %13 = vector.load %arg8[%c0_17, %c0_18] : memref<32x32xf32, #tpu.memory_space<vmem>>, vector<32x32xf32>
    %c0_19 = arith.constant 0 : index
    %c0_20 = arith.constant 0 : index
    %c0_21 = arith.constant 0 : index
    %14 = vector.load %arg11[%c0_19, %c0_20, %c0_21] : memref<2x32x32xf32, #tpu.memory_space<vmem>>, vector<1x32x32xf32>
    %15 = vector.shape_cast %14 : vector<1x32x32xf32> to vector<32x32xf32>
    %cst_22 = arith.constant dense<0.000000e+00> : vector<16x32xf32>
    %16 = tpu.matmul %1, %15, %cst_22 {dimension_numbers = #tpu.dot_dimension_numbers<[1], [0], [0], [1], [0, 0, 1, 1], [], []>} : vector<16x32xf32>, vector<32x32xf32>, vector<16x32xf32> -> vector<16x32xf32>
    %c0_23 = arith.constant 0 : index
    %c0_24 = arith.constant 0 : index
    %c0_25 = arith.constant 0 : index
    %17 = vector.load %arg12[%c0_23, %c0_24, %c0_25] : memref<2x1x32xf32, #tpu.memory_space<vmem>>, vector<1x1x32xf32>
    %18 = vector.shape_cast %17 : vector<1x1x32xf32> to vector<1x32xf32>
    %19 = vector.broadcast %18 : vector<1x32xf32> to vector<16x32xf32>
    %20 = arith.addf %16, %19 : vector<16x32xf32>
    %c0_26 = arith.constant 0 : index
    %c0_27 = arith.constant 0 : index
    %c0_28 = arith.constant 0 : index
    %21 = vector.load %arg13[%c0_26, %c0_27, %c0_28] : memref<2x32x32xf32, #tpu.memory_space<vmem>>, vector<1x32x32xf32>
    %22 = vector.shape_cast %21 : vector<1x32x32xf32> to vector<32x32xf32>
    %cst_29 = arith.constant dense<0.000000e+00> : vector<16x32xf32>
    %23 = tpu.matmul %1, %22, %cst_29 {dimension_numbers = #tpu.dot_dimension_numbers<[1], [0], [0], [1], [0, 0, 1, 1], [], []>} : vector<16x32xf32>, vector<32x32xf32>, vector<16x32xf32> -> vector<16x32xf32>
    %c0_30 = arith.constant 0 : index
    %c0_31 = arith.constant 0 : index
    %c0_32 = arith.constant 0 : index
    %24 = vector.load %arg14[%c0_30, %c0_31, %c0_32] : memref<2x1x32xf32, #tpu.memory_space<vmem>>, vector<1x1x32xf32>
    %25 = vector.shape_cast %24 : vector<1x1x32xf32> to vector<1x32xf32>
    %26 = vector.broadcast %25 : vector<1x32xf32> to vector<16x32xf32>
    %27 = arith.addf %23, %26 : vector<16x32xf32>
    %c0_33 = arith.constant 0 : index
    %c0_34 = arith.constant 0 : index
    %c0_35 = arith.constant 0 : index
    %28 = vector.load %arg15[%c0_33, %c0_34, %c0_35] : memref<2x32x32xf32, #tpu.memory_space<vmem>>, vector<1x32x32xf32>
    %29 = vector.shape_cast %28 : vector<1x32x32xf32> to vector<32x32xf32>
    %cst_36 = arith.constant dense<0.000000e+00> : vector<16x32xf32>
    %30 = tpu.matmul %1, %29, %cst_36 {dimension_numbers = #tpu.dot_dimension_numbers<[1], [0], [0], [1], [0, 0, 1, 1], [], []>} : vector<16x32xf32>, vector<32x32xf32>, vector<16x32xf32> -> vector<16x32xf32>
    %c0_37 = arith.constant 0 : index
    %c0_38 = arith.constant 0 : index
    %c0_39 = arith.constant 0 : index
    %31 = vector.load %arg16[%c0_37, %c0_38, %c0_39] : memref<2x1x32xf32, #tpu.memory_space<vmem>>, vector<1x1x32xf32>
    %32 = vector.shape_cast %31 : vector<1x1x32xf32> to vector<1x32xf32>
    %33 = vector.broadcast %32 : vector<1x32xf32> to vector<16x32xf32>
    %34 = arith.addf %30, %33 : vector<16x32xf32>
    %35 = vector.extract_strided_slice %20 {offsets = [0, 0], sizes = [8, 32], strides = [1, 1]} : vector<16x32xf32> to vector<8x32xf32>
    %36 = vector.extract_strided_slice %27 {offsets = [0, 0], sizes = [8, 32], strides = [1, 1]} : vector<16x32xf32> to vector<8x32xf32>
    %37 = vector.extract_strided_slice %34 {offsets = [0, 0], sizes = [8, 32], strides = [1, 1]} : vector<16x32xf32> to vector<8x32xf32>
    %38 = tpu.concatenate %36, %36, %36, %36 in 0 : vector<8x32xf32>, vector<8x32xf32>, vector<8x32xf32>, vector<8x32xf32> -> vector<32x32xf32>
    %39 = arith.mulf %38, %10 : vector<32x32xf32>
    %40 = tpu.concatenate %37, %37, %37, %37 in 0 : vector<8x32xf32>, vector<8x32xf32>, vector<8x32xf32>, vector<8x32xf32> -> vector<32x32xf32>
    %41 = arith.mulf %40, %10 : vector<32x32xf32>
    "tpu.trace_start"() <{level = 10 : i32, message = "qd,kd->qk"}> : () -> ()
    %cst_40 = arith.constant dense<0.000000e+00> : vector<8x32xf32>
    %42 = tpu.matmul %35, %39, %cst_40 {dimension_numbers = #tpu.dot_dimension_numbers<[1], [1], [0], [0], [0, 0, 1, 0], [], []>} : vector<8x32xf32>, vector<32x32xf32>, vector<8x32xf32> -> vector<8x32xf32>
    "tpu.trace_stop"() : () -> ()
    %cst_41 = arith.constant 0.353553385 : f32
    %43 = vector.broadcast %cst_41 : f32 to vector<8x32xf32>
    %44 = arith.mulf %42, %43 : vector<8x32xf32>
    %45 = arith.addf %44, %9 : vector<8x32xf32>
    %cst_42 = arith.constant dense<0xFF800000> : vector<8xf32>
    %46 = vector.multi_reduction <maximumf>, %45, %cst_42 [1] : vector<8x32xf32> to vector<8xf32>
    %47 = vector.shape_cast %46 : vector<8xf32> to vector<8x1xf32>
    %48 = vector.broadcast %47 : vector<8x1xf32> to vector<8x32xf32>
    %49 = arith.subf %45, %48 : vector<8x32xf32>
    %50 = math.exp %49 : vector<8x32xf32>
    %cst_43 = arith.constant dense<0.000000e+00> : vector<8x32xf32>
    %51 = tpu.matmul %50, %11, %cst_43 {dimension_numbers = #tpu.dot_dimension_numbers<[1], [0], [0], [1], [0, 0, 1, 1], [], []>} : vector<8x32xf32>, vector<32x32xf32>, vector<8x32xf32> -> vector<8x32xf32>
    %52 = tpu.reciprocal %51 {approx = true} : vector<8x32xf32> -> vector<8x32xf32>
    %53 = arith.mulf %51, %52 : vector<8x32xf32>
    %cst_44 = arith.constant 2.000000e+00 : f32
    %54 = vector.broadcast %cst_44 : f32 to vector<8x32xf32>
    %55 = arith.subf %54, %53 : vector<8x32xf32>
    %56 = arith.mulf %52, %55 : vector<8x32xf32>
    %57 = arith.mulf %50, %56 : vector<8x32xf32>
    %cst_45 = arith.constant dense<0.000000e+00> : vector<8x32xf32>
    %58 = tpu.matmul %57, %41, %cst_45 {dimension_numbers = #tpu.dot_dimension_numbers<[1], [0], [0], [1], [0, 0, 1, 1], [], []>} : vector<8x32xf32>, vector<32x32xf32>, vector<8x32xf32> -> vector<8x32xf32>
    %59 = vector.extract_strided_slice %20 {offsets = [8, 0], sizes = [8, 32], strides = [1, 1]} : vector<16x32xf32> to vector<8x32xf32>
    %60 = vector.extract_strided_slice %27 {offsets = [8, 0], sizes = [8, 32], strides = [1, 1]} : vector<16x32xf32> to vector<8x32xf32>
    %61 = vector.extract_strided_slice %34 {offsets = [8, 0], sizes = [8, 32], strides = [1, 1]} : vector<16x32xf32> to vector<8x32xf32>
    %62 = tpu.concatenate %60, %60, %60, %60 in 0 : vector<8x32xf32>, vector<8x32xf32>, vector<8x32xf32>, vector<8x32xf32> -> vector<32x32xf32>
    %63 = arith.mulf %62, %10 : vector<32x32xf32>
    %64 = tpu.concatenate %61, %61, %61, %61 in 0 : vector<8x32xf32>, vector<8x32xf32>, vector<8x32xf32>, vector<8x32xf32> -> vector<32x32xf32>
    %65 = arith.mulf %64, %10 : vector<32x32xf32>
    "tpu.trace_start"() <{level = 10 : i32, message = "qd,kd->qk"}> : () -> ()
    %cst_46 = arith.constant dense<0.000000e+00> : vector<8x32xf32>
    %66 = tpu.matmul %59, %63, %cst_46 {dimension_numbers = #tpu.dot_dimension_numbers<[1], [1], [0], [0], [0, 0, 1, 0], [], []>} : vector<8x32xf32>, vector<32x32xf32>, vector<8x32xf32> -> vector<8x32xf32>
    "tpu.trace_stop"() : () -> ()
    %cst_47 = arith.constant 0.353553385 : f32
    %67 = vector.broadcast %cst_47 : f32 to vector<8x32xf32>
    %68 = arith.mulf %66, %67 : vector<8x32xf32>
    %69 = arith.addf %68, %9 : vector<8x32xf32>
    %cst_48 = arith.constant dense<0xFF800000> : vector<8xf32>
    %70 = vector.multi_reduction <maximumf>, %69, %cst_48 [1] : vector<8x32xf32> to vector<8xf32>
    %71 = vector.shape_cast %70 : vector<8xf32> to vector<8x1xf32>
    %72 = vector.broadcast %71 : vector<8x1xf32> to vector<8x32xf32>
    %73 = arith.subf %69, %72 : vector<8x32xf32>
    %74 = math.exp %73 : vector<8x32xf32>
    %cst_49 = arith.constant dense<0.000000e+00> : vector<8x32xf32>
    %75 = tpu.matmul %74, %11, %cst_49 {dimension_numbers = #tpu.dot_dimension_numbers<[1], [0], [0], [1], [0, 0, 1, 1], [], []>} : vector<8x32xf32>, vector<32x32xf32>, vector<8x32xf32> -> vector<8x32xf32>
    %76 = tpu.reciprocal %75 {approx = true} : vector<8x32xf32> -> vector<8x32xf32>
    %77 = arith.mulf %75, %76 : vector<8x32xf32>
    %cst_50 = arith.constant 2.000000e+00 : f32
    %78 = vector.broadcast %cst_50 : f32 to vector<8x32xf32>
    %79 = arith.subf %78, %77 : vector<8x32xf32>
    %80 = arith.mulf %76, %79 : vector<8x32xf32>
    %81 = arith.mulf %74, %80 : vector<8x32xf32>
    %cst_51 = arith.constant dense<0.000000e+00> : vector<8x32xf32>
    %82 = tpu.matmul %81, %65, %cst_51 {dimension_numbers = #tpu.dot_dimension_numbers<[1], [0], [0], [1], [0, 0, 1, 1], [], []>} : vector<8x32xf32>, vector<32x32xf32>, vector<8x32xf32> -> vector<8x32xf32>
    %83 = tpu.concatenate %58, %82 in 0 : vector<8x32xf32>, vector<8x32xf32> -> vector<16x32xf32>
    %c0_52 = arith.constant 0 : index
    %c0_53 = arith.constant 0 : index
    %c0_54 = arith.constant 0 : index
    %84 = vector.load %arg17[%c0_52, %c0_53, %c0_54] : memref<2x32x32xf32, #tpu.memory_space<vmem>>, vector<1x32x32xf32>
    %85 = vector.shape_cast %84 : vector<1x32x32xf32> to vector<32x32xf32>
    %cst_55 = arith.constant dense<0.000000e+00> : vector<16x32xf32>
    %86 = tpu.matmul %83, %85, %cst_55 {dimension_numbers = #tpu.dot_dimension_numbers<[1], [0], [0], [1], [0, 0, 1, 1], [], []>} : vector<16x32xf32>, vector<32x32xf32>, vector<16x32xf32> -> vector<16x32xf32>
    %87 = arith.addf %1, %86 : vector<16x32xf32>
    %c0_56 = arith.constant 0 : index
    %c0_57 = arith.constant 0 : index
    %c0_58 = arith.constant 0 : index
    %88 = vector.load %arg18[%c0_56, %c0_57, %c0_58] : memref<2x1x32xf32, #tpu.memory_space<vmem>>, vector<1x1x32xf32>
    %89 = vector.shape_cast %88 : vector<1x1x32xf32> to vector<1x32xf32>
    %90 = vector.broadcast %89 : vector<1x32xf32> to vector<16x32xf32>
    %91 = arith.addf %87, %90 : vector<16x32xf32>
    %c0_59 = arith.constant 0 : index
    %c0_60 = arith.constant 0 : index
    %c0_61 = arith.constant 0 : index
    %92 = vector.load %arg31[%c0_59, %c0_60, %c0_61] : memref<2x1x32xf32, #tpu.memory_space<vmem>>, vector<1x1x32xf32>
    %93 = vector.shape_cast %92 : vector<1x1x32xf32> to vector<1x32xf32>
    %c0_62 = arith.constant 0 : index
    %c0_63 = arith.constant 0 : index
    %c0_64 = arith.constant 0 : index
    %94 = vector.load %arg32[%c0_62, %c0_63, %c0_64] : memref<2x1x32xf32, #tpu.memory_space<vmem>>, vector<1x1x32xf32>
    %95 = vector.shape_cast %94 : vector<1x1x32xf32> to vector<1x32xf32>
    %cst_65 = arith.constant dense<0.000000e+00> : vector<16xf32>
    %96 = vector.multi_reduction <add>, %91, %cst_65 [1] : vector<16x32xf32> to vector<16xf32>
    %97 = vector.shape_cast %96 : vector<16xf32> to vector<16x1xf32>
    %cst_66 = arith.constant 3.200000e+01 : f32
    %98 = vector.broadcast %cst_66 : f32 to vector<16x1xf32>
    %99 = arith.divf %97, %98 : vector<16x1xf32>
    %100 = vector.broadcast %99 : vector<16x1xf32> to vector<16x32xf32>
    %101 = arith.subf %91, %100 : vector<16x32xf32>
    %102 = arith.mulf %101, %101 : vector<16x32xf32>
    %cst_67 = arith.constant dense<0.000000e+00> : vector<16xf32>
    %103 = vector.multi_reduction <add>, %102, %cst_67 [1] : vector<16x32xf32> to vector<16xf32>
    %104 = vector.shape_cast %103 : vector<16xf32> to vector<16x1xf32>
    %cst_68 = arith.constant 3.200000e+01 : f32
    %105 = vector.broadcast %cst_68 : f32 to vector<16x1xf32>
    %106 = arith.divf %104, %105 : vector<16x1xf32>
    %107 = vector.broadcast %99 : vector<16x1xf32> to vector<16x32xf32>
    %108 = arith.subf %91, %107 : vector<16x32xf32>
    %cst_69 = arith.constant 9.99999974E-6 : f32
    %109 = vector.broadcast %cst_69 : f32 to vector<16x1xf32>
    %110 = arith.addf %106, %109 : vector<16x1xf32>
    %111 = math.rsqrt %110 : vector<16x1xf32>
    %112 = vector.broadcast %111 : vector<16x1xf32> to vector<16x32xf32>
    %113 = arith.mulf %108, %112 : vector<16x32xf32>
    %114 = vector.broadcast %93 : vector<1x32xf32> to vector<16x32xf32>
    %115 = arith.mulf %113, %114 : vector<16x32xf32>
    %116 = vector.broadcast %95 : vector<1x32xf32> to vector<16x32xf32>
    %117 = arith.addf %115, %116 : vector<16x32xf32>
    %c0_70 = arith.constant 0 : index
    %c0_71 = arith.constant 0 : index
    %c0_72 = arith.constant 0 : index
    %118 = vector.load %arg19[%c0_70, %c0_71, %c0_72] : memref<2x32x32xf32, #tpu.memory_space<vmem>>, vector<1x32x32xf32>
    %119 = vector.shape_cast %118 : vector<1x32x32xf32> to vector<32x32xf32>
    %cst_73 = arith.constant dense<0.000000e+00> : vector<16x32xf32>
    %120 = tpu.matmul %117, %119, %cst_73 {dimension_numbers = #tpu.dot_dimension_numbers<[1], [0], [0], [1], [0, 0, 1, 1], [], []>} : vector<16x32xf32>, vector<32x32xf32>, vector<16x32xf32> -> vector<16x32xf32>
    %c0_74 = arith.constant 0 : index
    %c0_75 = arith.constant 0 : index
    %c0_76 = arith.constant 0 : index
    %121 = vector.load %arg20[%c0_74, %c0_75, %c0_76] : memref<2x1x32xf32, #tpu.memory_space<vmem>>, vector<1x1x32xf32>
    %122 = vector.shape_cast %121 : vector<1x1x32xf32> to vector<1x32xf32>
    %123 = vector.broadcast %122 : vector<1x32xf32> to vector<16x32xf32>
    %124 = arith.addf %120, %123 : vector<16x32xf32>
    %c0_77 = arith.constant 0 : index
    %c0_78 = arith.constant 0 : index
    %c0_79 = arith.constant 0 : index
    %125 = vector.load %arg21[%c0_77, %c0_78, %c0_79] : memref<2x32x32xf32, #tpu.memory_space<vmem>>, vector<1x32x32xf32>
    %126 = vector.shape_cast %125 : vector<1x32x32xf32> to vector<32x32xf32>
    %cst_80 = arith.constant dense<0.000000e+00> : vector<16x32xf32>
    %127 = tpu.matmul %8, %126, %cst_80 {dimension_numbers = #tpu.dot_dimension_numbers<[1], [0], [0], [1], [0, 0, 1, 1], [], []>} : vector<16x32xf32>, vector<32x32xf32>, vector<16x32xf32> -> vector<16x32xf32>
    %c0_81 = arith.constant 0 : index
    %c0_82 = arith.constant 0 : index
    %c0_83 = arith.constant 0 : index
    %128 = vector.load %arg22[%c0_81, %c0_82, %c0_83] : memref<2x1x32xf32, #tpu.memory_space<vmem>>, vector<1x1x32xf32>
    %129 = vector.shape_cast %128 : vector<1x1x32xf32> to vector<1x32xf32>
    %130 = vector.broadcast %129 : vector<1x32xf32> to vector<16x32xf32>
    %131 = arith.addf %127, %130 : vector<16x32xf32>
    %c0_84 = arith.constant 0 : index
    %c0_85 = arith.constant 0 : index
    %c0_86 = arith.constant 0 : index
    %132 = vector.load %arg23[%c0_84, %c0_85, %c0_86] : memref<2x32x32xf32, #tpu.memory_space<vmem>>, vector<1x32x32xf32>
    %133 = vector.shape_cast %132 : vector<1x32x32xf32> to vector<32x32xf32>
    %cst_87 = arith.constant dense<0.000000e+00> : vector<16x32xf32>
    %134 = tpu.matmul %8, %133, %cst_87 {dimension_numbers = #tpu.dot_dimension_numbers<[1], [0], [0], [1], [0, 0, 1, 1], [], []>} : vector<16x32xf32>, vector<32x32xf32>, vector<16x32xf32> -> vector<16x32xf32>
    %c0_88 = arith.constant 0 : index
    %c0_89 = arith.constant 0 : index
    %c0_90 = arith.constant 0 : index
    %135 = vector.load %arg24[%c0_88, %c0_89, %c0_90] : memref<2x1x32xf32, #tpu.memory_space<vmem>>, vector<1x1x32xf32>
    %136 = vector.shape_cast %135 : vector<1x1x32xf32> to vector<1x32xf32>
    %137 = vector.broadcast %136 : vector<1x32xf32> to vector<16x32xf32>
    %138 = arith.addf %134, %137 : vector<16x32xf32>
    %139 = vector.extract_strided_slice %124 {offsets = [0, 0], sizes = [8, 32], strides = [1, 1]} : vector<16x32xf32> to vector<8x32xf32>
    %140 = vector.extract_strided_slice %131 {offsets = [0, 0], sizes = [8, 32], strides = [1, 1]} : vector<16x32xf32> to vector<8x32xf32>
    %141 = vector.extract_strided_slice %138 {offsets = [0, 0], sizes = [8, 32], strides = [1, 1]} : vector<16x32xf32> to vector<8x32xf32>
    %142 = tpu.concatenate %140, %140, %140, %140 in 0 : vector<8x32xf32>, vector<8x32xf32>, vector<8x32xf32>, vector<8x32xf32> -> vector<32x32xf32>
    %143 = arith.mulf %142, %12 : vector<32x32xf32>
    %144 = tpu.concatenate %141, %141, %141, %141 in 0 : vector<8x32xf32>, vector<8x32xf32>, vector<8x32xf32>, vector<8x32xf32> -> vector<32x32xf32>
    %145 = arith.mulf %144, %12 : vector<32x32xf32>
    "tpu.trace_start"() <{level = 10 : i32, message = "qd,kd->qk"}> : () -> ()
    %cst_91 = arith.constant dense<0.000000e+00> : vector<8x32xf32>
    %146 = tpu.matmul %139, %143, %cst_91 {dimension_numbers = #tpu.dot_dimension_numbers<[1], [1], [0], [0], [0, 0, 1, 0], [], []>} : vector<8x32xf32>, vector<32x32xf32>, vector<8x32xf32> -> vector<8x32xf32>
    "tpu.trace_stop"() : () -> ()
    %cst_92 = arith.constant 0.353553385 : f32
    %147 = vector.broadcast %cst_92 : f32 to vector<8x32xf32>
    %148 = arith.mulf %146, %147 : vector<8x32xf32>
    %cst_93 = arith.constant dense<0xFF800000> : vector<8xf32>
    %149 = vector.multi_reduction <maximumf>, %148, %cst_93 [1] : vector<8x32xf32> to vector<8xf32>
    %150 = vector.shape_cast %149 : vector<8xf32> to vector<8x1xf32>
    %151 = vector.broadcast %150 : vector<8x1xf32> to vector<8x32xf32>
    %152 = arith.subf %148, %151 : vector<8x32xf32>
    %153 = math.exp %152 : vector<8x32xf32>
    %cst_94 = arith.constant dense<0.000000e+00> : vector<8x32xf32>
    %154 = tpu.matmul %153, %13, %cst_94 {dimension_numbers = #tpu.dot_dimension_numbers<[1], [0], [0], [1], [0, 0, 1, 1], [], []>} : vector<8x32xf32>, vector<32x32xf32>, vector<8x32xf32> -> vector<8x32xf32>
    %155 = tpu.reciprocal %154 {approx = true} : vector<8x32xf32> -> vector<8x32xf32>
    %156 = arith.mulf %154, %155 : vector<8x32xf32>
    %cst_95 = arith.constant 2.000000e+00 : f32
    %157 = vector.broadcast %cst_95 : f32 to vector<8x32xf32>
    %158 = arith.subf %157, %156 : vector<8x32xf32>
    %159 = arith.mulf %155, %158 : vector<8x32xf32>
    %160 = arith.mulf %153, %159 : vector<8x32xf32>
    %cst_96 = arith.constant dense<0.000000e+00> : vector<8x32xf32>
    %161 = tpu.matmul %160, %145, %cst_96 {dimension_numbers = #tpu.dot_dimension_numbers<[1], [0], [0], [1], [0, 0, 1, 1], [], []>} : vector<8x32xf32>, vector<32x32xf32>, vector<8x32xf32> -> vector<8x32xf32>
    %162 = vector.extract_strided_slice %124 {offsets = [8, 0], sizes = [8, 32], strides = [1, 1]} : vector<16x32xf32> to vector<8x32xf32>
    %163 = vector.extract_strided_slice %131 {offsets = [8, 0], sizes = [8, 32], strides = [1, 1]} : vector<16x32xf32> to vector<8x32xf32>
    %164 = vector.extract_strided_slice %138 {offsets = [8, 0], sizes = [8, 32], strides = [1, 1]} : vector<16x32xf32> to vector<8x32xf32>
    %165 = tpu.concatenate %163, %163, %163, %163 in 0 : vector<8x32xf32>, vector<8x32xf32>, vector<8x32xf32>, vector<8x32xf32> -> vector<32x32xf32>
    %166 = arith.mulf %165, %12 : vector<32x32xf32>
    %167 = tpu.concatenate %164, %164, %164, %164 in 0 : vector<8x32xf32>, vector<8x32xf32>, vector<8x32xf32>, vector<8x32xf32> -> vector<32x32xf32>
    %168 = arith.mulf %167, %12 : vector<32x32xf32>
    "tpu.trace_start"() <{level = 10 : i32, message = "qd,kd->qk"}> : () -> ()
    %cst_97 = arith.constant dense<0.000000e+00> : vector<8x32xf32>
    %169 = tpu.matmul %162, %166, %cst_97 {dimension_numbers = #tpu.dot_dimension_numbers<[1], [1], [0], [0], [0, 0, 1, 0], [], []>} : vector<8x32xf32>, vector<32x32xf32>, vector<8x32xf32> -> vector<8x32xf32>
    "tpu.trace_stop"() : () -> ()
    %cst_98 = arith.constant 0.353553385 : f32
    %170 = vector.broadcast %cst_98 : f32 to vector<8x32xf32>
    %171 = arith.mulf %169, %170 : vector<8x32xf32>
    %cst_99 = arith.constant dense<0xFF800000> : vector<8xf32>
    %172 = vector.multi_reduction <maximumf>, %171, %cst_99 [1] : vector<8x32xf32> to vector<8xf32>
    %173 = vector.shape_cast %172 : vector<8xf32> to vector<8x1xf32>
    %174 = vector.broadcast %173 : vector<8x1xf32> to vector<8x32xf32>
    %175 = arith.subf %171, %174 : vector<8x32xf32>
    %176 = math.exp %175 : vector<8x32xf32>
    %cst_100 = arith.constant dense<0.000000e+00> : vector<8x32xf32>
    %177 = tpu.matmul %176, %13, %cst_100 {dimension_numbers = #tpu.dot_dimension_numbers<[1], [0], [0], [1], [0, 0, 1, 1], [], []>} : vector<8x32xf32>, vector<32x32xf32>, vector<8x32xf32> -> vector<8x32xf32>
    %178 = tpu.reciprocal %177 {approx = true} : vector<8x32xf32> -> vector<8x32xf32>
    %179 = arith.mulf %177, %178 : vector<8x32xf32>
    %cst_101 = arith.constant 2.000000e+00 : f32
    %180 = vector.broadcast %cst_101 : f32 to vector<8x32xf32>
    %181 = arith.subf %180, %179 : vector<8x32xf32>
    %182 = arith.mulf %178, %181 : vector<8x32xf32>
    %183 = arith.mulf %176, %182 : vector<8x32xf32>
    %cst_102 = arith.constant dense<0.000000e+00> : vector<8x32xf32>
    %184 = tpu.matmul %183, %168, %cst_102 {dimension_numbers = #tpu.dot_dimension_numbers<[1], [0], [0], [1], [0, 0, 1, 1], [], []>} : vector<8x32xf32>, vector<32x32xf32>, vector<8x32xf32> -> vector<8x32xf32>
    %185 = tpu.concatenate %161, %184 in 0 : vector<8x32xf32>, vector<8x32xf32> -> vector<16x32xf32>
    %c0_103 = arith.constant 0 : index
    %c0_104 = arith.constant 0 : index
    %c0_105 = arith.constant 0 : index
    %186 = vector.load %arg25[%c0_103, %c0_104, %c0_105] : memref<2x32x32xf32, #tpu.memory_space<vmem>>, vector<1x32x32xf32>
    %187 = vector.shape_cast %186 : vector<1x32x32xf32> to vector<32x32xf32>
    %cst_106 = arith.constant dense<0.000000e+00> : vector<16x32xf32>
    %188 = tpu.matmul %185, %187, %cst_106 {dimension_numbers = #tpu.dot_dimension_numbers<[1], [0], [0], [1], [0, 0, 1, 1], [], []>} : vector<16x32xf32>, vector<32x32xf32>, vector<16x32xf32> -> vector<16x32xf32>
    %189 = arith.addf %117, %188 : vector<16x32xf32>
    %c0_107 = arith.constant 0 : index
    %c0_108 = arith.constant 0 : index
    %c0_109 = arith.constant 0 : index
    %190 = vector.load %arg26[%c0_107, %c0_108, %c0_109] : memref<2x1x32xf32, #tpu.memory_space<vmem>>, vector<1x1x32xf32>
    %191 = vector.shape_cast %190 : vector<1x1x32xf32> to vector<1x32xf32>
    %192 = vector.broadcast %191 : vector<1x32xf32> to vector<16x32xf32>
    %193 = arith.addf %189, %192 : vector<16x32xf32>
    %c0_110 = arith.constant 0 : index
    %c0_111 = arith.constant 0 : index
    %c0_112 = arith.constant 0 : index
    %194 = vector.load %arg33[%c0_110, %c0_111, %c0_112] : memref<2x1x32xf32, #tpu.memory_space<vmem>>, vector<1x1x32xf32>
    %195 = vector.shape_cast %194 : vector<1x1x32xf32> to vector<1x32xf32>
    %c0_113 = arith.constant 0 : index
    %c0_114 = arith.constant 0 : index
    %c0_115 = arith.constant 0 : index
    %196 = vector.load %arg34[%c0_113, %c0_114, %c0_115] : memref<2x1x32xf32, #tpu.memory_space<vmem>>, vector<1x1x32xf32>
    %197 = vector.shape_cast %196 : vector<1x1x32xf32> to vector<1x32xf32>
    %cst_116 = arith.constant dense<0.000000e+00> : vector<16xf32>
    %198 = vector.multi_reduction <add>, %193, %cst_116 [1] : vector<16x32xf32> to vector<16xf32>
    %199 = vector.shape_cast %198 : vector<16xf32> to vector<16x1xf32>
    %cst_117 = arith.constant 3.200000e+01 : f32
    %200 = vector.broadcast %cst_117 : f32 to vector<16x1xf32>
    %201 = arith.divf %199, %200 : vector<16x1xf32>
    %202 = vector.broadcast %201 : vector<16x1xf32> to vector<16x32xf32>
    %203 = arith.subf %193, %202 : vector<16x32xf32>
    %204 = arith.mulf %203, %203 : vector<16x32xf32>
    %cst_118 = arith.constant dense<0.000000e+00> : vector<16xf32>
    %205 = vector.multi_reduction <add>, %204, %cst_118 [1] : vector<16x32xf32> to vector<16xf32>
    %206 = vector.shape_cast %205 : vector<16xf32> to vector<16x1xf32>
    %cst_119 = arith.constant 3.200000e+01 : f32
    %207 = vector.broadcast %cst_119 : f32 to vector<16x1xf32>
    %208 = arith.divf %206, %207 : vector<16x1xf32>
    %209 = vector.broadcast %201 : vector<16x1xf32> to vector<16x32xf32>
    %210 = arith.subf %193, %209 : vector<16x32xf32>
    %cst_120 = arith.constant 9.99999974E-6 : f32
    %211 = vector.broadcast %cst_120 : f32 to vector<16x1xf32>
    %212 = arith.addf %208, %211 : vector<16x1xf32>
    %213 = math.rsqrt %212 : vector<16x1xf32>
    %214 = vector.broadcast %213 : vector<16x1xf32> to vector<16x32xf32>
    %215 = arith.mulf %210, %214 : vector<16x32xf32>
    %216 = vector.broadcast %195 : vector<1x32xf32> to vector<16x32xf32>
    %217 = arith.mulf %215, %216 : vector<16x32xf32>
    %218 = vector.broadcast %197 : vector<1x32xf32> to vector<16x32xf32>
    %219 = arith.addf %217, %218 : vector<16x32xf32>
    %c0_121 = arith.constant 0 : index
    %c0_122 = arith.constant 0 : index
    %c0_123 = arith.constant 0 : index
    %220 = vector.load %arg27[%c0_121, %c0_122, %c0_123] : memref<2x32x64xf32, #tpu.memory_space<vmem>>, vector<1x32x64xf32>
    %221 = vector.shape_cast %220 : vector<1x32x64xf32> to vector<32x64xf32>
    %cst_124 = arith.constant dense<0.000000e+00> : vector<16x64xf32>
    %222 = tpu.matmul %219, %221, %cst_124 {dimension_numbers = #tpu.dot_dimension_numbers<[1], [0], [0], [1], [0, 0, 1, 1], [], []>} : vector<16x32xf32>, vector<32x64xf32>, vector<16x64xf32> -> vector<16x64xf32>
    %c0_125 = arith.constant 0 : index
    %c0_126 = arith.constant 0 : index
    %c0_127 = arith.constant 0 : index
    %223 = vector.load %arg28[%c0_125, %c0_126, %c0_127] : memref<2x1x64xf32, #tpu.memory_space<vmem>>, vector<1x1x64xf32>
    %224 = vector.shape_cast %223 : vector<1x1x64xf32> to vector<1x64xf32>
    %225 = vector.broadcast %224 : vector<1x64xf32> to vector<16x64xf32>
    %226 = arith.addf %222, %225 : vector<16x64xf32>
    %cst_128 = arith.constant 0.000000e+00 : f32
    %227 = vector.broadcast %cst_128 : f32 to vector<16x64xf32>
    %228 = arith.maximumf %226, %227 : vector<16x64xf32>
    %c0_129 = arith.constant 0 : index
    %c0_130 = arith.constant 0 : index
    %c0_131 = arith.constant 0 : index
    %229 = vector.load %arg29[%c0_129, %c0_130, %c0_131] : memref<2x64x32xf32, #tpu.memory_space<vmem>>, vector<1x64x32xf32>
    %230 = vector.shape_cast %229 : vector<1x64x32xf32> to vector<64x32xf32>
    %cst_132 = arith.constant dense<0.000000e+00> : vector<16x32xf32>
    %231 = tpu.matmul %228, %230, %cst_132 {dimension_numbers = #tpu.dot_dimension_numbers<[1], [0], [0], [1], [0, 0, 1, 1], [], []>} : vector<16x64xf32>, vector<64x32xf32>, vector<16x32xf32> -> vector<16x32xf32>
    %232 = arith.addf %219, %231 : vector<16x32xf32>
    %c0_133 = arith.constant 0 : index
    %c0_134 = arith.constant 0 : index
    %c0_135 = arith.constant 0 : index
    %233 = vector.load %arg30[%c0_133, %c0_134, %c0_135] : memref<2x1x32xf32, #tpu.memory_space<vmem>>, vector<1x1x32xf32>
    %234 = vector.shape_cast %233 : vector<1x1x32xf32> to vector<1x32xf32>
    %235 = vector.broadcast %234 : vector<1x32xf32> to vector<16x32xf32>
    %236 = arith.addf %232, %235 : vector<16x32xf32>
    %c0_136 = arith.constant 0 : index
    %c0_137 = arith.constant 0 : index
    %c0_138 = arith.constant 0 : index
    %237 = vector.load %arg35[%c0_136, %c0_137, %c0_138] : memref<2x1x32xf32, #tpu.memory_space<vmem>>, vector<1x1x32xf32>
    %238 = vector.shape_cast %237 : vector<1x1x32xf32> to vector<1x32xf32>
    %c0_139 = arith.constant 0 : index
    %c0_140 = arith.constant 0 : index
    %c0_141 = arith.constant 0 : index
    %239 = vector.load %arg36[%c0_139, %c0_140, %c0_141] : memref<2x1x32xf32, #tpu.memory_space<vmem>>, vector<1x1x32xf32>
    %240 = vector.shape_cast %239 : vector<1x1x32xf32> to vector<1x32xf32>
    %cst_142 = arith.constant dense<0.000000e+00> : vector<16xf32>
    %241 = vector.multi_reduction <add>, %236, %cst_142 [1] : vector<16x32xf32> to vector<16xf32>
    %242 = vector.shape_cast %241 : vector<16xf32> to vector<16x1xf32>
    %cst_143 = arith.constant 3.200000e+01 : f32
    %243 = vector.broadcast %cst_143 : f32 to vector<16x1xf32>
    %244 = arith.divf %242, %243 : vector<16x1xf32>
    %245 = vector.broadcast %244 : vector<16x1xf32> to vector<16x32xf32>
    %246 = arith.subf %236, %245 : vector<16x32xf32>
    %247 = arith.mulf %246, %246 : vector<16x32xf32>
    %cst_144 = arith.constant dense<0.000000e+00> : vector<16xf32>
    %248 = vector.multi_reduction <add>, %247, %cst_144 [1] : vector<16x32xf32> to vector<16xf32>
    %249 = vector.shape_cast %248 : vector<16xf32> to vector<16x1xf32>
    %cst_145 = arith.constant 3.200000e+01 : f32
    %250 = vector.broadcast %cst_145 : f32 to vector<16x1xf32>
    %251 = arith.divf %249, %250 : vector<16x1xf32>
    %252 = vector.broadcast %244 : vector<16x1xf32> to vector<16x32xf32>
    %253 = arith.subf %236, %252 : vector<16x32xf32>
    %cst_146 = arith.constant 9.99999974E-6 : f32
    %254 = vector.broadcast %cst_146 : f32 to vector<16x1xf32>
    %255 = arith.addf %251, %254 : vector<16x1xf32>
    %256 = math.rsqrt %255 : vector<16x1xf32>
    %257 = vector.broadcast %256 : vector<16x1xf32> to vector<16x32xf32>
    %258 = arith.mulf %253, %257 : vector<16x32xf32>
    %259 = vector.broadcast %238 : vector<1x32xf32> to vector<16x32xf32>
    %260 = arith.mulf %258, %259 : vector<16x32xf32>
    %261 = vector.broadcast %240 : vector<1x32xf32> to vector<16x32xf32>
    %262 = arith.addf %260, %261 : vector<16x32xf32>
    %c1 = arith.constant 1 : index
    %c0_147 = arith.constant 0 : index
    %c0_148 = arith.constant 0 : index
    %263 = vector.load %arg11[%c1, %c0_147, %c0_148] : memref<2x32x32xf32, #tpu.memory_space<vmem>>, vector<1x32x32xf32>
    %264 = vector.shape_cast %263 : vector<1x32x32xf32> to vector<32x32xf32>
    %cst_149 = arith.constant dense<0.000000e+00> : vector<16x32xf32>
    %265 = tpu.matmul %262, %264, %cst_149 {dimension_numbers = #tpu.dot_dimension_numbers<[1], [0], [0], [1], [0, 0, 1, 1], [], []>} : vector<16x32xf32>, vector<32x32xf32>, vector<16x32xf32> -> vector<16x32xf32>
    %c1_150 = arith.constant 1 : index
    %c0_151 = arith.constant 0 : index
    %c0_152 = arith.constant 0 : index
    %266 = vector.load %arg12[%c1_150, %c0_151, %c0_152] : memref<2x1x32xf32, #tpu.memory_space<vmem>>, vector<1x1x32xf32>
    %267 = vector.shape_cast %266 : vector<1x1x32xf32> to vector<1x32xf32>
    %268 = vector.broadcast %267 : vector<1x32xf32> to vector<16x32xf32>
    %269 = arith.addf %265, %268 : vector<16x32xf32>
    %c1_153 = arith.constant 1 : index
    %c0_154 = arith.constant 0 : index
    %c0_155 = arith.constant 0 : index
    %270 = vector.load %arg13[%c1_153, %c0_154, %c0_155] : memref<2x32x32xf32, #tpu.memory_space<vmem>>, vector<1x32x32xf32>
    %271 = vector.shape_cast %270 : vector<1x32x32xf32> to vector<32x32xf32>
    %cst_156 = arith.constant dense<0.000000e+00> : vector<16x32xf32>
    %272 = tpu.matmul %262, %271, %cst_156 {dimension_numbers = #tpu.dot_dimension_numbers<[1], [0], [0], [1], [0, 0, 1, 1], [], []>} : vector<16x32xf32>, vector<32x32xf32>, vector<16x32xf32> -> vector<16x32xf32>
    %c1_157 = arith.constant 1 : index
    %c0_158 = arith.constant 0 : index
    %c0_159 = arith.constant 0 : index
    %273 = vector.load %arg14[%c1_157, %c0_158, %c0_159] : memref<2x1x32xf32, #tpu.memory_space<vmem>>, vector<1x1x32xf32>
    %274 = vector.shape_cast %273 : vector<1x1x32xf32> to vector<1x32xf32>
    %275 = vector.broadcast %274 : vector<1x32xf32> to vector<16x32xf32>
    %276 = arith.addf %272, %275 : vector<16x32xf32>
    %c1_160 = arith.constant 1 : index
    %c0_161 = arith.constant 0 : index
    %c0_162 = arith.constant 0 : index
    %277 = vector.load %arg15[%c1_160, %c0_161, %c0_162] : memref<2x32x32xf32, #tpu.memory_space<vmem>>, vector<1x32x32xf32>
    %278 = vector.shape_cast %277 : vector<1x32x32xf32> to vector<32x32xf32>
    %cst_163 = arith.constant dense<0.000000e+00> : vector<16x32xf32>
    %279 = tpu.matmul %262, %278, %cst_163 {dimension_numbers = #tpu.dot_dimension_numbers<[1], [0], [0], [1], [0, 0, 1, 1], [], []>} : vector<16x32xf32>, vector<32x32xf32>, vector<16x32xf32> -> vector<16x32xf32>
    %c1_164 = arith.constant 1 : index
    %c0_165 = arith.constant 0 : index
    %c0_166 = arith.constant 0 : index
    %280 = vector.load %arg16[%c1_164, %c0_165, %c0_166] : memref<2x1x32xf32, #tpu.memory_space<vmem>>, vector<1x1x32xf32>
    %281 = vector.shape_cast %280 : vector<1x1x32xf32> to vector<1x32xf32>
    %282 = vector.broadcast %281 : vector<1x32xf32> to vector<16x32xf32>
    %283 = arith.addf %279, %282 : vector<16x32xf32>
    %284 = vector.extract_strided_slice %269 {offsets = [0, 0], sizes = [8, 32], strides = [1, 1]} : vector<16x32xf32> to vector<8x32xf32>
    %285 = vector.extract_strided_slice %276 {offsets = [0, 0], sizes = [8, 32], strides = [1, 1]} : vector<16x32xf32> to vector<8x32xf32>
    %286 = vector.extract_strided_slice %283 {offsets = [0, 0], sizes = [8, 32], strides = [1, 1]} : vector<16x32xf32> to vector<8x32xf32>
    %287 = tpu.concatenate %285, %285, %285, %285 in 0 : vector<8x32xf32>, vector<8x32xf32>, vector<8x32xf32>, vector<8x32xf32> -> vector<32x32xf32>
    %288 = arith.mulf %287, %10 : vector<32x32xf32>
    %289 = tpu.concatenate %286, %286, %286, %286 in 0 : vector<8x32xf32>, vector<8x32xf32>, vector<8x32xf32>, vector<8x32xf32> -> vector<32x32xf32>
    %290 = arith.mulf %289, %10 : vector<32x32xf32>
    "tpu.trace_start"() <{level = 10 : i32, message = "qd,kd->qk"}> : () -> ()
    %cst_167 = arith.constant dense<0.000000e+00> : vector<8x32xf32>
    %291 = tpu.matmul %284, %288, %cst_167 {dimension_numbers = #tpu.dot_dimension_numbers<[1], [1], [0], [0], [0, 0, 1, 0], [], []>} : vector<8x32xf32>, vector<32x32xf32>, vector<8x32xf32> -> vector<8x32xf32>
    "tpu.trace_stop"() : () -> ()
    %cst_168 = arith.constant 0.353553385 : f32
    %292 = vector.broadcast %cst_168 : f32 to vector<8x32xf32>
    %293 = arith.mulf %291, %292 : vector<8x32xf32>
    %294 = arith.addf %293, %9 : vector<8x32xf32>
    %cst_169 = arith.constant dense<0xFF800000> : vector<8xf32>
    %295 = vector.multi_reduction <maximumf>, %294, %cst_169 [1] : vector<8x32xf32> to vector<8xf32>
    %296 = vector.shape_cast %295 : vector<8xf32> to vector<8x1xf32>
    %297 = vector.broadcast %296 : vector<8x1xf32> to vector<8x32xf32>
    %298 = arith.subf %294, %297 : vector<8x32xf32>
    %299 = math.exp %298 : vector<8x32xf32>
    %cst_170 = arith.constant dense<0.000000e+00> : vector<8x32xf32>
    %300 = tpu.matmul %299, %11, %cst_170 {dimension_numbers = #tpu.dot_dimension_numbers<[1], [0], [0], [1], [0, 0, 1, 1], [], []>} : vector<8x32xf32>, vector<32x32xf32>, vector<8x32xf32> -> vector<8x32xf32>
    %301 = tpu.reciprocal %300 {approx = true} : vector<8x32xf32> -> vector<8x32xf32>
    %302 = arith.mulf %300, %301 : vector<8x32xf32>
    %cst_171 = arith.constant 2.000000e+00 : f32
    %303 = vector.broadcast %cst_171 : f32 to vector<8x32xf32>
    %304 = arith.subf %303, %302 : vector<8x32xf32>
    %305 = arith.mulf %301, %304 : vector<8x32xf32>
    %306 = arith.mulf %299, %305 : vector<8x32xf32>
    %cst_172 = arith.constant dense<0.000000e+00> : vector<8x32xf32>
    %307 = tpu.matmul %306, %290, %cst_172 {dimension_numbers = #tpu.dot_dimension_numbers<[1], [0], [0], [1], [0, 0, 1, 1], [], []>} : vector<8x32xf32>, vector<32x32xf32>, vector<8x32xf32> -> vector<8x32xf32>
    %308 = vector.extract_strided_slice %269 {offsets = [8, 0], sizes = [8, 32], strides = [1, 1]} : vector<16x32xf32> to vector<8x32xf32>
    %309 = vector.extract_strided_slice %276 {offsets = [8, 0], sizes = [8, 32], strides = [1, 1]} : vector<16x32xf32> to vector<8x32xf32>
    %310 = vector.extract_strided_slice %283 {offsets = [8, 0], sizes = [8, 32], strides = [1, 1]} : vector<16x32xf32> to vector<8x32xf32>
    %311 = tpu.concatenate %309, %309, %309, %309 in 0 : vector<8x32xf32>, vector<8x32xf32>, vector<8x32xf32>, vector<8x32xf32> -> vector<32x32xf32>
    %312 = arith.mulf %311, %10 : vector<32x32xf32>
    %313 = tpu.concatenate %310, %310, %310, %310 in 0 : vector<8x32xf32>, vector<8x32xf32>, vector<8x32xf32>, vector<8x32xf32> -> vector<32x32xf32>
    %314 = arith.mulf %313, %10 : vector<32x32xf32>
    "tpu.trace_start"() <{level = 10 : i32, message = "qd,kd->qk"}> : () -> ()
    %cst_173 = arith.constant dense<0.000000e+00> : vector<8x32xf32>
    %315 = tpu.matmul %308, %312, %cst_173 {dimension_numbers = #tpu.dot_dimension_numbers<[1], [1], [0], [0], [0, 0, 1, 0], [], []>} : vector<8x32xf32>, vector<32x32xf32>, vector<8x32xf32> -> vector<8x32xf32>
    "tpu.trace_stop"() : () -> ()
    %cst_174 = arith.constant 0.353553385 : f32
    %316 = vector.broadcast %cst_174 : f32 to vector<8x32xf32>
    %317 = arith.mulf %315, %316 : vector<8x32xf32>
    %318 = arith.addf %317, %9 : vector<8x32xf32>
    %cst_175 = arith.constant dense<0xFF800000> : vector<8xf32>
    %319 = vector.multi_reduction <maximumf>, %318, %cst_175 [1] : vector<8x32xf32> to vector<8xf32>
    %320 = vector.shape_cast %319 : vector<8xf32> to vector<8x1xf32>
    %321 = vector.broadcast %320 : vector<8x1xf32> to vector<8x32xf32>
    %322 = arith.subf %318, %321 : vector<8x32xf32>
    %323 = math.exp %322 : vector<8x32xf32>
    %cst_176 = arith.constant dense<0.000000e+00> : vector<8x32xf32>
    %324 = tpu.matmul %323, %11, %cst_176 {dimension_numbers = #tpu.dot_dimension_numbers<[1], [0], [0], [1], [0, 0, 1, 1], [], []>} : vector<8x32xf32>, vector<32x32xf32>, vector<8x32xf32> -> vector<8x32xf32>
    %325 = tpu.reciprocal %324 {approx = true} : vector<8x32xf32> -> vector<8x32xf32>
    %326 = arith.mulf %324, %325 : vector<8x32xf32>
    %cst_177 = arith.constant 2.000000e+00 : f32
    %327 = vector.broadcast %cst_177 : f32 to vector<8x32xf32>
    %328 = arith.subf %327, %326 : vector<8x32xf32>
    %329 = arith.mulf %325, %328 : vector<8x32xf32>
    %330 = arith.mulf %323, %329 : vector<8x32xf32>
    %cst_178 = arith.constant dense<0.000000e+00> : vector<8x32xf32>
    %331 = tpu.matmul %330, %314, %cst_178 {dimension_numbers = #tpu.dot_dimension_numbers<[1], [0], [0], [1], [0, 0, 1, 1], [], []>} : vector<8x32xf32>, vector<32x32xf32>, vector<8x32xf32> -> vector<8x32xf32>
    %332 = tpu.concatenate %307, %331 in 0 : vector<8x32xf32>, vector<8x32xf32> -> vector<16x32xf32>
    %c1_179 = arith.constant 1 : index
    %c0_180 = arith.constant 0 : index
    %c0_181 = arith.constant 0 : index
    %333 = vector.load %arg17[%c1_179, %c0_180, %c0_181] : memref<2x32x32xf32, #tpu.memory_space<vmem>>, vector<1x32x32xf32>
    %334 = vector.shape_cast %333 : vector<1x32x32xf32> to vector<32x32xf32>
    %cst_182 = arith.constant dense<0.000000e+00> : vector<16x32xf32>
    %335 = tpu.matmul %332, %334, %cst_182 {dimension_numbers = #tpu.dot_dimension_numbers<[1], [0], [0], [1], [0, 0, 1, 1], [], []>} : vector<16x32xf32>, vector<32x32xf32>, vector<16x32xf32> -> vector<16x32xf32>
    %336 = arith.addf %262, %335 : vector<16x32xf32>
    %c1_183 = arith.constant 1 : index
    %c0_184 = arith.constant 0 : index
    %c0_185 = arith.constant 0 : index
    %337 = vector.load %arg18[%c1_183, %c0_184, %c0_185] : memref<2x1x32xf32, #tpu.memory_space<vmem>>, vector<1x1x32xf32>
    %338 = vector.shape_cast %337 : vector<1x1x32xf32> to vector<1x32xf32>
    %339 = vector.broadcast %338 : vector<1x32xf32> to vector<16x32xf32>
    %340 = arith.addf %336, %339 : vector<16x32xf32>
    %c1_186 = arith.constant 1 : index
    %c0_187 = arith.constant 0 : index
    %c0_188 = arith.constant 0 : index
    %341 = vector.load %arg31[%c1_186, %c0_187, %c0_188] : memref<2x1x32xf32, #tpu.memory_space<vmem>>, vector<1x1x32xf32>
    %342 = vector.shape_cast %341 : vector<1x1x32xf32> to vector<1x32xf32>
    %c1_189 = arith.constant 1 : index
    %c0_190 = arith.constant 0 : index
    %c0_191 = arith.constant 0 : index
    %343 = vector.load %arg32[%c1_189, %c0_190, %c0_191] : memref<2x1x32xf32, #tpu.memory_space<vmem>>, vector<1x1x32xf32>
    %344 = vector.shape_cast %343 : vector<1x1x32xf32> to vector<1x32xf32>
    %cst_192 = arith.constant dense<0.000000e+00> : vector<16xf32>
    %345 = vector.multi_reduction <add>, %340, %cst_192 [1] : vector<16x32xf32> to vector<16xf32>
    %346 = vector.shape_cast %345 : vector<16xf32> to vector<16x1xf32>
    %cst_193 = arith.constant 3.200000e+01 : f32
    %347 = vector.broadcast %cst_193 : f32 to vector<16x1xf32>
    %348 = arith.divf %346, %347 : vector<16x1xf32>
    %349 = vector.broadcast %348 : vector<16x1xf32> to vector<16x32xf32>
    %350 = arith.subf %340, %349 : vector<16x32xf32>
    %351 = arith.mulf %350, %350 : vector<16x32xf32>
    %cst_194 = arith.constant dense<0.000000e+00> : vector<16xf32>
    %352 = vector.multi_reduction <add>, %351, %cst_194 [1] : vector<16x32xf32> to vector<16xf32>
    %353 = vector.shape_cast %352 : vector<16xf32> to vector<16x1xf32>
    %cst_195 = arith.constant 3.200000e+01 : f32
    %354 = vector.broadcast %cst_195 : f32 to vector<16x1xf32>
    %355 = arith.divf %353, %354 : vector<16x1xf32>
    %356 = vector.broadcast %348 : vector<16x1xf32> to vector<16x32xf32>
    %357 = arith.subf %340, %356 : vector<16x32xf32>
    %cst_196 = arith.constant 9.99999974E-6 : f32
    %358 = vector.broadcast %cst_196 : f32 to vector<16x1xf32>
    %359 = arith.addf %355, %358 : vector<16x1xf32>
    %360 = math.rsqrt %359 : vector<16x1xf32>
    %361 = vector.broadcast %360 : vector<16x1xf32> to vector<16x32xf32>
    %362 = arith.mulf %357, %361 : vector<16x32xf32>
    %363 = vector.broadcast %342 : vector<1x32xf32> to vector<16x32xf32>
    %364 = arith.mulf %362, %363 : vector<16x32xf32>
    %365 = vector.broadcast %344 : vector<1x32xf32> to vector<16x32xf32>
    %366 = arith.addf %364, %365 : vector<16x32xf32>
    %c1_197 = arith.constant 1 : index
    %c0_198 = arith.constant 0 : index
    %c0_199 = arith.constant 0 : index
    %367 = vector.load %arg19[%c1_197, %c0_198, %c0_199] : memref<2x32x32xf32, #tpu.memory_space<vmem>>, vector<1x32x32xf32>
    %368 = vector.shape_cast %367 : vector<1x32x32xf32> to vector<32x32xf32>
    %cst_200 = arith.constant dense<0.000000e+00> : vector<16x32xf32>
    %369 = tpu.matmul %366, %368, %cst_200 {dimension_numbers = #tpu.dot_dimension_numbers<[1], [0], [0], [1], [0, 0, 1, 1], [], []>} : vector<16x32xf32>, vector<32x32xf32>, vector<16x32xf32> -> vector<16x32xf32>
    %c1_201 = arith.constant 1 : index
    %c0_202 = arith.constant 0 : index
    %c0_203 = arith.constant 0 : index
    %370 = vector.load %arg20[%c1_201, %c0_202, %c0_203] : memref<2x1x32xf32, #tpu.memory_space<vmem>>, vector<1x1x32xf32>
    %371 = vector.shape_cast %370 : vector<1x1x32xf32> to vector<1x32xf32>
    %372 = vector.broadcast %371 : vector<1x32xf32> to vector<16x32xf32>
    %373 = arith.addf %369, %372 : vector<16x32xf32>
    %c1_204 = arith.constant 1 : index
    %c0_205 = arith.constant 0 : index
    %c0_206 = arith.constant 0 : index
    %374 = vector.load %arg21[%c1_204, %c0_205, %c0_206] : memref<2x32x32xf32, #tpu.memory_space<vmem>>, vector<1x32x32xf32>
    %375 = vector.shape_cast %374 : vector<1x32x32xf32> to vector<32x32xf32>
    %cst_207 = arith.constant dense<0.000000e+00> : vector<16x32xf32>
    %376 = tpu.matmul %8, %375, %cst_207 {dimension_numbers = #tpu.dot_dimension_numbers<[1], [0], [0], [1], [0, 0, 1, 1], [], []>} : vector<16x32xf32>, vector<32x32xf32>, vector<16x32xf32> -> vector<16x32xf32>
    %c1_208 = arith.constant 1 : index
    %c0_209 = arith.constant 0 : index
    %c0_210 = arith.constant 0 : index
    %377 = vector.load %arg22[%c1_208, %c0_209, %c0_210] : memref<2x1x32xf32, #tpu.memory_space<vmem>>, vector<1x1x32xf32>
    %378 = vector.shape_cast %377 : vector<1x1x32xf32> to vector<1x32xf32>
    %379 = vector.broadcast %378 : vector<1x32xf32> to vector<16x32xf32>
    %380 = arith.addf %376, %379 : vector<16x32xf32>
    %c1_211 = arith.constant 1 : index
    %c0_212 = arith.constant 0 : index
    %c0_213 = arith.constant 0 : index
    %381 = vector.load %arg23[%c1_211, %c0_212, %c0_213] : memref<2x32x32xf32, #tpu.memory_space<vmem>>, vector<1x32x32xf32>
    %382 = vector.shape_cast %381 : vector<1x32x32xf32> to vector<32x32xf32>
    %cst_214 = arith.constant dense<0.000000e+00> : vector<16x32xf32>
    %383 = tpu.matmul %8, %382, %cst_214 {dimension_numbers = #tpu.dot_dimension_numbers<[1], [0], [0], [1], [0, 0, 1, 1], [], []>} : vector<16x32xf32>, vector<32x32xf32>, vector<16x32xf32> -> vector<16x32xf32>
    %c1_215 = arith.constant 1 : index
    %c0_216 = arith.constant 0 : index
    %c0_217 = arith.constant 0 : index
    %384 = vector.load %arg24[%c1_215, %c0_216, %c0_217] : memref<2x1x32xf32, #tpu.memory_space<vmem>>, vector<1x1x32xf32>
    %385 = vector.shape_cast %384 : vector<1x1x32xf32> to vector<1x32xf32>
    %386 = vector.broadcast %385 : vector<1x32xf32> to vector<16x32xf32>
    %387 = arith.addf %383, %386 : vector<16x32xf32>
    %388 = vector.extract_strided_slice %373 {offsets = [0, 0], sizes = [8, 32], strides = [1, 1]} : vector<16x32xf32> to vector<8x32xf32>
    %389 = vector.extract_strided_slice %380 {offsets = [0, 0], sizes = [8, 32], strides = [1, 1]} : vector<16x32xf32> to vector<8x32xf32>
    %390 = vector.extract_strided_slice %387 {offsets = [0, 0], sizes = [8, 32], strides = [1, 1]} : vector<16x32xf32> to vector<8x32xf32>
    %391 = tpu.concatenate %389, %389, %389, %389 in 0 : vector<8x32xf32>, vector<8x32xf32>, vector<8x32xf32>, vector<8x32xf32> -> vector<32x32xf32>
    %392 = arith.mulf %391, %12 : vector<32x32xf32>
    %393 = tpu.concatenate %390, %390, %390, %390 in 0 : vector<8x32xf32>, vector<8x32xf32>, vector<8x32xf32>, vector<8x32xf32> -> vector<32x32xf32>
    %394 = arith.mulf %393, %12 : vector<32x32xf32>
    "tpu.trace_start"() <{level = 10 : i32, message = "qd,kd->qk"}> : () -> ()
    %cst_218 = arith.constant dense<0.000000e+00> : vector<8x32xf32>
    %395 = tpu.matmul %388, %392, %cst_218 {dimension_numbers = #tpu.dot_dimension_numbers<[1], [1], [0], [0], [0, 0, 1, 0], [], []>} : vector<8x32xf32>, vector<32x32xf32>, vector<8x32xf32> -> vector<8x32xf32>
    "tpu.trace_stop"() : () -> ()
    %cst_219 = arith.constant 0.353553385 : f32
    %396 = vector.broadcast %cst_219 : f32 to vector<8x32xf32>
    %397 = arith.mulf %395, %396 : vector<8x32xf32>
    %cst_220 = arith.constant dense<0xFF800000> : vector<8xf32>
    %398 = vector.multi_reduction <maximumf>, %397, %cst_220 [1] : vector<8x32xf32> to vector<8xf32>
    %399 = vector.shape_cast %398 : vector<8xf32> to vector<8x1xf32>
    %400 = vector.broadcast %399 : vector<8x1xf32> to vector<8x32xf32>
    %401 = arith.subf %397, %400 : vector<8x32xf32>
    %402 = math.exp %401 : vector<8x32xf32>
    %cst_221 = arith.constant dense<0.000000e+00> : vector<8x32xf32>
    %403 = tpu.matmul %402, %13, %cst_221 {dimension_numbers = #tpu.dot_dimension_numbers<[1], [0], [0], [1], [0, 0, 1, 1], [], []>} : vector<8x32xf32>, vector<32x32xf32>, vector<8x32xf32> -> vector<8x32xf32>
    %404 = tpu.reciprocal %403 {approx = true} : vector<8x32xf32> -> vector<8x32xf32>
    %405 = arith.mulf %403, %404 : vector<8x32xf32>
    %cst_222 = arith.constant 2.000000e+00 : f32
    %406 = vector.broadcast %cst_222 : f32 to vector<8x32xf32>
    %407 = arith.subf %406, %405 : vector<8x32xf32>
    %408 = arith.mulf %404, %407 : vector<8x32xf32>
    %409 = arith.mulf %402, %408 : vector<8x32xf32>
    %cst_223 = arith.constant dense<0.000000e+00> : vector<8x32xf32>
    %410 = tpu.matmul %409, %394, %cst_223 {dimension_numbers = #tpu.dot_dimension_numbers<[1], [0], [0], [1], [0, 0, 1, 1], [], []>} : vector<8x32xf32>, vector<32x32xf32>, vector<8x32xf32> -> vector<8x32xf32>
    %411 = vector.extract_strided_slice %373 {offsets = [8, 0], sizes = [8, 32], strides = [1, 1]} : vector<16x32xf32> to vector<8x32xf32>
    %412 = vector.extract_strided_slice %380 {offsets = [8, 0], sizes = [8, 32], strides = [1, 1]} : vector<16x32xf32> to vector<8x32xf32>
    %413 = vector.extract_strided_slice %387 {offsets = [8, 0], sizes = [8, 32], strides = [1, 1]} : vector<16x32xf32> to vector<8x32xf32>
    %414 = tpu.concatenate %412, %412, %412, %412 in 0 : vector<8x32xf32>, vector<8x32xf32>, vector<8x32xf32>, vector<8x32xf32> -> vector<32x32xf32>
    %415 = arith.mulf %414, %12 : vector<32x32xf32>
    %416 = tpu.concatenate %413, %413, %413, %413 in 0 : vector<8x32xf32>, vector<8x32xf32>, vector<8x32xf32>, vector<8x32xf32> -> vector<32x32xf32>
    %417 = arith.mulf %416, %12 : vector<32x32xf32>
    "tpu.trace_start"() <{level = 10 : i32, message = "qd,kd->qk"}> : () -> ()
    %cst_224 = arith.constant dense<0.000000e+00> : vector<8x32xf32>
    %418 = tpu.matmul %411, %415, %cst_224 {dimension_numbers = #tpu.dot_dimension_numbers<[1], [1], [0], [0], [0, 0, 1, 0], [], []>} : vector<8x32xf32>, vector<32x32xf32>, vector<8x32xf32> -> vector<8x32xf32>
    "tpu.trace_stop"() : () -> ()
    %cst_225 = arith.constant 0.353553385 : f32
    %419 = vector.broadcast %cst_225 : f32 to vector<8x32xf32>
    %420 = arith.mulf %418, %419 : vector<8x32xf32>
    %cst_226 = arith.constant dense<0xFF800000> : vector<8xf32>
    %421 = vector.multi_reduction <maximumf>, %420, %cst_226 [1] : vector<8x32xf32> to vector<8xf32>
    %422 = vector.shape_cast %421 : vector<8xf32> to vector<8x1xf32>
    %423 = vector.broadcast %422 : vector<8x1xf32> to vector<8x32xf32>
    %424 = arith.subf %420, %423 : vector<8x32xf32>
    %425 = math.exp %424 : vector<8x32xf32>
    %cst_227 = arith.constant dense<0.000000e+00> : vector<8x32xf32>
    %426 = tpu.matmul %425, %13, %cst_227 {dimension_numbers = #tpu.dot_dimension_numbers<[1], [0], [0], [1], [0, 0, 1, 1], [], []>} : vector<8x32xf32>, vector<32x32xf32>, vector<8x32xf32> -> vector<8x32xf32>
    %427 = tpu.reciprocal %426 {approx = true} : vector<8x32xf32> -> vector<8x32xf32>
    %428 = arith.mulf %426, %427 : vector<8x32xf32>
    %cst_228 = arith.constant 2.000000e+00 : f32
    %429 = vector.broadcast %cst_228 : f32 to vector<8x32xf32>
    %430 = arith.subf %429, %428 : vector<8x32xf32>
    %431 = arith.mulf %427, %430 : vector<8x32xf32>
    %432 = arith.mulf %425, %431 : vector<8x32xf32>
    %cst_229 = arith.constant dense<0.000000e+00> : vector<8x32xf32>
    %433 = tpu.matmul %432, %417, %cst_229 {dimension_numbers = #tpu.dot_dimension_numbers<[1], [0], [0], [1], [0, 0, 1, 1], [], []>} : vector<8x32xf32>, vector<32x32xf32>, vector<8x32xf32> -> vector<8x32xf32>
    %434 = tpu.concatenate %410, %433 in 0 : vector<8x32xf32>, vector<8x32xf32> -> vector<16x32xf32>
    %c1_230 = arith.constant 1 : index
    %c0_231 = arith.constant 0 : index
    %c0_232 = arith.constant 0 : index
    %435 = vector.load %arg25[%c1_230, %c0_231, %c0_232] : memref<2x32x32xf32, #tpu.memory_space<vmem>>, vector<1x32x32xf32>
    %436 = vector.shape_cast %435 : vector<1x32x32xf32> to vector<32x32xf32>
    %cst_233 = arith.constant dense<0.000000e+00> : vector<16x32xf32>
    %437 = tpu.matmul %434, %436, %cst_233 {dimension_numbers = #tpu.dot_dimension_numbers<[1], [0], [0], [1], [0, 0, 1, 1], [], []>} : vector<16x32xf32>, vector<32x32xf32>, vector<16x32xf32> -> vector<16x32xf32>
    %438 = arith.addf %366, %437 : vector<16x32xf32>
    %c1_234 = arith.constant 1 : index
    %c0_235 = arith.constant 0 : index
    %c0_236 = arith.constant 0 : index
    %439 = vector.load %arg26[%c1_234, %c0_235, %c0_236] : memref<2x1x32xf32, #tpu.memory_space<vmem>>, vector<1x1x32xf32>
    %440 = vector.shape_cast %439 : vector<1x1x32xf32> to vector<1x32xf32>
    %441 = vector.broadcast %440 : vector<1x32xf32> to vector<16x32xf32>
    %442 = arith.addf %438, %441 : vector<16x32xf32>
    %c1_237 = arith.constant 1 : index
    %c0_238 = arith.constant 0 : index
    %c0_239 = arith.constant 0 : index
    %443 = vector.load %arg33[%c1_237, %c0_238, %c0_239] : memref<2x1x32xf32, #tpu.memory_space<vmem>>, vector<1x1x32xf32>
    %444 = vector.shape_cast %443 : vector<1x1x32xf32> to vector<1x32xf32>
    %c1_240 = arith.constant 1 : index
    %c0_241 = arith.constant 0 : index
    %c0_242 = arith.constant 0 : index
    %445 = vector.load %arg34[%c1_240, %c0_241, %c0_242] : memref<2x1x32xf32, #tpu.memory_space<vmem>>, vector<1x1x32xf32>
    %446 = vector.shape_cast %445 : vector<1x1x32xf32> to vector<1x32xf32>
    %cst_243 = arith.constant dense<0.000000e+00> : vector<16xf32>
    %447 = vector.multi_reduction <add>, %442, %cst_243 [1] : vector<16x32xf32> to vector<16xf32>
    %448 = vector.shape_cast %447 : vector<16xf32> to vector<16x1xf32>
    %cst_244 = arith.constant 3.200000e+01 : f32
    %449 = vector.broadcast %cst_244 : f32 to vector<16x1xf32>
    %450 = arith.divf %448, %449 : vector<16x1xf32>
    %451 = vector.broadcast %450 : vector<16x1xf32> to vector<16x32xf32>
    %452 = arith.subf %442, %451 : vector<16x32xf32>
    %453 = arith.mulf %452, %452 : vector<16x32xf32>
    %cst_245 = arith.constant dense<0.000000e+00> : vector<16xf32>
    %454 = vector.multi_reduction <add>, %453, %cst_245 [1] : vector<16x32xf32> to vector<16xf32>
    %455 = vector.shape_cast %454 : vector<16xf32> to vector<16x1xf32>
    %cst_246 = arith.constant 3.200000e+01 : f32
    %456 = vector.broadcast %cst_246 : f32 to vector<16x1xf32>
    %457 = arith.divf %455, %456 : vector<16x1xf32>
    %458 = vector.broadcast %450 : vector<16x1xf32> to vector<16x32xf32>
    %459 = arith.subf %442, %458 : vector<16x32xf32>
    %cst_247 = arith.constant 9.99999974E-6 : f32
    %460 = vector.broadcast %cst_247 : f32 to vector<16x1xf32>
    %461 = arith.addf %457, %460 : vector<16x1xf32>
    %462 = math.rsqrt %461 : vector<16x1xf32>
    %463 = vector.broadcast %462 : vector<16x1xf32> to vector<16x32xf32>
    %464 = arith.mulf %459, %463 : vector<16x32xf32>
    %465 = vector.broadcast %444 : vector<1x32xf32> to vector<16x32xf32>
    %466 = arith.mulf %464, %465 : vector<16x32xf32>
    %467 = vector.broadcast %446 : vector<1x32xf32> to vector<16x32xf32>
    %468 = arith.addf %466, %467 : vector<16x32xf32>
    %c1_248 = arith.constant 1 : index
    %c0_249 = arith.constant 0 : index
    %c0_250 = arith.constant 0 : index
    %469 = vector.load %arg27[%c1_248, %c0_249, %c0_250] : memref<2x32x64xf32, #tpu.memory_space<vmem>>, vector<1x32x64xf32>
    %470 = vector.shape_cast %469 : vector<1x32x64xf32> to vector<32x64xf32>
    %cst_251 = arith.constant dense<0.000000e+00> : vector<16x64xf32>
    %471 = tpu.matmul %468, %470, %cst_251 {dimension_numbers = #tpu.dot_dimension_numbers<[1], [0], [0], [1], [0, 0, 1, 1], [], []>} : vector<16x32xf32>, vector<32x64xf32>, vector<16x64xf32> -> vector<16x64xf32>
    %c1_252 = arith.constant 1 : index
    %c0_253 = arith.constant 0 : index
    %c0_254 = arith.constant 0 : index
    %472 = vector.load %arg28[%c1_252, %c0_253, %c0_254] : memref<2x1x64xf32, #tpu.memory_space<vmem>>, vector<1x1x64xf32>
    %473 = vector.shape_cast %472 : vector<1x1x64xf32> to vector<1x64xf32>
    %474 = vector.broadcast %473 : vector<1x64xf32> to vector<16x64xf32>
    %475 = arith.addf %471, %474 : vector<16x64xf32>
    %cst_255 = arith.constant 0.000000e+00 : f32
    %476 = vector.broadcast %cst_255 : f32 to vector<16x64xf32>
    %477 = arith.maximumf %475, %476 : vector<16x64xf32>
    %c1_256 = arith.constant 1 : index
    %c0_257 = arith.constant 0 : index
    %c0_258 = arith.constant 0 : index
    %478 = vector.load %arg29[%c1_256, %c0_257, %c0_258] : memref<2x64x32xf32, #tpu.memory_space<vmem>>, vector<1x64x32xf32>
    %479 = vector.shape_cast %478 : vector<1x64x32xf32> to vector<64x32xf32>
    %cst_259 = arith.constant dense<0.000000e+00> : vector<16x32xf32>
    %480 = tpu.matmul %477, %479, %cst_259 {dimension_numbers = #tpu.dot_dimension_numbers<[1], [0], [0], [1], [0, 0, 1, 1], [], []>} : vector<16x64xf32>, vector<64x32xf32>, vector<16x32xf32> -> vector<16x32xf32>
    %481 = arith.addf %468, %480 : vector<16x32xf32>
    %c1_260 = arith.constant 1 : index
    %c0_261 = arith.constant 0 : index
    %c0_262 = arith.constant 0 : index
    %482 = vector.load %arg30[%c1_260, %c0_261, %c0_262] : memref<2x1x32xf32, #tpu.memory_space<vmem>>, vector<1x1x32xf32>
    %483 = vector.shape_cast %482 : vector<1x1x32xf32> to vector<1x32xf32>
    %484 = vector.broadcast %483 : vector<1x32xf32> to vector<16x32xf32>
    %485 = arith.addf %481, %484 : vector<16x32xf32>
    %c1_263 = arith.constant 1 : index
    %c0_264 = arith.constant 0 : index
    %c0_265 = arith.constant 0 : index
    %486 = vector.load %arg35[%c1_263, %c0_264, %c0_265] : memref<2x1x32xf32, #tpu.memory_space<vmem>>, vector<1x1x32xf32>
    %487 = vector.shape_cast %486 : vector<1x1x32xf32> to vector<1x32xf32>
    %c1_266 = arith.constant 1 : index
    %c0_267 = arith.constant 0 : index
    %c0_268 = arith.constant 0 : index
    %488 = vector.load %arg36[%c1_266, %c0_267, %c0_268] : memref<2x1x32xf32, #tpu.memory_space<vmem>>, vector<1x1x32xf32>
    %489 = vector.shape_cast %488 : vector<1x1x32xf32> to vector<1x32xf32>
    %cst_269 = arith.constant dense<0.000000e+00> : vector<16xf32>
    %490 = vector.multi_reduction <add>, %485, %cst_269 [1] : vector<16x32xf32> to vector<16xf32>
    %491 = vector.shape_cast %490 : vector<16xf32> to vector<16x1xf32>
    %cst_270 = arith.constant 3.200000e+01 : f32
    %492 = vector.broadcast %cst_270 : f32 to vector<16x1xf32>
    %493 = arith.divf %491, %492 : vector<16x1xf32>
    %494 = vector.broadcast %493 : vector<16x1xf32> to vector<16x32xf32>
    %495 = arith.subf %485, %494 : vector<16x32xf32>
    %496 = arith.mulf %495, %495 : vector<16x32xf32>
    %cst_271 = arith.constant dense<0.000000e+00> : vector<16xf32>
    %497 = vector.multi_reduction <add>, %496, %cst_271 [1] : vector<16x32xf32> to vector<16xf32>
    %498 = vector.shape_cast %497 : vector<16xf32> to vector<16x1xf32>
    %cst_272 = arith.constant 3.200000e+01 : f32
    %499 = vector.broadcast %cst_272 : f32 to vector<16x1xf32>
    %500 = arith.divf %498, %499 : vector<16x1xf32>
    %501 = vector.broadcast %493 : vector<16x1xf32> to vector<16x32xf32>
    %502 = arith.subf %485, %501 : vector<16x32xf32>
    %cst_273 = arith.constant 9.99999974E-6 : f32
    %503 = vector.broadcast %cst_273 : f32 to vector<16x1xf32>
    %504 = arith.addf %500, %503 : vector<16x1xf32>
    %505 = math.rsqrt %504 : vector<16x1xf32>
    %506 = vector.broadcast %505 : vector<16x1xf32> to vector<16x32xf32>
    %507 = arith.mulf %502, %506 : vector<16x32xf32>
    %508 = vector.broadcast %487 : vector<1x32xf32> to vector<16x32xf32>
    %509 = arith.mulf %507, %508 : vector<16x32xf32>
    %510 = vector.broadcast %489 : vector<1x32xf32> to vector<16x32xf32>
    %511 = arith.addf %509, %510 : vector<16x32xf32>
    %c0_274 = arith.constant 0 : index
    %c0_275 = arith.constant 0 : index
    %512 = vector.load %arg37[%c0_274, %c0_275] : memref<32x128xf32, #tpu.memory_space<vmem>>, vector<32x128xf32>
    %cst_276 = arith.constant dense<0.000000e+00> : vector<16x128xf32>
    %513 = tpu.matmul %511, %512, %cst_276 {dimension_numbers = #tpu.dot_dimension_numbers<[1], [0], [0], [1], [0, 0, 1, 1], [], []>} : vector<16x32xf32>, vector<32x128xf32>, vector<16x128xf32> -> vector<16x128xf32>
    %c0_277 = arith.constant 0 : index
    %c0_278 = arith.constant 0 : index
    %514 = vector.load %arg38[%c0_277, %c0_278] : memref<1x128xf32, #tpu.memory_space<vmem>>, vector<1x128xf32>
    %515 = vector.broadcast %514 : vector<1x128xf32> to vector<16x128xf32>
    %516 = arith.addf %513, %515 : vector<16x128xf32>
    %517 = vector.extract_strided_slice %516 {offsets = [0, 0], sizes = [8, 128], strides = [1, 1]} : vector<16x128xf32> to vector<8x128xf32>
    %c0_279 = arith.constant 0 : index
    %c0_280 = arith.constant 0 : index
    %c0_281 = arith.constant 0 : index
    %518 = vector.load %arg39[%c0_279, %c0_280, %c0_281] : memref<2x8x128xf32, #tpu.memory_space<vmem>>, vector<1x8x128xf32>
    %519 = vector.shape_cast %518 : vector<1x8x128xf32> to vector<8x128xf32>
    %520 = vector.shape_cast %517 : vector<8x128xf32> to vector<1x8x128xf32>
    tpu.vector_store %arg39[%c0_279, %c0_280, %c0_281], %520 {strides = array<i32>} : memref<2x8x128xf32, #tpu.memory_space<vmem>>, vector<1x8x128xf32>,
    %521 = vector.extract_strided_slice %516 {offsets = [8, 0], sizes = [8, 128], strides = [1, 1]} : vector<16x128xf32> to vector<8x128xf32>
    %c1_282 = arith.constant 1 : index
    %c0_283 = arith.constant 0 : index
    %c0_284 = arith.constant 0 : index
    %522 = vector.load %arg39[%c1_282, %c0_283, %c0_284] : memref<2x8x128xf32, #tpu.memory_space<vmem>>, vector<1x8x128xf32>
    %523 = vector.shape_cast %522 : vector<1x8x128xf32> to vector<8x128xf32>
    %524 = vector.shape_cast %521 : vector<8x128xf32> to vector<1x8x128xf32>
    tpu.vector_store %arg39[%c1_282, %c0_283, %c0_284], %524 {strides = array<i32>} : memref<2x8x128xf32, #tpu.memory_space<vmem>>, vector<1x8x128xf32>,
    return
  }
  func.func @transform_0(%arg0: i32) -> (i32, i32, i32) {
    %c0_i32 = arith.constant 0 : i32
    %c0_i32_0 = arith.constant 0 : i32
    %c0_i32_1 = arith.constant 0 : i32
    return %arg0, %c0_i32, %c0_i32_0 : i32, i32, i32
  }
  func.func @transform_1(%arg0: i32) -> (i32, i32, i32) {
    %c0_i32 = arith.constant 0 : i32
    %c0_i32_0 = arith.constant 0 : i32
    %c0_i32_1 = arith.constant 0 : i32
    return %arg0, %c0_i32, %c0_i32_0 : i32, i32, i32
  }
  func.func @transform_2(%arg0: i32) -> (i32, i32) {
    %c0_i32 = arith.constant 0 : i32
    %c0_i32_0 = arith.constant 0 : i32
    %c0_i32_1 = arith.constant 0 : i32
    return %c0_i32, %c0_i32_0 : i32, i32
  }
  func.func @transform_3(%arg0: i32) -> (i32, i32, i32) {
    %c0_i32 = arith.constant 0 : i32
    %c0_i32_0 = arith.constant 0 : i32
    %c0_i32_1 = arith.constant 0 : i32
    return %arg0, %c0_i32, %c0_i32_0 : i32, i32, i32
  }
  func.func @transform_4(%arg0: i32) -> (i32, i32) {
    %c0_i32 = arith.constant 0 : i32
    %c0_i32_0 = arith.constant 0 : i32
    %c0_i32_1 = arith.constant 0 : i32
    return %c0_i32, %c0_i32_0 : i32, i32
  }
  func.func @transform_5(%arg0: i32) -> (i32, i32) {
    %c0_i32 = arith.constant 0 : i32
    %c0_i32_0 = arith.constant 0 : i32
    %c0_i32_1 = arith.constant 0 : i32
    return %c0_i32, %c0_i32_0 : i32, i32
  }
  func.func @transform_6(%arg0: i32) -> (i32, i32) {
    %c0_i32 = arith.constant 0 : i32
    %c0_i32_0 = arith.constant 0 : i32
    %c0_i32_1 = arith.constant 0 : i32
    return %c0_i32, %c0_i32_0 : i32, i32
  }
  func.func @transform_7(%arg0: i32) -> (i32, i32) {
    %c0_i32 = arith.constant 0 : i32
    %c0_i32_0 = arith.constant 0 : i32
    %c0_i32_1 = arith.constant 0 : i32
    return %c0_i32, %c0_i32_0 : i32, i32
  }
  func.func @transform_8(%arg0: i32) -> (i32, i32) {
    %c0_i32 = arith.constant 0 : i32
    %c0_i32_0 = arith.constant 0 : i32
    %c0_i32_1 = arith.constant 0 : i32
    return %c0_i32, %c0_i32_0 : i32, i32
  }
  func.func @transform_9(%arg0: i32) -> (i32, i32) {
    %c0_i32 = arith.constant 0 : i32
    %c0_i32_0 = arith.constant 0 : i32
    %c0_i32_1 = arith.constant 0 : i32
    return %c0_i32, %c0_i32_0 : i32, i32
  }
  func.func @transform_10(%arg0: i32) -> (i32, i32, i32) {
    %c0_i32 = arith.constant 0 : i32
    %c0_i32_0 = arith.constant 0 : i32
    %c0_i32_1 = arith.constant 0 : i32
    %c0_i32_2 = arith.constant 0 : i32
    return %c0_i32, %c0_i32_0, %c0_i32_1 : i32, i32, i32
  }
  func.func @transform_11(%arg0: i32) -> (i32, i32, i32) {
    %c0_i32 = arith.constant 0 : i32
    %c0_i32_0 = arith.constant 0 : i32
    %c0_i32_1 = arith.constant 0 : i32
    %c0_i32_2 = arith.constant 0 : i32
    return %c0_i32, %c0_i32_0, %c0_i32_1 : i32, i32, i32
  }
  func.func @transform_12(%arg0: i32) -> (i32, i32, i32) {
    %c0_i32 = arith.constant 0 : i32
    %c0_i32_0 = arith.constant 0 : i32
    %c0_i32_1 = arith.constant 0 : i32
    %c0_i32_2 = arith.constant 0 : i32
    return %c0_i32, %c0_i32_0, %c0_i32_1 : i32, i32, i32
  }
  func.func @transform_13(%arg0: i32) -> (i32, i32, i32) {
    %c0_i32 = arith.constant 0 : i32
    %c0_i32_0 = arith.constant 0 : i32
    %c0_i32_1 = arith.constant 0 : i32
    %c0_i32_2 = arith.constant 0 : i32
    return %c0_i32, %c0_i32_0, %c0_i32_1 : i32, i32, i32
  }
  func.func @transform_14(%arg0: i32) -> (i32, i32, i32) {
    %c0_i32 = arith.constant 0 : i32
    %c0_i32_0 = arith.constant 0 : i32
    %c0_i32_1 = arith.constant 0 : i32
    %c0_i32_2 = arith.constant 0 : i32
    return %c0_i32, %c0_i32_0, %c0_i32_1 : i32, i32, i32
  }
  func.func @transform_15(%arg0: i32) -> (i32, i32, i32) {
    %c0_i32 = arith.constant 0 : i32
    %c0_i32_0 = arith.constant 0 : i32
    %c0_i32_1 = arith.constant 0 : i32
    %c0_i32_2 = arith.constant 0 : i32
    return %c0_i32, %c0_i32_0, %c0_i32_1 : i32, i32, i32
  }
  func.func @transform_16(%arg0: i32) -> (i32, i32, i32) {
    %c0_i32 = arith.constant 0 : i32
    %c0_i32_0 = arith.constant 0 : i32
    %c0_i32_1 = arith.constant 0 : i32
    %c0_i32_2 = arith.constant 0 : i32
    return %c0_i32, %c0_i32_0, %c0_i32_1 : i32, i32, i32
  }
  func.func @transform_17(%arg0: i32) -> (i32, i32, i32) {
    %c0_i32 = arith.constant 0 : i32
    %c0_i32_0 = arith.constant 0 : i32
    %c0_i32_1 = arith.constant 0 : i32
    %c0_i32_2 = arith.constant 0 : i32
    return %c0_i32, %c0_i32_0, %c0_i32_1 : i32, i32, i32
  }
  func.func @transform_18(%arg0: i32) -> (i32, i32, i32) {
    %c0_i32 = arith.constant 0 : i32
    %c0_i32_0 = arith.constant 0 : i32
    %c0_i32_1 = arith.constant 0 : i32
    %c0_i32_2 = arith.constant 0 : i32
    return %c0_i32, %c0_i32_0, %c0_i32_1 : i32, i32, i32
  }
  func.func @transform_19(%arg0: i32) -> (i32, i32, i32) {
    %c0_i32 = arith.constant 0 : i32
    %c0_i32_0 = arith.constant 0 : i32
    %c0_i32_1 = arith.constant 0 : i32
    %c0_i32_2 = arith.constant 0 : i32
    return %c0_i32, %c0_i32_0, %c0_i32_1 : i32, i32, i32
  }
  func.func @transform_20(%arg0: i32) -> (i32, i32, i32) {
    %c0_i32 = arith.constant 0 : i32
    %c0_i32_0 = arith.constant 0 : i32
    %c0_i32_1 = arith.constant 0 : i32
    %c0_i32_2 = arith.constant 0 : i32
    return %c0_i32, %c0_i32_0, %c0_i32_1 : i32, i32, i32
  }
  func.func @transform_21(%arg0: i32) -> (i32, i32, i32) {
    %c0_i32 = arith.constant 0 : i32
    %c0_i32_0 = arith.constant 0 : i32
    %c0_i32_1 = arith.constant 0 : i32
    %c0_i32_2 = arith.constant 0 : i32
    return %c0_i32, %c0_i32_0, %c0_i32_1 : i32, i32, i32
  }
  func.func @transform_22(%arg0: i32) -> (i32, i32, i32) {
    %c0_i32 = arith.constant 0 : i32
    %c0_i32_0 = arith.constant 0 : i32
    %c0_i32_1 = arith.constant 0 : i32
    %c0_i32_2 = arith.constant 0 : i32
    return %c0_i32, %c0_i32_0, %c0_i32_1 : i32, i32, i32
  }
  func.func @transform_23(%arg0: i32) -> (i32, i32, i32) {
    %c0_i32 = arith.constant 0 : i32
    %c0_i32_0 = arith.constant 0 : i32
    %c0_i32_1 = arith.constant 0 : i32
    %c0_i32_2 = arith.constant 0 : i32
    return %c0_i32, %c0_i32_0, %c0_i32_1 : i32, i32, i32
  }
  func.func @transform_24(%arg0: i32) -> (i32, i32, i32) {
    %c0_i32 = arith.constant 0 : i32
    %c0_i32_0 = arith.constant 0 : i32
    %c0_i32_1 = arith.constant 0 : i32
    %c0_i32_2 = arith.constant 0 : i32
    return %c0_i32, %c0_i32_0, %c0_i32_1 : i32, i32, i32
  }
  func.func @transform_25(%arg0: i32) -> (i32, i32, i32) {
    %c0_i32 = arith.constant 0 : i32
    %c0_i32_0 = arith.constant 0 : i32
    %c0_i32_1 = arith.constant 0 : i32
    %c0_i32_2 = arith.constant 0 : i32
    return %c0_i32, %c0_i32_0, %c0_i32_1 : i32, i32, i32
  }
  func.func @transform_26(%arg0: i32) -> (i32, i32, i32) {
    %c0_i32 = arith.constant 0 : i32
    %c0_i32_0 = arith.constant 0 : i32
    %c0_i32_1 = arith.constant 0 : i32
    %c0_i32_2 = arith.constant 0 : i32
    return %c0_i32, %c0_i32_0, %c0_i32_1 : i32, i32, i32
  }
  func.func @transform_27(%arg0: i32) -> (i32, i32, i32) {
    %c0_i32 = arith.constant 0 : i32
    %c0_i32_0 = arith.constant 0 : i32
    %c0_i32_1 = arith.constant 0 : i32
    %c0_i32_2 = arith.constant 0 : i32
    return %c0_i32, %c0_i32_0, %c0_i32_1 : i32, i32, i32
  }
  func.func @transform_28(%arg0: i32) -> (i32, i32, i32) {
    %c0_i32 = arith.constant 0 : i32
    %c0_i32_0 = arith.constant 0 : i32
    %c0_i32_1 = arith.constant 0 : i32
    %c0_i32_2 = arith.constant 0 : i32
    return %c0_i32, %c0_i32_0, %c0_i32_1 : i32, i32, i32
  }
  func.func @transform_29(%arg0: i32) -> (i32, i32, i32) {
    %c0_i32 = arith.constant 0 : i32
    %c0_i32_0 = arith.constant 0 : i32
    %c0_i32_1 = arith.constant 0 : i32
    %c0_i32_2 = arith.constant 0 : i32
    return %c0_i32, %c0_i32_0, %c0_i32_1 : i32, i32, i32
  }
  func.func @transform_30(%arg0: i32) -> (i32, i32, i32) {
    %c0_i32 = arith.constant 0 : i32
    %c0_i32_0 = arith.constant 0 : i32
    %c0_i32_1 = arith.constant 0 : i32
    %c0_i32_2 = arith.constant 0 : i32
    return %c0_i32, %c0_i32_0, %c0_i32_1 : i32, i32, i32
  }
  func.func @transform_31(%arg0: i32) -> (i32, i32, i32) {
    %c0_i32 = arith.constant 0 : i32
    %c0_i32_0 = arith.constant 0 : i32
    %c0_i32_1 = arith.constant 0 : i32
    %c0_i32_2 = arith.constant 0 : i32
    return %c0_i32, %c0_i32_0, %c0_i32_1 : i32, i32, i32
  }
  func.func @transform_32(%arg0: i32) -> (i32, i32, i32) {
    %c0_i32 = arith.constant 0 : i32
    %c0_i32_0 = arith.constant 0 : i32
    %c0_i32_1 = arith.constant 0 : i32
    %c0_i32_2 = arith.constant 0 : i32
    return %c0_i32, %c0_i32_0, %c0_i32_1 : i32, i32, i32
  }
  func.func @transform_33(%arg0: i32) -> (i32, i32, i32) {
    %c0_i32 = arith.constant 0 : i32
    %c0_i32_0 = arith.constant 0 : i32
    %c0_i32_1 = arith.constant 0 : i32
    %c0_i32_2 = arith.constant 0 : i32
    return %c0_i32, %c0_i32_0, %c0_i32_1 : i32, i32, i32
  }
  func.func @transform_34(%arg0: i32) -> (i32, i32, i32) {
    %c0_i32 = arith.constant 0 : i32
    %c0_i32_0 = arith.constant 0 : i32
    %c0_i32_1 = arith.constant 0 : i32
    %c0_i32_2 = arith.constant 0 : i32
    return %c0_i32, %c0_i32_0, %c0_i32_1 : i32, i32, i32
  }
  func.func @transform_35(%arg0: i32) -> (i32, i32, i32) {
    %c0_i32 = arith.constant 0 : i32
    %c0_i32_0 = arith.constant 0 : i32
    %c0_i32_1 = arith.constant 0 : i32
    %c0_i32_2 = arith.constant 0 : i32
    return %c0_i32, %c0_i32_0, %c0_i32_1 : i32, i32, i32
  }
  func.func @transform_36(%arg0: i32) -> (i32, i32) {
    %c0_i32 = arith.constant 0 : i32
    %c0_i32_0 = arith.constant 0 : i32
    %c0_i32_1 = arith.constant 0 : i32
    return %c0_i32, %c0_i32_0 : i32, i32
  }
  func.func @transform_37(%arg0: i32) -> (i32, i32) {
    %c0_i32 = arith.constant 0 : i32
    %c0_i32_0 = arith.constant 0 : i32
    %c0_i32_1 = arith.constant 0 : i32
    return %c0_i32, %c0_i32_0 : i32, i32
  }
  func.func @transform_38(%arg0: i32) -> (i32, i32, i32) {
    %c0_i32 = arith.constant 0 : i32
    %c0_i32_0 = arith.constant 0 : i32
    %c0_i32_1 = arith.constant 0 : i32
    return %arg0, %c0_i32, %c0_i32_0 : i32, i32, i32
  }
}

</mosaic_0001>

<llo_original>
// kernel: tpu_custom_call.1
$region0: #{tpu_custom_call.1}
  #allocation0 [shape = 'u32[]', space=smem, size = 0x4, offset = 0x4, fixed_abs, tag = 'smem constant byte address 0x4 - core index']
  #allocation1 [shape = 'u32[144,128]{1,0:T(1,128)}', space=vmem, size = 0x12000, scoped, tag = 'internal scratch']
  %s0 = inlined_call_operand.smem [shape: u32[39], index: -1, kind: input, shape index: {}]
  %s1 = sld [smem:[%s0]]
  %s2 = scalar_lea.smem %s0, 1
  %s3 = sld [smem:[%s2]]
  %s4 = scalar_lea.smem %s0, 2
  %s5 = sld [smem:[%s4]]
  %s6 = scalar_lea.smem %s0, 3
  %s7 = sld [smem:[%s6]]
  %s8 = scalar_lea.smem %s0, 4
  %s9 = sld [smem:[%s8]]
  %s10 = scalar_lea.smem %s0, 5
  %s11 = sld [smem:[%s10]]
  %s12 = scalar_lea.smem %s0, 6
  %s13 = sld [smem:[%s12]]
  %s14 = scalar_lea.smem %s0, 7
  %s15 = sld [smem:[%s14]]
  %s16 = scalar_lea.smem %s0, 8
  %s17 = sld [smem:[%s16]]
  %s18 = scalar_lea.smem %s0, 9
  %s19 = sld [smem:[%s18]]
  %s20 = scalar_lea.smem %s0, 10
  %s21 = sld [smem:[%s20]]
  %s22 = scalar_lea.smem %s0, 11
  %s23 = sld [smem:[%s22]]
  %s24 = scalar_lea.smem %s0, 12
  %s25 = sld [smem:[%s24]]
  %s26 = scalar_lea.smem %s0, 13
  %s27 = sld [smem:[%s26]]
  %s28 = scalar_lea.smem %s0, 14
  %s29 = sld [smem:[%s28]]
  %s30 = scalar_lea.smem %s0, 15
  %s31 = sld [smem:[%s30]]
  %s32 = scalar_lea.smem %s0, 16
  %s33 = sld [smem:[%s32]]
  %s34 = scalar_lea.smem %s0, 17
  %s35 = sld [smem:[%s34]]
  %s36 = scalar_lea.smem %s0, 18
  %s37 = sld [smem:[%s36]]
  %s38 = scalar_lea.smem %s0, 19
  %s39 = sld [smem:[%s38]]
  %s40 = scalar_lea.smem %s0, 20
  %s41 = sld [smem:[%s40]]
  %s42 = scalar_lea.smem %s0, 21
  %s43 = sld [smem:[%s42]]
  %s44 = scalar_lea.smem %s0, 22
  %s45 = sld [smem:[%s44]]
  %s46 = scalar_lea.smem %s0, 23
  %s47 = sld [smem:[%s46]]
  %s48 = scalar_lea.smem %s0, 24
  %s49 = sld [smem:[%s48]]
  %s50 = scalar_lea.smem %s0, 25
  %s51 = sld [smem:[%s50]]
  %s52 = scalar_lea.smem %s0, 26
  %s53 = sld [smem:[%s52]]
  %s54 = scalar_lea.smem %s0, 27
  %s55 = sld [smem:[%s54]]
  %s56 = scalar_lea.smem %s0, 28
  %s57 = sld [smem:[%s56]]
  %s58 = scalar_lea.smem %s0, 29
  %s59 = sld [smem:[%s58]]
  %s60 = scalar_lea.smem %s0, 30
  %s61 = sld [smem:[%s60]]
  %s62 = scalar_lea.smem %s0, 31
  %s63 = sld [smem:[%s62]]
  %s64 = scalar_lea.smem %s0, 32
  %s65 = sld [smem:[%s64]]
  %s66 = scalar_lea.smem %s0, 33
  %s67 = sld [smem:[%s66]]
  %s68 = scalar_lea.smem %s0, 34
  %s69 = sld [smem:[%s68]]
  %s70 = scalar_lea.smem %s0, 35
  %s71 = sld [smem:[%s70]]
  %s72 = scalar_lea.smem %s0, 36
  %s73 = sld [smem:[%s72]]
  %s74 = scalar_lea.smem %s0, 37
  %s75 = sld [smem:[%s74]]
  %s76 = scalar_lea.smem %s0, 38
  %s77 = sld [smem:[%s76]]
  %s78 = sld [smem:[#allocation0]]
  $region269: #{tpu_custom_call.1} parent=0
    _
  %s80 = ssub.s32 1, %s78
  %s81 = scalar_select 0, %s80, %s78
  $region1: #{tpu_custom_call.1} parent=0
    #allocation2 [shape = 'u8[16384]{0}', space=vmem, size = 0x4000, scoped, tag = 'input window, operand 0']
    #allocation3 [shape = 's32[2]{0}', space=sflag, size = 0x8, scoped, tag = 'scoped memory for tpu_custom_call.1']
    #allocation4 [shape = 's32[2]{0}', space=sflag, size = 0x8, scoped, tag = 'scoped memory for tpu_custom_call.1']
    #allocation5 [shape = 'u8[16384]{0}', space=vmem, size = 0x4000, scoped, tag = 'input window, operand 1']
    #allocation6 [shape = 's32[2]{0}', space=sflag, size = 0x8, scoped, tag = 'scoped memory for tpu_custom_call.1']
    #allocation7 [shape = 'u8[4096]{0}', space=vmem, size = 0x1000, scoped, tag = 'input window, operand 2, single buffered']
    #allocation8 [shape = 'u8[2048]{0}', space=vmem, size = 0x800, scoped, tag = 'input window, operand 3']
    #allocation9 [shape = 's32[2]{0}', space=sflag, size = 0x8, scoped, tag = 'scoped memory for tpu_custom_call.1']
    #allocation10 [shape = 'u8[16384]{0}', space=vmem, size = 0x4000, scoped, tag = 'input window, operand 4, single buffered']
    #allocation11 [shape = 'u8[16384]{0}', space=vmem, size = 0x4000, scoped, tag = 'input window, operand 5, single buffered']
    #allocation12 [shape = 's32[1]{0}', space=sflag, size = 0x4, scoped, tag = 'scoped memory for tpu_custom_call.1']
    #allocation13 [shape = 'u8[16384]{0}', space=vmem, size = 0x4000, scoped, tag = 'input window, operand 6, single buffered']
    #allocation14 [shape = 'u8[16384]{0}', space=vmem, size = 0x4000, scoped, tag = 'input window, operand 7, single buffered']
    #allocation15 [shape = 's32[1]{0}', space=sflag, size = 0x4, scoped, tag = 'scoped memory for tpu_custom_call.1']
    #allocation16 [shape = 'u8[8192]{0}', space=vmem, size = 0x2000, scoped, tag = 'input window, operand 8, single buffered']
    #allocation17 [shape = 'u8[512]{0}', space=vmem, size = 0x400, scoped, tag = 'input window, operand 9, single buffered']
    #allocation18 [shape = 's32[1]{0}', space=sflag, size = 0x4, scoped, tag = 'scoped memory for tpu_custom_call.1']
    #allocation19 [shape = 'u8[1024]{0}', space=vmem, size = 0x400, scoped, tag = 'input window, operand 11, single buffered']
    #allocation20 [shape = 'u8[1024]{0}', space=vmem, size = 0x400, scoped, tag = 'input window, operand 13, single buffered']
    #allocation21 [shape = 's32[1]{0}', space=sflag, size = 0x4, scoped, tag = 'scoped memory for tpu_custom_call.1']
    #allocation22 [shape = 'u8[1024]{0}', space=vmem, size = 0x400, scoped, tag = 'input window, operand 15, single buffered']
    #allocation23 [shape = 'u8[32768]{0}', space=vmem, size = 0x8000, scoped, tag = 'input window, operand 16, single buffered']
    #allocation24 [shape = 's32[1]{0}', space=sflag, size = 0x4, scoped, tag = 'scoped memory for tpu_custom_call.1']
    #allocation25 [shape = 'u8[1024]{0}', space=vmem, size = 0x400, scoped, tag = 'input window, operand 17, single buffered']
    #allocation26 [shape = 'u8[32768]{0}', space=vmem, size = 0x8000, scoped, tag = 'input window, operand 18, single buffered']
    #allocation27 [shape = 's32[1]{0}', space=sflag, size = 0x4, scoped, tag = 'scoped memory for tpu_custom_call.1']
    #allocation28 [shape = 'u8[1024]{0}', space=vmem, size = 0x400, scoped, tag = 'input window, operand 19, single buffered']
    #allocation29 [shape = 'u8[32768]{0}', space=vmem, size = 0x8000, scoped, tag = 'input window, operand 20, single buffered']
    #allocation30 [shape = 's32[1]{0}', space=sflag, size = 0x4, scoped, tag = 'scoped memory for tpu_custom_call.1']
    #allocation31 [shape = 'u8[32768]{0}', space=vmem, size = 0x8000, scoped, tag = 'input window, operand 22, single buffered']
    #allocation32 [shape = 'u8[32768]{0}', space=vmem, size = 0x8000, scoped, tag = 'input window, operand 24, single buffered']
    #allocation33 [shape = 's32[1]{0}', space=sflag, size = 0x4, scoped, tag = 'scoped memory for tpu_custom_call.1']
    #allocation34 [shape = 'u8[32768]{0}', space=vmem, size = 0x8000, scoped, tag = 'input window, operand 26, single buffered']
    #allocation35 [shape = 'u8[16384]{0}', space=vmem, size = 0x4000, scoped, tag = 'output window, operand 0']
    %82 = vsyncpa [#allocation3], 0
    %s83 = scalar_lea.sflag [#allocation3], 1
    %84 = vsyncpa %s83, 0
    %85 = vsyncpa [#allocation6], 0
    %s86 = scalar_lea.sflag [#allocation6], 1
    %87 = vsyncpa %s86, 0
    %88 = vsyncpa [#allocation9], 0
    %s89 = scalar_lea.sflag [#allocation9], 1
    %90 = vsyncpa %s89, 0
    %91 = vsyncpa [#allocation12], 0
    %92 = vsyncpa [#allocation15], 0
    %93 = vsyncpa [#allocation18], 0
    %94 = vsyncpa [#allocation21], 0
    %95 = vsyncpa [#allocation24], 0
    %96 = vsyncpa [#allocation27], 0
    %97 = vsyncpa [#allocation30], 0
    %98 = vsyncpa [#allocation33], 0
    %99 = vsyncpa [#allocation4], 0
    %s100 = scalar_lea.sflag [#allocation4], 1
    %101 = vsyncpa %s100, 0
    loop: start=0, step=1, limit=4
    $region2: #{tpu_custom_call.1} parent=1 // loop_pre_header
      _
    $region3: #{tpu_custom_call.1} parent=1 // loop_header
      %s103 = sphi 0, %s107
      %p104 = scmp.ge.s32.totalorder %s103, 4
      %s113 = sphi 0, %s115
      %s116 = sphi 0, %s113
      %s117 = sphi 0, %s116
      %s133 = sphi 0, %s117
      %s139 = sphi 0, %s141
      %s142 = sphi 0, %s139
      %s143 = sphi 0, %s142
      %s159 = sphi 0, %s143
      %s163 = sphi 0, %s163
      %s165 = sphi 0, %s163
      %s166 = sphi 0, %s165
      %s180 = sphi 0, %s166
      %s186 = sphi 0, %s188
      %s189 = sphi 0, %s186
      %s190 = sphi 0, %s189
      %s206 = sphi 0, %s190
      %s210 = sphi 0, %s210
      %s212 = sphi 0, %s210
      %s213 = sphi 0, %s212
      %s227 = sphi 0, %s213
      %s231 = sphi 0, %s231
      %s233 = sphi 0, %s231
      %s234 = sphi 0, %s233
      %s248 = sphi 0, %s234
      %s252 = sphi 0, %s252
      %s254 = sphi 0, %s252
      %s255 = sphi 0, %s254
      %s269 = sphi 0, %s255
      %s273 = sphi 0, %s273
      %s275 = sphi 0, %s273
      %s276 = sphi 0, %s275
      %s290 = sphi 0, %s276
      %s294 = sphi 0, %s294
      %s296 = sphi 0, %s294
      %s297 = sphi 0, %s296
      %s311 = sphi 0, %s297
      %s315 = sphi 0, %s315
      %s317 = sphi 0, %s315
      %s318 = sphi 0, %s317
      %s332 = sphi 0, %s318
      %s336 = sphi 0, %s336
      %s338 = sphi 0, %s336
      %s339 = sphi 0, %s338
      %s353 = sphi 0, %s339
      %s357 = sphi 0, %s357
      %s359 = sphi 0, %s357
      %s360 = sphi 0, %s359
      %s374 = sphi 0, %s360
      %s378 = sphi 0, %s378
      %s380 = sphi 0, %s378
      %s381 = sphi 0, %s380
      %s395 = sphi 0, %s381
      %s399 = sphi 0, %s399
      %s401 = sphi 0, %s399
      %s402 = sphi 0, %s401
      %s416 = sphi 0, %s402
      %s420 = sphi 0, %s420
      %s422 = sphi 0, %s420
      %s423 = sphi 0, %s422
      %s437 = sphi 0, %s423
      %s441 = sphi 0, %s441
      %s443 = sphi 0, %s441
      %s444 = sphi 0, %s443
      %s458 = sphi 0, %s444
      %s462 = sphi 0, %s462
      %s464 = sphi 0, %s462
      %s465 = sphi 0, %s464
      %s479 = sphi 0, %s465
      %s483 = sphi 0, %s483
      %s485 = sphi 0, %s483
      %s486 = sphi 0, %s485
      %s500 = sphi 0, %s486
      %s504 = sphi 0, %s504
      %s506 = sphi 0, %s504
      %s507 = sphi 0, %s506
      %s521 = sphi 0, %s507
      %s525 = sphi 0, %s525
      %s527 = sphi 0, %s525
      %s528 = sphi 0, %s527
      %s542 = sphi 0, %s528
      %s546 = sphi 0, %s546
      %s548 = sphi 0, %s546
      %s549 = sphi 0, %s548
      %s563 = sphi 0, %s549
      %s567 = sphi 0, %s567
      %s569 = sphi 0, %s567
      %s570 = sphi 0, %s569
      %s584 = sphi 0, %s570
      %s588 = sphi 0, %s588
      %s590 = sphi 0, %s588
      %s591 = sphi 0, %s590
      %s605 = sphi 0, %s591
      %s609 = sphi 0, %s609
      %s611 = sphi 0, %s609
      %s612 = sphi 0, %s611
      %s626 = sphi 0, %s612
      %s630 = sphi 0, %s630
      %s632 = sphi 0, %s630
      %s633 = sphi 0, %s632
      %s647 = sphi 0, %s633
      %s651 = sphi 0, %s651
      %s653 = sphi 0, %s651
      %s654 = sphi 0, %s653
      %s668 = sphi 0, %s654
      %s672 = sphi 0, %s672
      %s674 = sphi 0, %s672
      %s675 = sphi 0, %s674
      %s689 = sphi 0, %s675
      %s693 = sphi 0, %s693
      %s695 = sphi 0, %s693
      %s696 = sphi 0, %s695
      %s710 = sphi 0, %s696
      %s714 = sphi 0, %s714
      %s716 = sphi 0, %s714
      %s717 = sphi 0, %s716
      %s731 = sphi 0, %s717
      %s735 = sphi 0, %s735
      %s737 = sphi 0, %s735
      %s738 = sphi 0, %s737
      %s752 = sphi 0, %s738
      %s756 = sphi 0, %s756
      %s758 = sphi 0, %s756
      %s759 = sphi 0, %s758
      %s773 = sphi 0, %s759
      %s777 = sphi 0, %s777
      %s779 = sphi 0, %s777
      %s780 = sphi 0, %s779
      %s794 = sphi 0, %s780
      %s798 = sphi 0, %s798
      %s800 = sphi 0, %s798
      %s801 = sphi 0, %s800
      %s815 = sphi 0, %s801
      %s819 = sphi 0, %s819
      %s821 = sphi 0, %s819
      %s822 = sphi 0, %s821
      %s836 = sphi 0, %s822
      %s840 = sphi 0, %s840
      %s842 = sphi 0, %s840
      %s843 = sphi 0, %s842
      %s857 = sphi 0, %s843
      %s861 = sphi 0, %s861
      %s863 = sphi 0, %s861
      %s864 = sphi 0, %s863
      %s878 = sphi 0, %s864
      %s882 = sphi 0, %s882
      %s884 = sphi 0, %s882
      %s885 = sphi 0, %s884
      %s899 = sphi 0, %s885
      %s903 = sphi 0, %s903
      %s905 = sphi 0, %s903
      %s906 = sphi 0, %s905
      %s920 = sphi 0, %s906
      %s926 = sphi 0, %s928
      %s929 = sphi 0, %s926
      %s930 = sphi 0, %s929
      %s946 = sphi 0, %s930
    $region4: #{tpu_custom_call.1} parent=1 // loop_header_branch
      %106 = sbr.rel (%p104) target = $region8
    $region5: #{tpu_custom_call.1} parent=1 // loop_body
      %s108 = ssub.s32 %s103, 1
      %s109 = ssub.s32 %s103, 2
      %s110 = sadd.s32 %s103, 1
      %s111 = ssub.s32 %s103, %s110
      %p112 = scmp.eq.s32.totalorder %s111, 0
      %s114 = sadd.s32 %s113, 1
      %s115 = scalar_select %p112, %s113, %s114
      %p118 = pneg %p112
      %p119 = scmp.eq.s32.totalorder %s103, 1
      %p120 = por %p118, %p119
      %p121 = scmp.ne.s32.totalorder %s113, %s116
      %p122 = scmp.eq.s32.totalorder %s103, 0
      %p123 = por %p121, %p122
      %p124 = scmp.ne.s32.totalorder %s113, %s116
      %p125 = scmp.eq.s32.totalorder %s108, 1
      %p126 = por %p124, %p125
      %p127 = scmp.ne.s32.totalorder %s116, %s117
      %p128 = scmp.eq.s32.totalorder %s108, 0
      %p129 = por %p127, %p128
      %p130 = scmp.ne.s32.totalorder %s116, %s117
      %p131 = scmp.eq.s32.totalorder %s109, 1
      %p132 = por %p130, %p131
      %p134 = scmp.ne.s32.totalorder %s117, %s133
      %p135 = scmp.eq.s32.totalorder %s109, 0
      %p136 = por %p134, %p135
      %s137 = ssub.s32 %s103, %s110
      %p138 = scmp.eq.s32.totalorder %s137, 0
      %s140 = sadd.s32 %s139, 1
      %s141 = scalar_select %p138, %s139, %s140
      %p144 = pneg %p138
      %p145 = scmp.eq.s32.totalorder %s103, 1
      %p146 = por %p144, %p145
      %p147 = scmp.ne.s32.totalorder %s139, %s142
      %p148 = scmp.eq.s32.totalorder %s103, 0
      %p149 = por %p147, %p148
      %p150 = scmp.ne.s32.totalorder %s139, %s142
      %p151 = scmp.eq.s32.totalorder %s108, 1
      %p152 = por %p150, %p151
      %p153 = scmp.ne.s32.totalorder %s142, %s143
      %p154 = scmp.eq.s32.totalorder %s108, 0
      %p155 = por %p153, %p154
      %p156 = scmp.ne.s32.totalorder %s142, %s143
      %p157 = scmp.eq.s32.totalorder %s109, 1
      %p158 = por %p156, %p157
      %p160 = scmp.ne.s32.totalorder %s143, %s159
      %p161 = scmp.eq.s32.totalorder %s109, 0
      %p162 = por %p160, %p161
      %s164 = sadd.s32 %s163, 1
      %p167 = scmp.eq.s32.totalorder %s103, 1
      %p168 = scmp.ne.s32.totalorder %s163, %s165
      %p169 = scmp.eq.s32.totalorder %s103, 0
      %p170 = por %p168, %p169
      %p171 = scmp.ne.s32.totalorder %s163, %s165
      %p172 = scmp.eq.s32.totalorder %s108, 1
      %p173 = por %p171, %p172
      %p174 = scmp.ne.s32.totalorder %s165, %s166
      %p175 = scmp.eq.s32.totalorder %s108, 0
      %p176 = por %p174, %p175
      %p177 = scmp.ne.s32.totalorder %s165, %s166
      %p178 = scmp.eq.s32.totalorder %s109, 1
      %p179 = por %p177, %p178
      %p181 = scmp.ne.s32.totalorder %s166, %s180
      %p182 = scmp.eq.s32.totalorder %s109, 0
      %p183 = por %p181, %p182
      %s184 = ssub.s32 %s103, %s110
      %p185 = scmp.eq.s32.totalorder %s184, 0
      %s187 = sadd.s32 %s186, 1
      %s188 = scalar_select %p185, %s186, %s187
      %p191 = pneg %p185
      %p192 = scmp.eq.s32.totalorder %s103, 1
      %p193 = por %p191, %p192
      %p194 = scmp.ne.s32.totalorder %s186, %s189
      %p195 = scmp.eq.s32.totalorder %s103, 0
      %p196 = por %p194, %p195
      %p197 = scmp.ne.s32.totalorder %s186, %s189
      %p198 = scmp.eq.s32.totalorder %s108, 1
      %p199 = por %p197, %p198
      %p200 = scmp.ne.s32.totalorder %s189, %s190
      %p201 = scmp.eq.s32.totalorder %s108, 0
      %p202 = por %p200, %p201
      %p203 = scmp.ne.s32.totalorder %s189, %s190
      %p204 = scmp.eq.s32.totalorder %s109, 1
      %p205 = por %p203, %p204
      %p207 = scmp.ne.s32.totalorder %s190, %s206
      %p208 = scmp.eq.s32.totalorder %s109, 0
      %p209 = por %p207, %p208
      %s211 = sadd.s32 %s210, 1
      %p214 = scmp.eq.s32.totalorder %s103, 1
      %p215 = scmp.ne.s32.totalorder %s210, %s212
      %p216 = scmp.eq.s32.totalorder %s103, 0
      %p217 = por %p215, %p216
      %p218 = scmp.ne.s32.totalorder %s210, %s212
      %p219 = scmp.eq.s32.totalorder %s108, 1
      %p220 = por %p218, %p219
      %p221 = scmp.ne.s32.totalorder %s212, %s213
      %p222 = scmp.eq.s32.totalorder %s108, 0
      %p223 = por %p221, %p222
      %p224 = scmp.ne.s32.totalorder %s212, %s213
      %p225 = scmp.eq.s32.totalorder %s109, 1
      %p226 = por %p224, %p225
      %p228 = scmp.ne.s32.totalorder %s213, %s227
      %p229 = scmp.eq.s32.totalorder %s109, 0
      %p230 = por %p228, %p229
      %s232 = sadd.s32 %s231, 1
      %p235 = scmp.eq.s32.totalorder %s103, 1
      %p236 = scmp.ne.s32.totalorder %s231, %s233
      %p237 = scmp.eq.s32.totalorder %s103, 0
      %p238 = por %p236, %p237
      %p239 = scmp.ne.s32.totalorder %s231, %s233
      %p240 = scmp.eq.s32.totalorder %s108, 1
      %p241 = por %p239, %p240
      %p242 = scmp.ne.s32.totalorder %s233, %s234
      %p243 = scmp.eq.s32.totalorder %s108, 0
      %p244 = por %p242, %p243
      %p245 = scmp.ne.s32.totalorder %s233, %s234
      %p246 = scmp.eq.s32.totalorder %s109, 1
      %p247 = por %p245, %p246
      %p249 = scmp.ne.s32.totalorder %s234, %s248
      %p250 = scmp.eq.s32.totalorder %s109, 0
      %p251 = por %p249, %p250
      %s253 = sadd.s32 %s252, 1
      %p256 = scmp.eq.s32.totalorder %s103, 1
      %p257 = scmp.ne.s32.totalorder %s252, %s254
      %p258 = scmp.eq.s32.totalorder %s103, 0
      %p259 = por %p257, %p258
      %p260 = scmp.ne.s32.totalorder %s252, %s254
      %p261 = scmp.eq.s32.totalorder %s108, 1
      %p262 = por %p260, %p261
      %p263 = scmp.ne.s32.totalorder %s254, %s255
      %p264 = scmp.eq.s32.totalorder %s108, 0
      %p265 = por %p263, %p264
      %p266 = scmp.ne.s32.totalorder %s254, %s255
      %p267 = scmp.eq.s32.totalorder %s109, 1
      %p268 = por %p266, %p267
      %p270 = scmp.ne.s32.totalorder %s255, %s269
      %p271 = scmp.eq.s32.totalorder %s109, 0
      %p272 = por %p270, %p271
      %s274 = sadd.s32 %s273, 1
      %p277 = scmp.eq.s32.totalorder %s103, 1
      %p278 = scmp.ne.s32.totalorder %s273, %s275
      %p279 = scmp.eq.s32.totalorder %s103, 0
      %p280 = por %p278, %p279
      %p281 = scmp.ne.s32.totalorder %s273, %s275
      %p282 = scmp.eq.s32.totalorder %s108, 1
      %p283 = por %p281, %p282
      %p284 = scmp.ne.s32.totalorder %s275, %s276
      %p285 = scmp.eq.s32.totalorder %s108, 0
      %p286 = por %p284, %p285
      %p287 = scmp.ne.s32.totalorder %s275, %s276
      %p288 = scmp.eq.s32.totalorder %s109, 1
      %p289 = por %p287, %p288
      %p291 = scmp.ne.s32.totalorder %s276, %s290
      %p292 = scmp.eq.s32.totalorder %s109, 0
      %p293 = por %p291, %p292
      %s295 = sadd.s32 %s294, 1
      %p298 = scmp.eq.s32.totalorder %s103, 1
      %p299 = scmp.ne.s32.totalorder %s294, %s296
      %p300 = scmp.eq.s32.totalorder %s103, 0
      %p301 = por %p299, %p300
      %p302 = scmp.ne.s32.totalorder %s294, %s296
      %p303 = scmp.eq.s32.totalorder %s108, 1
      %p304 = por %p302, %p303
      %p305 = scmp.ne.s32.totalorder %s296, %s297
      %p306 = scmp.eq.s32.totalorder %s108, 0
      %p307 = por %p305, %p306
      %p308 = scmp.ne.s32.totalorder %s296, %s297
      %p309 = scmp.eq.s32.totalorder %s109, 1
      %p310 = por %p308, %p309
      %p312 = scmp.ne.s32.totalorder %s297, %s311
      %p313 = scmp.eq.s32.totalorder %s109, 0
      %p314 = por %p312, %p313
      %s316 = sadd.s32 %s315, 1
      %p319 = scmp.eq.s32.totalorder %s103, 1
      %p320 = scmp.ne.s32.totalorder %s315, %s317
      %p321 = scmp.eq.s32.totalorder %s103, 0
      %p322 = por %p320, %p321
      %p323 = scmp.ne.s32.totalorder %s315, %s317
      %p324 = scmp.eq.s32.totalorder %s108, 1
      %p325 = por %p323, %p324
      %p326 = scmp.ne.s32.totalorder %s317, %s318
      %p327 = scmp.eq.s32.totalorder %s108, 0
      %p328 = por %p326, %p327
      %p329 = scmp.ne.s32.totalorder %s317, %s318
      %p330 = scmp.eq.s32.totalorder %s109, 1
      %p331 = por %p329, %p330
      %p333 = scmp.ne.s32.totalorder %s318, %s332
      %p334 = scmp.eq.s32.totalorder %s109, 0
      %p335 = por %p333, %p334
      %s337 = sadd.s32 %s336, 1
      %p340 = scmp.eq.s32.totalorder %s103, 1
      %p341 = scmp.ne.s32.totalorder %s336, %s338
      %p342 = scmp.eq.s32.totalorder %s103, 0
      %p343 = por %p341, %p342
      %p344 = scmp.ne.s32.totalorder %s336, %s338
      %p345 = scmp.eq.s32.totalorder %s108, 1
      %p346 = por %p344, %p345
      %p347 = scmp.ne.s32.totalorder %s338, %s339
      %p348 = scmp.eq.s32.totalorder %s108, 0
      %p349 = por %p347, %p348
      %p350 = scmp.ne.s32.totalorder %s338, %s339
      %p351 = scmp.eq.s32.totalorder %s109, 1
      %p352 = por %p350, %p351
      %p354 = scmp.ne.s32.totalorder %s339, %s353
      %p355 = scmp.eq.s32.totalorder %s109, 0
      %p356 = por %p354, %p355
      %s358 = sadd.s32 %s357, 1
      %p361 = scmp.eq.s32.totalorder %s103, 1
      %p362 = scmp.ne.s32.totalorder %s357, %s359
      %p363 = scmp.eq.s32.totalorder %s103, 0
      %p364 = por %p362, %p363
      %p365 = scmp.ne.s32.totalorder %s357, %s359
      %p366 = scmp.eq.s32.totalorder %s108, 1
      %p367 = por %p365, %p366
      %p368 = scmp.ne.s32.totalorder %s359, %s360
      %p369 = scmp.eq.s32.totalorder %s108, 0
      %p370 = por %p368, %p369
      %p371 = scmp.ne.s32.totalorder %s359, %s360
      %p372 = scmp.eq.s32.totalorder %s109, 1
      %p373 = por %p371, %p372
      %p375 = scmp.ne.s32.totalorder %s360, %s374
      %p376 = scmp.eq.s32.totalorder %s109, 0
      %p377 = por %p375, %p376
      %s379 = sadd.s32 %s378, 1
      %p382 = scmp.eq.s32.totalorder %s103, 1
      %p383 = scmp.ne.s32.totalorder %s378, %s380
      %p384 = scmp.eq.s32.totalorder %s103, 0
      %p385 = por %p383, %p384
      %p386 = scmp.ne.s32.totalorder %s378, %s380
      %p387 = scmp.eq.s32.totalorder %s108, 1
      %p388 = por %p386, %p387
      %p389 = scmp.ne.s32.totalorder %s380, %s381
      %p390 = scmp.eq.s32.totalorder %s108, 0
      %p391 = por %p389, %p390
      %p392 = scmp.ne.s32.totalorder %s380, %s381
      %p393 = scmp.eq.s32.totalorder %s109, 1
      %p394 = por %p392, %p393
      %p396 = scmp.ne.s32.totalorder %s381, %s395
      %p397 = scmp.eq.s32.totalorder %s109, 0
      %p398 = por %p396, %p397
      %s400 = sadd.s32 %s399, 1
      %p403 = scmp.eq.s32.totalorder %s103, 1
      %p404 = scmp.ne.s32.totalorder %s399, %s401
      %p405 = scmp.eq.s32.totalorder %s103, 0
      %p406 = por %p404, %p405
      %p407 = scmp.ne.s32.totalorder %s399, %s401
      %p408 = scmp.eq.s32.totalorder %s108, 1
      %p409 = por %p407, %p408
      %p410 = scmp.ne.s32.totalorder %s401, %s402
      %p411 = scmp.eq.s32.totalorder %s108, 0
      %p412 = por %p410, %p411
      %p413 = scmp.ne.s32.totalorder %s401, %s402
      %p414 = scmp.eq.s32.totalorder %s109, 1
      %p415 = por %p413, %p414
      %p417 = scmp.ne.s32.totalorder %s402, %s416
      %p418 = scmp.eq.s32.totalorder %s109, 0
      %p419 = por %p417, %p418
      %s421 = sadd.s32 %s420, 1
      %p424 = scmp.eq.s32.totalorder %s103, 1
      %p425 = scmp.ne.s32.totalorder %s420, %s422
      %p426 = scmp.eq.s32.totalorder %s103, 0
      %p427 = por %p425, %p426
      %p428 = scmp.ne.s32.totalorder %s420, %s422
      %p429 = scmp.eq.s32.totalorder %s108, 1
      %p430 = por %p428, %p429
      %p431 = scmp.ne.s32.totalorder %s422, %s423
      %p432 = scmp.eq.s32.totalorder %s108, 0
      %p433 = por %p431, %p432
      %p434 = scmp.ne.s32.totalorder %s422, %s423
      %p435 = scmp.eq.s32.totalorder %s109, 1
      %p436 = por %p434, %p435
      %p438 = scmp.ne.s32.totalorder %s423, %s437
      %p439 = scmp.eq.s32.totalorder %s109, 0
      %p440 = por %p438, %p439
      %s442 = sadd.s32 %s441, 1
      %p445 = scmp.eq.s32.totalorder %s103, 1
      %p446 = scmp.ne.s32.totalorder %s441, %s443
      %p447 = scmp.eq.s32.totalorder %s103, 0
      %p448 = por %p446, %p447
      %p449 = scmp.ne.s32.totalorder %s441, %s443
      %p450 = scmp.eq.s32.totalorder %s108, 1
      %p451 = por %p449, %p450
      %p452 = scmp.ne.s32.totalorder %s443, %s444
      %p453 = scmp.eq.s32.totalorder %s108, 0
      %p454 = por %p452, %p453
      %p455 = scmp.ne.s32.totalorder %s443, %s444
      %p456 = scmp.eq.s32.totalorder %s109, 1
      %p457 = por %p455, %p456
      %p459 = scmp.ne.s32.totalorder %s444, %s458
      %p460 = scmp.eq.s32.totalorder %s109, 0
      %p461 = por %p459, %p460
      %s463 = sadd.s32 %s462, 1
      %p466 = scmp.eq.s32.totalorder %s103, 1
      %p467 = scmp.ne.s32.totalorder %s462, %s464
      %p468 = scmp.eq.s32.totalorder %s103, 0
      %p469 = por %p467, %p468
      %p470 = scmp.ne.s32.totalorder %s462, %s464
      %p471 = scmp.eq.s32.totalorder %s108, 1
      %p472 = por %p470, %p471
      %p473 = scmp.ne.s32.totalorder %s464, %s465
      %p474 = scmp.eq.s32.totalorder %s108, 0
      %p475 = por %p473, %p474
      %p476 = scmp.ne.s32.totalorder %s464, %s465
      %p477 = scmp.eq.s32.totalorder %s109, 1
      %p478 = por %p476, %p477
      %p480 = scmp.ne.s32.totalorder %s465, %s479
      %p481 = scmp.eq.s32.totalorder %s109, 0
      %p482 = por %p480, %p481
      %s484 = sadd.s32 %s483, 1
      %p487 = scmp.eq.s32.totalorder %s103, 1
      %p488 = scmp.ne.s32.totalorder %s483, %s485
      %p489 = scmp.eq.s32.totalorder %s103, 0
      %p490 = por %p488, %p489
      %p491 = scmp.ne.s32.totalorder %s483, %s485
      %p492 = scmp.eq.s32.totalorder %s108, 1
      %p493 = por %p491, %p492
      %p494 = scmp.ne.s32.totalorder %s485, %s486
      %p495 = scmp.eq.s32.totalorder %s108, 0
      %p496 = por %p494, %p495
      %p497 = scmp.ne.s32.totalorder %s485, %s486
      %p498 = scmp.eq.s32.totalorder %s109, 1
      %p499 = por %p497, %p498
      %p501 = scmp.ne.s32.totalorder %s486, %s500
      %p502 = scmp.eq.s32.totalorder %s109, 0
      %p503 = por %p501, %p502
      %s505 = sadd.s32 %s504, 1
      %p508 = scmp.eq.s32.totalorder %s103, 1
      %p509 = scmp.ne.s32.totalorder %s504, %s506
      %p510 = scmp.eq.s32.totalorder %s103, 0
      %p511 = por %p509, %p510
      %p512 = scmp.ne.s32.totalorder %s504, %s506
      %p513 = scmp.eq.s32.totalorder %s108, 1
      %p514 = por %p512, %p513
      %p515 = scmp.ne.s32.totalorder %s506, %s507
      %p516 = scmp.eq.s32.totalorder %s108, 0
      %p517 = por %p515, %p516
      %p518 = scmp.ne.s32.totalorder %s506, %s507
      %p519 = scmp.eq.s32.totalorder %s109, 1
      %p520 = por %p518, %p519
      %p522 = scmp.ne.s32.totalorder %s507, %s521
      %p523 = scmp.eq.s32.totalorder %s109, 0
      %p524 = por %p522, %p523
      %s526 = sadd.s32 %s525, 1
      %p529 = scmp.eq.s32.totalorder %s103, 1
      %p530 = scmp.ne.s32.totalorder %s525, %s527
      %p531 = scmp.eq.s32.totalorder %s103, 0
      %p532 = por %p530, %p531
      %p533 = scmp.ne.s32.totalorder %s525, %s527
      %p534 = scmp.eq.s32.totalorder %s108, 1
      %p535 = por %p533, %p534
      %p536 = scmp.ne.s32.totalorder %s527, %s528
      %p537 = scmp.eq.s32.totalorder %s108, 0
      %p538 = por %p536, %p537
      %p539 = scmp.ne.s32.totalorder %s527, %s528
      %p540 = scmp.eq.s32.totalorder %s109, 1
      %p541 = por %p539, %p540
      %p543 = scmp.ne.s32.totalorder %s528, %s542
      %p544 = scmp.eq.s32.totalorder %s109, 0
      %p545 = por %p543, %p544
      %s547 = sadd.s32 %s546, 1
      %p550 = scmp.eq.s32.totalorder %s103, 1
      %p551 = scmp.ne.s32.totalorder %s546, %s548
      %p552 = scmp.eq.s32.totalorder %s103, 0
      %p553 = por %p551, %p552
      %p554 = scmp.ne.s32.totalorder %s546, %s548
      %p555 = scmp.eq.s32.totalorder %s108, 1
      %p556 = por %p554, %p555
      %p557 = scmp.ne.s32.totalorder %s548, %s549
      %p558 = scmp.eq.s32.totalorder %s108, 0
      %p559 = por %p557, %p558
      %p560 = scmp.ne.s32.totalorder %s548, %s549
      %p561 = scmp.eq.s32.totalorder %s109, 1
      %p562 = por %p560, %p561
      %p564 = scmp.ne.s32.totalorder %s549, %s563
      %p565 = scmp.eq.s32.totalorder %s109, 0
      %p566 = por %p564, %p565
      %s568 = sadd.s32 %s567, 1
      %p571 = scmp.eq.s32.totalorder %s103, 1
      %p572 = scmp.ne.s32.totalorder %s567, %s569
      %p573 = scmp.eq.s32.totalorder %s103, 0
      %p574 = por %p572, %p573
      %p575 = scmp.ne.s32.totalorder %s567, %s569
      %p576 = scmp.eq.s32.totalorder %s108, 1
      %p577 = por %p575, %p576
      %p578 = scmp.ne.s32.totalorder %s569, %s570
      %p579 = scmp.eq.s32.totalorder %s108, 0
      %p580 = por %p578, %p579
      %p581 = scmp.ne.s32.totalorder %s569, %s570
      %p582 = scmp.eq.s32.totalorder %s109, 1
      %p583 = por %p581, %p582
      %p585 = scmp.ne.s32.totalorder %s570, %s584
      %p586 = scmp.eq.s32.totalorder %s109, 0
      %p587 = por %p585, %p586
      %s589 = sadd.s32 %s588, 1
      %p592 = scmp.eq.s32.totalorder %s103, 1
      %p593 = scmp.ne.s32.totalorder %s588, %s590
      %p594 = scmp.eq.s32.totalorder %s103, 0
      %p595 = por %p593, %p594
      %p596 = scmp.ne.s32.totalorder %s588, %s590
      %p597 = scmp.eq.s32.totalorder %s108, 1
      %p598 = por %p596, %p597
      %p599 = scmp.ne.s32.totalorder %s590, %s591
      %p600 = scmp.eq.s32.totalorder %s108, 0
      %p601 = por %p599, %p600
      %p602 = scmp.ne.s32.totalorder %s590, %s591
      %p603 = scmp.eq.s32.totalorder %s109, 1
      %p604 = por %p602, %p603
      %p606 = scmp.ne.s32.totalorder %s591, %s605
      %p607 = scmp.eq.s32.totalorder %s109, 0
      %p608 = por %p606, %p607
      %s610 = sadd.s32 %s609, 1
      %p613 = scmp.eq.s32.totalorder %s103, 1
      %p614 = scmp.ne.s32.totalorder %s609, %s611
      %p615 = scmp.eq.s32.totalorder %s103, 0
      %p616 = por %p614, %p615
      %p617 = scmp.ne.s32.totalorder %s609, %s611
      %p618 = scmp.eq.s32.totalorder %s108, 1
      %p619 = por %p617, %p618
      %p620 = scmp.ne.s32.totalorder %s611, %s612
      %p621 = scmp.eq.s32.totalorder %s108, 0
      %p622 = por %p620, %p621
      %p623 = scmp.ne.s32.totalorder %s611, %s612
      %p624 = scmp.eq.s32.totalorder %s109, 1
      %p625 = por %p623, %p624
      %p627 = scmp.ne.s32.totalorder %s612, %s626
      %p628 = scmp.eq.s32.totalorder %s109, 0
      %p629 = por %p627, %p628
      %s631 = sadd.s32 %s630, 1
      %p634 = scmp.eq.s32.totalorder %s103, 1
      %p635 = scmp.ne.s32.totalorder %s630, %s632
      %p636 = scmp.eq.s32.totalorder %s103, 0
      %p637 = por %p635, %p636
      %p638 = scmp.ne.s32.totalorder %s630, %s632
      %p639 = scmp.eq.s32.totalorder %s108, 1
      %p640 = por %p638, %p639
      %p641 = scmp.ne.s32.totalorder %s632, %s633
      %p642 = scmp.eq.s32.totalorder %s108, 0
      %p643 = por %p641, %p642
      %p644 = scmp.ne.s32.totalorder %s632, %s633
      %p645 = scmp.eq.s32.totalorder %s109, 1
      %p646 = por %p644, %p645
      %p648 = scmp.ne.s32.totalorder %s633, %s647
      %p649 = scmp.eq.s32.totalorder %s109, 0
      %p650 = por %p648, %p649
      %s652 = sadd.s32 %s651, 1
      %p655 = scmp.eq.s32.totalorder %s103, 1
      %p656 = scmp.ne.s32.totalorder %s651, %s653
      %p657 = scmp.eq.s32.totalorder %s103, 0
      %p658 = por %p656, %p657
      %p659 = scmp.ne.s32.totalorder %s651, %s653
      %p660 = scmp.eq.s32.totalorder %s108, 1
      %p661 = por %p659, %p660
      %p662 = scmp.ne.s32.totalorder %s653, %s654
      %p663 = scmp.eq.s32.totalorder %s108, 0
      %p664 = por %p662, %p663
      %p665 = scmp.ne.s32.totalorder %s653, %s654
      %p666 = scmp.eq.s32.totalorder %s109, 1
      %p667 = por %p665, %p666
      %p669 = scmp.ne.s32.totalorder %s654, %s668
      %p670 = scmp.eq.s32.totalorder %s109, 0
      %p671 = por %p669, %p670
      %s673 = sadd.s32 %s672, 1
      %p676 = scmp.eq.s32.totalorder %s103, 1
      %p677 = scmp.ne.s32.totalorder %s672, %s674
      %p678 = scmp.eq.s32.totalorder %s103, 0
      %p679 = por %p677, %p678
      %p680 = scmp.ne.s32.totalorder %s672, %s674
      %p681 = scmp.eq.s32.totalorder %s108, 1
      %p682 = por %p680, %p681
      %p683 = scmp.ne.s32.totalorder %s674, %s675
      %p684 = scmp.eq.s32.totalorder %s108, 0
      %p685 = por %p683, %p684
      %p686 = scmp.ne.s32.totalorder %s674, %s675
      %p687 = scmp.eq.s32.totalorder %s109, 1
      %p688 = por %p686, %p687
      %p690 = scmp.ne.s32.totalorder %s675, %s689
      %p691 = scmp.eq.s32.totalorder %s109, 0
      %p692 = por %p690, %p691
      %s694 = sadd.s32 %s693, 1
      %p697 = scmp.eq.s32.totalorder %s103, 1
      %p698 = scmp.ne.s32.totalorder %s693, %s695
      %p699 = scmp.eq.s32.totalorder %s103, 0
      %p700 = por %p698, %p699
      %p701 = scmp.ne.s32.totalorder %s693, %s695
      %p702 = scmp.eq.s32.totalorder %s108, 1
      %p703 = por %p701, %p702
      %p704 = scmp.ne.s32.totalorder %s695, %s696
      %p705 = scmp.eq.s32.totalorder %s108, 0
      %p706 = por %p704, %p705
      %p707 = scmp.ne.s32.totalorder %s695, %s696
      %p708 = scmp.eq.s32.totalorder %s109, 1
      %p709 = por %p707, %p708
      %p711 = scmp.ne.s32.totalorder %s696, %s710
      %p712 = scmp.eq.s32.totalorder %s109, 0
      %p713 = por %p711, %p712
      %s715 = sadd.s32 %s714, 1
      %p718 = scmp.eq.s32.totalorder %s103, 1
      %p719 = scmp.ne.s32.totalorder %s714, %s716
      %p720 = scmp.eq.s32.totalorder %s103, 0
      %p721 = por %p719, %p720
      %p722 = scmp.ne.s32.totalorder %s714, %s716
      %p723 = scmp.eq.s32.totalorder %s108, 1
      %p724 = por %p722, %p723
      %p725 = scmp.ne.s32.totalorder %s716, %s717
      %p726 = scmp.eq.s32.totalorder %s108, 0
      %p727 = por %p725, %p726
      %p728 = scmp.ne.s32.totalorder %s716, %s717
      %p729 = scmp.eq.s32.totalorder %s109, 1
      %p730 = por %p728, %p729
      %p732 = scmp.ne.s32.totalorder %s717, %s731
      %p733 = scmp.eq.s32.totalorder %s109, 0
      %p734 = por %p732, %p733
      %s736 = sadd.s32 %s735, 1
      %p739 = scmp.eq.s32.totalorder %s103, 1
      %p740 = scmp.ne.s32.totalorder %s735, %s737
      %p741 = scmp.eq.s32.totalorder %s103, 0
      %p742 = por %p740, %p741
      %p743 = scmp.ne.s32.totalorder %s735, %s737
      %p744 = scmp.eq.s32.totalorder %s108, 1
      %p745 = por %p743, %p744
      %p746 = scmp.ne.s32.totalorder %s737, %s738
      %p747 = scmp.eq.s32.totalorder %s108, 0
      %p748 = por %p746, %p747
      %p749 = scmp.ne.s32.totalorder %s737, %s738
      %p750 = scmp.eq.s32.totalorder %s109, 1
      %p751 = por %p749, %p750
      %p753 = scmp.ne.s32.totalorder %s738, %s752
      %p754 = scmp.eq.s32.totalorder %s109, 0
      %p755 = por %p753, %p754
      %s757 = sadd.s32 %s756, 1
      %p760 = scmp.eq.s32.totalorder %s103, 1
      %p761 = scmp.ne.s32.totalorder %s756, %s758
      %p762 = scmp.eq.s32.totalorder %s103, 0
      %p763 = por %p761, %p762
      %p764 = scmp.ne.s32.totalorder %s756, %s758
      %p765 = scmp.eq.s32.totalorder %s108, 1
      %p766 = por %p764, %p765
      %p767 = scmp.ne.s32.totalorder %s758, %s759
      %p768 = scmp.eq.s32.totalorder %s108, 0
      %p769 = por %p767, %p768
      %p770 = scmp.ne.s32.totalorder %s758, %s759
      %p771 = scmp.eq.s32.totalorder %s109, 1
      %p772 = por %p770, %p771
      %p774 = scmp.ne.s32.totalorder %s759, %s773
      %p775 = scmp.eq.s32.totalorder %s109, 0
      %p776 = por %p774, %p775
      %s778 = sadd.s32 %s777, 1
      %p781 = scmp.eq.s32.totalorder %s103, 1
      %p782 = scmp.ne.s32.totalorder %s777, %s779
      %p783 = scmp.eq.s32.totalorder %s103, 0
      %p784 = por %p782, %p783
      %p785 = scmp.ne.s32.totalorder %s777, %s779
      %p786 = scmp.eq.s32.totalorder %s108, 1
      %p787 = por %p785, %p786
      %p788 = scmp.ne.s32.totalorder %s779, %s780
      %p789 = scmp.eq.s32.totalorder %s108, 0
      %p790 = por %p788, %p789
      %p791 = scmp.ne.s32.totalorder %s779, %s780
      %p792 = scmp.eq.s32.totalorder %s109, 1
      %p793 = por %p791, %p792
      %p795 = scmp.ne.s32.totalorder %s780, %s794
      %p796 = scmp.eq.s32.totalorder %s109, 0
      %p797 = por %p795, %p796
      %s799 = sadd.s32 %s798, 1
      %p802 = scmp.eq.s32.totalorder %s103, 1
      %p803 = scmp.ne.s32.totalorder %s798, %s800
      %p804 = scmp.eq.s32.totalorder %s103, 0
      %p805 = por %p803, %p804
      %p806 = scmp.ne.s32.totalorder %s798, %s800
      %p807 = scmp.eq.s32.totalorder %s108, 1
      %p808 = por %p806, %p807
      %p809 = scmp.ne.s32.totalorder %s800, %s801
      %p810 = scmp.eq.s32.totalorder %s108, 0
      %p811 = por %p809, %p810
      %p812 = scmp.ne.s32.totalorder %s800, %s801
      %p813 = scmp.eq.s32.totalorder %s109, 1
      %p814 = por %p812, %p813
      %p816 = scmp.ne.s32.totalorder %s801, %s815
      %p817 = scmp.eq.s32.totalorder %s109, 0
      %p818 = por %p816, %p817
      %s820 = sadd.s32 %s819, 1
      %p823 = scmp.eq.s32.totalorder %s103, 1
      %p824 = scmp.ne.s32.totalorder %s819, %s821
      %p825 = scmp.eq.s32.totalorder %s103, 0
      %p826 = por %p824, %p825
      %p827 = scmp.ne.s32.totalorder %s819, %s821
      %p828 = scmp.eq.s32.totalorder %s108, 1
      %p829 = por %p827, %p828
      %p830 = scmp.ne.s32.totalorder %s821, %s822
      %p831 = scmp.eq.s32.totalorder %s108, 0
      %p832 = por %p830, %p831
      %p833 = scmp.ne.s32.totalorder %s821, %s822
      %p834 = scmp.eq.s32.totalorder %s109, 1
      %p835 = por %p833, %p834
      %p837 = scmp.ne.s32.totalorder %s822, %s836
      %p838 = scmp.eq.s32.totalorder %s109, 0
      %p839 = por %p837, %p838
      %s841 = sadd.s32 %s840, 1
      %p844 = scmp.eq.s32.totalorder %s103, 1
      %p845 = scmp.ne.s32.totalorder %s840, %s842
      %p846 = scmp.eq.s32.totalorder %s103, 0
      %p847 = por %p845, %p846
      %p848 = scmp.ne.s32.totalorder %s840, %s842
      %p849 = scmp.eq.s32.totalorder %s108, 1
      %p850 = por %p848, %p849
      %p851 = scmp.ne.s32.totalorder %s842, %s843
      %p852 = scmp.eq.s32.totalorder %s108, 0
      %p853 = por %p851, %p852
      %p854 = scmp.ne.s32.totalorder %s842, %s843
      %p855 = scmp.eq.s32.totalorder %s109, 1
      %p856 = por %p854, %p855
      %p858 = scmp.ne.s32.totalorder %s843, %s857
      %p859 = scmp.eq.s32.totalorder %s109, 0
      %p860 = por %p858, %p859
      %s862 = sadd.s32 %s861, 1
      %p865 = scmp.eq.s32.totalorder %s103, 1
      %p866 = scmp.ne.s32.totalorder %s861, %s863
      %p867 = scmp.eq.s32.totalorder %s103, 0
      %p868 = por %p866, %p867
      %p869 = scmp.ne.s32.totalorder %s861, %s863
      %p870 = scmp.eq.s32.totalorder %s108, 1
      %p871 = por %p869, %p870
      %p872 = scmp.ne.s32.totalorder %s863, %s864
      %p873 = scmp.eq.s32.totalorder %s108, 0
      %p874 = por %p872, %p873
      %p875 = scmp.ne.s32.totalorder %s863, %s864
      %p876 = scmp.eq.s32.totalorder %s109, 1
      %p877 = por %p875, %p876
      %p879 = scmp.ne.s32.totalorder %s864, %s878
      %p880 = scmp.eq.s32.totalorder %s109, 0
      %p881 = por %p879, %p880
      %s883 = sadd.s32 %s882, 1
      %p886 = scmp.eq.s32.totalorder %s103, 1
      %p887 = scmp.ne.s32.totalorder %s882, %s884
      %p888 = scmp.eq.s32.totalorder %s103, 0
      %p889 = por %p887, %p888
      %p890 = scmp.ne.s32.totalorder %s882, %s884
      %p891 = scmp.eq.s32.totalorder %s108, 1
      %p892 = por %p890, %p891
      %p893 = scmp.ne.s32.totalorder %s884, %s885
      %p894 = scmp.eq.s32.totalorder %s108, 0
      %p895 = por %p893, %p894
      %p896 = scmp.ne.s32.totalorder %s884, %s885
      %p897 = scmp.eq.s32.totalorder %s109, 1
      %p898 = por %p896, %p897
      %p900 = scmp.ne.s32.totalorder %s885, %s899
      %p901 = scmp.eq.s32.totalorder %s109, 0
      %p902 = por %p900, %p901
      %s904 = sadd.s32 %s903, 1
      %p907 = scmp.eq.s32.totalorder %s103, 1
      %p908 = scmp.ne.s32.totalorder %s903, %s905
      %p909 = scmp.eq.s32.totalorder %s103, 0
      %p910 = por %p908, %p909
      %p911 = scmp.ne.s32.totalorder %s903, %s905
      %p912 = scmp.eq.s32.totalorder %s108, 1
      %p913 = por %p911, %p912
      %p914 = scmp.ne.s32.totalorder %s905, %s906
      %p915 = scmp.eq.s32.totalorder %s108, 0
      %p916 = por %p914, %p915
      %p917 = scmp.ne.s32.totalorder %s905, %s906
      %p918 = scmp.eq.s32.totalorder %s109, 1
      %p919 = por %p917, %p918
      %p921 = scmp.ne.s32.totalorder %s906, %s920
      %p922 = scmp.eq.s32.totalorder %s109, 0
      %p923 = por %p921, %p922
      %s924 = ssub.s32 %s103, %s110
      %p925 = scmp.eq.s32.totalorder %s924, 0
      %s927 = sadd.s32 %s926, 1
      %s928 = scalar_select %p925, %s926, %s927
      %p931 = pneg %p925
      %p932 = scmp.eq.s32.totalorder %s103, 1
      %p933 = por %p931, %p932
      %p934 = scmp.ne.s32.totalorder %s926, %s929
      %p935 = scmp.eq.s32.totalorder %s103, 0
      %p936 = por %p934, %p935
      %p937 = scmp.ne.s32.totalorder %s926, %s929
      %p938 = scmp.eq.s32.totalorder %s108, 1
      %p939 = por %p937, %p938
      %p940 = scmp.ne.s32.totalorder %s929, %s930
      %p941 = scmp.eq.s32.totalorder %s108, 0
      %p942 = por %p940, %p941
      %p943 = scmp.ne.s32.totalorder %s929, %s930
      %p944 = scmp.eq.s32.totalorder %s109, 1
      %p945 = por %p943, %p944
      %p947 = scmp.ne.s32.totalorder %s930, %s946
      %p948 = scmp.eq.s32.totalorder %s109, 0
      %p949 = por %p947, %p948
      %p950 = scmp.le.s32.totalorder 1, %s103
      %p951 = scmp.lt.s32.totalorder %s103, 3
      %p952 = pnand %p950, %p951
      %p953 = pneg %p952
      // Predicated region
      $region9: #{tpu_custom_call.1} parent=5 // pred_check
        _
      $region10: #{tpu_custom_call.1} parent=5 // pred_check_branch
        %955 = sbr.rel (%p952) target = $region12
      $region11: #{tpu_custom_call.1} parent=5 // pred_region
        %s956 = ssub.s32 %s103, 1
        // Predicated region
        $region13: #{tpu_custom_call.1} parent=11 // pred_check
          %p957 = pneg %p176
        $region14: #{tpu_custom_call.1} parent=11 // pred_check_branch
          %959 = sbr.rel (%p957) target = $region16
        $region15: #{tpu_custom_call.1} parent=11 // pred_region
          %s961 = ssub.s32 128, 128
          %962 = vsyncadd [#allocation6], %s961
          %s964 = sshll.u32 [#allocation7], 4
          %s965 = int_to_ptr.vmem [resolvable:$true] %s964
          %967 = dma.hbm_to_vmem [thread:$0]  %s5, 128, %s965, [#allocation6]
        $region16: #{tpu_custom_call.1} parent=11 // pred_fallthru
          _
        // Predicated region
        $region17: #{tpu_custom_call.1} parent=11 // pred_check
          %p968 = pneg %p223
        $region18: #{tpu_custom_call.1} parent=11 // pred_check_branch
          %970 = sbr.rel (%p968) target = $region20
        $region19: #{tpu_custom_call.1} parent=11 // pred_region
          %s972 = ssub.s32 512, 512
          %973 = vsyncadd [#allocation9], %s972
          %s974 = sshll.u32 [#allocation10], 4
          %s975 = int_to_ptr.vmem [resolvable:$true] %s974
          %980 = dma.hbm_to_vmem [thread:$0]  %s9, 512, %s975, [#allocation9], 128, 128, 8
        $region20: #{tpu_custom_call.1} parent=11 // pred_fallthru
          _
        // Predicated region
        $region21: #{tpu_custom_call.1} parent=11 // pred_check
          %p981 = pneg %p244
        $region22: #{tpu_custom_call.1} parent=11 // pred_check_branch
          %983 = sbr.rel (%p981) target = $region24
        $region23: #{tpu_custom_call.1} parent=11 // pred_region
          %s985 = ssub.s32 512, 512
          %986 = vsyncadd [#allocation12], %s985
          %s987 = sshll.u32 [#allocation11], 4
          %s988 = int_to_ptr.vmem [resolvable:$true] %s987
          %993 = dma.hbm_to_vmem [thread:$0]  %s11, 512, %s988, [#allocation12], 128, 128, 8
        $region24: #{tpu_custom_call.1} parent=11 // pred_fallthru
          _
        // Predicated region
        $region25: #{tpu_custom_call.1} parent=11 // pred_check
          %p994 = pneg %p265
        $region26: #{tpu_custom_call.1} parent=11 // pred_check_branch
          %996 = sbr.rel (%p994) target = $region28
        $region27: #{tpu_custom_call.1} parent=11 // pred_region
          %s998 = ssub.s32 512, 512
          %999 = vsyncadd [#allocation12], %s998
          %s1000 = sshll.u32 [#allocation13], 4
          %s1001 = int_to_ptr.vmem [resolvable:$true] %s1000
          %1006 = dma.hbm_to_vmem [thread:$0]  %s13, 512, %s1001, [#allocation12], 128, 128, 8
        $region28: #{tpu_custom_call.1} parent=11 // pred_fallthru
          _
        // Predicated region
        $region29: #{tpu_custom_call.1} parent=11 // pred_check
          %p1007 = pneg %p286
        $region30: #{tpu_custom_call.1} parent=11 // pred_check_branch
          %1009 = sbr.rel (%p1007) target = $region32
        $region31: #{tpu_custom_call.1} parent=11 // pred_region
          %s1011 = ssub.s32 512, 512
          %1012 = vsyncadd [#allocation15], %s1011
          %s1013 = sshll.u32 [#allocation14], 4
          %s1014 = int_to_ptr.vmem [resolvable:$true] %s1013
          %1019 = dma.hbm_to_vmem [thread:$0]  %s15, 512, %s1014, [#allocation15], 128, 128, 8
        $region32: #{tpu_custom_call.1} parent=11 // pred_fallthru
          _
        // Predicated region
        $region33: #{tpu_custom_call.1} parent=11 // pred_check
          %p1020 = pneg %p307
        $region34: #{tpu_custom_call.1} parent=11 // pred_check_branch
          %1022 = sbr.rel (%p1020) target = $region36
        $region35: #{tpu_custom_call.1} parent=11 // pred_region
          %s1024 = ssub.s32 256, 256
          %1025 = vsyncadd [#allocation15], %s1024
          %s1026 = sshll.u32 [#allocation16], 4
          %s1027 = int_to_ptr.vmem [resolvable:$true] %s1026
          %1032 = dma.hbm_to_vmem [thread:$0]  %s17, 256, %s1027, [#allocation15], 128, 128, 8
        $region36: #{tpu_custom_call.1} parent=11 // pred_fallthru
          _
        // Predicated region
        $region37: #{tpu_custom_call.1} parent=11 // pred_check
          %p1033 = pneg %p328
        $region38: #{tpu_custom_call.1} parent=11 // pred_check_branch
          %1035 = sbr.rel (%p1033) target = $region40
        $region39: #{tpu_custom_call.1} parent=11 // pred_region
          %s1037 = ssub.s32 16, 16
          %1038 = vsyncadd [#allocation18], %s1037
          %s1040 = sshll.u32 [#allocation17], 4
          %s1041 = int_to_ptr.vmem [resolvable:$true] %s1040
          %1043 = dma.hbm_to_vmem [thread:$0]  %s19, 16, %s1041, [#allocation18]
        $region40: #{tpu_custom_call.1} parent=11 // pred_fallthru
          _
        // Predicated region
        $region41: #{tpu_custom_call.1} parent=11 // pred_check
          %p1044 = pneg %p349
        $region42: #{tpu_custom_call.1} parent=11 // pred_check_branch
          %1046 = sbr.rel (%p1044) target = $region44
        $region43: #{tpu_custom_call.1} parent=11 // pred_region
          _
        $region44: #{tpu_custom_call.1} parent=11 // pred_fallthru
          _
        // Predicated region
        $region45: #{tpu_custom_call.1} parent=11 // pred_check
          %p1047 = pneg %p370
        $region46: #{tpu_custom_call.1} parent=11 // pred_check_branch
          %1049 = sbr.rel (%p1047) target = $region48
        $region47: #{tpu_custom_call.1} parent=11 // pred_region
          %s1051 = ssub.s32 32, 32
          %1052 = vsyncadd [#allocation18], %s1051
          %s1053 = sshll.u32 [#allocation19], 4
          %s1054 = int_to_ptr.vmem [resolvable:$true] %s1053
          %1059 = dma.hbm_to_vmem [thread:$0]  %s23, 32, %s1054, [#allocation18], 16, 16, 1
        $region48: #{tpu_custom_call.1} parent=11 // pred_fallthru
          _
        // Predicated region
        $region49: #{tpu_custom_call.1} parent=11 // pred_check
          %p1060 = pneg %p391
        $region50: #{tpu_custom_call.1} parent=11 // pred_check_branch
          %1062 = sbr.rel (%p1060) target = $region52
        $region51: #{tpu_custom_call.1} parent=11 // pred_region
          _
        $region52: #{tpu_custom_call.1} parent=11 // pred_fallthru
          _
        // Predicated region
        $region53: #{tpu_custom_call.1} parent=11 // pred_check
          %p1063 = pneg %p412
        $region54: #{tpu_custom_call.1} parent=11 // pred_check_branch
          %1065 = sbr.rel (%p1063) target = $region56
        $region55: #{tpu_custom_call.1} parent=11 // pred_region
          %s1067 = ssub.s32 32, 32
          %1068 = vsyncadd [#allocation21], %s1067
          %s1069 = sshll.u32 [#allocation20], 4
          %s1070 = int_to_ptr.vmem [resolvable:$true] %s1069
          %1075 = dma.hbm_to_vmem [thread:$0]  %s27, 32, %s1070, [#allocation21], 16, 16, 1
        $region56: #{tpu_custom_call.1} parent=11 // pred_fallthru
          _
        // Predicated region
        $region57: #{tpu_custom_call.1} parent=11 // pred_check
          %p1076 = pneg %p433
        $region58: #{tpu_custom_call.1} parent=11 // pred_check_branch
          %1078 = sbr.rel (%p1076) target = $region60
        $region59: #{tpu_custom_call.1} parent=11 // pred_region
          _
        $region60: #{tpu_custom_call.1} parent=11 // pred_fallthru
          _
        // Predicated region
        $region61: #{tpu_custom_call.1} parent=11 // pred_check
          %p1079 = pneg %p454
        $region62: #{tpu_custom_call.1} parent=11 // pred_check_branch
          %1081 = sbr.rel (%p1079) target = $region64
        $region63: #{tpu_custom_call.1} parent=11 // pred_region
          %s1083 = ssub.s32 32, 32
          %1084 = vsyncadd [#allocation21], %s1083
          %s1085 = sshll.u32 [#allocation22], 4
          %s1086 = int_to_ptr.vmem [resolvable:$true] %s1085
          %1091 = dma.hbm_to_vmem [thread:$0]  %s31, 32, %s1086, [#allocation21], 16, 16, 1
        $region64: #{tpu_custom_call.1} parent=11 // pred_fallthru
          _
        // Predicated region
        $region65: #{tpu_custom_call.1} parent=11 // pred_check
          %p1092 = pneg %p475
        $region66: #{tpu_custom_call.1} parent=11 // pred_check_branch
          %1094 = sbr.rel (%p1092) target = $region68
        $region67: #{tpu_custom_call.1} parent=11 // pred_region
          %s1096 = ssub.s32 1024, 1024
          %1097 = vsyncadd [#allocation24], %s1096
          %s1098 = sshll.u32 [#allocation23], 4
          %s1099 = int_to_ptr.vmem [resolvable:$true] %s1098
          %1104 = dma.hbm_to_vmem [thread:$0]  %s33, 1024, %s1099, [#allocation24], 128, 128, 8
        $region68: #{tpu_custom_call.1} parent=11 // pred_fallthru
          _
        // Predicated region
        $region69: #{tpu_custom_call.1} parent=11 // pred_check
          %p1105 = pneg %p496
        $region70: #{tpu_custom_call.1} parent=11 // pred_check_branch
          %1107 = sbr.rel (%p1105) target = $region72
        $region71: #{tpu_custom_call.1} parent=11 // pred_region
          %s1109 = ssub.s32 32, 32
          %1110 = vsyncadd [#allocation24], %s1109
          %s1111 = sshll.u32 [#allocation25], 4
          %s1112 = int_to_ptr.vmem [resolvable:$true] %s1111
          %1117 = dma.hbm_to_vmem [thread:$0]  %s35, 32, %s1112, [#allocation24], 16, 16, 1
        $region72: #{tpu_custom_call.1} parent=11 // pred_fallthru
          _
        // Predicated region
        $region73: #{tpu_custom_call.1} parent=11 // pred_check
          %p1118 = pneg %p517
        $region74: #{tpu_custom_call.1} parent=11 // pred_check_branch
          %1120 = sbr.rel (%p1118) target = $region76
        $region75: #{tpu_custom_call.1} parent=11 // pred_region
          %s1122 = ssub.s32 1024, 1024
          %1123 = vsyncadd [#allocation27], %s1122
          %s1124 = sshll.u32 [#allocation26], 4
          %s1125 = int_to_ptr.vmem [resolvable:$true] %s1124
          %1130 = dma.hbm_to_vmem [thread:$0]  %s37, 1024, %s1125, [#allocation27], 128, 128, 8
        $region76: #{tpu_custom_call.1} parent=11 // pred_fallthru
          _
        // Predicated region
        $region77: #{tpu_custom_call.1} parent=11 // pred_check
          %p1131 = pneg %p538
        $region78: #{tpu_custom_call.1} parent=11 // pred_check_branch
          %1133 = sbr.rel (%p1131) target = $region80
        $region79: #{tpu_custom_call.1} parent=11 // pred_region
          %s1135 = ssub.s32 32, 32
          %1136 = vsyncadd [#allocation27], %s1135
          %s1137 = sshll.u32 [#allocation28], 4
          %s1138 = int_to_ptr.vmem [resolvable:$true] %s1137
          %1143 = dma.hbm_to_vmem [thread:$0]  %s39, 32, %s1138, [#allocation27], 16, 16, 1
        $region80: #{tpu_custom_call.1} parent=11 // pred_fallthru
          _
        // Predicated region
        $region81: #{tpu_custom_call.1} parent=11 // pred_check
          %p1144 = pneg %p559
        $region82: #{tpu_custom_call.1} parent=11 // pred_check_branch
          %1146 = sbr.rel (%p1144) target = $region84
        $region83: #{tpu_custom_call.1} parent=11 // pred_region
          %s1148 = ssub.s32 1024, 1024
          %1149 = vsyncadd [#allocation30], %s1148
          %s1150 = sshll.u32 [#allocation29], 4
          %s1151 = int_to_ptr.vmem [resolvable:$true] %s1150
          %1156 = dma.hbm_to_vmem [thread:$0]  %s41, 1024, %s1151, [#allocation30], 128, 128, 8
        $region84: #{tpu_custom_call.1} parent=11 // pred_fallthru
          _
        // Predicated region
        $region85: #{tpu_custom_call.1} parent=11 // pred_check
          %p1157 = pneg %p580
        $region86: #{tpu_custom_call.1} parent=11 // pred_check_branch
          %1159 = sbr.rel (%p1157) target = $region88
        $region87: #{tpu_custom_call.1} parent=11 // pred_region
          _
        $region88: #{tpu_custom_call.1} parent=11 // pred_fallthru
          _
        // Predicated region
        $region89: #{tpu_custom_call.1} parent=11 // pred_check
          %p1160 = pneg %p601
        $region90: #{tpu_custom_call.1} parent=11 // pred_check_branch
          %1162 = sbr.rel (%p1160) target = $region92
        $region91: #{tpu_custom_call.1} parent=11 // pred_region
          %s1164 = ssub.s32 1024, 1024
          %1165 = vsyncadd [#allocation30], %s1164
          %s1166 = sshll.u32 [#allocation31], 4
          %s1167 = int_to_ptr.vmem [resolvable:$true] %s1166
          %1172 = dma.hbm_to_vmem [thread:$0]  %s45, 1024, %s1167, [#allocation30], 128, 128, 8
        $region92: #{tpu_custom_call.1} parent=11 // pred_fallthru
          _
        // Predicated region
        $region93: #{tpu_custom_call.1} parent=11 // pred_check
          %p1173 = pneg %p622
        $region94: #{tpu_custom_call.1} parent=11 // pred_check_branch
          %1175 = sbr.rel (%p1173) target = $region96
        $region95: #{tpu_custom_call.1} parent=11 // pred_region
          _
        $region96: #{tpu_custom_call.1} parent=11 // pred_fallthru
          _
        // Predicated region
        $region97: #{tpu_custom_call.1} parent=11 // pred_check
          %p1176 = pneg %p643
        $region98: #{tpu_custom_call.1} parent=11 // pred_check_branch
          %1178 = sbr.rel (%p1176) target = $region100
        $region99: #{tpu_custom_call.1} parent=11 // pred_region
          %s1180 = ssub.s32 1024, 1024
          %1181 = vsyncadd [#allocation33], %s1180
          %s1182 = sshll.u32 [#allocation32], 4
          %s1183 = int_to_ptr.vmem [resolvable:$true] %s1182
          %1188 = dma.hbm_to_vmem [thread:$0]  %s49, 1024, %s1183, [#allocation33], 128, 128, 8
        $region100: #{tpu_custom_call.1} parent=11 // pred_fallthru
          _
        // Predicated region
        $region101: #{tpu_custom_call.1} parent=11 // pred_check
          %p1189 = pneg %p664
        $region102: #{tpu_custom_call.1} parent=11 // pred_check_branch
          %1191 = sbr.rel (%p1189) target = $region104
        $region103: #{tpu_custom_call.1} parent=11 // pred_region
          _
        $region104: #{tpu_custom_call.1} parent=11 // pred_fallthru
          _
        // Predicated region
        $region105: #{tpu_custom_call.1} parent=11 // pred_check
          %p1192 = pneg %p685
        $region106: #{tpu_custom_call.1} parent=11 // pred_check_branch
          %1194 = sbr.rel (%p1192) target = $region108
        $region107: #{tpu_custom_call.1} parent=11 // pred_region
          %s1196 = ssub.s32 1024, 1024
          %1197 = vsyncadd [#allocation33], %s1196
          %s1198 = sshll.u32 [#allocation34], 4
          %s1199 = int_to_ptr.vmem [resolvable:$true] %s1198
          %1204 = dma.hbm_to_vmem [thread:$0]  %s53, 1024, %s1199, [#allocation33], 128, 128, 8
        $region108: #{tpu_custom_call.1} parent=11 // pred_fallthru
          _
        // Predicated region
        $region109: #{tpu_custom_call.1} parent=11 // pred_check
          %p1205 = pneg %p706
        $region110: #{tpu_custom_call.1} parent=11 // pred_check_branch
          %1207 = sbr.rel (%p1205) target = $region112
        $region111: #{tpu_custom_call.1} parent=11 // pred_region
          _
        $region112: #{tpu_custom_call.1} parent=11 // pred_fallthru
          _
        // Predicated region
        $region113: #{tpu_custom_call.1} parent=11 // pred_check
          %p1208 = pneg %p727
        $region114: #{tpu_custom_call.1} parent=11 // pred_check_branch
          %1210 = sbr.rel (%p1208) target = $region116
        $region115: #{tpu_custom_call.1} parent=11 // pred_region
          _
        $region116: #{tpu_custom_call.1} parent=11 // pred_fallthru
          _
        // Predicated region
        $region117: #{tpu_custom_call.1} parent=11 // pred_check
          %p1211 = pneg %p748
        $region118: #{tpu_custom_call.1} parent=11 // pred_check_branch
          %1213 = sbr.rel (%p1211) target = $region120
        $region119: #{tpu_custom_call.1} parent=11 // pred_region
          _
        $region120: #{tpu_custom_call.1} parent=11 // pred_fallthru
          _
        // Predicated region
        $region121: #{tpu_custom_call.1} parent=11 // pred_check
          %p1214 = pneg %p769
        $region122: #{tpu_custom_call.1} parent=11 // pred_check_branch
          %1216 = sbr.rel (%p1214) target = $region124
        $region123: #{tpu_custom_call.1} parent=11 // pred_region
          _
        $region124: #{tpu_custom_call.1} parent=11 // pred_fallthru
          _
        // Predicated region
        $region125: #{tpu_custom_call.1} parent=11 // pred_check
          %p1217 = pneg %p790
        $region126: #{tpu_custom_call.1} parent=11 // pred_check_branch
          %1219 = sbr.rel (%p1217) target = $region128
        $region127: #{tpu_custom_call.1} parent=11 // pred_region
          _
        $region128: #{tpu_custom_call.1} parent=11 // pred_fallthru
          _
        // Predicated region
        $region129: #{tpu_custom_call.1} parent=11 // pred_check
          %p1220 = pneg %p811
        $region130: #{tpu_custom_call.1} parent=11 // pred_check_branch
          %1222 = sbr.rel (%p1220) target = $region132
        $region131: #{tpu_custom_call.1} parent=11 // pred_region
          _
        $region132: #{tpu_custom_call.1} parent=11 // pred_fallthru
          _
        // Predicated region
        $region133: #{tpu_custom_call.1} parent=11 // pred_check
          %p1223 = pneg %p832
        $region134: #{tpu_custom_call.1} parent=11 // pred_check_branch
          %1225 = sbr.rel (%p1223) target = $region136
        $region135: #{tpu_custom_call.1} parent=11 // pred_region
          _
        $region136: #{tpu_custom_call.1} parent=11 // pred_fallthru
          _
        // Predicated region
        $region137: #{tpu_custom_call.1} parent=11 // pred_check
          %p1226 = pneg %p853
        $region138: #{tpu_custom_call.1} parent=11 // pred_check_branch
          %1228 = sbr.rel (%p1226) target = $region140
        $region139: #{tpu_custom_call.1} parent=11 // pred_region
          _
        $region140: #{tpu_custom_call.1} parent=11 // pred_fallthru
          _
        // Predicated region
        $region141: #{tpu_custom_call.1} parent=11 // pred_check
          %p1229 = pneg %p874
        $region142: #{tpu_custom_call.1} parent=11 // pred_check_branch
          %1231 = sbr.rel (%p1229) target = $region144
        $region143: #{tpu_custom_call.1} parent=11 // pred_region
          _
        $region144: #{tpu_custom_call.1} parent=11 // pred_fallthru
          _
        // Predicated region
        $region145: #{tpu_custom_call.1} parent=11 // pred_check
          %p1232 = pneg %p895
        $region146: #{tpu_custom_call.1} parent=11 // pred_check_branch
          %1234 = sbr.rel (%p1232) target = $region148
        $region147: #{tpu_custom_call.1} parent=11 // pred_region
          _
        $region148: #{tpu_custom_call.1} parent=11 // pred_fallthru
          _
        // Predicated region
        $region149: #{tpu_custom_call.1} parent=11 // pred_check
          %p1235 = pneg %p916
        $region150: #{tpu_custom_call.1} parent=11 // pred_check_branch
          %1237 = sbr.rel (%p1235) target = $region152
        $region151: #{tpu_custom_call.1} parent=11 // pred_region
          _
        $region152: #{tpu_custom_call.1} parent=11 // pred_fallthru
          _
      $region12: #{tpu_custom_call.1} parent=5 // pred_fallthru
        _
      %p1238 = scmp.lt.s32.totalorder %s103, 2
      // Predicated region
      $region153: #{tpu_custom_call.1} parent=5 // pred_check
        %p1239 = pneg %p1238
      $region154: #{tpu_custom_call.1} parent=5 // pred_check_branch
        %1241 = sbr.rel (%p1239) target = $region156
      $region155: #{tpu_custom_call.1} parent=5 // pred_region
        // Predicated region
        $region157: #{tpu_custom_call.1} parent=155 // pred_check
          %p1242 = pneg %p123
        $region158: #{tpu_custom_call.1} parent=155 // pred_check_branch
          %1244 = sbr.rel (%p1242) target = $region160
        $region159: #{tpu_custom_call.1} parent=155 // pred_region
          %s1245 = sand.u32 %s113, 1
          %s1246 = scalar_lea.sflag [#allocation3], %s1245
          %s1247 = sand.u32 %s113, 1
          %s1248 = smul.addr %s1247, 16
          %s1249 = scalar_lea.vmem [#allocation2], %s1248
          %s1250 = smul.u32 2, %s103
          %s1252 = ssub.s32 256, 256
          %1253 = vsyncadd %s1246, %s1252
          %s1254 = smul.addr %s1250, 128
          %s1255 = scalar_lea.hbm %s1, %s1254
          %s1256 = sshll.u32 %s1249, 4
          %s1257 = int_to_ptr.vmem [resolvable:$true] %s1256
          %1262 = dma.hbm_to_vmem [thread:$0]  %s1255, 256, %s1257, %s1246, 128, 128, 8
        $region160: #{tpu_custom_call.1} parent=155 // pred_fallthru
          _
        // Predicated region
        $region161: #{tpu_custom_call.1} parent=155 // pred_check
          %p1263 = pneg %p149
        $region162: #{tpu_custom_call.1} parent=155 // pred_check_branch
          %1265 = sbr.rel (%p1263) target = $region164
        $region163: #{tpu_custom_call.1} parent=155 // pred_region
          %s1266 = sand.u32 %s103, 1
          %s1267 = scalar_lea.sflag [#allocation6], %s1266
          %s1268 = sand.u32 %s139, 1
          %s1269 = smul.addr %s1268, 16
          %s1270 = scalar_lea.vmem [#allocation5], %s1269
          %s1271 = smul.u32 2, %s103
          %s1273 = ssub.s32 256, 256
          %1274 = vsyncadd %s1267, %s1273
          %s1275 = smul.addr %s1271, 128
          %s1276 = scalar_lea.hbm %s3, %s1275
          %s1277 = sshll.u32 %s1270, 4
          %s1278 = int_to_ptr.vmem [resolvable:$true] %s1277
          %1283 = dma.hbm_to_vmem [thread:$0]  %s1276, 256, %s1278, %s1267, 128, 128, 8
        $region164: #{tpu_custom_call.1} parent=155 // pred_fallthru
          _
        // Predicated region
        $region165: #{tpu_custom_call.1} parent=155 // pred_check
          %p1284 = pneg %p196
        $region166: #{tpu_custom_call.1} parent=155 // pred_check_branch
          %1286 = sbr.rel (%p1284) target = $region168
        $region167: #{tpu_custom_call.1} parent=155 // pred_region
          %s1287 = sand.u32 %s103, 1
          %s1288 = scalar_lea.sflag [#allocation9], %s1287
          %s1289 = sand.u32 %s186, 1
          %s1290 = smul.addr %s1289, 2
          %s1291 = scalar_lea.vmem [#allocation8], %s1290
          %s1292 = smul.u32 2, %s103
          %s1294 = ssub.s32 32, 32
          %1295 = vsyncadd %s1288, %s1294
          %s1296 = smul.addr %s1292, 16
          %s1297 = scalar_lea.hbm %s7, %s1296
          %s1298 = sshll.u32 %s1291, 4
          %s1299 = int_to_ptr.vmem [resolvable:$true] %s1298
          %1304 = dma.hbm_to_vmem [thread:$0]  %s1297, 32, %s1299, %s1288, 16, 16, 1
        $region168: #{tpu_custom_call.1} parent=155 // pred_fallthru
          _
      $region156: #{tpu_custom_call.1} parent=5 // pred_fallthru
        _
      %p1305 = scmp.le.s32.totalorder 1, %s103
      %p1306 = scmp.lt.s32.totalorder %s103, 3
      %p1307 = pnand %p1305, %p1306
      %p1308 = pneg %p1307
      // Predicated region
      $region169: #{tpu_custom_call.1} parent=5 // pred_check
        _
      $region170: #{tpu_custom_call.1} parent=5 // pred_check_branch
        %1310 = sbr.rel (%p1307) target = $region172
      $region171: #{tpu_custom_call.1} parent=5 // pred_region
        %s1311 = ssub.s32 %s103, 1
        %s1312 = sand.u32 %s116, 1
        %s1313 = scalar_lea.sflag [#allocation3], %s1312
        %s1314 = sand.u32 %s116, 1
        %s1315 = smul.addr %s1314, 16
        %s1316 = scalar_lea.vmem [#allocation2], %s1315
        // Predicated region
        $region173: #{tpu_custom_call.1} parent=171 // pred_check
          %p1317 = pneg %p129
        $region174: #{tpu_custom_call.1} parent=171 // pred_check_branch
          %1319 = sbr.rel (%p1317) target = $region176
        $region175: #{tpu_custom_call.1} parent=171 // pred_region
          %1320 = dma.done %s1313, 256
        $region176: #{tpu_custom_call.1} parent=171 // pred_fallthru
          _
        %s1321 = sand.u32 %s108, 1
        %s1322 = scalar_lea.sflag [#allocation6], %s1321
        %s1323 = sand.u32 %s142, 1
        %s1324 = smul.addr %s1323, 16
        %s1325 = scalar_lea.vmem [#allocation5], %s1324
        // Predicated region
        $region177: #{tpu_custom_call.1} parent=171 // pred_check
          %p1326 = pneg %p155
        $region178: #{tpu_custom_call.1} parent=171 // pred_check_branch
          %1328 = sbr.rel (%p1326) target = $region180
        $region179: #{tpu_custom_call.1} parent=171 // pred_region
          %1329 = dma.done %s1322, 256
        $region180: #{tpu_custom_call.1} parent=171 // pred_fallthru
          _
        // Predicated region
        $region181: #{tpu_custom_call.1} parent=171 // pred_check
          %p1330 = pneg %p176
        $region182: #{tpu_custom_call.1} parent=171 // pred_check_branch
          %1332 = sbr.rel (%p1330) target = $region184
        $region183: #{tpu_custom_call.1} parent=171 // pred_region
          %1333 = dma.done [#allocation6], 128
        $region184: #{tpu_custom_call.1} parent=171 // pred_fallthru
          _
        %s1334 = sand.u32 %s108, 1
        %s1335 = scalar_lea.sflag [#allocation9], %s1334
        %s1336 = sand.u32 %s189, 1
        %s1337 = smul.addr %s1336, 2
        %s1338 = scalar_lea.vmem [#allocation8], %s1337
        // Predicated region
        $region185: #{tpu_custom_call.1} parent=171 // pred_check
          %p1339 = pneg %p202
        $region186: #{tpu_custom_call.1} parent=171 // pred_check_branch
          %1341 = sbr.rel (%p1339) target = $region188
        $region187: #{tpu_custom_call.1} parent=171 // pred_region
          %1342 = dma.done %s1335, 32
        $region188: #{tpu_custom_call.1} parent=171 // pred_fallthru
          _
        // Predicated region
        $region189: #{tpu_custom_call.1} parent=171 // pred_check
          %p1343 = pneg %p223
        $region190: #{tpu_custom_call.1} parent=171 // pred_check_branch
          %1345 = sbr.rel (%p1343) target = $region192
        $region191: #{tpu_custom_call.1} parent=171 // pred_region
          %1346 = dma.done [#allocation9], 512
        $region192: #{tpu_custom_call.1} parent=171 // pred_fallthru
          _
        // Predicated region
        $region193: #{tpu_custom_call.1} parent=171 // pred_check
          %p1347 = pneg %p244
        $region194: #{tpu_custom_call.1} parent=171 // pred_check_branch
          %1349 = sbr.rel (%p1347) target = $region196
        $region195: #{tpu_custom_call.1} parent=171 // pred_region
          %1350 = dma.done [#allocation12], 512
        $region196: #{tpu_custom_call.1} parent=171 // pred_fallthru
          _
        // Predicated region
        $region197: #{tpu_custom_call.1} parent=171 // pred_check
          %p1351 = pneg %p265
        $region198: #{tpu_custom_call.1} parent=171 // pred_check_branch
          %1353 = sbr.rel (%p1351) target = $region200
        $region199: #{tpu_custom_call.1} parent=171 // pred_region
          %1354 = dma.done [#allocation12], 512
        $region200: #{tpu_custom_call.1} parent=171 // pred_fallthru
          _
        // Predicated region
        $region201: #{tpu_custom_call.1} parent=171 // pred_check
          %p1355 = pneg %p286
        $region202: #{tpu_custom_call.1} parent=171 // pred_check_branch
          %1357 = sbr.rel (%p1355) target = $region204
        $region203: #{tpu_custom_call.1} parent=171 // pred_region
          %1358 = dma.done [#allocation15], 512
        $region204: #{tpu_custom_call.1} parent=171 // pred_fallthru
          _
        // Predicated region
        $region205: #{tpu_custom_call.1} parent=171 // pred_check
          %p1359 = pneg %p307
        $region206: #{tpu_custom_call.1} parent=171 // pred_check_branch
          %1361 = sbr.rel (%p1359) target = $region208
        $region207: #{tpu_custom_call.1} parent=171 // pred_region
          %1362 = dma.done [#allocation15], 256
        $region208: #{tpu_custom_call.1} parent=171 // pred_fallthru
          _
        // Predicated region
        $region209: #{tpu_custom_call.1} parent=171 // pred_check
          %p1363 = pneg %p328
        $region210: #{tpu_custom_call.1} parent=171 // pred_check_branch
          %1365 = sbr.rel (%p1363) target = $region212
        $region211: #{tpu_custom_call.1} parent=171 // pred_region
          %1366 = dma.done [#allocation18], 16
        $region212: #{tpu_custom_call.1} parent=171 // pred_fallthru
          _
        // Predicated region
        $region213: #{tpu_custom_call.1} parent=171 // pred_check
          %p1367 = pneg %p370
        $region214: #{tpu_custom_call.1} parent=171 // pred_check_branch
          %1369 = sbr.rel (%p1367) target = $region216
        $region215: #{tpu_custom_call.1} parent=171 // pred_region
          %1370 = dma.done [#allocation18], 32
        $region216: #{tpu_custom_call.1} parent=171 // pred_fallthru
          _
        // Predicated region
        $region217: #{tpu_custom_call.1} parent=171 // pred_check
          %p1371 = pneg %p412
        $region218: #{tpu_custom_call.1} parent=171 // pred_check_branch
          %1373 = sbr.rel (%p1371) target = $region220
        $region219: #{tpu_custom_call.1} parent=171 // pred_region
          %1374 = dma.done [#allocation21], 32
        $region220: #{tpu_custom_call.1} parent=171 // pred_fallthru
          _
        // Predicated region
        $region221: #{tpu_custom_call.1} parent=171 // pred_check
          %p1375 = pneg %p454
        $region222: #{tpu_custom_call.1} parent=171 // pred_check_branch
          %1377 = sbr.rel (%p1375) target = $region224
        $region223: #{tpu_custom_call.1} parent=171 // pred_region
          %1378 = dma.done [#allocation21], 32
        $region224: #{tpu_custom_call.1} parent=171 // pred_fallthru
          _
        // Predicated region
        $region225: #{tpu_custom_call.1} parent=171 // pred_check
          %p1379 = pneg %p475
        $region226: #{tpu_custom_call.1} parent=171 // pred_check_branch
          %1381 = sbr.rel (%p1379) target = $region228
        $region227: #{tpu_custom_call.1} parent=171 // pred_region
          %1382 = dma.done [#allocation24], 1024
        $region228: #{tpu_custom_call.1} parent=171 // pred_fallthru
          _
        // Predicated region
        $region229: #{tpu_custom_call.1} parent=171 // pred_check
          %p1383 = pneg %p496
        $region230: #{tpu_custom_call.1} parent=171 // pred_check_branch
          %1385 = sbr.rel (%p1383) target = $region232
        $region231: #{tpu_custom_call.1} parent=171 // pred_region
          %1386 = dma.done [#allocation24], 32
        $region232: #{tpu_custom_call.1} parent=171 // pred_fallthru
          _
        // Predicated region
        $region233: #{tpu_custom_call.1} parent=171 // pred_check
          %p1387 = pneg %p517
        $region234: #{tpu_custom_call.1} parent=171 // pred_check_branch
          %1389 = sbr.rel (%p1387) target = $region236
        $region235: #{tpu_custom_call.1} parent=171 // pred_region
          %1390 = dma.done [#allocation27], 1024
        $region236: #{tpu_custom_call.1} parent=171 // pred_fallthru
          _
        // Predicated region
        $region237: #{tpu_custom_call.1} parent=171 // pred_check
          %p1391 = pneg %p538
        $region238: #{tpu_custom_call.1} parent=171 // pred_check_branch
          %1393 = sbr.rel (%p1391) target = $region240
        $region239: #{tpu_custom_call.1} parent=171 // pred_region
          %1394 = dma.done [#allocation27], 32
        $region240: #{tpu_custom_call.1} parent=171 // pred_fallthru
          _
        // Predicated region
        $region241: #{tpu_custom_call.1} parent=171 // pred_check
          %p1395 = pneg %p559
        $region242: #{tpu_custom_call.1} parent=171 // pred_check_branch
          %1397 = sbr.rel (%p1395) target = $region244
        $region243: #{tpu_custom_call.1} parent=171 // pred_region
          %1398 = dma.done [#allocation30], 1024
        $region244: #{tpu_custom_call.1} parent=171 // pred_fallthru
          _
        // Predicated region
        $region245: #{tpu_custom_call.1} parent=171 // pred_check
          %p1399 = pneg %p601
        $region246: #{tpu_custom_call.1} parent=171 // pred_check_branch
          %1401 = sbr.rel (%p1399) target = $region248
        $region247: #{tpu_custom_call.1} parent=171 // pred_region
          %1402 = dma.done [#allocation30], 1024
        $region248: #{tpu_custom_call.1} parent=171 // pred_fallthru
          _
        // Predicated region
        $region249: #{tpu_custom_call.1} parent=171 // pred_check
          %p1403 = pneg %p643
        $region250: #{tpu_custom_call.1} parent=171 // pred_check_branch
          %1405 = sbr.rel (%p1403) target = $region252
        $region251: #{tpu_custom_call.1} parent=171 // pred_region
          %1406 = dma.done [#allocation33], 1024
        $region252: #{tpu_custom_call.1} parent=171 // pred_fallthru
          _
        // Predicated region
        $region253: #{tpu_custom_call.1} parent=171 // pred_check
          %p1407 = pneg %p685
        $region254: #{tpu_custom_call.1} parent=171 // pred_check_branch
          %1409 = sbr.rel (%p1407) target = $region256
        $region255: #{tpu_custom_call.1} parent=171 // pred_region
          %1410 = dma.done [#allocation33], 1024
        $region256: #{tpu_custom_call.1} parent=171 // pred_fallthru
          _
        %s1411 = sand.u32 %s116, 1
        %s1412 = scalar_lea.sflag [#allocation3], %s1411
        %s1413 = sand.u32 %s116, 1
        %s1414 = smul.addr %s1413, 16
        %s1415 = scalar_lea.vmem [#allocation2], %s1414
        %p1416 = pneg %p129
        %p1417 = pneg %p126
        %s1418 = sand.u32 %s108, 1
        %s1419 = scalar_lea.sflag [#allocation6], %s1418
        %s1420 = sand.u32 %s142, 1
        %s1421 = smul.addr %s1420, 16
        %s1422 = scalar_lea.vmem [#allocation5], %s1421
        %p1423 = pneg %p155
        %p1424 = pneg %p152
        %p1425 = pneg %p176
        %p1426 = pneg %p173
        %s1427 = sand.u32 %s108, 1
        %s1428 = scalar_lea.sflag [#allocation9], %s1427
        %s1429 = sand.u32 %s189, 1
        %s1430 = smul.addr %s1429, 2
        %s1431 = scalar_lea.vmem [#allocation8], %s1430
        %p1432 = pneg %p202
        %p1433 = pneg %p199
        %p1434 = pneg %p223
        %p1435 = pneg %p220
        %p1436 = pneg %p244
        %p1437 = pneg %p241
        %p1438 = pneg %p265
        %p1439 = pneg %p262
        %p1440 = pneg %p286
        %p1441 = pneg %p283
        %p1442 = pneg %p307
        %p1443 = pneg %p304
        %p1444 = pneg %p328
        %p1445 = pneg %p325
        %p1446 = pneg %p349
        %p1447 = pneg %p346
        %p1448 = pneg %p370
        %p1449 = pneg %p367
        %p1450 = pneg %p391
        %p1451 = pneg %p388
        %p1452 = pneg %p412
        %p1453 = pneg %p409
        %p1454 = pneg %p433
        %p1455 = pneg %p430
        %p1456 = pneg %p454
        %p1457 = pneg %p451
        %p1458 = pneg %p475
        %p1459 = pneg %p472
        %p1460 = pneg %p496
        %p1461 = pneg %p493
        %p1462 = pneg %p517
        %p1463 = pneg %p514
        %p1464 = pneg %p538
        %p1465 = pneg %p535
        %p1466 = pneg %p559
        %p1467 = pneg %p556
        %p1468 = pneg %p580
        %p1469 = pneg %p577
        %p1470 = pneg %p601
        %p1471 = pneg %p598
        %p1472 = pneg %p622
        %p1473 = pneg %p619
        %p1474 = pneg %p643
        %p1475 = pneg %p640
        %p1476 = pneg %p664
        %p1477 = pneg %p661
        %p1478 = pneg %p685
        %p1479 = pneg %p682
        %p1480 = pneg %p706
        %p1481 = pneg %p703
        %p1482 = pneg %p727
        %p1483 = pneg %p724
        %p1484 = pneg %p748
        %p1485 = pneg %p745
        %p1486 = pneg %p769
        %p1487 = pneg %p766
        %p1488 = pneg %p790
        %p1489 = pneg %p787
        %p1490 = pneg %p811
        %p1491 = pneg %p808
        %p1492 = pneg %p832
        %p1493 = pneg %p829
        %p1494 = pneg %p853
        %p1495 = pneg %p850
        %p1496 = pneg %p874
        %p1497 = pneg %p871
        %p1498 = pneg %p895
        %p1499 = pneg %p892
        %p1500 = pneg %p916
        %p1501 = pneg %p913
        %p1502 = pneg %p942
        %p1503 = pneg %p939
        %s1504 = sand.u32 %s929, 1
        %s1505 = scalar_lea.sflag [#allocation4], %s1504
        %s1506 = sand.u32 %s929, 1
        %s1507 = smul.addr %s1506, 16
        %s1508 = scalar_lea.vmem [#allocation35], %s1507
        %s1509 = smul.u32 2, %s108
        %s1510 = smul.u32 2, %s108
        %s1511 = smul.u32 2, %s108
        %s1512 = smul.u32 2, %s108
        %v1513 = vld [vmem:[%s1316] sm:$0xff]
        %v1514 = vld [vmem:[%s1316 + $0x8] sm:$0xff]
        %v1515 = vld [vmem:[%s1325] sm:$0xff]
        %v1516 = vld [vmem:[%s1325 + $0x8] sm:$0xff]
        %v1517 = vld [vmem:[#allocation16] sm:$0xff]
        %v1518 = vld [vmem:[#allocation16 + $0x8] sm:$0xff]
        %v1519 = vld [vmem:[#allocation17] sm:$0x1]
        %v1521 = vlaneseq
        %v1522 = vshrl.u32 %v1521, 7
        %v1523 = vsub.s32 0, %v1522
        %v1524 = vrot.slane %v1519, %v1523
        %vm1526 = vcmask 130048
        %v1528 = vsel %vm1526, %v1515, 0
        %v1531 = vsel %vm1526, %v1516, 0
        %1533 = vmatprep.subr.mxu0 0.0
        %1534 = vmatpush1.msra.mxu0 0.0
        %1535 = vmatprep.subr.mxu0 0.0
        %1536 = vmatpush1.msra.mxu0 0.0
        %1537 = vmatprep.subr.mxu0 0.0
        %1538 = vmatpush1.msra.mxu0 0.0
        %1539 = vmatprep.subr.mxu0 0.0
        %1540 = vmatpush1.msra.mxu0 0.0
        %1541 = vmatprep.subr.mxu0 0.0
        %1542 = vmatpush1.msra.mxu0 0.0
        %1543 = vmatprep.subr.mxu0 0.0
        %1544 = vmatpush1.msra.mxu0 0.0
        %1545 = vmatprep.subr.mxu0 0.0
        %1546 = vmatpush1.msra.mxu0 0.0
        %1547 = vmatprep.subr.mxu0 0.0
        %1548 = vmatpush1.msra.mxu0 0.0
        %1549 = vmatprep.subr.mxu0 0.0
        %1550 = vmatpush1.msra.mxu0 0.0
        %1551 = vmatprep.subr.mxu0 0.0
        %1552 = vmatpush1.msra.mxu0 0.0
        %1553 = vmatprep.subr.mxu0 0.0
        %1554 = vmatpush1.msra.mxu0 0.0
        %1555 = vmatprep.subr.mxu0 0.0
        %1556 = vmatpush1.msra.mxu0 0.0
        %1557 = vmatprep.subr.mxu0 0.0
        %1558 = vmatpush1.msra.mxu0 0.0
        %1559 = vmatprep.subr.mxu0 0.0
        %1560 = vmatpush1.msra.mxu0 0.0
        %1561 = vmatprep.subr.mxu0 0.0
        %1562 = vmatpush1.msra.mxu0 %v1518
        %1563 = vmatprep.subr.mxu0 0.0
        %1564 = vmatpush1.msra.mxu0 %v1517
        %1565 = vmatprep.subr.mxu0 0.0
        %1566 = vmatpush2.msra.mxu0 0.0
        %1567 = vmatprep.subr.mxu0 0.0
        %1568 = vmatpush2.msra.mxu0 0.0
        %1569 = vmatprep.subr.mxu0 0.0
        %1570 = vmatpush2.msra.mxu0 0.0
        %1571 = vmatprep.subr.mxu0 0.0
        %1572 = vmatpush2.msra.mxu0 0.0
        %1573 = vmatprep.subr.mxu0 0.0
        %1574 = vmatpush2.msra.mxu0 0.0
        %1575 = vmatprep.subr.mxu0 0.0
        %1576 = vmatpush2.msra.mxu0 0.0
        %1577 = vmatprep.subr.mxu0 0.0
        %1578 = vmatpush2.msra.mxu0 0.0
        %1579 = vmatprep.subr.mxu0 0.0
        %1580 = vmatpush2.msra.mxu0 0.0
        %1581 = vmatprep.subr.mxu0 0.0
        %1582 = vmatpush2.msra.mxu0 0.0
        %1583 = vmatprep.subr.mxu0 0.0
        %1584 = vmatpush2.msra.mxu0 0.0
        %1585 = vmatprep.subr.mxu0 0.0
        %1586 = vmatpush2.msra.mxu0 0.0
        %1587 = vmatprep.subr.mxu0 0.0
        %1588 = vmatpush2.msra.mxu0 0.0
        %1589 = vmatprep.subr.mxu0 0.0
        %1590 = vmatpush2.msra.mxu0 0.0
        %1591 = vmatprep.subr.mxu0 0.0
        %1592 = vmatpush2.msra.mxu0 0.0
        %1593 = vmatprep.subr.mxu0 0.0
        %1594 = vmatpush2.msra.mxu0 0.0
        %1595 = vmatprep.subr.mxu0 0.0
        %1596 = vmatpush2.msra.mxu0 0.0
        %1597 = vmatprep.mubr.f32.mxu0 0.0
        %1598 = vmatmul.mubr.f32.gmra.mxu0 %v1528
        %v1599 = vpop.f32.mrf.mxu0
        %v1600 = vadd.f32 %v1524, %v1599
        %v1601 = vpop.f32.mrf.mxu0
        %1602 = vmatprep.mubr.f32.mxu0 0.0
        %1603 = vmatmul.mubr.f32.gmra.mxu0 %v1531
        %v1604 = vpop.f32.mrf.mxu0
        %v1605 = vadd.f32 %v1524, %v1604
        %v1606 = vpop.f32.mrf.mxu0
        %1607 = vdwg.mxu0
        %v1608 = vld [vmem:[#allocation7] sm:$0xff]
        %v1609 = vld [vmem:[#allocation10] sm:$0xff]
        %v1610 = vld [vmem:[#allocation10 + $0x8] sm:$0xff]
        %v1611 = vld [vmem:[#allocation10 + $0x10] sm:$0xff]
        %v1612 = vld [vmem:[#allocation10 + $0x18] sm:$0xff]
        %v1613 = vld [vmem:[#allocation11] sm:$0xff]
        %v1614 = vld [vmem:[#allocation11 + $0x8] sm:$0xff]
        %v1615 = vld [vmem:[#allocation11 + $0x10] sm:$0xff]
        %v1616 = vld [vmem:[#allocation11 + $0x18] sm:$0xff]
        %v1617 = vld [vmem:[#allocation13] sm:$0xff]
        %v1618 = vld [vmem:[#allocation13 + $0x8] sm:$0xff]
        %v1619 = vld [vmem:[#allocation13 + $0x10] sm:$0xff]
        %v1620 = vld [vmem:[#allocation13 + $0x18] sm:$0xff]
        %v1621 = vld [vmem:[#allocation14] sm:$0xff]
        %v1622 = vld [vmem:[#allocation14 + $0x8] sm:$0xff]
        %v1623 = vld [vmem:[#allocation14 + $0x10] sm:$0xff]
        %v1624 = vld [vmem:[#allocation14 + $0x18] sm:$0xff]
        %v1625 = vld [vmem:[%s21] sm:$0xff]
        %v1626 = vld [vmem:[%s21 + $0x8] sm:$0xff]
        %v1627 = vld [vmem:[%s21 + $0x10] sm:$0xff]
        %v1628 = vld [vmem:[%s21 + $0x18] sm:$0xff]
        %v1629 = vld [vmem:[#allocation19] sm:$0x1]
        %v1631 = vlaneseq
        %v1632 = vshrl.u32 %v1631, 7
        %v1633 = vsub.s32 0, %v1632
        %v1634 = vrot.slane %v1629, %v1633
        %vm1636 = vcmask 261120
        %v1638 = vsel %vm1636, %v1513, 0
        %v1641 = vsel %vm1636, %v1514, 0
        %1643 = vmatprep.subr.mxu0 0.0
        %1644 = vmatpush1.msra.mxu0 0.0
        %1645 = vmatprep.subr.mxu0 0.0
        %1646 = vmatpush1.msra.mxu0 0.0
        %1647 = vmatprep.subr.mxu0 0.0
        %1648 = vmatpush1.msra.mxu0 0.0
        %1649 = vmatprep.subr.mxu0 0.0
        %1650 = vmatpush1.msra.mxu0 0.0
        %1651 = vmatprep.subr.mxu0 0.0
        %1652 = vmatpush1.msra.mxu0 0.0
        %1653 = vmatprep.subr.mxu0 0.0
        %1654 = vmatpush1.msra.mxu0 0.0
        %1655 = vmatprep.subr.mxu0 0.0
        %1656 = vmatpush1.msra.mxu0 0.0
        %1657 = vmatprep.subr.mxu0 0.0
        %1658 = vmatpush1.msra.mxu0 0.0
        %1659 = vmatprep.subr.mxu0 0.0
        %1660 = vmatpush1.msra.mxu0 0.0
        %1661 = vmatprep.subr.mxu0 0.0
        %1662 = vmatpush1.msra.mxu0 0.0
        %1663 = vmatprep.subr.mxu0 0.0
        %1664 = vmatpush1.msra.mxu0 0.0
        %1665 = vmatprep.subr.mxu0 0.0
        %1666 = vmatpush1.msra.mxu0 0.0
        %1667 = vmatprep.subr.mxu0 0.0
        %1668 = vmatpush1.msra.mxu0 %v1628
        %1669 = vmatprep.subr.mxu0 0.0
        %1670 = vmatpush1.msra.mxu0 %v1627
        %1671 = vmatprep.subr.mxu0 0.0
        %1672 = vmatpush1.msra.mxu0 %v1626
        %1673 = vmatprep.subr.mxu0 0.0
        %1674 = vmatpush1.msra.mxu0 %v1625
        %1675 = vmatprep.subr.mxu0 0.0
        %1676 = vmatpush2.msra.mxu0 0.0
        %1677 = vmatprep.subr.mxu0 0.0
        %1678 = vmatpush2.msra.mxu0 0.0
        %1679 = vmatprep.subr.mxu0 0.0
        %1680 = vmatpush2.msra.mxu0 0.0
        %1681 = vmatprep.subr.mxu0 0.0
        %1682 = vmatpush2.msra.mxu0 0.0
        %1683 = vmatprep.subr.mxu0 0.0
        %1684 = vmatpush2.msra.mxu0 0.0
        %1685 = vmatprep.subr.mxu0 0.0
        %1686 = vmatpush2.msra.mxu0 0.0
        %1687 = vmatprep.subr.mxu0 0.0
        %1688 = vmatpush2.msra.mxu0 0.0
        %1689 = vmatprep.subr.mxu0 0.0
        %1690 = vmatpush2.msra.mxu0 0.0
        %1691 = vmatprep.subr.mxu0 0.0
        %1692 = vmatpush2.msra.mxu0 0.0
        %1693 = vmatprep.subr.mxu0 0.0
        %1694 = vmatpush2.msra.mxu0 0.0
        %1695 = vmatprep.subr.mxu0 0.0
        %1696 = vmatpush2.msra.mxu0 0.0
        %1697 = vmatprep.subr.mxu0 0.0
        %1698 = vmatpush2.msra.mxu0 0.0
        %1699 = vmatprep.subr.mxu0 0.0
        %1700 = vmatpush2.msra.mxu0 0.0
        %1701 = vmatprep.subr.mxu0 0.0
        %1702 = vmatpush2.msra.mxu0 0.0
        %1703 = vmatprep.subr.mxu0 0.0
        %1704 = vmatpush2.msra.mxu0 0.0
        %1705 = vmatprep.subr.mxu0 0.0
        %1706 = vmatpush2.msra.mxu0 0.0
        %1707 = vmatprep.mubr.f32.mxu0 0.0
        %1708 = vmatmul.mubr.f32.gmra.mxu0 %v1638
        %v1709 = vpop.f32.mrf.mxu0
        %v1710 = vadd.f32 %v1634, %v1709
        %v1711 = vpop.f32.mrf.mxu0
        %1712 = vmatprep.mubr.f32.mxu0 0.0
        %1713 = vmatmul.mubr.f32.gmra.mxu0 %v1641
        %v1714 = vpop.f32.mrf.mxu0
        %v1715 = vadd.f32 %v1634, %v1714
        %v1716 = vpop.f32.mrf.mxu0
        %1717 = vdwg.mxu0
        %v1718 = vld [vmem:[%s25] sm:$0xff]
        %v1719 = vld [vmem:[%s25 + $0x8] sm:$0xff]
        %v1720 = vld [vmem:[%s25 + $0x10] sm:$0xff]
        %v1721 = vld [vmem:[%s25 + $0x18] sm:$0xff]
        %v1722 = vld [vmem:[#allocation20] sm:$0x1]
        %v1724 = vlaneseq
        %v1725 = vshrl.u32 %v1724, 7
        %v1726 = vsub.s32 0, %v1725
        %v1727 = vrot.slane %v1722, %v1726
        %1729 = vmatprep.subr.mxu0 0.0
        %1730 = vmatpush1.msra.mxu0 0.0
        %1731 = vmatprep.subr.mxu0 0.0
        %1732 = vmatpush1.msra.mxu0 0.0
        %1733 = vmatprep.subr.mxu0 0.0
        %1734 = vmatpush1.msra.mxu0 0.0
        %1735 = vmatprep.subr.mxu0 0.0
        %1736 = vmatpush1.msra.mxu0 0.0
        %1737 = vmatprep.subr.mxu0 0.0
        %1738 = vmatpush1.msra.mxu0 0.0
        %1739 = vmatprep.subr.mxu0 0.0
        %1740 = vmatpush1.msra.mxu0 0.0
        %1741 = vmatprep.subr.mxu0 0.0
        %1742 = vmatpush1.msra.mxu0 0.0
        %1743 = vmatprep.subr.mxu0 0.0
        %1744 = vmatpush1.msra.mxu0 0.0
        %1745 = vmatprep.subr.mxu0 0.0
        %1746 = vmatpush1.msra.mxu0 0.0
        %1747 = vmatprep.subr.mxu0 0.0
        %1748 = vmatpush1.msra.mxu0 0.0
        %1749 = vmatprep.subr.mxu0 0.0
        %1750 = vmatpush1.msra.mxu0 0.0
        %1751 = vmatprep.subr.mxu0 0.0
        %1752 = vmatpush1.msra.mxu0 0.0
        %1753 = vmatprep.subr.mxu0 0.0
        %1754 = vmatpush1.msra.mxu0 %v1721
        %1755 = vmatprep.subr.mxu0 0.0
        %1756 = vmatpush1.msra.mxu0 %v1720
        %1757 = vmatprep.subr.mxu0 0.0
        %1758 = vmatpush1.msra.mxu0 %v1719
        %1759 = vmatprep.subr.mxu0 0.0
        %1760 = vmatpush1.msra.mxu0 %v1718
        %1761 = vmatprep.subr.mxu0 0.0
        %1762 = vmatpush2.msra.mxu0 0.0
        %1763 = vmatprep.subr.mxu0 0.0
        %1764 = vmatpush2.msra.mxu0 0.0
        %1765 = vmatprep.subr.mxu0 0.0
        %1766 = vmatpush2.msra.mxu0 0.0
        %1767 = vmatprep.subr.mxu0 0.0
        %1768 = vmatpush2.msra.mxu0 0.0
        %1769 = vmatprep.subr.mxu0 0.0
        %1770 = vmatpush2.msra.mxu0 0.0
        %1771 = vmatprep.subr.mxu0 0.0
        %1772 = vmatpush2.msra.mxu0 0.0
        %1773 = vmatprep.subr.mxu0 0.0
        %1774 = vmatpush2.msra.mxu0 0.0
        %1775 = vmatprep.subr.mxu0 0.0
        %1776 = vmatpush2.msra.mxu0 0.0
        %1777 = vmatprep.subr.mxu0 0.0
        %1778 = vmatpush2.msra.mxu0 0.0
        %1779 = vmatprep.subr.mxu0 0.0
        %1780 = vmatpush2.msra.mxu0 0.0
        %1781 = vmatprep.subr.mxu0 0.0
        %1782 = vmatpush2.msra.mxu0 0.0
        %1783 = vmatprep.subr.mxu0 0.0
        %1784 = vmatpush2.msra.mxu0 0.0
        %1785 = vmatprep.subr.mxu0 0.0
        %1786 = vmatpush2.msra.mxu0 0.0
        %1787 = vmatprep.subr.mxu0 0.0
        %1788 = vmatpush2.msra.mxu0 0.0
        %1789 = vmatprep.subr.mxu0 0.0
        %1790 = vmatpush2.msra.mxu0 0.0
        %1791 = vmatprep.subr.mxu0 0.0
        %1792 = vmatpush2.msra.mxu0 0.0
        %1793 = vmatprep.mubr.f32.mxu0 0.0
        %1794 = vmatmul.mubr.f32.gmra.mxu0 %v1638
        %v1795 = vpop.f32.mrf.mxu0
        %v1796 = vadd.f32 %v1727, %v1795
        %v1797 = vpop.f32.mrf.mxu0
        %1798 = vmatprep.mubr.f32.mxu0 0.0
        %1799 = vmatmul.mubr.f32.gmra.mxu0 %v1641
        %v1800 = vpop.f32.mrf.mxu0
        %v1801 = vadd.f32 %v1727, %v1800
        %v1802 = vpop.f32.mrf.mxu0
        %1803 = vdwg.mxu0
        %v1804 = vld [vmem:[%s29] sm:$0xff]
        %v1805 = vld [vmem:[%s29 + $0x8] sm:$0xff]
        %v1806 = vld [vmem:[%s29 + $0x10] sm:$0xff]
        %v1807 = vld [vmem:[%s29 + $0x18] sm:$0xff]
        %v1808 = vld [vmem:[#allocation22] sm:$0x1]
        %v1810 = vlaneseq
        %v1811 = vshrl.u32 %v1810, 7
        %v1812 = vsub.s32 0, %v1811
        %v1813 = vrot.slane %v1808, %v1812
        %1815 = vmatprep.subr.mxu0 0.0
        %1816 = vmatpush1.msra.mxu0 0.0
        %1817 = vmatprep.subr.mxu0 0.0
        %1818 = vmatpush1.msra.mxu0 0.0
        %1819 = vmatprep.subr.mxu0 0.0
        %1820 = vmatpush1.msra.mxu0 0.0
        %1821 = vmatprep.subr.mxu0 0.0
        %1822 = vmatpush1.msra.mxu0 0.0
        %1823 = vmatprep.subr.mxu0 0.0
        %1824 = vmatpush1.msra.mxu0 0.0
        %1825 = vmatprep.subr.mxu0 0.0
        %1826 = vmatpush1.msra.mxu0 0.0
        %1827 = vmatprep.subr.mxu0 0.0
        %1828 = vmatpush1.msra.mxu0 0.0
        %1829 = vmatprep.subr.mxu0 0.0
        %1830 = vmatpush1.msra.mxu0 0.0
        %1831 = vmatprep.subr.mxu0 0.0
        %1832 = vmatpush1.msra.mxu0 0.0
        %1833 = vmatprep.subr.mxu0 0.0
        %1834 = vmatpush1.msra.mxu0 0.0
        %1835 = vmatprep.subr.mxu0 0.0
        %1836 = vmatpush1.msra.mxu0 0.0
        %1837 = vmatprep.subr.mxu0 0.0
        %1838 = vmatpush1.msra.mxu0 0.0
        %1839 = vmatprep.subr.mxu0 0.0
        %1840 = vmatpush1.msra.mxu0 %v1807
        %1841 = vmatprep.subr.mxu0 0.0
        %1842 = vmatpush1.msra.mxu0 %v1806
        %1843 = vmatprep.subr.mxu0 0.0
        %1844 = vmatpush1.msra.mxu0 %v1805
        %1845 = vmatprep.subr.mxu0 0.0
        %1846 = vmatpush1.msra.mxu0 %v1804
        %1847 = vmatprep.subr.mxu0 0.0
        %1848 = vmatpush2.msra.mxu0 0.0
        %1849 = vmatprep.subr.mxu0 0.0
        %1850 = vmatpush2.msra.mxu0 0.0
        %1851 = vmatprep.subr.mxu0 0.0
        %1852 = vmatpush2.msra.mxu0 0.0
        %1853 = vmatprep.subr.mxu0 0.0
        %1854 = vmatpush2.msra.mxu0 0.0
        %1855 = vmatprep.subr.mxu0 0.0
        %1856 = vmatpush2.msra.mxu0 0.0
        %1857 = vmatprep.subr.mxu0 0.0
        %1858 = vmatpush2.msra.mxu0 0.0
        %1859 = vmatprep.subr.mxu0 0.0
        %1860 = vmatpush2.msra.mxu0 0.0
        %1861 = vmatprep.subr.mxu0 0.0
        %1862 = vmatpush2.msra.mxu0 0.0
        %1863 = vmatprep.subr.mxu0 0.0
        %1864 = vmatpush2.msra.mxu0 0.0
        %1865 = vmatprep.subr.mxu0 0.0
        %1866 = vmatpush2.msra.mxu0 0.0
        %1867 = vmatprep.subr.mxu0 0.0
        %1868 = vmatpush2.msra.mxu0 0.0
        %1869 = vmatprep.subr.mxu0 0.0
        %1870 = vmatpush2.msra.mxu0 0.0
        %1871 = vmatprep.subr.mxu0 0.0
        %1872 = vmatpush2.msra.mxu0 0.0
        %1873 = vmatprep.subr.mxu0 0.0
        %1874 = vmatpush2.msra.mxu0 0.0
        %1875 = vmatprep.subr.mxu0 0.0
        %1876 = vmatpush2.msra.mxu0 0.0
        %1877 = vmatprep.subr.mxu0 0.0
        %1878 = vmatpush2.msra.mxu0 0.0
        %1879 = vmatprep.mubr.f32.mxu0 0.0
        %1880 = vmatmul.mubr.f32.gmra.mxu0 %v1638
        %v1881 = vpop.f32.mrf.mxu0
        %v1882 = vadd.f32 %v1813, %v1881
        %v1883 = vpop.f32.mrf.mxu0
        %1884 = vmatprep.mubr.f32.mxu0 0.0
        %1885 = vmatmul.mubr.f32.gmra.mxu0 %v1641
        %v1886 = vpop.f32.mrf.mxu0
        %v1887 = vadd.f32 %v1813, %v1886
        %v1888 = vpop.f32.mrf.mxu0
        %1889 = vdwg.mxu0
        %v1890 = vmul.f32 %v1796, %v1609
        %v1891 = vmul.f32 %v1796, %v1610
        %v1892 = vmul.f32 %v1796, %v1611
        %v1893 = vmul.f32 %v1796, %v1612
        %v1894 = vmul.f32 %v1882, %v1609
        %v1895 = vmul.f32 %v1882, %v1610
        %v1896 = vmul.f32 %v1882, %v1611
        %v1897 = vmul.f32 %v1882, %v1612
        %v1899 = vsel %vm1636, %v1710, 0
        %v1902 = vsel %vm1636, %v1890, 0
        %v1905 = vsel %vm1636, %v1891, 0
        %v1908 = vsel %vm1636, %v1892, 0
        %v1911 = vsel %vm1636, %v1893, 0
        %1913 = vmatprep.subr.mxu0 0.0
        %1914 = vmatpush1.xpose.msra.mxu0 0.0
        %1915 = vmatprep.subr.mxu0 0.0
        %1916 = vmatpush1.xpose.msra.mxu0 0.0
        %1917 = vmatprep.subr.mxu0 0.0
        %1918 = vmatpush1.xpose.msra.mxu0 0.0
        %1919 = vmatprep.subr.mxu0 0.0
        %1920 = vmatpush1.xpose.msra.mxu0 0.0
        %1921 = vmatprep.subr.mxu0 0.0
        %1922 = vmatpush1.xpose.msra.mxu0 0.0
        %1923 = vmatprep.subr.mxu0 0.0
        %1924 = vmatpush1.xpose.msra.mxu0 0.0
        %1925 = vmatprep.subr.mxu0 0.0
        %1926 = vmatpush1.xpose.msra.mxu0 0.0
        %1927 = vmatprep.subr.mxu0 0.0
        %1928 = vmatpush1.xpose.msra.mxu0 0.0
        %1929 = vmatprep.subr.mxu0 0.0
        %1930 = vmatpush1.xpose.msra.mxu0 0.0
        %1931 = vmatprep.subr.mxu0 0.0
        %1932 = vmatpush1.xpose.msra.mxu0 0.0
        %1933 = vmatprep.subr.mxu0 0.0
        %1934 = vmatpush1.xpose.msra.mxu0 0.0
        %1935 = vmatprep.subr.mxu0 0.0
        %1936 = vmatpush1.xpose.msra.mxu0 0.0
        %1937 = vmatprep.subr.mxu0 0.0
        %1938 = vmatpush1.xpose.msra.mxu0 %v1911
        %1939 = vmatprep.subr.mxu0 0.0
        %1940 = vmatpush1.xpose.msra.mxu0 %v1908
        %1941 = vmatprep.subr.mxu0 0.0
        %1942 = vmatpush1.xpose.msra.mxu0 %v1905
        %1943 = vmatprep.subr.mxu0 0.0
        %1944 = vmatpush1.xpose.msra.mxu0 %v1902
        %1945 = vmatprep.subr.mxu0 0.0
        %1946 = vmatpush2.xpose.msra.mxu0 0.0
        %1947 = vmatprep.subr.mxu0 0.0
        %1948 = vmatpush2.xpose.msra.mxu0 0.0
        %1949 = vmatprep.subr.mxu0 0.0
        %1950 = vmatpush2.xpose.msra.mxu0 0.0
        %1951 = vmatprep.subr.mxu0 0.0
        %1952 = vmatpush2.xpose.msra.mxu0 0.0
        %1953 = vmatprep.subr.mxu0 0.0
        %1954 = vmatpush2.xpose.msra.mxu0 0.0
        %1955 = vmatprep.subr.mxu0 0.0
        %1956 = vmatpush2.xpose.msra.mxu0 0.0
        %1957 = vmatprep.subr.mxu0 0.0
        %1958 = vmatpush2.xpose.msra.mxu0 0.0
        %1959 = vmatprep.subr.mxu0 0.0
        %1960 = vmatpush2.xpose.msra.mxu0 0.0
        %1961 = vmatprep.subr.mxu0 0.0
        %1962 = vmatpush2.xpose.msra.mxu0 0.0
        %1963 = vmatprep.subr.mxu0 0.0
        %1964 = vmatpush2.xpose.msra.mxu0 0.0
        %1965 = vmatprep.subr.mxu0 0.0
        %1966 = vmatpush2.xpose.msra.mxu0 0.0
        %1967 = vmatprep.subr.mxu0 0.0
        %1968 = vmatpush2.xpose.msra.mxu0 0.0
        %1969 = vmatprep.subr.mxu0 0.0
        %1970 = vmatpush2.xpose.msra.mxu0 0.0
        %1971 = vmatprep.subr.mxu0 0.0
        %1972 = vmatpush2.xpose.msra.mxu0 0.0
        %1973 = vmatprep.subr.mxu0 0.0
        %1974 = vmatpush2.xpose.msra.mxu0 0.0
        %1975 = vmatprep.subr.mxu0 0.0
        %1976 = vmatpush2.xpose.msra.mxu0 0.0
        %1977 = vmatprep.mubr.f32.mxu0 0.0
        %1978 = vmatmul.mubr.f32.gmra.mxu0 %v1899
        %v1979 = vpop.f32.mrf.mxu0
        %v1980 = vadd.f32 0.0, %v1979
        %v1981 = vpop.f32.mrf.mxu0
        %1982 = vdwg.mxu0
        %v1983 = vmul.f32 %v1980, 0.35355338
        %v1984 = vadd.f32 %v1983, %v1608
        %v1985 = vsel %vm1636, %v1984, -inf
        %1986 = vmax.xlane.f32.xlu0 %v1985
        %v1987 = vpop.xlane.xlu0 %1986
        %v1988 = vsub.f32 %v1984, %v1987
        %v1989 = vmul.f32 %v1988, 1.442695
        %v1990 = vpow.pop %v1989
        %v1992 = vsel %vm1636, %v1990, 0
        %1994 = vmatprep.subr.mxu0 0.0
        %1995 = vmatpush1.msra.mxu0 0.0
        %1996 = vmatprep.subr.mxu0 0.0
        %1997 = vmatpush1.msra.mxu0 0.0
        %1998 = vmatprep.subr.mxu0 0.0
        %1999 = vmatpush1.msra.mxu0 0.0
        %2000 = vmatprep.subr.mxu0 0.0
        %2001 = vmatpush1.msra.mxu0 0.0
        %2002 = vmatprep.subr.mxu0 0.0
        %2003 = vmatpush1.msra.mxu0 0.0
        %2004 = vmatprep.subr.mxu0 0.0
        %2005 = vmatpush1.msra.mxu0 0.0
        %2006 = vmatprep.subr.mxu0 0.0
        %2007 = vmatpush1.msra.mxu0 0.0
        %2008 = vmatprep.subr.mxu0 0.0
        %2009 = vmatpush1.msra.mxu0 0.0
        %2010 = vmatprep.subr.mxu0 0.0
        %2011 = vmatpush1.msra.mxu0 0.0
        %2012 = vmatprep.subr.mxu0 0.0
        %2013 = vmatpush1.msra.mxu0 0.0
        %2014 = vmatprep.subr.mxu0 0.0
        %2015 = vmatpush1.msra.mxu0 0.0
        %2016 = vmatprep.subr.mxu0 0.0
        %2017 = vmatpush1.msra.mxu0 0.0
        %2018 = vmatprep.subr.mxu0 0.0
        %2019 = vmatpush1.msra.mxu0 %v1616
        %2020 = vmatprep.subr.mxu0 0.0
        %2021 = vmatpush1.msra.mxu0 %v1615
        %2022 = vmatprep.subr.mxu0 0.0
        %2023 = vmatpush1.msra.mxu0 %v1614
        %2024 = vmatprep.subr.mxu0 0.0
        %2025 = vmatpush1.msra.mxu0 %v1613
        %2026 = vmatprep.subr.mxu0 0.0
        %2027 = vmatpush2.msra.mxu0 0.0
        %2028 = vmatprep.subr.mxu0 0.0
        %2029 = vmatpush2.msra.mxu0 0.0
        %2030 = vmatprep.subr.mxu0 0.0
        %2031 = vmatpush2.msra.mxu0 0.0
        %2032 = vmatprep.subr.mxu0 0.0
        %2033 = vmatpush2.msra.mxu0 0.0
        %2034 = vmatprep.subr.mxu0 0.0
        %2035 = vmatpush2.msra.mxu0 0.0
        %2036 = vmatprep.subr.mxu0 0.0
        %2037 = vmatpush2.msra.mxu0 0.0
        %2038 = vmatprep.subr.mxu0 0.0
        %2039 = vmatpush2.msra.mxu0 0.0
        %2040 = vmatprep.subr.mxu0 0.0
        %2041 = vmatpush2.msra.mxu0 0.0
        %2042 = vmatprep.subr.mxu0 0.0
        %2043 = vmatpush2.msra.mxu0 0.0
        %2044 = vmatprep.subr.mxu0 0.0
        %2045 = vmatpush2.msra.mxu0 0.0
        %2046 = vmatprep.subr.mxu0 0.0
        %2047 = vmatpush2.msra.mxu0 0.0
        %2048 = vmatprep.subr.mxu0 0.0
        %2049 = vmatpush2.msra.mxu0 0.0
        %2050 = vmatprep.subr.mxu0 0.0
        %2051 = vmatpush2.msra.mxu0 0.0
        %2052 = vmatprep.subr.mxu0 0.0
        %2053 = vmatpush2.msra.mxu0 0.0
        %2054 = vmatprep.subr.mxu0 0.0
        %2055 = vmatpush2.msra.mxu0 0.0
        %2056 = vmatprep.subr.mxu0 0.0
        %2057 = vmatpush2.msra.mxu0 0.0
        %2058 = vmatprep.mubr.f32.mxu0 0.0
        %2059 = vmatmul.mubr.f32.gmra.mxu0 %v1992
        %v2060 = vpop.f32.mrf.mxu0
        %v2061 = vadd.f32 0.0, %v2060
        %v2062 = vpop.f32.mrf.mxu0
        %2063 = vdwg.mxu0
        %v2064 = vrcp.pop %v2061
        %v2065 = vmul.f32 %v2061, %v2064
        %v2066 = vsub.f32 2.0, %v2065
        %v2067 = vmul.f32 %v2064, %v2066
        %v2068 = vmul.f32 %v1990, %v2067
        %v2070 = vsel %vm1636, %v2068, 0
        %2072 = vmatprep.subr.mxu0 0.0
        %2073 = vmatpush1.msra.mxu0 0.0
        %2074 = vmatprep.subr.mxu0 0.0
        %2075 = vmatpush1.msra.mxu0 0.0
        %2076 = vmatprep.subr.mxu0 0.0
        %2077 = vmatpush1.msra.mxu0 0.0
        %2078 = vmatprep.subr.mxu0 0.0
        %2079 = vmatpush1.msra.mxu0 0.0
        %2080 = vmatprep.subr.mxu0 0.0
        %2081 = vmatpush1.msra.mxu0 0.0
        %2082 = vmatprep.subr.mxu0 0.0
        %2083 = vmatpush1.msra.mxu0 0.0
        %2084 = vmatprep.subr.mxu0 0.0
        %2085 = vmatpush1.msra.mxu0 0.0
        %2086 = vmatprep.subr.mxu0 0.0
        %2087 = vmatpush1.msra.mxu0 0.0
        %2088 = vmatprep.subr.mxu0 0.0
        %2089 = vmatpush1.msra.mxu0 0.0
        %2090 = vmatprep.subr.mxu0 0.0
        %2091 = vmatpush1.msra.mxu0 0.0
        %2092 = vmatprep.subr.mxu0 0.0
        %2093 = vmatpush1.msra.mxu0 0.0
        %2094 = vmatprep.subr.mxu0 0.0
        %2095 = vmatpush1.msra.mxu0 0.0
        %2096 = vmatprep.subr.mxu0 0.0
        %2097 = vmatpush1.msra.mxu0 %v1897
        %2098 = vmatprep.subr.mxu0 0.0
        %2099 = vmatpush1.msra.mxu0 %v1896
        %2100 = vmatprep.subr.mxu0 0.0
        %2101 = vmatpush1.msra.mxu0 %v1895
        %2102 = vmatprep.subr.mxu0 0.0
        %2103 = vmatpush1.msra.mxu0 %v1894
        %2104 = vmatprep.subr.mxu0 0.0
        %2105 = vmatpush2.msra.mxu0 0.0
        %2106 = vmatprep.subr.mxu0 0.0
        %2107 = vmatpush2.msra.mxu0 0.0
        %2108 = vmatprep.subr.mxu0 0.0
        %2109 = vmatpush2.msra.mxu0 0.0
        %2110 = vmatprep.subr.mxu0 0.0
        %2111 = vmatpush2.msra.mxu0 0.0
        %2112 = vmatprep.subr.mxu0 0.0
        %2113 = vmatpush2.msra.mxu0 0.0
        %2114 = vmatprep.subr.mxu0 0.0
        %2115 = vmatpush2.msra.mxu0 0.0
        %2116 = vmatprep.subr.mxu0 0.0
        %2117 = vmatpush2.msra.mxu0 0.0
        %2118 = vmatprep.subr.mxu0 0.0
        %2119 = vmatpush2.msra.mxu0 0.0
        %2120 = vmatprep.subr.mxu0 0.0
        %2121 = vmatpush2.msra.mxu0 0.0
        %2122 = vmatprep.subr.mxu0 0.0
        %2123 = vmatpush2.msra.mxu0 0.0
        %2124 = vmatprep.subr.mxu0 0.0
        %2125 = vmatpush2.msra.mxu0 0.0
        %2126 = vmatprep.subr.mxu0 0.0
        %2127 = vmatpush2.msra.mxu0 0.0
        %2128 = vmatprep.subr.mxu0 0.0
        %2129 = vmatpush2.msra.mxu0 0.0
        %2130 = vmatprep.subr.mxu0 0.0
        %2131 = vmatpush2.msra.mxu0 0.0
        %2132 = vmatprep.subr.mxu0 0.0
        %2133 = vmatpush2.msra.mxu0 0.0
        %2134 = vmatprep.subr.mxu0 0.0
        %2135 = vmatpush2.msra.mxu0 0.0
        %2136 = vmatprep.mubr.f32.mxu0 0.0
        %2137 = vmatmul.mubr.f32.gmra.mxu0 %v2070
        %v2138 = vpop.f32.mrf.mxu0
        %v2139 = vadd.f32 0.0, %v2138
        %v2140 = vpop.f32.mrf.mxu0
        %2141 = vdwg.mxu0
        %v2142 = vmul.f32 %v1801, %v1609
        %v2143 = vmul.f32 %v1801, %v1610
        %v2144 = vmul.f32 %v1801, %v1611
        %v2145 = vmul.f32 %v1801, %v1612
        %v2146 = vmul.f32 %v1887, %v1609
        %v2147 = vmul.f32 %v1887, %v1610
        %v2148 = vmul.f32 %v1887, %v1611
        %v2149 = vmul.f32 %v1887, %v1612
        %v2151 = vsel %vm1636, %v1715, 0
        %v2154 = vsel %vm1636, %v2142, 0
        %v2157 = vsel %vm1636, %v2143, 0
        %v2160 = vsel %vm1636, %v2144, 0
        %v2163 = vsel %vm1636, %v2145, 0
        %2165 = vmatprep.subr.mxu0 0.0
        %2166 = vmatpush1.xpose.msra.mxu0 0.0
        %2167 = vmatprep.subr.mxu0 0.0
        %2168 = vmatpush1.xpose.msra.mxu0 0.0
        %2169 = vmatprep.subr.mxu0 0.0
        %2170 = vmatpush1.xpose.msra.mxu0 0.0
        %2171 = vmatprep.subr.mxu0 0.0
        %2172 = vmatpush1.xpose.msra.mxu0 0.0
        %2173 = vmatprep.subr.mxu0 0.0
        %2174 = vmatpush1.xpose.msra.mxu0 0.0
        %2175 = vmatprep.subr.mxu0 0.0
        %2176 = vmatpush1.xpose.msra.mxu0 0.0
        %2177 = vmatprep.subr.mxu0 0.0
        %2178 = vmatpush1.xpose.msra.mxu0 0.0
        %2179 = vmatprep.subr.mxu0 0.0
        %2180 = vmatpush1.xpose.msra.mxu0 0.0
        %2181 = vmatprep.subr.mxu0 0.0
        %2182 = vmatpush1.xpose.msra.mxu0 0.0
        %2183 = vmatprep.subr.mxu0 0.0
        %2184 = vmatpush1.xpose.msra.mxu0 0.0
        %2185 = vmatprep.subr.mxu0 0.0
        %2186 = vmatpush1.xpose.msra.mxu0 0.0
        %2187 = vmatprep.subr.mxu0 0.0
        %2188 = vmatpush1.xpose.msra.mxu0 0.0
        %2189 = vmatprep.subr.mxu0 0.0
        %2190 = vmatpush1.xpose.msra.mxu0 %v2163
        %2191 = vmatprep.subr.mxu0 0.0
        %2192 = vmatpush1.xpose.msra.mxu0 %v2160
        %2193 = vmatprep.subr.mxu0 0.0
        %2194 = vmatpush1.xpose.msra.mxu0 %v2157
        %2195 = vmatprep.subr.mxu0 0.0
        %2196 = vmatpush1.xpose.msra.mxu0 %v2154
        %2197 = vmatprep.subr.mxu0 0.0
        %2198 = vmatpush2.xpose.msra.mxu0 0.0
        %2199 = vmatprep.subr.mxu0 0.0
        %2200 = vmatpush2.xpose.msra.mxu0 0.0
        %2201 = vmatprep.subr.mxu0 0.0
        %2202 = vmatpush2.xpose.msra.mxu0 0.0
        %2203 = vmatprep.subr.mxu0 0.0
        %2204 = vmatpush2.xpose.msra.mxu0 0.0
        %2205 = vmatprep.subr.mxu0 0.0
        %2206 = vmatpush2.xpose.msra.mxu0 0.0
        %2207 = vmatprep.subr.mxu0 0.0
        %2208 = vmatpush2.xpose.msra.mxu0 0.0
        %2209 = vmatprep.subr.mxu0 0.0
        %2210 = vmatpush2.xpose.msra.mxu0 0.0
        %2211 = vmatprep.subr.mxu0 0.0
        %2212 = vmatpush2.xpose.msra.mxu0 0.0
        %2213 = vmatprep.subr.mxu0 0.0
        %2214 = vmatpush2.xpose.msra.mxu0 0.0
        %2215 = vmatprep.subr.mxu0 0.0
        %2216 = vmatpush2.xpose.msra.mxu0 0.0
        %2217 = vmatprep.subr.mxu0 0.0
        %2218 = vmatpush2.xpose.msra.mxu0 0.0
        %2219 = vmatprep.subr.mxu0 0.0
        %2220 = vmatpush2.xpose.msra.mxu0 0.0
        %2221 = vmatprep.subr.mxu0 0.0
        %2222 = vmatpush2.xpose.msra.mxu0 0.0
        %2223 = vmatprep.subr.mxu0 0.0
        %2224 = vmatpush2.xpose.msra.mxu0 0.0
        %2225 = vmatprep.subr.mxu0 0.0
        %2226 = vmatpush2.xpose.msra.mxu0 0.0
        %2227 = vmatprep.subr.mxu0 0.0
        %2228 = vmatpush2.xpose.msra.mxu0 0.0
        %2229 = vmatprep.mubr.f32.mxu0 0.0
        %2230 = vmatmul.mubr.f32.gmra.mxu0 %v2151
        %v2231 = vpop.f32.mrf.mxu0
        %v2232 = vadd.f32 0.0, %v2231
        %v2233 = vpop.f32.mrf.mxu0
        %2234 = vdwg.mxu0
        %v2235 = vmul.f32 %v2232, 0.35355338
        %v2236 = vadd.f32 %v2235, %v1608
        %v2237 = vsel %vm1636, %v2236, -inf
        %2238 = vmax.xlane.f32.xlu0 %v2237
        %v2239 = vpop.xlane.xlu0 %2238
        %v2240 = vsub.f32 %v2236, %v2239
        %v2241 = vmul.f32 %v2240, 1.442695
        %v2242 = vpow.pop %v2241
        %v2244 = vsel %vm1636, %v2242, 0
        %2246 = vmatprep.subr.mxu0 0.0
        %2247 = vmatpush1.msra.mxu0 0.0
        %2248 = vmatprep.subr.mxu0 0.0
        %2249 = vmatpush1.msra.mxu0 0.0
        %2250 = vmatprep.subr.mxu0 0.0
        %2251 = vmatpush1.msra.mxu0 0.0
        %2252 = vmatprep.subr.mxu0 0.0
        %2253 = vmatpush1.msra.mxu0 0.0
        %2254 = vmatprep.subr.mxu0 0.0
        %2255 = vmatpush1.msra.mxu0 0.0
        %2256 = vmatprep.subr.mxu0 0.0
        %2257 = vmatpush1.msra.mxu0 0.0
        %2258 = vmatprep.subr.mxu0 0.0
        %2259 = vmatpush1.msra.mxu0 0.0
        %2260 = vmatprep.subr.mxu0 0.0
        %2261 = vmatpush1.msra.mxu0 0.0
        %2262 = vmatprep.subr.mxu0 0.0
        %2263 = vmatpush1.msra.mxu0 0.0
        %2264 = vmatprep.subr.mxu0 0.0
        %2265 = vmatpush1.msra.mxu0 0.0
        %2266 = vmatprep.subr.mxu0 0.0
        %2267 = vmatpush1.msra.mxu0 0.0
        %2268 = vmatprep.subr.mxu0 0.0
        %2269 = vmatpush1.msra.mxu0 0.0
        %2270 = vmatprep.subr.mxu0 0.0
        %2271 = vmatpush1.msra.mxu0 %v1616
        %2272 = vmatprep.subr.mxu0 0.0
        %2273 = vmatpush1.msra.mxu0 %v1615
        %2274 = vmatprep.subr.mxu0 0.0
        %2275 = vmatpush1.msra.mxu0 %v1614
        %2276 = vmatprep.subr.mxu0 0.0
        %2277 = vmatpush1.msra.mxu0 %v1613
        %2278 = vmatprep.subr.mxu0 0.0
        %2279 = vmatpush2.msra.mxu0 0.0
        %2280 = vmatprep.subr.mxu0 0.0
        %2281 = vmatpush2.msra.mxu0 0.0
        %2282 = vmatprep.subr.mxu0 0.0
        %2283 = vmatpush2.msra.mxu0 0.0
        %2284 = vmatprep.subr.mxu0 0.0
        %2285 = vmatpush2.msra.mxu0 0.0
        %2286 = vmatprep.subr.mxu0 0.0
        %2287 = vmatpush2.msra.mxu0 0.0
        %2288 = vmatprep.subr.mxu0 0.0
        %2289 = vmatpush2.msra.mxu0 0.0
        %2290 = vmatprep.subr.mxu0 0.0
        %2291 = vmatpush2.msra.mxu0 0.0
        %2292 = vmatprep.subr.mxu0 0.0
        %2293 = vmatpush2.msra.mxu0 0.0
        %2294 = vmatprep.subr.mxu0 0.0
        %2295 = vmatpush2.msra.mxu0 0.0
        %2296 = vmatprep.subr.mxu0 0.0
        %2297 = vmatpush2.msra.mxu0 0.0
        %2298 = vmatprep.subr.mxu0 0.0
        %2299 = vmatpush2.msra.mxu0 0.0
        %2300 = vmatprep.subr.mxu0 0.0
        %2301 = vmatpush2.msra.mxu0 0.0
        %2302 = vmatprep.subr.mxu0 0.0
        %2303 = vmatpush2.msra.mxu0 0.0
        %2304 = vmatprep.subr.mxu0 0.0
        %2305 = vmatpush2.msra.mxu0 0.0
        %2306 = vmatprep.subr.mxu0 0.0
        %2307 = vmatpush2.msra.mxu0 0.0
        %2308 = vmatprep.subr.mxu0 0.0
        %2309 = vmatpush2.msra.mxu0 0.0
        %2310 = vmatprep.mubr.f32.mxu0 0.0
        %2311 = vmatmul.mubr.f32.gmra.mxu0 %v2244
        %v2312 = vpop.f32.mrf.mxu0
        %v2313 = vadd.f32 0.0, %v2312
        %v2314 = vpop.f32.mrf.mxu0
        %2315 = vdwg.mxu0
        %v2316 = vrcp.pop %v2313
        %v2317 = vmul.f32 %v2313, %v2316
        %v2318 = vsub.f32 2.0, %v2317
        %v2319 = vmul.f32 %v2316, %v2318
        %v2320 = vmul.f32 %v2242, %v2319
        %v2322 = vsel %vm1636, %v2320, 0
        %2324 = vmatprep.subr.mxu0 0.0
        %2325 = vmatpush1.msra.mxu0 0.0
        %2326 = vmatprep.subr.mxu0 0.0
        %2327 = vmatpush1.msra.mxu0 0.0
        %2328 = vmatprep.subr.mxu0 0.0
        %2329 = vmatpush1.msra.mxu0 0.0
        %2330 = vmatprep.subr.mxu0 0.0
        %2331 = vmatpush1.msra.mxu0 0.0
        %2332 = vmatprep.subr.mxu0 0.0
        %2333 = vmatpush1.msra.mxu0 0.0
        %2334 = vmatprep.subr.mxu0 0.0
        %2335 = vmatpush1.msra.mxu0 0.0
        %2336 = vmatprep.subr.mxu0 0.0
        %2337 = vmatpush1.msra.mxu0 0.0
        %2338 = vmatprep.subr.mxu0 0.0
        %2339 = vmatpush1.msra.mxu0 0.0
        %2340 = vmatprep.subr.mxu0 0.0
        %2341 = vmatpush1.msra.mxu0 0.0
        %2342 = vmatprep.subr.mxu0 0.0
        %2343 = vmatpush1.msra.mxu0 0.0
        %2344 = vmatprep.subr.mxu0 0.0
        %2345 = vmatpush1.msra.mxu0 0.0
        %2346 = vmatprep.subr.mxu0 0.0
        %2347 = vmatpush1.msra.mxu0 0.0
        %2348 = vmatprep.subr.mxu0 0.0
        %2349 = vmatpush1.msra.mxu0 %v2149
        %2350 = vmatprep.subr.mxu0 0.0
        %2351 = vmatpush1.msra.mxu0 %v2148
        %2352 = vmatprep.subr.mxu0 0.0
        %2353 = vmatpush1.msra.mxu0 %v2147
        %2354 = vmatprep.subr.mxu0 0.0
        %2355 = vmatpush1.msra.mxu0 %v2146
        %2356 = vmatprep.subr.mxu0 0.0
        %2357 = vmatpush2.msra.mxu0 0.0
        %2358 = vmatprep.subr.mxu0 0.0
        %2359 = vmatpush2.msra.mxu0 0.0
        %2360 = vmatprep.subr.mxu0 0.0
        %2361 = vmatpush2.msra.mxu0 0.0
        %2362 = vmatprep.subr.mxu0 0.0
        %2363 = vmatpush2.msra.mxu0 0.0
        %2364 = vmatprep.subr.mxu0 0.0
        %2365 = vmatpush2.msra.mxu0 0.0
        %2366 = vmatprep.subr.mxu0 0.0
        %2367 = vmatpush2.msra.mxu0 0.0
        %2368 = vmatprep.subr.mxu0 0.0
        %2369 = vmatpush2.msra.mxu0 0.0
        %2370 = vmatprep.subr.mxu0 0.0
        %2371 = vmatpush2.msra.mxu0 0.0
        %2372 = vmatprep.subr.mxu0 0.0
        %2373 = vmatpush2.msra.mxu0 0.0
        %2374 = vmatprep.subr.mxu0 0.0
        %2375 = vmatpush2.msra.mxu0 0.0
        %2376 = vmatprep.subr.mxu0 0.0
        %2377 = vmatpush2.msra.mxu0 0.0
        %2378 = vmatprep.subr.mxu0 0.0
        %2379 = vmatpush2.msra.mxu0 0.0
        %2380 = vmatprep.subr.mxu0 0.0
        %2381 = vmatpush2.msra.mxu0 0.0
        %2382 = vmatprep.subr.mxu0 0.0
        %2383 = vmatpush2.msra.mxu0 0.0
        %2384 = vmatprep.subr.mxu0 0.0
        %2385 = vmatpush2.msra.mxu0 0.0
        %2386 = vmatprep.subr.mxu0 0.0
        %2387 = vmatpush2.msra.mxu0 0.0
        %2388 = vmatprep.mubr.f32.mxu0 0.0
        %2389 = vmatmul.mubr.f32.gmra.mxu0 %v2322
        %v2390 = vpop.f32.mrf.mxu0
        %v2391 = vadd.f32 0.0, %v2390
        %v2392 = vpop.f32.mrf.mxu0
        %2393 = vdwg.mxu0
        %v2394 = vld [vmem:[#allocation23] sm:$0xff]
        %v2395 = vld [vmem:[#allocation23 + $0x8] sm:$0xff]
        %v2396 = vld [vmem:[#allocation23 + $0x10] sm:$0xff]
        %v2397 = vld [vmem:[#allocation23 + $0x18] sm:$0xff]
        %v2399 = vsel %vm1636, %v2139, 0
        %v2402 = vsel %vm1636, %v2391, 0
        %2404 = vmatprep.subr.mxu0 0.0
        %2405 = vmatpush1.msra.mxu0 0.0
        %2406 = vmatprep.subr.mxu0 0.0
        %2407 = vmatpush1.msra.mxu0 0.0
        %2408 = vmatprep.subr.mxu0 0.0
        %2409 = vmatpush1.msra.mxu0 0.0
        %2410 = vmatprep.subr.mxu0 0.0
        %2411 = vmatpush1.msra.mxu0 0.0
        %2412 = vmatprep.subr.mxu0 0.0
        %2413 = vmatpush1.msra.mxu0 0.0
        %2414 = vmatprep.subr.mxu0 0.0
        %2415 = vmatpush1.msra.mxu0 0.0
        %2416 = vmatprep.subr.mxu0 0.0
        %2417 = vmatpush1.msra.mxu0 0.0
        %2418 = vmatprep.subr.mxu0 0.0
        %2419 = vmatpush1.msra.mxu0 0.0
        %2420 = vmatprep.subr.mxu0 0.0
        %2421 = vmatpush1.msra.mxu0 0.0
        %2422 = vmatprep.subr.mxu0 0.0
        %2423 = vmatpush1.msra.mxu0 0.0
        %2424 = vmatprep.subr.mxu0 0.0
        %2425 = vmatpush1.msra.mxu0 0.0
        %2426 = vmatprep.subr.mxu0 0.0
        %2427 = vmatpush1.msra.mxu0 0.0
        %2428 = vmatprep.subr.mxu0 0.0
        %2429 = vmatpush1.msra.mxu0 %v2397
        %2430 = vmatprep.subr.mxu0 0.0
        %2431 = vmatpush1.msra.mxu0 %v2396
        %2432 = vmatprep.subr.mxu0 0.0
        %2433 = vmatpush1.msra.mxu0 %v2395
        %2434 = vmatprep.subr.mxu0 0.0
        %2435 = vmatpush1.msra.mxu0 %v2394
        %2436 = vmatprep.subr.mxu0 0.0
        %2437 = vmatpush2.msra.mxu0 0.0
        %2438 = vmatprep.subr.mxu0 0.0
        %2439 = vmatpush2.msra.mxu0 0.0
        %2440 = vmatprep.subr.mxu0 0.0
        %2441 = vmatpush2.msra.mxu0 0.0
        %2442 = vmatprep.subr.mxu0 0.0
        %2443 = vmatpush2.msra.mxu0 0.0
        %2444 = vmatprep.subr.mxu0 0.0
        %2445 = vmatpush2.msra.mxu0 0.0
        %2446 = vmatprep.subr.mxu0 0.0
        %2447 = vmatpush2.msra.mxu0 0.0
        %2448 = vmatprep.subr.mxu0 0.0
        %2449 = vmatpush2.msra.mxu0 0.0
        %2450 = vmatprep.subr.mxu0 0.0
        %2451 = vmatpush2.msra.mxu0 0.0
        %2452 = vmatprep.subr.mxu0 0.0
        %2453 = vmatpush2.msra.mxu0 0.0
        %2454 = vmatprep.subr.mxu0 0.0
        %2455 = vmatpush2.msra.mxu0 0.0
        %2456 = vmatprep.subr.mxu0 0.0
        %2457 = vmatpush2.msra.mxu0 0.0
        %2458 = vmatprep.subr.mxu0 0.0
        %2459 = vmatpush2.msra.mxu0 0.0
        %2460 = vmatprep.subr.mxu0 0.0
        %2461 = vmatpush2.msra.mxu0 0.0
        %2462 = vmatprep.subr.mxu0 0.0
        %2463 = vmatpush2.msra.mxu0 0.0
        %2464 = vmatprep.subr.mxu0 0.0
        %2465 = vmatpush2.msra.mxu0 0.0
        %2466 = vmatprep.subr.mxu0 0.0
        %2467 = vmatpush2.msra.mxu0 0.0
        %2468 = vmatprep.mubr.f32.mxu0 0.0
        %2469 = vmatmul.mubr.f32.gmra.mxu0 %v2399
        %v2470 = vpop.f32.mrf.mxu0
        %v2471 = vadd.f32 0.0, %v2470
        %v2472 = vpop.f32.mrf.mxu0
        %2473 = vmatprep.mubr.f32.mxu0 0.0
        %2474 = vmatmul.mubr.f32.gmra.mxu0 %v2402
        %v2475 = vpop.f32.mrf.mxu0
        %v2476 = vadd.f32 0.0, %v2475
        %v2477 = vpop.f32.mrf.mxu0
        %2478 = vdwg.mxu0
        %v2479 = vadd.f32 %v1513, %v2471
        %v2480 = vadd.f32 %v1514, %v2476
        %v2481 = vld [vmem:[#allocation25] sm:$0x1]
        %v2483 = vlaneseq
        %v2484 = vshrl.u32 %v2483, 7
        %v2485 = vsub.s32 0, %v2484
        %v2486 = vrot.slane %v2481, %v2485
        %v2488 = vadd.f32 %v2479, %v2486
        %v2489 = vadd.f32 %v2480, %v2486
        %v2490 = vld [vmem:[%s61] sm:$0x1]
        %v2491 = vld [vmem:[%s63] sm:$0x1]
        %v2492 = vsel %vm1636, %v2488, 0.0
        %2493 = vadd.xlane.f32.xlu0 %v2492
        %v2494 = vpop.xlane.xlu0 %2493
        %v2495 = vsel %vm1636, %v2489, 0.0
        %2496 = vadd.xlane.f32.xlu0 %v2495
        %v2497 = vpop.xlane.xlu0 %2496
        %v2498 = vrcp.pop 32.0
        %v2499 = vmul.f32 %v2494, %v2498
        %v2500 = vmul.f32 %v2497, %v2498
        %v2501 = vsub.f32 %v2488, %v2499
        %v2502 = vsub.f32 %v2489, %v2500
        %v2503 = vmul.f32 %v2501, %v2501
        %v2504 = vmul.f32 %v2502, %v2502
        %v2505 = vsel %vm1636, %v2503, 0.0
        %2506 = vadd.xlane.f32.xlu0 %v2505
        %v2507 = vpop.xlane.xlu0 %2506
        %v2508 = vsel %vm1636, %v2504, 0.0
        %2509 = vadd.xlane.f32.xlu0 %v2508
        %v2510 = vpop.xlane.xlu0 %2509
        %v2511 = vmul.f32 %v2507, %v2498
        %v2512 = vmul.f32 %v2510, %v2498
        %v2513 = vadd.f32 %v2511, 1e-05
        %v2514 = vadd.f32 %v2512, 1e-05
        %v2515 = vrsqrt.pop %v2513
        %v2516 = vrsqrt.pop %v2514
        %v2517 = vmul.f32 %v2501, %v2515
        %v2518 = vmul.f32 %v2502, %v2516
        %v2520 = vlaneseq
        %v2521 = vshrl.u32 %v2520, 7
        %v2522 = vsub.s32 0, %v2521
        %v2523 = vrot.slane %v2490, %v2522
        %v2525 = vmul.f32 %v2517, %v2523
        %v2526 = vmul.f32 %v2518, %v2523
        %v2528 = vlaneseq
        %v2529 = vshrl.u32 %v2528, 7
        %v2530 = vsub.s32 0, %v2529
        %v2531 = vrot.slane %v2491, %v2530
        %v2533 = vadd.f32 %v2525, %v2531
        %v2534 = vadd.f32 %v2526, %v2531
        %v2535 = vld [vmem:[#allocation26] sm:$0xff]
        %v2536 = vld [vmem:[#allocation26 + $0x8] sm:$0xff]
        %v2537 = vld [vmem:[#allocation26 + $0x10] sm:$0xff]
        %v2538 = vld [vmem:[#allocation26 + $0x18] sm:$0xff]
        %v2539 = vld [vmem:[#allocation28] sm:$0x1]
        %v2541 = vlaneseq
        %v2542 = vshrl.u32 %v2541, 7
        %v2543 = vsub.s32 0, %v2542
        %v2544 = vrot.slane %v2539, %v2543
        %v2547 = vsel %vm1636, %v2533, 0
        %v2550 = vsel %vm1636, %v2534, 0
        %2552 = vmatprep.subr.mxu0 0.0
        %2553 = vmatpush1.msra.mxu0 0.0
        %2554 = vmatprep.subr.mxu0 0.0
        %2555 = vmatpush1.msra.mxu0 0.0
        %2556 = vmatprep.subr.mxu0 0.0
        %2557 = vmatpush1.msra.mxu0 0.0
        %2558 = vmatprep.subr.mxu0 0.0
        %2559 = vmatpush1.msra.mxu0 0.0
        %2560 = vmatprep.subr.mxu0 0.0
        %2561 = vmatpush1.msra.mxu0 0.0
        %2562 = vmatprep.subr.mxu0 0.0
        %2563 = vmatpush1.msra.mxu0 0.0
        %2564 = vmatprep.subr.mxu0 0.0
        %2565 = vmatpush1.msra.mxu0 0.0
        %2566 = vmatprep.subr.mxu0 0.0
        %2567 = vmatpush1.msra.mxu0 0.0
        %2568 = vmatprep.subr.mxu0 0.0
        %2569 = vmatpush1.msra.mxu0 0.0
        %2570 = vmatprep.subr.mxu0 0.0
        %2571 = vmatpush1.msra.mxu0 0.0
        %2572 = vmatprep.subr.mxu0 0.0
        %2573 = vmatpush1.msra.mxu0 0.0
        %2574 = vmatprep.subr.mxu0 0.0
        %2575 = vmatpush1.msra.mxu0 0.0
        %2576 = vmatprep.subr.mxu0 0.0
        %2577 = vmatpush1.msra.mxu0 %v2538
        %2578 = vmatprep.subr.mxu0 0.0
        %2579 = vmatpush1.msra.mxu0 %v2537
        %2580 = vmatprep.subr.mxu0 0.0
        %2581 = vmatpush1.msra.mxu0 %v2536
        %2582 = vmatprep.subr.mxu0 0.0
        %2583 = vmatpush1.msra.mxu0 %v2535
        %2584 = vmatprep.subr.mxu0 0.0
        %2585 = vmatpush2.msra.mxu0 0.0
        %2586 = vmatprep.subr.mxu0 0.0
        %2587 = vmatpush2.msra.mxu0 0.0
        %2588 = vmatprep.subr.mxu0 0.0
        %2589 = vmatpush2.msra.mxu0 0.0
        %2590 = vmatprep.subr.mxu0 0.0
        %2591 = vmatpush2.msra.mxu0 0.0
        %2592 = vmatprep.subr.mxu0 0.0
        %2593 = vmatpush2.msra.mxu0 0.0
        %2594 = vmatprep.subr.mxu0 0.0
        %2595 = vmatpush2.msra.mxu0 0.0
        %2596 = vmatprep.subr.mxu0 0.0
        %2597 = vmatpush2.msra.mxu0 0.0
        %2598 = vmatprep.subr.mxu0 0.0
        %2599 = vmatpush2.msra.mxu0 0.0
        %2600 = vmatprep.subr.mxu0 0.0
        %2601 = vmatpush2.msra.mxu0 0.0
        %2602 = vmatprep.subr.mxu0 0.0
        %2603 = vmatpush2.msra.mxu0 0.0
        %2604 = vmatprep.subr.mxu0 0.0
        %2605 = vmatpush2.msra.mxu0 0.0
        %2606 = vmatprep.subr.mxu0 0.0
        %2607 = vmatpush2.msra.mxu0 0.0
        %2608 = vmatprep.subr.mxu0 0.0
        %2609 = vmatpush2.msra.mxu0 0.0
        %2610 = vmatprep.subr.mxu0 0.0
        %2611 = vmatpush2.msra.mxu0 0.0
        %2612 = vmatprep.subr.mxu0 0.0
        %2613 = vmatpush2.msra.mxu0 0.0
        %2614 = vmatprep.subr.mxu0 0.0
        %2615 = vmatpush2.msra.mxu0 0.0
        %2616 = vmatprep.mubr.f32.mxu0 0.0
        %2617 = vmatmul.mubr.f32.gmra.mxu0 %v2547
        %v2618 = vpop.f32.mrf.mxu0
        %v2619 = vadd.f32 %v2544, %v2618
        %v2620 = vpop.f32.mrf.mxu0
        %2621 = vmatprep.mubr.f32.mxu0 0.0
        %2622 = vmatmul.mubr.f32.gmra.mxu0 %v2550
        %v2623 = vpop.f32.mrf.mxu0
        %v2624 = vadd.f32 %v2544, %v2623
        %v2625 = vpop.f32.mrf.mxu0
        %2626 = vdwg.mxu0
        %v2627 = vld [vmem:[#allocation29] sm:$0xff]
        %v2628 = vld [vmem:[#allocation29 + $0x8] sm:$0xff]
        %v2629 = vld [vmem:[#allocation29 + $0x10] sm:$0xff]
        %v2630 = vld [vmem:[#allocation29 + $0x18] sm:$0xff]
        %v2631 = vld [vmem:[%s43] sm:$0x1]
        %v2633 = vlaneseq
        %v2634 = vshrl.u32 %v2633, 7
        %v2635 = vsub.s32 0, %v2634
        %v2636 = vrot.slane %v2631, %v2635
        %v2639 = vsel %vm1636, %v1600, 0
        %v2642 = vsel %vm1636, %v1605, 0
        %2644 = vmatprep.subr.mxu0 0.0
        %2645 = vmatpush1.msra.mxu0 0.0
        %2646 = vmatprep.subr.mxu0 0.0
        %2647 = vmatpush1.msra.mxu0 0.0
        %2648 = vmatprep.subr.mxu0 0.0
        %2649 = vmatpush1.msra.mxu0 0.0
        %2650 = vmatprep.subr.mxu0 0.0
        %2651 = vmatpush1.msra.mxu0 0.0
        %2652 = vmatprep.subr.mxu0 0.0
        %2653 = vmatpush1.msra.mxu0 0.0
        %2654 = vmatprep.subr.mxu0 0.0
        %2655 = vmatpush1.msra.mxu0 0.0
        %2656 = vmatprep.subr.mxu0 0.0
        %2657 = vmatpush1.msra.mxu0 0.0
        %2658 = vmatprep.subr.mxu0 0.0
        %2659 = vmatpush1.msra.mxu0 0.0
        %2660 = vmatprep.subr.mxu0 0.0
        %2661 = vmatpush1.msra.mxu0 0.0
        %2662 = vmatprep.subr.mxu0 0.0
        %2663 = vmatpush1.msra.mxu0 0.0
        %2664 = vmatprep.subr.mxu0 0.0
        %2665 = vmatpush1.msra.mxu0 0.0
        %2666 = vmatprep.subr.mxu0 0.0
        %2667 = vmatpush1.msra.mxu0 0.0
        %2668 = vmatprep.subr.mxu0 0.0
        %2669 = vmatpush1.msra.mxu0 %v2630
        %2670 = vmatprep.subr.mxu0 0.0
        %2671 = vmatpush1.msra.mxu0 %v2629
        %2672 = vmatprep.subr.mxu0 0.0
        %2673 = vmatpush1.msra.mxu0 %v2628
        %2674 = vmatprep.subr.mxu0 0.0
        %2675 = vmatpush1.msra.mxu0 %v2627
        %2676 = vmatprep.subr.mxu0 0.0
        %2677 = vmatpush2.msra.mxu0 0.0
        %2678 = vmatprep.subr.mxu0 0.0
        %2679 = vmatpush2.msra.mxu0 0.0
        %2680 = vmatprep.subr.mxu0 0.0
        %2681 = vmatpush2.msra.mxu0 0.0
        %2682 = vmatprep.subr.mxu0 0.0
        %2683 = vmatpush2.msra.mxu0 0.0
        %2684 = vmatprep.subr.mxu0 0.0
        %2685 = vmatpush2.msra.mxu0 0.0
        %2686 = vmatprep.subr.mxu0 0.0
        %2687 = vmatpush2.msra.mxu0 0.0
        %2688 = vmatprep.subr.mxu0 0.0
        %2689 = vmatpush2.msra.mxu0 0.0
        %2690 = vmatprep.subr.mxu0 0.0
        %2691 = vmatpush2.msra.mxu0 0.0
        %2692 = vmatprep.subr.mxu0 0.0
        %2693 = vmatpush2.msra.mxu0 0.0
        %2694 = vmatprep.subr.mxu0 0.0
        %2695 = vmatpush2.msra.mxu0 0.0
        %2696 = vmatprep.subr.mxu0 0.0
        %2697 = vmatpush2.msra.mxu0 0.0
        %2698 = vmatprep.subr.mxu0 0.0
        %2699 = vmatpush2.msra.mxu0 0.0
        %2700 = vmatprep.subr.mxu0 0.0
        %2701 = vmatpush2.msra.mxu0 0.0
        %2702 = vmatprep.subr.mxu0 0.0
        %2703 = vmatpush2.msra.mxu0 0.0
        %2704 = vmatprep.subr.mxu0 0.0
        %2705 = vmatpush2.msra.mxu0 0.0
        %2706 = vmatprep.subr.mxu0 0.0
        %2707 = vmatpush2.msra.mxu0 0.0
        %2708 = vmatprep.mubr.f32.mxu0 0.0
        %2709 = vmatmul.mubr.f32.gmra.mxu0 %v2639
        %v2710 = vpop.f32.mrf.mxu0
        %v2711 = vadd.f32 %v2636, %v2710
        %v2712 = vpop.f32.mrf.mxu0
        %2713 = vmatprep.mubr.f32.mxu0 0.0
        %2714 = vmatmul.mubr.f32.gmra.mxu0 %v2642
        %v2715 = vpop.f32.mrf.mxu0
        %v2716 = vadd.f32 %v2636, %v2715
        %v2717 = vpop.f32.mrf.mxu0
        %2718 = vdwg.mxu0
        %v2719 = vld [vmem:[#allocation31] sm:$0xff]
        %v2720 = vld [vmem:[#allocation31 + $0x8] sm:$0xff]
        %v2721 = vld [vmem:[#allocation31 + $0x10] sm:$0xff]
        %v2722 = vld [vmem:[#allocation31 + $0x18] sm:$0xff]
        %v2723 = vld [vmem:[%s47] sm:$0x1]
        %v2725 = vlaneseq
        %v2726 = vshrl.u32 %v2725, 7
        %v2727 = vsub.s32 0, %v2726
        %v2728 = vrot.slane %v2723, %v2727
        %2730 = vmatprep.subr.mxu0 0.0
        %2731 = vmatpush1.msra.mxu0 0.0
        %2732 = vmatprep.subr.mxu0 0.0
        %2733 = vmatpush1.msra.mxu0 0.0
        %2734 = vmatprep.subr.mxu0 0.0
        %2735 = vmatpush1.msra.mxu0 0.0
        %2736 = vmatprep.subr.mxu0 0.0
        %2737 = vmatpush1.msra.mxu0 0.0
        %2738 = vmatprep.subr.mxu0 0.0
        %2739 = vmatpush1.msra.mxu0 0.0
        %2740 = vmatprep.subr.mxu0 0.0
        %2741 = vmatpush1.msra.mxu0 0.0
        %2742 = vmatprep.subr.mxu0 0.0
        %2743 = vmatpush1.msra.mxu0 0.0
        %2744 = vmatprep.subr.mxu0 0.0
        %2745 = vmatpush1.msra.mxu0 0.0
        %2746 = vmatprep.subr.mxu0 0.0
        %2747 = vmatpush1.msra.mxu0 0.0
        %2748 = vmatprep.subr.mxu0 0.0
        %2749 = vmatpush1.msra.mxu0 0.0
        %2750 = vmatprep.subr.mxu0 0.0
        %2751 = vmatpush1.msra.mxu0 0.0
        %2752 = vmatprep.subr.mxu0 0.0
        %2753 = vmatpush1.msra.mxu0 0.0
        %2754 = vmatprep.subr.mxu0 0.0
        %2755 = vmatpush1.msra.mxu0 %v2722
        %2756 = vmatprep.subr.mxu0 0.0
        %2757 = vmatpush1.msra.mxu0 %v2721
        %2758 = vmatprep.subr.mxu0 0.0
        %2759 = vmatpush1.msra.mxu0 %v2720
        %2760 = vmatprep.subr.mxu0 0.0
        %2761 = vmatpush1.msra.mxu0 %v2719
        %2762 = vmatprep.subr.mxu0 0.0
        %2763 = vmatpush2.msra.mxu0 0.0
        %2764 = vmatprep.subr.mxu0 0.0
        %2765 = vmatpush2.msra.mxu0 0.0
        %2766 = vmatprep.subr.mxu0 0.0
        %2767 = vmatpush2.msra.mxu0 0.0
        %2768 = vmatprep.subr.mxu0 0.0
        %2769 = vmatpush2.msra.mxu0 0.0
        %2770 = vmatprep.subr.mxu0 0.0
        %2771 = vmatpush2.msra.mxu0 0.0
        %2772 = vmatprep.subr.mxu0 0.0
        %2773 = vmatpush2.msra.mxu0 0.0
        %2774 = vmatprep.subr.mxu0 0.0
        %2775 = vmatpush2.msra.mxu0 0.0
        %2776 = vmatprep.subr.mxu0 0.0
        %2777 = vmatpush2.msra.mxu0 0.0
        %2778 = vmatprep.subr.mxu0 0.0
        %2779 = vmatpush2.msra.mxu0 0.0
        %2780 = vmatprep.subr.mxu0 0.0
        %2781 = vmatpush2.msra.mxu0 0.0
        %2782 = vmatprep.subr.mxu0 0.0
        %2783 = vmatpush2.msra.mxu0 0.0
        %2784 = vmatprep.subr.mxu0 0.0
        %2785 = vmatpush2.msra.mxu0 0.0
        %2786 = vmatprep.subr.mxu0 0.0
        %2787 = vmatpush2.msra.mxu0 0.0
        %2788 = vmatprep.subr.mxu0 0.0
        %2789 = vmatpush2.msra.mxu0 0.0
        %2790 = vmatprep.subr.mxu0 0.0
        %2791 = vmatpush2.msra.mxu0 0.0
        %2792 = vmatprep.subr.mxu0 0.0
        %2793 = vmatpush2.msra.mxu0 0.0
        %2794 = vmatprep.mubr.f32.mxu0 0.0
        %2795 = vmatmul.mubr.f32.gmra.mxu0 %v2639
        %v2796 = vpop.f32.mrf.mxu0
        %v2797 = vadd.f32 %v2728, %v2796
        %v2798 = vpop.f32.mrf.mxu0
        %2799 = vmatprep.mubr.f32.mxu0 0.0
        %2800 = vmatmul.mubr.f32.gmra.mxu0 %v2642
        %v2801 = vpop.f32.mrf.mxu0
        %v2802 = vadd.f32 %v2728, %v2801
        %v2803 = vpop.f32.mrf.mxu0
        %2804 = vdwg.mxu0
        %v2805 = vmul.f32 %v2711, %v1617
        %v2806 = vmul.f32 %v2711, %v1618
        %v2807 = vmul.f32 %v2711, %v1619
        %v2808 = vmul.f32 %v2711, %v1620
        %v2809 = vmul.f32 %v2797, %v1617
        %v2810 = vmul.f32 %v2797, %v1618
        %v2811 = vmul.f32 %v2797, %v1619
        %v2812 = vmul.f32 %v2797, %v1620
        %v2814 = vsel %vm1636, %v2619, 0
        %v2817 = vsel %vm1636, %v2805, 0
        %v2820 = vsel %vm1636, %v2806, 0
        %v2823 = vsel %vm1636, %v2807, 0
        %v2826 = vsel %vm1636, %v2808, 0
        %2828 = vmatprep.subr.mxu0 0.0
        %2829 = vmatpush1.xpose.msra.mxu0 0.0
        %2830 = vmatprep.subr.mxu0 0.0
        %2831 = vmatpush1.xpose.msra.mxu0 0.0
        %2832 = vmatprep.subr.mxu0 0.0
        %2833 = vmatpush1.xpose.msra.mxu0 0.0
        %2834 = vmatprep.subr.mxu0 0.0
        %2835 = vmatpush1.xpose.msra.mxu0 0.0
        %2836 = vmatprep.subr.mxu0 0.0
        %2837 = vmatpush1.xpose.msra.mxu0 0.0
        %2838 = vmatprep.subr.mxu0 0.0
        %2839 = vmatpush1.xpose.msra.mxu0 0.0
        %2840 = vmatprep.subr.mxu0 0.0
        %2841 = vmatpush1.xpose.msra.mxu0 0.0
        %2842 = vmatprep.subr.mxu0 0.0
        %2843 = vmatpush1.xpose.msra.mxu0 0.0
        %2844 = vmatprep.subr.mxu0 0.0
        %2845 = vmatpush1.xpose.msra.mxu0 0.0
        %2846 = vmatprep.subr.mxu0 0.0
        %2847 = vmatpush1.xpose.msra.mxu0 0.0
        %2848 = vmatprep.subr.mxu0 0.0
        %2849 = vmatpush1.xpose.msra.mxu0 0.0
        %2850 = vmatprep.subr.mxu0 0.0
        %2851 = vmatpush1.xpose.msra.mxu0 0.0
        %2852 = vmatprep.subr.mxu0 0.0
        %2853 = vmatpush1.xpose.msra.mxu0 %v2826
        %2854 = vmatprep.subr.mxu0 0.0
        %2855 = vmatpush1.xpose.msra.mxu0 %v2823
        %2856 = vmatprep.subr.mxu0 0.0
        %2857 = vmatpush1.xpose.msra.mxu0 %v2820
        %2858 = vmatprep.subr.mxu0 0.0
        %2859 = vmatpush1.xpose.msra.mxu0 %v2817
        %2860 = vmatprep.subr.mxu0 0.0
        %2861 = vmatpush2.xpose.msra.mxu0 0.0
        %2862 = vmatprep.subr.mxu0 0.0
        %2863 = vmatpush2.xpose.msra.mxu0 0.0
        %2864 = vmatprep.subr.mxu0 0.0
        %2865 = vmatpush2.xpose.msra.mxu0 0.0
        %2866 = vmatprep.subr.mxu0 0.0
        %2867 = vmatpush2.xpose.msra.mxu0 0.0
        %2868 = vmatprep.subr.mxu0 0.0
        %2869 = vmatpush2.xpose.msra.mxu0 0.0
        %2870 = vmatprep.subr.mxu0 0.0
        %2871 = vmatpush2.xpose.msra.mxu0 0.0
        %2872 = vmatprep.subr.mxu0 0.0
        %2873 = vmatpush2.xpose.msra.mxu0 0.0
        %2874 = vmatprep.subr.mxu0 0.0
        %2875 = vmatpush2.xpose.msra.mxu0 0.0
        %2876 = vmatprep.subr.mxu0 0.0
        %2877 = vmatpush2.xpose.msra.mxu0 0.0
        %2878 = vmatprep.subr.mxu0 0.0
        %2879 = vmatpush2.xpose.msra.mxu0 0.0
        %2880 = vmatprep.subr.mxu0 0.0
        %2881 = vmatpush2.xpose.msra.mxu0 0.0
        %2882 = vmatprep.subr.mxu0 0.0
        %2883 = vmatpush2.xpose.msra.mxu0 0.0
        %2884 = vmatprep.subr.mxu0 0.0
        %2885 = vmatpush2.xpose.msra.mxu0 0.0
        %2886 = vmatprep.subr.mxu0 0.0
        %2887 = vmatpush2.xpose.msra.mxu0 0.0
        %2888 = vmatprep.subr.mxu0 0.0
        %2889 = vmatpush2.xpose.msra.mxu0 0.0
        %2890 = vmatprep.subr.mxu0 0.0
        %2891 = vmatpush2.xpose.msra.mxu0 0.0
        %2892 = vmatprep.mubr.f32.mxu0 0.0
        %2893 = vmatmul.mubr.f32.gmra.mxu0 %v2814
        %v2894 = vpop.f32.mrf.mxu0
        %v2895 = vadd.f32 0.0, %v2894
        %v2896 = vpop.f32.mrf.mxu0
        %2897 = vdwg.mxu0
        %v2898 = vmul.f32 %v2895, 0.35355338
        %v2899 = vsel %vm1636, %v2898, -inf
        %2900 = vmax.xlane.f32.xlu0 %v2899
        %v2901 = vpop.xlane.xlu0 %2900
        %v2902 = vsub.f32 %v2898, %v2901
        %v2903 = vmul.f32 %v2902, 1.442695
        %v2904 = vpow.pop %v2903
        %v2906 = vsel %vm1636, %v2904, 0
        %2908 = vmatprep.subr.mxu0 0.0
        %2909 = vmatpush1.msra.mxu0 0.0
        %2910 = vmatprep.subr.mxu0 0.0
        %2911 = vmatpush1.msra.mxu0 0.0
        %2912 = vmatprep.subr.mxu0 0.0
        %2913 = vmatpush1.msra.mxu0 0.0
        %2914 = vmatprep.subr.mxu0 0.0
        %2915 = vmatpush1.msra.mxu0 0.0
        %2916 = vmatprep.subr.mxu0 0.0
        %2917 = vmatpush1.msra.mxu0 0.0
        %2918 = vmatprep.subr.mxu0 0.0
        %2919 = vmatpush1.msra.mxu0 0.0
        %2920 = vmatprep.subr.mxu0 0.0
        %2921 = vmatpush1.msra.mxu0 0.0
        %2922 = vmatprep.subr.mxu0 0.0
        %2923 = vmatpush1.msra.mxu0 0.0
        %2924 = vmatprep.subr.mxu0 0.0
        %2925 = vmatpush1.msra.mxu0 0.0
        %2926 = vmatprep.subr.mxu0 0.0
        %2927 = vmatpush1.msra.mxu0 0.0
        %2928 = vmatprep.subr.mxu0 0.0
        %2929 = vmatpush1.msra.mxu0 0.0
        %2930 = vmatprep.subr.mxu0 0.0
        %2931 = vmatpush1.msra.mxu0 0.0
        %2932 = vmatprep.subr.mxu0 0.0
        %2933 = vmatpush1.msra.mxu0 %v1624
        %2934 = vmatprep.subr.mxu0 0.0
        %2935 = vmatpush1.msra.mxu0 %v1623
        %2936 = vmatprep.subr.mxu0 0.0
        %2937 = vmatpush1.msra.mxu0 %v1622
        %2938 = vmatprep.subr.mxu0 0.0
        %2939 = vmatpush1.msra.mxu0 %v1621
        %2940 = vmatprep.subr.mxu0 0.0
        %2941 = vmatpush2.msra.mxu0 0.0
        %2942 = vmatprep.subr.mxu0 0.0
        %2943 = vmatpush2.msra.mxu0 0.0
        %2944 = vmatprep.subr.mxu0 0.0
        %2945 = vmatpush2.msra.mxu0 0.0
        %2946 = vmatprep.subr.mxu0 0.0
        %2947 = vmatpush2.msra.mxu0 0.0
        %2948 = vmatprep.subr.mxu0 0.0
        %2949 = vmatpush2.msra.mxu0 0.0
        %2950 = vmatprep.subr.mxu0 0.0
        %2951 = vmatpush2.msra.mxu0 0.0
        %2952 = vmatprep.subr.mxu0 0.0
        %2953 = vmatpush2.msra.mxu0 0.0
        %2954 = vmatprep.subr.mxu0 0.0
        %2955 = vmatpush2.msra.mxu0 0.0
        %2956 = vmatprep.subr.mxu0 0.0
        %2957 = vmatpush2.msra.mxu0 0.0
        %2958 = vmatprep.subr.mxu0 0.0
        %2959 = vmatpush2.msra.mxu0 0.0
        %2960 = vmatprep.subr.mxu0 0.0
        %2961 = vmatpush2.msra.mxu0 0.0
        %2962 = vmatprep.subr.mxu0 0.0
        %2963 = vmatpush2.msra.mxu0 0.0
        %2964 = vmatprep.subr.mxu0 0.0
        %2965 = vmatpush2.msra.mxu0 0.0
        %2966 = vmatprep.subr.mxu0 0.0
        %2967 = vmatpush2.msra.mxu0 0.0
        %2968 = vmatprep.subr.mxu0 0.0
        %2969 = vmatpush2.msra.mxu0 0.0
        %2970 = vmatprep.subr.mxu0 0.0
        %2971 = vmatpush2.msra.mxu0 0.0
        %2972 = vmatprep.mubr.f32.mxu0 0.0
        %2973 = vmatmul.mubr.f32.gmra.mxu0 %v2906
        %v2974 = vpop.f32.mrf.mxu0
        %v2975 = vadd.f32 0.0, %v2974
        %v2976 = vpop.f32.mrf.mxu0
        %2977 = vdwg.mxu0
        %v2978 = vrcp.pop %v2975
        %v2979 = vmul.f32 %v2975, %v2978
        %v2980 = vsub.f32 2.0, %v2979
        %v2981 = vmul.f32 %v2978, %v2980
        %v2982 = vmul.f32 %v2904, %v2981
        %v2984 = vsel %vm1636, %v2982, 0
        %2986 = vmatprep.subr.mxu0 0.0
        %2987 = vmatpush1.msra.mxu0 0.0
        %2988 = vmatprep.subr.mxu0 0.0
        %2989 = vmatpush1.msra.mxu0 0.0
        %2990 = vmatprep.subr.mxu0 0.0
        %2991 = vmatpush1.msra.mxu0 0.0
        %2992 = vmatprep.subr.mxu0 0.0
        %2993 = vmatpush1.msra.mxu0 0.0
        %2994 = vmatprep.subr.mxu0 0.0
        %2995 = vmatpush1.msra.mxu0 0.0
        %2996 = vmatprep.subr.mxu0 0.0
        %2997 = vmatpush1.msra.mxu0 0.0
        %2998 = vmatprep.subr.mxu0 0.0
        %2999 = vmatpush1.msra.mxu0 0.0
        %3000 = vmatprep.subr.mxu0 0.0
        %3001 = vmatpush1.msra.mxu0 0.0
        %3002 = vmatprep.subr.mxu0 0.0
        %3003 = vmatpush1.msra.mxu0 0.0
        %3004 = vmatprep.subr.mxu0 0.0
        %3005 = vmatpush1.msra.mxu0 0.0
        %3006 = vmatprep.subr.mxu0 0.0
        %3007 = vmatpush1.msra.mxu0 0.0
        %3008 = vmatprep.subr.mxu0 0.0
        %3009 = vmatpush1.msra.mxu0 0.0
        %3010 = vmatprep.subr.mxu0 0.0
        %3011 = vmatpush1.msra.mxu0 %v2812
        %3012 = vmatprep.subr.mxu0 0.0
        %3013 = vmatpush1.msra.mxu0 %v2811
        %3014 = vmatprep.subr.mxu0 0.0
        %3015 = vmatpush1.msra.mxu0 %v2810
        %3016 = vmatprep.subr.mxu0 0.0
        %3017 = vmatpush1.msra.mxu0 %v2809
        %3018 = vmatprep.subr.mxu0 0.0
        %3019 = vmatpush2.msra.mxu0 0.0
        %3020 = vmatprep.subr.mxu0 0.0
        %3021 = vmatpush2.msra.mxu0 0.0
        %3022 = vmatprep.subr.mxu0 0.0
        %3023 = vmatpush2.msra.mxu0 0.0
        %3024 = vmatprep.subr.mxu0 0.0
        %3025 = vmatpush2.msra.mxu0 0.0
        %3026 = vmatprep.subr.mxu0 0.0
        %3027 = vmatpush2.msra.mxu0 0.0
        %3028 = vmatprep.subr.mxu0 0.0
        %3029 = vmatpush2.msra.mxu0 0.0
        %3030 = vmatprep.subr.mxu0 0.0
        %3031 = vmatpush2.msra.mxu0 0.0
        %3032 = vmatprep.subr.mxu0 0.0
        %3033 = vmatpush2.msra.mxu0 0.0
        %3034 = vmatprep.subr.mxu0 0.0
        %3035 = vmatpush2.msra.mxu0 0.0
        %3036 = vmatprep.subr.mxu0 0.0
        %3037 = vmatpush2.msra.mxu0 0.0
        %3038 = vmatprep.subr.mxu0 0.0
        %3039 = vmatpush2.msra.mxu0 0.0
        %3040 = vmatprep.subr.mxu0 0.0
        %3041 = vmatpush2.msra.mxu0 0.0
        %3042 = vmatprep.subr.mxu0 0.0
        %3043 = vmatpush2.msra.mxu0 0.0
        %3044 = vmatprep.subr.mxu0 0.0
        %3045 = vmatpush2.msra.mxu0 0.0
        %3046 = vmatprep.subr.mxu0 0.0
        %3047 = vmatpush2.msra.mxu0 0.0
        %3048 = vmatprep.subr.mxu0 0.0
        %3049 = vmatpush2.msra.mxu0 0.0
        %3050 = vmatprep.mubr.f32.mxu0 0.0
        %3051 = vmatmul.mubr.f32.gmra.mxu0 %v2984
        %v3052 = vpop.f32.mrf.mxu0
        %v3053 = vadd.f32 0.0, %v3052
        %v3054 = vpop.f32.mrf.mxu0
        %3055 = vdwg.mxu0
        %v3056 = vmul.f32 %v2716, %v1617
        %v3057 = vmul.f32 %v2716, %v1618
        %v3058 = vmul.f32 %v2716, %v1619
        %v3059 = vmul.f32 %v2716, %v1620
        %v3060 = vmul.f32 %v2802, %v1617
        %v3061 = vmul.f32 %v2802, %v1618
        %v3062 = vmul.f32 %v2802, %v1619
        %v3063 = vmul.f32 %v2802, %v1620
        %v3065 = vsel %vm1636, %v2624, 0
        %v3068 = vsel %vm1636, %v3056, 0
        %v3071 = vsel %vm1636, %v3057, 0
        %v3074 = vsel %vm1636, %v3058, 0
        %v3077 = vsel %vm1636, %v3059, 0
        %3079 = vmatprep.subr.mxu0 0.0
        %3080 = vmatpush1.xpose.msra.mxu0 0.0
        %3081 = vmatprep.subr.mxu0 0.0
        %3082 = vmatpush1.xpose.msra.mxu0 0.0
        %3083 = vmatprep.subr.mxu0 0.0
        %3084 = vmatpush1.xpose.msra.mxu0 0.0
        %3085 = vmatprep.subr.mxu0 0.0
        %3086 = vmatpush1.xpose.msra.mxu0 0.0
        %3087 = vmatprep.subr.mxu0 0.0
        %3088 = vmatpush1.xpose.msra.mxu0 0.0
        %3089 = vmatprep.subr.mxu0 0.0
        %3090 = vmatpush1.xpose.msra.mxu0 0.0
        %3091 = vmatprep.subr.mxu0 0.0
        %3092 = vmatpush1.xpose.msra.mxu0 0.0
        %3093 = vmatprep.subr.mxu0 0.0
        %3094 = vmatpush1.xpose.msra.mxu0 0.0
        %3095 = vmatprep.subr.mxu0 0.0
        %3096 = vmatpush1.xpose.msra.mxu0 0.0
        %3097 = vmatprep.subr.mxu0 0.0
        %3098 = vmatpush1.xpose.msra.mxu0 0.0
        %3099 = vmatprep.subr.mxu0 0.0
        %3100 = vmatpush1.xpose.msra.mxu0 0.0
        %3101 = vmatprep.subr.mxu0 0.0
        %3102 = vmatpush1.xpose.msra.mxu0 0.0
        %3103 = vmatprep.subr.mxu0 0.0
        %3104 = vmatpush1.xpose.msra.mxu0 %v3077
        %3105 = vmatprep.subr.mxu0 0.0
        %3106 = vmatpush1.xpose.msra.mxu0 %v3074
        %3107 = vmatprep.subr.mxu0 0.0
        %3108 = vmatpush1.xpose.msra.mxu0 %v3071
        %3109 = vmatprep.subr.mxu0 0.0
        %3110 = vmatpush1.xpose.msra.mxu0 %v3068
        %3111 = vmatprep.subr.mxu0 0.0
        %3112 = vmatpush2.xpose.msra.mxu0 0.0
        %3113 = vmatprep.subr.mxu0 0.0
        %3114 = vmatpush2.xpose.msra.mxu0 0.0
        %3115 = vmatprep.subr.mxu0 0.0
        %3116 = vmatpush2.xpose.msra.mxu0 0.0
        %3117 = vmatprep.subr.mxu0 0.0
        %3118 = vmatpush2.xpose.msra.mxu0 0.0
        %3119 = vmatprep.subr.mxu0 0.0
        %3120 = vmatpush2.xpose.msra.mxu0 0.0
        %3121 = vmatprep.subr.mxu0 0.0
        %3122 = vmatpush2.xpose.msra.mxu0 0.0
        %3123 = vmatprep.subr.mxu0 0.0
        %3124 = vmatpush2.xpose.msra.mxu0 0.0
        %3125 = vmatprep.subr.mxu0 0.0
        %3126 = vmatpush2.xpose.msra.mxu0 0.0
        %3127 = vmatprep.subr.mxu0 0.0
        %3128 = vmatpush2.xpose.msra.mxu0 0.0
        %3129 = vmatprep.subr.mxu0 0.0
        %3130 = vmatpush2.xpose.msra.mxu0 0.0
        %3131 = vmatprep.subr.mxu0 0.0
        %3132 = vmatpush2.xpose.msra.mxu0 0.0
        %3133 = vmatprep.subr.mxu0 0.0
        %3134 = vmatpush2.xpose.msra.mxu0 0.0
        %3135 = vmatprep.subr.mxu0 0.0
        %3136 = vmatpush2.xpose.msra.mxu0 0.0
        %3137 = vmatprep.subr.mxu0 0.0
        %3138 = vmatpush2.xpose.msra.mxu0 0.0
        %3139 = vmatprep.subr.mxu0 0.0
        %3140 = vmatpush2.xpose.msra.mxu0 0.0
        %3141 = vmatprep.subr.mxu0 0.0
        %3142 = vmatpush2.xpose.msra.mxu0 0.0
        %3143 = vmatprep.mubr.f32.mxu0 0.0
        %3144 = vmatmul.mubr.f32.gmra.mxu0 %v3065
        %v3145 = vpop.f32.mrf.mxu0
        %v3146 = vadd.f32 0.0, %v3145
        %v3147 = vpop.f32.mrf.mxu0
        %3148 = vdwg.mxu0
        %v3149 = vmul.f32 %v3146, 0.35355338
        %v3150 = vsel %vm1636, %v3149, -inf
        %3151 = vmax.xlane.f32.xlu0 %v3150
        %v3152 = vpop.xlane.xlu0 %3151
        %v3153 = vsub.f32 %v3149, %v3152
        %v3154 = vmul.f32 %v3153, 1.442695
        %v3155 = vpow.pop %v3154
        %v3157 = vsel %vm1636, %v3155, 0
        %3159 = vmatprep.subr.mxu0 0.0
        %3160 = vmatpush1.msra.mxu0 0.0
        %3161 = vmatprep.subr.mxu0 0.0
        %3162 = vmatpush1.msra.mxu0 0.0
        %3163 = vmatprep.subr.mxu0 0.0
        %3164 = vmatpush1.msra.mxu0 0.0
        %3165 = vmatprep.subr.mxu0 0.0
        %3166 = vmatpush1.msra.mxu0 0.0
        %3167 = vmatprep.subr.mxu0 0.0
        %3168 = vmatpush1.msra.mxu0 0.0
        %3169 = vmatprep.subr.mxu0 0.0
        %3170 = vmatpush1.msra.mxu0 0.0
        %3171 = vmatprep.subr.mxu0 0.0
        %3172 = vmatpush1.msra.mxu0 0.0
        %3173 = vmatprep.subr.mxu0 0.0
        %3174 = vmatpush1.msra.mxu0 0.0
        %3175 = vmatprep.subr.mxu0 0.0
        %3176 = vmatpush1.msra.mxu0 0.0
        %3177 = vmatprep.subr.mxu0 0.0
        %3178 = vmatpush1.msra.mxu0 0.0
        %3179 = vmatprep.subr.mxu0 0.0
        %3180 = vmatpush1.msra.mxu0 0.0
        %3181 = vmatprep.subr.mxu0 0.0
        %3182 = vmatpush1.msra.mxu0 0.0
        %3183 = vmatprep.subr.mxu0 0.0
        %3184 = vmatpush1.msra.mxu0 %v1624
        %3185 = vmatprep.subr.mxu0 0.0
        %3186 = vmatpush1.msra.mxu0 %v1623
        %3187 = vmatprep.subr.mxu0 0.0
        %3188 = vmatpush1.msra.mxu0 %v1622
        %3189 = vmatprep.subr.mxu0 0.0
        %3190 = vmatpush1.msra.mxu0 %v1621
        %3191 = vmatprep.subr.mxu0 0.0
        %3192 = vmatpush2.msra.mxu0 0.0
        %3193 = vmatprep.subr.mxu0 0.0
        %3194 = vmatpush2.msra.mxu0 0.0
        %3195 = vmatprep.subr.mxu0 0.0
        %3196 = vmatpush2.msra.mxu0 0.0
        %3197 = vmatprep.subr.mxu0 0.0
        %3198 = vmatpush2.msra.mxu0 0.0
        %3199 = vmatprep.subr.mxu0 0.0
        %3200 = vmatpush2.msra.mxu0 0.0
        %3201 = vmatprep.subr.mxu0 0.0
        %3202 = vmatpush2.msra.mxu0 0.0
        %3203 = vmatprep.subr.mxu0 0.0
        %3204 = vmatpush2.msra.mxu0 0.0
        %3205 = vmatprep.subr.mxu0 0.0
        %3206 = vmatpush2.msra.mxu0 0.0
        %3207 = vmatprep.subr.mxu0 0.0
        %3208 = vmatpush2.msra.mxu0 0.0
        %3209 = vmatprep.subr.mxu0 0.0
        %3210 = vmatpush2.msra.mxu0 0.0
        %3211 = vmatprep.subr.mxu0 0.0
        %3212 = vmatpush2.msra.mxu0 0.0
        %3213 = vmatprep.subr.mxu0 0.0
        %3214 = vmatpush2.msra.mxu0 0.0
        %3215 = vmatprep.subr.mxu0 0.0
        %3216 = vmatpush2.msra.mxu0 0.0
        %3217 = vmatprep.subr.mxu0 0.0
        %3218 = vmatpush2.msra.mxu0 0.0
        %3219 = vmatprep.subr.mxu0 0.0
        %3220 = vmatpush2.msra.mxu0 0.0
        %3221 = vmatprep.subr.mxu0 0.0
        %3222 = vmatpush2.msra.mxu0 0.0
        %3223 = vmatprep.mubr.f32.mxu0 0.0
        %3224 = vmatmul.mubr.f32.gmra.mxu0 %v3157
        %v3225 = vpop.f32.mrf.mxu0
        %v3226 = vadd.f32 0.0, %v3225
        %v3227 = vpop.f32.mrf.mxu0
        %3228 = vdwg.mxu0
        %v3229 = vrcp.pop %v3226
        %v3230 = vmul.f32 %v3226, %v3229
        %v3231 = vsub.f32 2.0, %v3230
        %v3232 = vmul.f32 %v3229, %v3231
        %v3233 = vmul.f32 %v3155, %v3232
        %v3235 = vsel %vm1636, %v3233, 0
        %3237 = vmatprep.subr.mxu0 0.0
        %3238 = vmatpush1.msra.mxu0 0.0
        %3239 = vmatprep.subr.mxu0 0.0
        %3240 = vmatpush1.msra.mxu0 0.0
        %3241 = vmatprep.subr.mxu0 0.0
        %3242 = vmatpush1.msra.mxu0 0.0
        %3243 = vmatprep.subr.mxu0 0.0
        %3244 = vmatpush1.msra.mxu0 0.0
        %3245 = vmatprep.subr.mxu0 0.0
        %3246 = vmatpush1.msra.mxu0 0.0
        %3247 = vmatprep.subr.mxu0 0.0
        %3248 = vmatpush1.msra.mxu0 0.0
        %3249 = vmatprep.subr.mxu0 0.0
        %3250 = vmatpush1.msra.mxu0 0.0
        %3251 = vmatprep.subr.mxu0 0.0
        %3252 = vmatpush1.msra.mxu0 0.0
        %3253 = vmatprep.subr.mxu0 0.0
        %3254 = vmatpush1.msra.mxu0 0.0
        %3255 = vmatprep.subr.mxu0 0.0
        %3256 = vmatpush1.msra.mxu0 0.0
        %3257 = vmatprep.subr.mxu0 0.0
        %3258 = vmatpush1.msra.mxu0 0.0
        %3259 = vmatprep.subr.mxu0 0.0
        %3260 = vmatpush1.msra.mxu0 0.0
        %3261 = vmatprep.subr.mxu0 0.0
        %3262 = vmatpush1.msra.mxu0 %v3063
        %3263 = vmatprep.subr.mxu0 0.0
        %3264 = vmatpush1.msra.mxu0 %v3062
        %3265 = vmatprep.subr.mxu0 0.0
        %3266 = vmatpush1.msra.mxu0 %v3061
        %3267 = vmatprep.subr.mxu0 0.0
        %3268 = vmatpush1.msra.mxu0 %v3060
        %3269 = vmatprep.subr.mxu0 0.0
        %3270 = vmatpush2.msra.mxu0 0.0
        %3271 = vmatprep.subr.mxu0 0.0
        %3272 = vmatpush2.msra.mxu0 0.0
        %3273 = vmatprep.subr.mxu0 0.0
        %3274 = vmatpush2.msra.mxu0 0.0
        %3275 = vmatprep.subr.mxu0 0.0
        %3276 = vmatpush2.msra.mxu0 0.0
        %3277 = vmatprep.subr.mxu0 0.0
        %3278 = vmatpush2.msra.mxu0 0.0
        %3279 = vmatprep.subr.mxu0 0.0
        %3280 = vmatpush2.msra.mxu0 0.0
        %3281 = vmatprep.subr.mxu0 0.0
        %3282 = vmatpush2.msra.mxu0 0.0
        %3283 = vmatprep.subr.mxu0 0.0
        %3284 = vmatpush2.msra.mxu0 0.0
        %3285 = vmatprep.subr.mxu0 0.0
        %3286 = vmatpush2.msra.mxu0 0.0
        %3287 = vmatprep.subr.mxu0 0.0
        %3288 = vmatpush2.msra.mxu0 0.0
        %3289 = vmatprep.subr.mxu0 0.0
        %3290 = vmatpush2.msra.mxu0 0.0
        %3291 = vmatprep.subr.mxu0 0.0
        %3292 = vmatpush2.msra.mxu0 0.0
        %3293 = vmatprep.subr.mxu0 0.0
        %3294 = vmatpush2.msra.mxu0 0.0
        %3295 = vmatprep.subr.mxu0 0.0
        %3296 = vmatpush2.msra.mxu0 0.0
        %3297 = vmatprep.subr.mxu0 0.0
        %3298 = vmatpush2.msra.mxu0 0.0
        %3299 = vmatprep.subr.mxu0 0.0
        %3300 = vmatpush2.msra.mxu0 0.0
        %3301 = vmatprep.mubr.f32.mxu0 0.0
        %3302 = vmatmul.mubr.f32.gmra.mxu0 %v3235
        %v3303 = vpop.f32.mrf.mxu0
        %v3304 = vadd.f32 0.0, %v3303
        %v3305 = vpop.f32.mrf.mxu0
        %3306 = vdwg.mxu0
        %v3307 = vld [vmem:[#allocation32] sm:$0xff]
        %v3308 = vld [vmem:[#allocation32 + $0x8] sm:$0xff]
        %v3309 = vld [vmem:[#allocation32 + $0x10] sm:$0xff]
        %v3310 = vld [vmem:[#allocation32 + $0x18] sm:$0xff]
        %v3312 = vsel %vm1636, %v3053, 0
        %v3315 = vsel %vm1636, %v3304, 0
        %3317 = vmatprep.subr.mxu0 0.0
        %3318 = vmatpush1.msra.mxu0 0.0
        %3319 = vmatprep.subr.mxu0 0.0
        %3320 = vmatpush1.msra.mxu0 0.0
        %3321 = vmatprep.subr.mxu0 0.0
        %3322 = vmatpush1.msra.mxu0 0.0
        %3323 = vmatprep.subr.mxu0 0.0
        %3324 = vmatpush1.msra.mxu0 0.0
        %3325 = vmatprep.subr.mxu0 0.0
        %3326 = vmatpush1.msra.mxu0 0.0
        %3327 = vmatprep.subr.mxu0 0.0
        %3328 = vmatpush1.msra.mxu0 0.0
        %3329 = vmatprep.subr.mxu0 0.0
        %3330 = vmatpush1.msra.mxu0 0.0
        %3331 = vmatprep.subr.mxu0 0.0
        %3332 = vmatpush1.msra.mxu0 0.0
        %3333 = vmatprep.subr.mxu0 0.0
        %3334 = vmatpush1.msra.mxu0 0.0
        %3335 = vmatprep.subr.mxu0 0.0
        %3336 = vmatpush1.msra.mxu0 0.0
        %3337 = vmatprep.subr.mxu0 0.0
        %3338 = vmatpush1.msra.mxu0 0.0
        %3339 = vmatprep.subr.mxu0 0.0
        %3340 = vmatpush1.msra.mxu0 0.0
        %3341 = vmatprep.subr.mxu0 0.0
        %3342 = vmatpush1.msra.mxu0 %v3310
        %3343 = vmatprep.subr.mxu0 0.0
        %3344 = vmatpush1.msra.mxu0 %v3309
        %3345 = vmatprep.subr.mxu0 0.0
        %3346 = vmatpush1.msra.mxu0 %v3308
        %3347 = vmatprep.subr.mxu0 0.0
        %3348 = vmatpush1.msra.mxu0 %v3307
        %3349 = vmatprep.subr.mxu0 0.0
        %3350 = vmatpush2.msra.mxu0 0.0
        %3351 = vmatprep.subr.mxu0 0.0
        %3352 = vmatpush2.msra.mxu0 0.0
        %3353 = vmatprep.subr.mxu0 0.0
        %3354 = vmatpush2.msra.mxu0 0.0
        %3355 = vmatprep.subr.mxu0 0.0
        %3356 = vmatpush2.msra.mxu0 0.0
        %3357 = vmatprep.subr.mxu0 0.0
        %3358 = vmatpush2.msra.mxu0 0.0
        %3359 = vmatprep.subr.mxu0 0.0
        %3360 = vmatpush2.msra.mxu0 0.0
        %3361 = vmatprep.subr.mxu0 0.0
        %3362 = vmatpush2.msra.mxu0 0.0
        %3363 = vmatprep.subr.mxu0 0.0
        %3364 = vmatpush2.msra.mxu0 0.0
        %3365 = vmatprep.subr.mxu0 0.0
        %3366 = vmatpush2.msra.mxu0 0.0
        %3367 = vmatprep.subr.mxu0 0.0
        %3368 = vmatpush2.msra.mxu0 0.0
        %3369 = vmatprep.subr.mxu0 0.0
        %3370 = vmatpush2.msra.mxu0 0.0
        %3371 = vmatprep.subr.mxu0 0.0
        %3372 = vmatpush2.msra.mxu0 0.0
        %3373 = vmatprep.subr.mxu0 0.0
        %3374 = vmatpush2.msra.mxu0 0.0
        %3375 = vmatprep.subr.mxu0 0.0
        %3376 = vmatpush2.msra.mxu0 0.0
        %3377 = vmatprep.subr.mxu0 0.0
        %3378 = vmatpush2.msra.mxu0 0.0
        %3379 = vmatprep.subr.mxu0 0.0
        %3380 = vmatpush2.msra.mxu0 0.0
        %3381 = vmatprep.mubr.f32.mxu0 0.0
        %3382 = vmatmul.mubr.f32.gmra.mxu0 %v3312
        %v3383 = vpop.f32.mrf.mxu0
        %v3384 = vadd.f32 0.0, %v3383
        %v3385 = vpop.f32.mrf.mxu0
        %3386 = vmatprep.mubr.f32.mxu0 0.0
        %3387 = vmatmul.mubr.f32.gmra.mxu0 %v3315
        %v3388 = vpop.f32.mrf.mxu0
        %v3389 = vadd.f32 0.0, %v3388
        %v3390 = vpop.f32.mrf.mxu0
        %3391 = vdwg.mxu0
        %v3392 = vadd.f32 %v2533, %v3384
        %v3393 = vadd.f32 %v2534, %v3389
        %v3394 = vld [vmem:[%s51] sm:$0x1]
        %v3396 = vlaneseq
        %v3397 = vshrl.u32 %v3396, 7
        %v3398 = vsub.s32 0, %v3397
        %v3399 = vrot.slane %v3394, %v3398
        %v3401 = vadd.f32 %v3392, %v3399
        %v3402 = vadd.f32 %v3393, %v3399
        %v3403 = vld [vmem:[%s65] sm:$0x1]
        %v3404 = vld [vmem:[%s67] sm:$0x1]
        %v3405 = vsel %vm1636, %v3401, 0.0
        %3406 = vadd.xlane.f32.xlu0 %v3405
        %v3407 = vpop.xlane.xlu0 %3406
        %v3408 = vsel %vm1636, %v3402, 0.0
        %3409 = vadd.xlane.f32.xlu0 %v3408
        %v3410 = vpop.xlane.xlu0 %3409
        %v3411 = vmul.f32 %v3407, %v2498
        %v3412 = vmul.f32 %v3410, %v2498
        %v3413 = vsub.f32 %v3401, %v3411
        %v3414 = vsub.f32 %v3402, %v3412
        %v3415 = vmul.f32 %v3413, %v3413
        %v3416 = vmul.f32 %v3414, %v3414
        %v3417 = vsel %vm1636, %v3415, 0.0
        %3418 = vadd.xlane.f32.xlu0 %v3417
        %v3419 = vpop.xlane.xlu0 %3418
        %v3420 = vsel %vm1636, %v3416, 0.0
        %3421 = vadd.xlane.f32.xlu0 %v3420
        %v3422 = vpop.xlane.xlu0 %3421
        %v3423 = vmul.f32 %v3419, %v2498
        %v3424 = vmul.f32 %v3422, %v2498
        %v3425 = vadd.f32 %v3423, 1e-05
        %v3426 = vadd.f32 %v3424, 1e-05
        %v3427 = vrsqrt.pop %v3425
        %v3428 = vrsqrt.pop %v3426
        %v3429 = vmul.f32 %v3413, %v3427
        %v3430 = vmul.f32 %v3414, %v3428
        %v3432 = vlaneseq
        %v3433 = vshrl.u32 %v3432, 7
        %v3434 = vsub.s32 0, %v3433
        %v3435 = vrot.slane %v3403, %v3434
        %v3437 = vmul.f32 %v3429, %v3435
        %v3438 = vmul.f32 %v3430, %v3435
        %v3440 = vlaneseq
        %v3441 = vshrl.u32 %v3440, 7
        %v3442 = vsub.s32 0, %v3441
        %v3443 = vrot.slane %v3404, %v3442
        %v3445 = vadd.f32 %v3437, %v3443
        %v3446 = vadd.f32 %v3438, %v3443
        %v3447 = vld [vmem:[#allocation34] sm:$0xff]
        %v3448 = vld [vmem:[#allocation34 + $0x8] sm:$0xff]
        %v3449 = vld [vmem:[#allocation34 + $0x10] sm:$0xff]
        %v3450 = vld [vmem:[#allocation34 + $0x18] sm:$0xff]
        %v3451 = vld [vmem:[%s55] sm:$0x1]
        %v3453 = vlaneseq
        %v3454 = vshrl.u32 %v3453, 7
        %v3455 = vsub.s32 0, %v3454
        %v3456 = vrot.slane %v3451, %v3455
        %v3459 = vsel %vm1636, %v3445, 0
        %v3462 = vsel %vm1636, %v3446, 0
        %3464 = vmatprep.subr.mxu0 0.0
        %3465 = vmatpush1.msra.mxu0 0.0
        %3466 = vmatprep.subr.mxu0 0.0
        %3467 = vmatpush1.msra.mxu0 0.0
        %3468 = vmatprep.subr.mxu0 0.0
        %3469 = vmatpush1.msra.mxu0 0.0
        %3470 = vmatprep.subr.mxu0 0.0
        %3471 = vmatpush1.msra.mxu0 0.0
        %3472 = vmatprep.subr.mxu0 0.0
        %3473 = vmatpush1.msra.mxu0 0.0
        %3474 = vmatprep.subr.mxu0 0.0
        %3475 = vmatpush1.msra.mxu0 0.0
        %3476 = vmatprep.subr.mxu0 0.0
        %3477 = vmatpush1.msra.mxu0 0.0
        %3478 = vmatprep.subr.mxu0 0.0
        %3479 = vmatpush1.msra.mxu0 0.0
        %3480 = vmatprep.subr.mxu0 0.0
        %3481 = vmatpush1.msra.mxu0 0.0
        %3482 = vmatprep.subr.mxu0 0.0
        %3483 = vmatpush1.msra.mxu0 0.0
        %3484 = vmatprep.subr.mxu0 0.0
        %3485 = vmatpush1.msra.mxu0 0.0
        %3486 = vmatprep.subr.mxu0 0.0
        %3487 = vmatpush1.msra.mxu0 0.0
        %3488 = vmatprep.subr.mxu0 0.0
        %3489 = vmatpush1.msra.mxu0 %v3450
        %3490 = vmatprep.subr.mxu0 0.0
        %3491 = vmatpush1.msra.mxu0 %v3449
        %3492 = vmatprep.subr.mxu0 0.0
        %3493 = vmatpush1.msra.mxu0 %v3448
        %3494 = vmatprep.subr.mxu0 0.0
        %3495 = vmatpush1.msra.mxu0 %v3447
        %3496 = vmatprep.subr.mxu0 0.0
        %3497 = vmatpush2.msra.mxu0 0.0
        %3498 = vmatprep.subr.mxu0 0.0
        %3499 = vmatpush2.msra.mxu0 0.0
        %3500 = vmatprep.subr.mxu0 0.0
        %3501 = vmatpush2.msra.mxu0 0.0
        %3502 = vmatprep.subr.mxu0 0.0
        %3503 = vmatpush2.msra.mxu0 0.0
        %3504 = vmatprep.subr.mxu0 0.0
        %3505 = vmatpush2.msra.mxu0 0.0
        %3506 = vmatprep.subr.mxu0 0.0
        %3507 = vmatpush2.msra.mxu0 0.0
        %3508 = vmatprep.subr.mxu0 0.0
        %3509 = vmatpush2.msra.mxu0 0.0
        %3510 = vmatprep.subr.mxu0 0.0
        %3511 = vmatpush2.msra.mxu0 0.0
        %3512 = vmatprep.subr.mxu0 0.0
        %3513 = vmatpush2.msra.mxu0 0.0
        %3514 = vmatprep.subr.mxu0 0.0
        %3515 = vmatpush2.msra.mxu0 0.0
        %3516 = vmatprep.subr.mxu0 0.0
        %3517 = vmatpush2.msra.mxu0 0.0
        %3518 = vmatprep.subr.mxu0 0.0
        %3519 = vmatpush2.msra.mxu0 0.0
        %3520 = vmatprep.subr.mxu0 0.0
        %3521 = vmatpush2.msra.mxu0 0.0
        %3522 = vmatprep.subr.mxu0 0.0
        %3523 = vmatpush2.msra.mxu0 0.0
        %3524 = vmatprep.subr.mxu0 0.0
        %3525 = vmatpush2.msra.mxu0 0.0
        %3526 = vmatprep.subr.mxu0 0.0
        %3527 = vmatpush2.msra.mxu0 0.0
        %3528 = vmatprep.mubr.f32.mxu0 0.0
        %3529 = vmatmul.mubr.f32.gmra.mxu0 %v3459
        %v3530 = vpop.f32.mrf.mxu0
        %v3531 = vadd.f32 %v3456, %v3530
        %v3532 = vpop.f32.mrf.mxu0
        %3533 = vmatprep.mubr.f32.mxu0 0.0
        %3534 = vmatmul.mubr.f32.gmra.mxu0 %v3462
        %v3535 = vpop.f32.mrf.mxu0
        %v3536 = vadd.f32 %v3456, %v3535
        %v3537 = vpop.f32.mrf.mxu0
        %3538 = vdwg.mxu0
        %v3539 = vmax.f32 %v3531, 0.0
        %v3540 = vmax.f32 %v3536, 0.0
        %v3541 = vld [vmem:[%s57] sm:$0xff]
        %v3542 = vld [vmem:[%s57 + $0x8] sm:$0xff]
        %v3543 = vld [vmem:[%s57 + $0x10] sm:$0xff]
        %v3544 = vld [vmem:[%s57 + $0x18] sm:$0xff]
        %v3545 = vld [vmem:[%s57 + $0x20] sm:$0xff]
        %v3546 = vld [vmem:[%s57 + $0x28] sm:$0xff]
        %v3547 = vld [vmem:[%s57 + $0x30] sm:$0xff]
        %v3548 = vld [vmem:[%s57 + $0x38] sm:$0xff]
        %vm3549 = vcmask 523264
        %v3551 = vsel %vm3549, %v3539, 0
        %v3554 = vsel %vm3549, %v3540, 0
        %3556 = vmatprep.subr.mxu0 0.0
        %3557 = vmatpush1.msra.mxu0 0.0
        %3558 = vmatprep.subr.mxu0 0.0
        %3559 = vmatpush1.msra.mxu0 0.0
        %3560 = vmatprep.subr.mxu0 0.0
        %3561 = vmatpush1.msra.mxu0 0.0
        %3562 = vmatprep.subr.mxu0 0.0
        %3563 = vmatpush1.msra.mxu0 0.0
        %3564 = vmatprep.subr.mxu0 0.0
        %3565 = vmatpush1.msra.mxu0 0.0
        %3566 = vmatprep.subr.mxu0 0.0
        %3567 = vmatpush1.msra.mxu0 0.0
        %3568 = vmatprep.subr.mxu0 0.0
        %3569 = vmatpush1.msra.mxu0 0.0
        %3570 = vmatprep.subr.mxu0 0.0
        %3571 = vmatpush1.msra.mxu0 0.0
        %3572 = vmatprep.subr.mxu0 0.0
        %3573 = vmatpush1.msra.mxu0 %v3548
        %3574 = vmatprep.subr.mxu0 0.0
        %3575 = vmatpush1.msra.mxu0 %v3547
        %3576 = vmatprep.subr.mxu0 0.0
        %3577 = vmatpush1.msra.mxu0 %v3546
        %3578 = vmatprep.subr.mxu0 0.0
        %3579 = vmatpush1.msra.mxu0 %v3545
        %3580 = vmatprep.subr.mxu0 0.0
        %3581 = vmatpush1.msra.mxu0 %v3544
        %3582 = vmatprep.subr.mxu0 0.0
        %3583 = vmatpush1.msra.mxu0 %v3543
        %3584 = vmatprep.subr.mxu0 0.0
        %3585 = vmatpush1.msra.mxu0 %v3542
        %3586 = vmatprep.subr.mxu0 0.0
        %3587 = vmatpush1.msra.mxu0 %v3541
        %3588 = vmatprep.subr.mxu0 0.0
        %3589 = vmatpush2.msra.mxu0 0.0
        %3590 = vmatprep.subr.mxu0 0.0
        %3591 = vmatpush2.msra.mxu0 0.0
        %3592 = vmatprep.subr.mxu0 0.0
        %3593 = vmatpush2.msra.mxu0 0.0
        %3594 = vmatprep.subr.mxu0 0.0
        %3595 = vmatpush2.msra.mxu0 0.0
        %3596 = vmatprep.subr.mxu0 0.0
        %3597 = vmatpush2.msra.mxu0 0.0
        %3598 = vmatprep.subr.mxu0 0.0
        %3599 = vmatpush2.msra.mxu0 0.0
        %3600 = vmatprep.subr.mxu0 0.0
        %3601 = vmatpush2.msra.mxu0 0.0
        %3602 = vmatprep.subr.mxu0 0.0
        %3603 = vmatpush2.msra.mxu0 0.0
        %3604 = vmatprep.subr.mxu0 0.0
        %3605 = vmatpush2.msra.mxu0 0.0
        %3606 = vmatprep.subr.mxu0 0.0
        %3607 = vmatpush2.msra.mxu0 0.0
        %3608 = vmatprep.subr.mxu0 0.0
        %3609 = vmatpush2.msra.mxu0 0.0
        %3610 = vmatprep.subr.mxu0 0.0
        %3611 = vmatpush2.msra.mxu0 0.0
        %3612 = vmatprep.subr.mxu0 0.0
        %3613 = vmatpush2.msra.mxu0 0.0
        %3614 = vmatprep.subr.mxu0 0.0
        %3615 = vmatpush2.msra.mxu0 0.0
        %3616 = vmatprep.subr.mxu0 0.0
        %3617 = vmatpush2.msra.mxu0 0.0
        %3618 = vmatprep.subr.mxu0 0.0
        %3619 = vmatpush2.msra.mxu0 0.0
        %3620 = vmatprep.mubr.f32.mxu0 0.0
        %3621 = vmatmul.mubr.f32.gmra.mxu0 %v3551
        %v3622 = vpop.f32.mrf.mxu0
        %v3623 = vadd.f32 0.0, %v3622
        %v3624 = vpop.f32.mrf.mxu0
        %3625 = vmatprep.mubr.f32.mxu0 0.0
        %3626 = vmatmul.mubr.f32.gmra.mxu0 %v3554
        %v3627 = vpop.f32.mrf.mxu0
        %v3628 = vadd.f32 0.0, %v3627
        %v3629 = vpop.f32.mrf.mxu0
        %3630 = vdwg.mxu0
        %v3631 = vadd.f32 %v3445, %v3623
        %v3632 = vadd.f32 %v3446, %v3628
        %v3633 = vld [vmem:[%s59] sm:$0x1]
        %v3635 = vlaneseq
        %v3636 = vshrl.u32 %v3635, 7
        %v3637 = vsub.s32 0, %v3636
        %v3638 = vrot.slane %v3633, %v3637
        %v3640 = vadd.f32 %v3631, %v3638
        %v3641 = vadd.f32 %v3632, %v3638
        %v3642 = vld [vmem:[%s69] sm:$0x1]
        %v3643 = vld [vmem:[%s71] sm:$0x1]
        %v3644 = vsel %vm1636, %v3640, 0.0
        %3645 = vadd.xlane.f32.xlu0 %v3644
        %v3646 = vpop.xlane.xlu0 %3645
        %v3647 = vsel %vm1636, %v3641, 0.0
        %3648 = vadd.xlane.f32.xlu0 %v3647
        %v3649 = vpop.xlane.xlu0 %3648
        %v3650 = vmul.f32 %v3646, %v2498
        %v3651 = vmul.f32 %v3649, %v2498
        %v3652 = vsub.f32 %v3640, %v3650
        %v3653 = vsub.f32 %v3641, %v3651
        %v3654 = vmul.f32 %v3652, %v3652
        %v3655 = vmul.f32 %v3653, %v3653
        %v3656 = vsel %vm1636, %v3654, 0.0
        %3657 = vadd.xlane.f32.xlu0 %v3656
        %v3658 = vpop.xlane.xlu0 %3657
        %v3659 = vsel %vm1636, %v3655, 0.0
        %3660 = vadd.xlane.f32.xlu0 %v3659
        %v3661 = vpop.xlane.xlu0 %3660
        %v3662 = vmul.f32 %v3658, %v2498
        %v3663 = vmul.f32 %v3661, %v2498
        %v3664 = vadd.f32 %v3662, 1e-05
        %v3665 = vadd.f32 %v3663, 1e-05
        %v3666 = vrsqrt.pop %v3664
        %v3667 = vrsqrt.pop %v3665
        %v3668 = vmul.f32 %v3652, %v3666
        %v3669 = vmul.f32 %v3653, %v3667
        %v3671 = vlaneseq
        %v3672 = vshrl.u32 %v3671, 7
        %v3673 = vsub.s32 0, %v3672
        %v3674 = vrot.slane %v3642, %v3673
        %v3676 = vmul.f32 %v3668, %v3674
        %v3677 = vmul.f32 %v3669, %v3674
        %v3679 = vlaneseq
        %v3680 = vshrl.u32 %v3679, 7
        %v3681 = vsub.s32 0, %v3680
        %v3682 = vrot.slane %v3643, %v3681
        %v3684 = vadd.f32 %v3676, %v3682
        %v3685 = vadd.f32 %v3677, %v3682
        %s3686 = scalar_lea.vmem %s21, 32
        %v3687 = vld [vmem:[%s3686] sm:$0xff]
        %v3688 = vld [vmem:[%s3686 + $0x8] sm:$0xff]
        %v3689 = vld [vmem:[%s3686 + $0x10] sm:$0xff]
        %v3690 = vld [vmem:[%s3686 + $0x18] sm:$0xff]
        %s3691 = scalar_lea.vmem [#allocation19], 1
        %v3692 = vld [vmem:[%s3691] sm:$0x1]
        %v3694 = vlaneseq
        %v3695 = vshrl.u32 %v3694, 7
        %v3696 = vsub.s32 0, %v3695
        %v3697 = vrot.slane %v3692, %v3696
        %v3700 = vsel %vm1636, %v3684, 0
        %v3703 = vsel %vm1636, %v3685, 0
        %3705 = vmatprep.subr.mxu0 0.0
        %3706 = vmatpush1.msra.mxu0 0.0
        %3707 = vmatprep.subr.mxu0 0.0
        %3708 = vmatpush1.msra.mxu0 0.0
        %3709 = vmatprep.subr.mxu0 0.0
        %3710 = vmatpush1.msra.mxu0 0.0
        %3711 = vmatprep.subr.mxu0 0.0
        %3712 = vmatpush1.msra.mxu0 0.0
        %3713 = vmatprep.subr.mxu0 0.0
        %3714 = vmatpush1.msra.mxu0 0.0
        %3715 = vmatprep.subr.mxu0 0.0
        %3716 = vmatpush1.msra.mxu0 0.0
        %3717 = vmatprep.subr.mxu0 0.0
        %3718 = vmatpush1.msra.mxu0 0.0
        %3719 = vmatprep.subr.mxu0 0.0
        %3720 = vmatpush1.msra.mxu0 0.0
        %3721 = vmatprep.subr.mxu0 0.0
        %3722 = vmatpush1.msra.mxu0 0.0
        %3723 = vmatprep.subr.mxu0 0.0
        %3724 = vmatpush1.msra.mxu0 0.0
        %3725 = vmatprep.subr.mxu0 0.0
        %3726 = vmatpush1.msra.mxu0 0.0
        %3727 = vmatprep.subr.mxu0 0.0
        %3728 = vmatpush1.msra.mxu0 0.0
        %3729 = vmatprep.subr.mxu0 0.0
        %3730 = vmatpush1.msra.mxu0 %v3690
        %3731 = vmatprep.subr.mxu0 0.0
        %3732 = vmatpush1.msra.mxu0 %v3689
        %3733 = vmatprep.subr.mxu0 0.0
        %3734 = vmatpush1.msra.mxu0 %v3688
        %3735 = vmatprep.subr.mxu0 0.0
        %3736 = vmatpush1.msra.mxu0 %v3687
        %3737 = vmatprep.subr.mxu0 0.0
        %3738 = vmatpush2.msra.mxu0 0.0
        %3739 = vmatprep.subr.mxu0 0.0
        %3740 = vmatpush2.msra.mxu0 0.0
        %3741 = vmatprep.subr.mxu0 0.0
        %3742 = vmatpush2.msra.mxu0 0.0
        %3743 = vmatprep.subr.mxu0 0.0
        %3744 = vmatpush2.msra.mxu0 0.0
        %3745 = vmatprep.subr.mxu0 0.0
        %3746 = vmatpush2.msra.mxu0 0.0
        %3747 = vmatprep.subr.mxu0 0.0
        %3748 = vmatpush2.msra.mxu0 0.0
        %3749 = vmatprep.subr.mxu0 0.0
        %3750 = vmatpush2.msra.mxu0 0.0
        %3751 = vmatprep.subr.mxu0 0.0
        %3752 = vmatpush2.msra.mxu0 0.0
        %3753 = vmatprep.subr.mxu0 0.0
        %3754 = vmatpush2.msra.mxu0 0.0
        %3755 = vmatprep.subr.mxu0 0.0
        %3756 = vmatpush2.msra.mxu0 0.0
        %3757 = vmatprep.subr.mxu0 0.0
        %3758 = vmatpush2.msra.mxu0 0.0
        %3759 = vmatprep.subr.mxu0 0.0
        %3760 = vmatpush2.msra.mxu0 0.0
        %3761 = vmatprep.subr.mxu0 0.0
        %3762 = vmatpush2.msra.mxu0 0.0
        %3763 = vmatprep.subr.mxu0 0.0
        %3764 = vmatpush2.msra.mxu0 0.0
        %3765 = vmatprep.subr.mxu0 0.0
        %3766 = vmatpush2.msra.mxu0 0.0
        %3767 = vmatprep.subr.mxu0 0.0
        %3768 = vmatpush2.msra.mxu0 0.0
        %3769 = vmatprep.mubr.f32.mxu0 0.0
        %3770 = vmatmul.mubr.f32.gmra.mxu0 %v3700
        %v3771 = vpop.f32.mrf.mxu0
        %v3772 = vadd.f32 %v3697, %v3771
        %v3773 = vpop.f32.mrf.mxu0
        %3774 = vmatprep.mubr.f32.mxu0 0.0
        %3775 = vmatmul.mubr.f32.gmra.mxu0 %v3703
        %v3776 = vpop.f32.mrf.mxu0
        %v3777 = vadd.f32 %v3697, %v3776
        %v3778 = vpop.f32.mrf.mxu0
        %3779 = vdwg.mxu0
        %s3780 = scalar_lea.vmem %s25, 32
        %v3781 = vld [vmem:[%s3780] sm:$0xff]
        %v3782 = vld [vmem:[%s3780 + $0x8] sm:$0xff]
        %v3783 = vld [vmem:[%s3780 + $0x10] sm:$0xff]
        %v3784 = vld [vmem:[%s3780 + $0x18] sm:$0xff]
        %s3785 = scalar_lea.vmem [#allocation20], 1
        %v3786 = vld [vmem:[%s3785] sm:$0x1]
        %v3788 = vlaneseq
        %v3789 = vshrl.u32 %v3788, 7
        %v3790 = vsub.s32 0, %v3789
        %v3791 = vrot.slane %v3786, %v3790
        %3793 = vmatprep.subr.mxu0 0.0
        %3794 = vmatpush1.msra.mxu0 0.0
        %3795 = vmatprep.subr.mxu0 0.0
        %3796 = vmatpush1.msra.mxu0 0.0
        %3797 = vmatprep.subr.mxu0 0.0
        %3798 = vmatpush1.msra.mxu0 0.0
        %3799 = vmatprep.subr.mxu0 0.0
        %3800 = vmatpush1.msra.mxu0 0.0
        %3801 = vmatprep.subr.mxu0 0.0
        %3802 = vmatpush1.msra.mxu0 0.0
        %3803 = vmatprep.subr.mxu0 0.0
        %3804 = vmatpush1.msra.mxu0 0.0
        %3805 = vmatprep.subr.mxu0 0.0
        %3806 = vmatpush1.msra.mxu0 0.0
        %3807 = vmatprep.subr.mxu0 0.0
        %3808 = vmatpush1.msra.mxu0 0.0
        %3809 = vmatprep.subr.mxu0 0.0
        %3810 = vmatpush1.msra.mxu0 0.0
        %3811 = vmatprep.subr.mxu0 0.0
        %3812 = vmatpush1.msra.mxu0 0.0
        %3813 = vmatprep.subr.mxu0 0.0
        %3814 = vmatpush1.msra.mxu0 0.0
        %3815 = vmatprep.subr.mxu0 0.0
        %3816 = vmatpush1.msra.mxu0 0.0
        %3817 = vmatprep.subr.mxu0 0.0
        %3818 = vmatpush1.msra.mxu0 %v3784
        %3819 = vmatprep.subr.mxu0 0.0
        %3820 = vmatpush1.msra.mxu0 %v3783
        %3821 = vmatprep.subr.mxu0 0.0
        %3822 = vmatpush1.msra.mxu0 %v3782
        %3823 = vmatprep.subr.mxu0 0.0
        %3824 = vmatpush1.msra.mxu0 %v3781
        %3825 = vmatprep.subr.mxu0 0.0
        %3826 = vmatpush2.msra.mxu0 0.0
        %3827 = vmatprep.subr.mxu0 0.0
        %3828 = vmatpush2.msra.mxu0 0.0
        %3829 = vmatprep.subr.mxu0 0.0
        %3830 = vmatpush2.msra.mxu0 0.0
        %3831 = vmatprep.subr.mxu0 0.0
        %3832 = vmatpush2.msra.mxu0 0.0
        %3833 = vmatprep.subr.mxu0 0.0
        %3834 = vmatpush2.msra.mxu0 0.0
        %3835 = vmatprep.subr.mxu0 0.0
        %3836 = vmatpush2.msra.mxu0 0.0
        %3837 = vmatprep.subr.mxu0 0.0
        %3838 = vmatpush2.msra.mxu0 0.0
        %3839 = vmatprep.subr.mxu0 0.0
        %3840 = vmatpush2.msra.mxu0 0.0
        %3841 = vmatprep.subr.mxu0 0.0
        %3842 = vmatpush2.msra.mxu0 0.0
        %3843 = vmatprep.subr.mxu0 0.0
        %3844 = vmatpush2.msra.mxu0 0.0
        %3845 = vmatprep.subr.mxu0 0.0
        %3846 = vmatpush2.msra.mxu0 0.0
        %3847 = vmatprep.subr.mxu0 0.0
        %3848 = vmatpush2.msra.mxu0 0.0
        %3849 = vmatprep.subr.mxu0 0.0
        %3850 = vmatpush2.msra.mxu0 0.0
        %3851 = vmatprep.subr.mxu0 0.0
        %3852 = vmatpush2.msra.mxu0 0.0
        %3853 = vmatprep.subr.mxu0 0.0
        %3854 = vmatpush2.msra.mxu0 0.0
        %3855 = vmatprep.subr.mxu0 0.0
        %3856 = vmatpush2.msra.mxu0 0.0
        %3857 = vmatprep.mubr.f32.mxu0 0.0
        %3858 = vmatmul.mubr.f32.gmra.mxu0 %v3700
        %v3859 = vpop.f32.mrf.mxu0
        %v3860 = vadd.f32 %v3791, %v3859
        %v3861 = vpop.f32.mrf.mxu0
        %3862 = vmatprep.mubr.f32.mxu0 0.0
        %3863 = vmatmul.mubr.f32.gmra.mxu0 %v3703
        %v3864 = vpop.f32.mrf.mxu0
        %v3865 = vadd.f32 %v3791, %v3864
        %v3866 = vpop.f32.mrf.mxu0
        %3867 = vdwg.mxu0
        %s3868 = scalar_lea.vmem %s29, 32
        %v3869 = vld [vmem:[%s3868] sm:$0xff]
        %v3870 = vld [vmem:[%s3868 + $0x8] sm:$0xff]
        %v3871 = vld [vmem:[%s3868 + $0x10] sm:$0xff]
        %v3872 = vld [vmem:[%s3868 + $0x18] sm:$0xff]
        %s3873 = scalar_lea.vmem [#allocation22], 1
        %v3874 = vld [vmem:[%s3873] sm:$0x1]
        %v3876 = vlaneseq
        %v3877 = vshrl.u32 %v3876, 7
        %v3878 = vsub.s32 0, %v3877
        %v3879 = vrot.slane %v3874, %v3878
        %3881 = vmatprep.subr.mxu0 0.0
        %3882 = vmatpush1.msra.mxu0 0.0
        %3883 = vmatprep.subr.mxu0 0.0
        %3884 = vmatpush1.msra.mxu0 0.0
        %3885 = vmatprep.subr.mxu0 0.0
        %3886 = vmatpush1.msra.mxu0 0.0
        %3887 = vmatprep.subr.mxu0 0.0
        %3888 = vmatpush1.msra.mxu0 0.0
        %3889 = vmatprep.subr.mxu0 0.0
        %3890 = vmatpush1.msra.mxu0 0.0
        %3891 = vmatprep.subr.mxu0 0.0
        %3892 = vmatpush1.msra.mxu0 0.0
        %3893 = vmatprep.subr.mxu0 0.0
        %3894 = vmatpush1.msra.mxu0 0.0
        %3895 = vmatprep.subr.mxu0 0.0
        %3896 = vmatpush1.msra.mxu0 0.0
        %3897 = vmatprep.subr.mxu0 0.0
        %3898 = vmatpush1.msra.mxu0 0.0
        %3899 = vmatprep.subr.mxu0 0.0
        %3900 = vmatpush1.msra.mxu0 0.0
        %3901 = vmatprep.subr.mxu0 0.0
        %3902 = vmatpush1.msra.mxu0 0.0
        %3903 = vmatprep.subr.mxu0 0.0
        %3904 = vmatpush1.msra.mxu0 0.0
        %3905 = vmatprep.subr.mxu0 0.0
        %3906 = vmatpush1.msra.mxu0 %v3872
        %3907 = vmatprep.subr.mxu0 0.0
        %3908 = vmatpush1.msra.mxu0 %v3871
        %3909 = vmatprep.subr.mxu0 0.0
        %3910 = vmatpush1.msra.mxu0 %v3870
        %3911 = vmatprep.subr.mxu0 0.0
        %3912 = vmatpush1.msra.mxu0 %v3869
        %3913 = vmatprep.subr.mxu0 0.0
        %3914 = vmatpush2.msra.mxu0 0.0
        %3915 = vmatprep.subr.mxu0 0.0
        %3916 = vmatpush2.msra.mxu0 0.0
        %3917 = vmatprep.subr.mxu0 0.0
        %3918 = vmatpush2.msra.mxu0 0.0
        %3919 = vmatprep.subr.mxu0 0.0
        %3920 = vmatpush2.msra.mxu0 0.0
        %3921 = vmatprep.subr.mxu0 0.0
        %3922 = vmatpush2.msra.mxu0 0.0
        %3923 = vmatprep.subr.mxu0 0.0
        %3924 = vmatpush2.msra.mxu0 0.0
        %3925 = vmatprep.subr.mxu0 0.0
        %3926 = vmatpush2.msra.mxu0 0.0
        %3927 = vmatprep.subr.mxu0 0.0
        %3928 = vmatpush2.msra.mxu0 0.0
        %3929 = vmatprep.subr.mxu0 0.0
        %3930 = vmatpush2.msra.mxu0 0.0
        %3931 = vmatprep.subr.mxu0 0.0
        %3932 = vmatpush2.msra.mxu0 0.0
        %3933 = vmatprep.subr.mxu0 0.0
        %3934 = vmatpush2.msra.mxu0 0.0
        %3935 = vmatprep.subr.mxu0 0.0
        %3936 = vmatpush2.msra.mxu0 0.0
        %3937 = vmatprep.subr.mxu0 0.0
        %3938 = vmatpush2.msra.mxu0 0.0
        %3939 = vmatprep.subr.mxu0 0.0
        %3940 = vmatpush2.msra.mxu0 0.0
        %3941 = vmatprep.subr.mxu0 0.0
        %3942 = vmatpush2.msra.mxu0 0.0
        %3943 = vmatprep.subr.mxu0 0.0
        %3944 = vmatpush2.msra.mxu0 0.0
        %3945 = vmatprep.mubr.f32.mxu0 0.0
        %3946 = vmatmul.mubr.f32.gmra.mxu0 %v3700
        %v3947 = vpop.f32.mrf.mxu0
        %v3948 = vadd.f32 %v3879, %v3947
        %v3949 = vpop.f32.mrf.mxu0
        %3950 = vmatprep.mubr.f32.mxu0 0.0
        %3951 = vmatmul.mubr.f32.gmra.mxu0 %v3703
        %v3952 = vpop.f32.mrf.mxu0
        %v3953 = vadd.f32 %v3879, %v3952
        %v3954 = vpop.f32.mrf.mxu0
        %3955 = vdwg.mxu0
        %v3956 = vmul.f32 %v3860, %v1609
        %v3957 = vmul.f32 %v3860, %v1610
        %v3958 = vmul.f32 %v3860, %v1611
        %v3959 = vmul.f32 %v3860, %v1612
        %v3960 = vmul.f32 %v3948, %v1609
        %v3961 = vmul.f32 %v3948, %v1610
        %v3962 = vmul.f32 %v3948, %v1611
        %v3963 = vmul.f32 %v3948, %v1612
        %v3965 = vsel %vm1636, %v3772, 0
        %v3968 = vsel %vm1636, %v3956, 0
        %v3971 = vsel %vm1636, %v3957, 0
        %v3974 = vsel %vm1636, %v3958, 0
        %v3977 = vsel %vm1636, %v3959, 0
        %3979 = vmatprep.subr.mxu0 0.0
        %3980 = vmatpush1.xpose.msra.mxu0 0.0
        %3981 = vmatprep.subr.mxu0 0.0
        %3982 = vmatpush1.xpose.msra.mxu0 0.0
        %3983 = vmatprep.subr.mxu0 0.0
        %3984 = vmatpush1.xpose.msra.mxu0 0.0
        %3985 = vmatprep.subr.mxu0 0.0
        %3986 = vmatpush1.xpose.msra.mxu0 0.0
        %3987 = vmatprep.subr.mxu0 0.0
        %3988 = vmatpush1.xpose.msra.mxu0 0.0
        %3989 = vmatprep.subr.mxu0 0.0
        %3990 = vmatpush1.xpose.msra.mxu0 0.0
        %3991 = vmatprep.subr.mxu0 0.0
        %3992 = vmatpush1.xpose.msra.mxu0 0.0
        %3993 = vmatprep.subr.mxu0 0.0
        %3994 = vmatpush1.xpose.msra.mxu0 0.0
        %3995 = vmatprep.subr.mxu0 0.0
        %3996 = vmatpush1.xpose.msra.mxu0 0.0
        %3997 = vmatprep.subr.mxu0 0.0
        %3998 = vmatpush1.xpose.msra.mxu0 0.0
        %3999 = vmatprep.subr.mxu0 0.0
        %4000 = vmatpush1.xpose.msra.mxu0 0.0
        %4001 = vmatprep.subr.mxu0 0.0
        %4002 = vmatpush1.xpose.msra.mxu0 0.0
        %4003 = vmatprep.subr.mxu0 0.0
        %4004 = vmatpush1.xpose.msra.mxu0 %v3977
        %4005 = vmatprep.subr.mxu0 0.0
        %4006 = vmatpush1.xpose.msra.mxu0 %v3974
        %4007 = vmatprep.subr.mxu0 0.0
        %4008 = vmatpush1.xpose.msra.mxu0 %v3971
        %4009 = vmatprep.subr.mxu0 0.0
        %4010 = vmatpush1.xpose.msra.mxu0 %v3968
        %4011 = vmatprep.subr.mxu0 0.0
        %4012 = vmatpush2.xpose.msra.mxu0 0.0
        %4013 = vmatprep.subr.mxu0 0.0
        %4014 = vmatpush2.xpose.msra.mxu0 0.0
        %4015 = vmatprep.subr.mxu0 0.0
        %4016 = vmatpush2.xpose.msra.mxu0 0.0
        %4017 = vmatprep.subr.mxu0 0.0
        %4018 = vmatpush2.xpose.msra.mxu0 0.0
        %4019 = vmatprep.subr.mxu0 0.0
        %4020 = vmatpush2.xpose.msra.mxu0 0.0
        %4021 = vmatprep.subr.mxu0 0.0
        %4022 = vmatpush2.xpose.msra.mxu0 0.0
        %4023 = vmatprep.subr.mxu0 0.0
        %4024 = vmatpush2.xpose.msra.mxu0 0.0
        %4025 = vmatprep.subr.mxu0 0.0
        %4026 = vmatpush2.xpose.msra.mxu0 0.0
        %4027 = vmatprep.subr.mxu0 0.0
        %4028 = vmatpush2.xpose.msra.mxu0 0.0
        %4029 = vmatprep.subr.mxu0 0.0
        %4030 = vmatpush2.xpose.msra.mxu0 0.0
        %4031 = vmatprep.subr.mxu0 0.0
        %4032 = vmatpush2.xpose.msra.mxu0 0.0
        %4033 = vmatprep.subr.mxu0 0.0
        %4034 = vmatpush2.xpose.msra.mxu0 0.0
        %4035 = vmatprep.subr.mxu0 0.0
        %4036 = vmatpush2.xpose.msra.mxu0 0.0
        %4037 = vmatprep.subr.mxu0 0.0
        %4038 = vmatpush2.xpose.msra.mxu0 0.0
        %4039 = vmatprep.subr.mxu0 0.0
        %4040 = vmatpush2.xpose.msra.mxu0 0.0
        %4041 = vmatprep.subr.mxu0 0.0
        %4042 = vmatpush2.xpose.msra.mxu0 0.0
        %4043 = vmatprep.mubr.f32.mxu0 0.0
        %4044 = vmatmul.mubr.f32.gmra.mxu0 %v3965
        %v4045 = vpop.f32.mrf.mxu0
        %v4046 = vadd.f32 0.0, %v4045
        %v4047 = vpop.f32.mrf.mxu0
        %4048 = vdwg.mxu0
        %v4049 = vmul.f32 %v4046, 0.35355338
        %v4050 = vadd.f32 %v4049, %v1608
        %v4051 = vsel %vm1636, %v4050, -inf
        %4052 = vmax.xlane.f32.xlu0 %v4051
        %v4053 = vpop.xlane.xlu0 %4052
        %v4054 = vsub.f32 %v4050, %v4053
        %v4055 = vmul.f32 %v4054, 1.442695
        %v4056 = vpow.pop %v4055
        %v4058 = vsel %vm1636, %v4056, 0
        %4060 = vmatprep.subr.mxu0 0.0
        %4061 = vmatpush1.msra.mxu0 0.0
        %4062 = vmatprep.subr.mxu0 0.0
        %4063 = vmatpush1.msra.mxu0 0.0
        %4064 = vmatprep.subr.mxu0 0.0
        %4065 = vmatpush1.msra.mxu0 0.0
        %4066 = vmatprep.subr.mxu0 0.0
        %4067 = vmatpush1.msra.mxu0 0.0
        %4068 = vmatprep.subr.mxu0 0.0
        %4069 = vmatpush1.msra.mxu0 0.0
        %4070 = vmatprep.subr.mxu0 0.0
        %4071 = vmatpush1.msra.mxu0 0.0
        %4072 = vmatprep.subr.mxu0 0.0
        %4073 = vmatpush1.msra.mxu0 0.0
        %4074 = vmatprep.subr.mxu0 0.0
        %4075 = vmatpush1.msra.mxu0 0.0
        %4076 = vmatprep.subr.mxu0 0.0
        %4077 = vmatpush1.msra.mxu0 0.0
        %4078 = vmatprep.subr.mxu0 0.0
        %4079 = vmatpush1.msra.mxu0 0.0
        %4080 = vmatprep.subr.mxu0 0.0
        %4081 = vmatpush1.msra.mxu0 0.0
        %4082 = vmatprep.subr.mxu0 0.0
        %4083 = vmatpush1.msra.mxu0 0.0
        %4084 = vmatprep.subr.mxu0 0.0
        %4085 = vmatpush1.msra.mxu0 %v1616
        %4086 = vmatprep.subr.mxu0 0.0
        %4087 = vmatpush1.msra.mxu0 %v1615
        %4088 = vmatprep.subr.mxu0 0.0
        %4089 = vmatpush1.msra.mxu0 %v1614
        %4090 = vmatprep.subr.mxu0 0.0
        %4091 = vmatpush1.msra.mxu0 %v1613
        %4092 = vmatprep.subr.mxu0 0.0
        %4093 = vmatpush2.msra.mxu0 0.0
        %4094 = vmatprep.subr.mxu0 0.0
        %4095 = vmatpush2.msra.mxu0 0.0
        %4096 = vmatprep.subr.mxu0 0.0
        %4097 = vmatpush2.msra.mxu0 0.0
        %4098 = vmatprep.subr.mxu0 0.0
        %4099 = vmatpush2.msra.mxu0 0.0
        %4100 = vmatprep.subr.mxu0 0.0
        %4101 = vmatpush2.msra.mxu0 0.0
        %4102 = vmatprep.subr.mxu0 0.0
        %4103 = vmatpush2.msra.mxu0 0.0
        %4104 = vmatprep.subr.mxu0 0.0
        %4105 = vmatpush2.msra.mxu0 0.0
        %4106 = vmatprep.subr.mxu0 0.0
        %4107 = vmatpush2.msra.mxu0 0.0
        %4108 = vmatprep.subr.mxu0 0.0
        %4109 = vmatpush2.msra.mxu0 0.0
        %4110 = vmatprep.subr.mxu0 0.0
        %4111 = vmatpush2.msra.mxu0 0.0
        %4112 = vmatprep.subr.mxu0 0.0
        %4113 = vmatpush2.msra.mxu0 0.0
        %4114 = vmatprep.subr.mxu0 0.0
        %4115 = vmatpush2.msra.mxu0 0.0
        %4116 = vmatprep.subr.mxu0 0.0
        %4117 = vmatpush2.msra.mxu0 0.0
        %4118 = vmatprep.subr.mxu0 0.0
        %4119 = vmatpush2.msra.mxu0 0.0
        %4120 = vmatprep.subr.mxu0 0.0
        %4121 = vmatpush2.msra.mxu0 0.0
        %4122 = vmatprep.subr.mxu0 0.0
        %4123 = vmatpush2.msra.mxu0 0.0
        %4124 = vmatprep.mubr.f32.mxu0 0.0
        %4125 = vmatmul.mubr.f32.gmra.mxu0 %v4058
        %v4126 = vpop.f32.mrf.mxu0
        %v4127 = vadd.f32 0.0, %v4126
        %v4128 = vpop.f32.mrf.mxu0
        %4129 = vdwg.mxu0
        %v4130 = vrcp.pop %v4127
        %v4131 = vmul.f32 %v4127, %v4130
        %v4132 = vsub.f32 2.0, %v4131
        %v4133 = vmul.f32 %v4130, %v4132
        %v4134 = vmul.f32 %v4056, %v4133
        %v4136 = vsel %vm1636, %v4134, 0
        %4138 = vmatprep.subr.mxu0 0.0
        %4139 = vmatpush1.msra.mxu0 0.0
        %4140 = vmatprep.subr.mxu0 0.0
        %4141 = vmatpush1.msra.mxu0 0.0
        %4142 = vmatprep.subr.mxu0 0.0
        %4143 = vmatpush1.msra.mxu0 0.0
        %4144 = vmatprep.subr.mxu0 0.0
        %4145 = vmatpush1.msra.mxu0 0.0
        %4146 = vmatprep.subr.mxu0 0.0
        %4147 = vmatpush1.msra.mxu0 0.0
        %4148 = vmatprep.subr.mxu0 0.0
        %4149 = vmatpush1.msra.mxu0 0.0
        %4150 = vmatprep.subr.mxu0 0.0
        %4151 = vmatpush1.msra.mxu0 0.0
        %4152 = vmatprep.subr.mxu0 0.0
        %4153 = vmatpush1.msra.mxu0 0.0
        %4154 = vmatprep.subr.mxu0 0.0
        %4155 = vmatpush1.msra.mxu0 0.0
        %4156 = vmatprep.subr.mxu0 0.0
        %4157 = vmatpush1.msra.mxu0 0.0
        %4158 = vmatprep.subr.mxu0 0.0
        %4159 = vmatpush1.msra.mxu0 0.0
        %4160 = vmatprep.subr.mxu0 0.0
        %4161 = vmatpush1.msra.mxu0 0.0
        %4162 = vmatprep.subr.mxu0 0.0
        %4163 = vmatpush1.msra.mxu0 %v3963
        %4164 = vmatprep.subr.mxu0 0.0
        %4165 = vmatpush1.msra.mxu0 %v3962
        %4166 = vmatprep.subr.mxu0 0.0
        %4167 = vmatpush1.msra.mxu0 %v3961
        %4168 = vmatprep.subr.mxu0 0.0
        %4169 = vmatpush1.msra.mxu0 %v3960
        %4170 = vmatprep.subr.mxu0 0.0
        %4171 = vmatpush2.msra.mxu0 0.0
        %4172 = vmatprep.subr.mxu0 0.0
        %4173 = vmatpush2.msra.mxu0 0.0
        %4174 = vmatprep.subr.mxu0 0.0
        %4175 = vmatpush2.msra.mxu0 0.0
        %4176 = vmatprep.subr.mxu0 0.0
        %4177 = vmatpush2.msra.mxu0 0.0
        %4178 = vmatprep.subr.mxu0 0.0
        %4179 = vmatpush2.msra.mxu0 0.0
        %4180 = vmatprep.subr.mxu0 0.0
        %4181 = vmatpush2.msra.mxu0 0.0
        %4182 = vmatprep.subr.mxu0 0.0
        %4183 = vmatpush2.msra.mxu0 0.0
        %4184 = vmatprep.subr.mxu0 0.0
        %4185 = vmatpush2.msra.mxu0 0.0
        %4186 = vmatprep.subr.mxu0 0.0
        %4187 = vmatpush2.msra.mxu0 0.0
        %4188 = vmatprep.subr.mxu0 0.0
        %4189 = vmatpush2.msra.mxu0 0.0
        %4190 = vmatprep.subr.mxu0 0.0
        %4191 = vmatpush2.msra.mxu0 0.0
        %4192 = vmatprep.subr.mxu0 0.0
        %4193 = vmatpush2.msra.mxu0 0.0
        %4194 = vmatprep.subr.mxu0 0.0
        %4195 = vmatpush2.msra.mxu0 0.0
        %4196 = vmatprep.subr.mxu0 0.0
        %4197 = vmatpush2.msra.mxu0 0.0
        %4198 = vmatprep.subr.mxu0 0.0
        %4199 = vmatpush2.msra.mxu0 0.0
        %4200 = vmatprep.subr.mxu0 0.0
        %4201 = vmatpush2.msra.mxu0 0.0
        %4202 = vmatprep.mubr.f32.mxu0 0.0
        %4203 = vmatmul.mubr.f32.gmra.mxu0 %v4136
        %v4204 = vpop.f32.mrf.mxu0
        %v4205 = vadd.f32 0.0, %v4204
        %v4206 = vpop.f32.mrf.mxu0
        %4207 = vdwg.mxu0
        %v4208 = vmul.f32 %v3865, %v1609
        %v4209 = vmul.f32 %v3865, %v1610
        %v4210 = vmul.f32 %v3865, %v1611
        %v4211 = vmul.f32 %v3865, %v1612
        %v4212 = vmul.f32 %v3953, %v1609
        %v4213 = vmul.f32 %v3953, %v1610
        %v4214 = vmul.f32 %v3953, %v1611
        %v4215 = vmul.f32 %v3953, %v1612
        %v4217 = vsel %vm1636, %v3777, 0
        %v4220 = vsel %vm1636, %v4208, 0
        %v4223 = vsel %vm1636, %v4209, 0
        %v4226 = vsel %vm1636, %v4210, 0
        %v4229 = vsel %vm1636, %v4211, 0
        %4231 = vmatprep.subr.mxu0 0.0
        %4232 = vmatpush1.xpose.msra.mxu0 0.0
        %4233 = vmatprep.subr.mxu0 0.0
        %4234 = vmatpush1.xpose.msra.mxu0 0.0
        %4235 = vmatprep.subr.mxu0 0.0
        %4236 = vmatpush1.xpose.msra.mxu0 0.0
        %4237 = vmatprep.subr.mxu0 0.0
        %4238 = vmatpush1.xpose.msra.mxu0 0.0
        %4239 = vmatprep.subr.mxu0 0.0
        %4240 = vmatpush1.xpose.msra.mxu0 0.0
        %4241 = vmatprep.subr.mxu0 0.0
        %4242 = vmatpush1.xpose.msra.mxu0 0.0
        %4243 = vmatprep.subr.mxu0 0.0
        %4244 = vmatpush1.xpose.msra.mxu0 0.0
        %4245 = vmatprep.subr.mxu0 0.0
        %4246 = vmatpush1.xpose.msra.mxu0 0.0
        %4247 = vmatprep.subr.mxu0 0.0
        %4248 = vmatpush1.xpose.msra.mxu0 0.0
        %4249 = vmatprep.subr.mxu0 0.0
        %4250 = vmatpush1.xpose.msra.mxu0 0.0
        %4251 = vmatprep.subr.mxu0 0.0
        %4252 = vmatpush1.xpose.msra.mxu0 0.0
        %4253 = vmatprep.subr.mxu0 0.0
        %4254 = vmatpush1.xpose.msra.mxu0 0.0
        %4255 = vmatprep.subr.mxu0 0.0
        %4256 = vmatpush1.xpose.msra.mxu0 %v4229
        %4257 = vmatprep.subr.mxu0 0.0
        %4258 = vmatpush1.xpose.msra.mxu0 %v4226
        %4259 = vmatprep.subr.mxu0 0.0
        %4260 = vmatpush1.xpose.msra.mxu0 %v4223
        %4261 = vmatprep.subr.mxu0 0.0
        %4262 = vmatpush1.xpose.msra.mxu0 %v4220
        %4263 = vmatprep.subr.mxu0 0.0
        %4264 = vmatpush2.xpose.msra.mxu0 0.0
        %4265 = vmatprep.subr.mxu0 0.0
        %4266 = vmatpush2.xpose.msra.mxu0 0.0
        %4267 = vmatprep.subr.mxu0 0.0
        %4268 = vmatpush2.xpose.msra.mxu0 0.0
        %4269 = vmatprep.subr.mxu0 0.0
        %4270 = vmatpush2.xpose.msra.mxu0 0.0
        %4271 = vmatprep.subr.mxu0 0.0
        %4272 = vmatpush2.xpose.msra.mxu0 0.0
        %4273 = vmatprep.subr.mxu0 0.0
        %4274 = vmatpush2.xpose.msra.mxu0 0.0
        %4275 = vmatprep.subr.mxu0 0.0
        %4276 = vmatpush2.xpose.msra.mxu0 0.0
        %4277 = vmatprep.subr.mxu0 0.0
        %4278 = vmatpush2.xpose.msra.mxu0 0.0
        %4279 = vmatprep.subr.mxu0 0.0
        %4280 = vmatpush2.xpose.msra.mxu0 0.0
        %4281 = vmatprep.subr.mxu0 0.0
        %4282 = vmatpush2.xpose.msra.mxu0 0.0
        %4283 = vmatprep.subr.mxu0 0.0
        %4284 = vmatpush2.xpose.msra.mxu0 0.0
        %4285 = vmatprep.subr.mxu0 0.0
        %4286 = vmatpush2.xpose.msra.mxu0 0.0
        %4287 = vmatprep.subr.mxu0 0.0
        %4288 = vmatpush2.xpose.msra.mxu0 0.0
        %4289 = vmatprep.subr.mxu0 0.0
        %4290 = vmatpush2.xpose.msra.mxu0 0.0
        %4291 = vmatprep.subr.mxu0 0.0
        %4292 = vmatpush2.xpose.msra.mxu0 0.0
        %4293 = vmatprep.subr.mxu0 0.0
        %4294 = vmatpush2.xpose.msra.mxu0 0.0
        %4295 = vmatprep.mubr.f32.mxu0 0.0
        %4296 = vmatmul.mubr.f32.gmra.mxu0 %v4217
        %v4297 = vpop.f32.mrf.mxu0
        %v4298 = vadd.f32 0.0, %v4297
        %v4299 = vpop.f32.mrf.mxu0
        %4300 = vdwg.mxu0
        %v4301 = vmul.f32 %v4298, 0.35355338
        %v4302 = vadd.f32 %v4301, %v1608
        %v4303 = vsel %vm1636, %v4302, -inf
        %4304 = vmax.xlane.f32.xlu0 %v4303
        %v4305 = vpop.xlane.xlu0 %4304
        %v4306 = vsub.f32 %v4302, %v4305
        %v4307 = vmul.f32 %v4306, 1.442695
        %v4308 = vpow.pop %v4307
        %v4310 = vsel %vm1636, %v4308, 0
        %4312 = vmatprep.subr.mxu0 0.0
        %4313 = vmatpush1.msra.mxu0 0.0
        %4314 = vmatprep.subr.mxu0 0.0
        %4315 = vmatpush1.msra.mxu0 0.0
        %4316 = vmatprep.subr.mxu0 0.0
        %4317 = vmatpush1.msra.mxu0 0.0
        %4318 = vmatprep.subr.mxu0 0.0
        %4319 = vmatpush1.msra.mxu0 0.0
        %4320 = vmatprep.subr.mxu0 0.0
        %4321 = vmatpush1.msra.mxu0 0.0
        %4322 = vmatprep.subr.mxu0 0.0
        %4323 = vmatpush1.msra.mxu0 0.0
        %4324 = vmatprep.subr.mxu0 0.0
        %4325 = vmatpush1.msra.mxu0 0.0
        %4326 = vmatprep.subr.mxu0 0.0
        %4327 = vmatpush1.msra.mxu0 0.0
        %4328 = vmatprep.subr.mxu0 0.0
        %4329 = vmatpush1.msra.mxu0 0.0
        %4330 = vmatprep.subr.mxu0 0.0
        %4331 = vmatpush1.msra.mxu0 0.0
        %4332 = vmatprep.subr.mxu0 0.0
        %4333 = vmatpush1.msra.mxu0 0.0
        %4334 = vmatprep.subr.mxu0 0.0
        %4335 = vmatpush1.msra.mxu0 0.0
        %4336 = vmatprep.subr.mxu0 0.0
        %4337 = vmatpush1.msra.mxu0 %v1616
        %4338 = vmatprep.subr.mxu0 0.0
        %4339 = vmatpush1.msra.mxu0 %v1615
        %4340 = vmatprep.subr.mxu0 0.0
        %4341 = vmatpush1.msra.mxu0 %v1614
        %4342 = vmatprep.subr.mxu0 0.0
        %4343 = vmatpush1.msra.mxu0 %v1613
        %4344 = vmatprep.subr.mxu0 0.0
        %4345 = vmatpush2.msra.mxu0 0.0
        %4346 = vmatprep.subr.mxu0 0.0
        %4347 = vmatpush2.msra.mxu0 0.0
        %4348 = vmatprep.subr.mxu0 0.0
        %4349 = vmatpush2.msra.mxu0 0.0
        %4350 = vmatprep.subr.mxu0 0.0
        %4351 = vmatpush2.msra.mxu0 0.0
        %4352 = vmatprep.subr.mxu0 0.0
        %4353 = vmatpush2.msra.mxu0 0.0
        %4354 = vmatprep.subr.mxu0 0.0
        %4355 = vmatpush2.msra.mxu0 0.0
        %4356 = vmatprep.subr.mxu0 0.0
        %4357 = vmatpush2.msra.mxu0 0.0
        %4358 = vmatprep.subr.mxu0 0.0
        %4359 = vmatpush2.msra.mxu0 0.0
        %4360 = vmatprep.subr.mxu0 0.0
        %4361 = vmatpush2.msra.mxu0 0.0
        %4362 = vmatprep.subr.mxu0 0.0
        %4363 = vmatpush2.msra.mxu0 0.0
        %4364 = vmatprep.subr.mxu0 0.0
        %4365 = vmatpush2.msra.mxu0 0.0
        %4366 = vmatprep.subr.mxu0 0.0
        %4367 = vmatpush2.msra.mxu0 0.0
        %4368 = vmatprep.subr.mxu0 0.0
        %4369 = vmatpush2.msra.mxu0 0.0
        %4370 = vmatprep.subr.mxu0 0.0
        %4371 = vmatpush2.msra.mxu0 0.0
        %4372 = vmatprep.subr.mxu0 0.0
        %4373 = vmatpush2.msra.mxu0 0.0
        %4374 = vmatprep.subr.mxu0 0.0
        %4375 = vmatpush2.msra.mxu0 0.0
        %4376 = vmatprep.mubr.f32.mxu0 0.0
        %4377 = vmatmul.mubr.f32.gmra.mxu0 %v4310
        %v4378 = vpop.f32.mrf.mxu0
        %v4379 = vadd.f32 0.0, %v4378
        %v4380 = vpop.f32.mrf.mxu0
        %4381 = vdwg.mxu0
        %v4382 = vrcp.pop %v4379
        %v4383 = vmul.f32 %v4379, %v4382
        %v4384 = vsub.f32 2.0, %v4383
        %v4385 = vmul.f32 %v4382, %v4384
        %v4386 = vmul.f32 %v4308, %v4385
        %v4388 = vsel %vm1636, %v4386, 0
        %4390 = vmatprep.subr.mxu0 0.0
        %4391 = vmatpush1.msra.mxu0 0.0
        %4392 = vmatprep.subr.mxu0 0.0
        %4393 = vmatpush1.msra.mxu0 0.0
        %4394 = vmatprep.subr.mxu0 0.0
        %4395 = vmatpush1.msra.mxu0 0.0
        %4396 = vmatprep.subr.mxu0 0.0
        %4397 = vmatpush1.msra.mxu0 0.0
        %4398 = vmatprep.subr.mxu0 0.0
        %4399 = vmatpush1.msra.mxu0 0.0
        %4400 = vmatprep.subr.mxu0 0.0
        %4401 = vmatpush1.msra.mxu0 0.0
        %4402 = vmatprep.subr.mxu0 0.0
        %4403 = vmatpush1.msra.mxu0 0.0
        %4404 = vmatprep.subr.mxu0 0.0
        %4405 = vmatpush1.msra.mxu0 0.0
        %4406 = vmatprep.subr.mxu0 0.0
        %4407 = vmatpush1.msra.mxu0 0.0
        %4408 = vmatprep.subr.mxu0 0.0
        %4409 = vmatpush1.msra.mxu0 0.0
        %4410 = vmatprep.subr.mxu0 0.0
        %4411 = vmatpush1.msra.mxu0 0.0
        %4412 = vmatprep.subr.mxu0 0.0
        %4413 = vmatpush1.msra.mxu0 0.0
        %4414 = vmatprep.subr.mxu0 0.0
        %4415 = vmatpush1.msra.mxu0 %v4215
        %4416 = vmatprep.subr.mxu0 0.0
        %4417 = vmatpush1.msra.mxu0 %v4214
        %4418 = vmatprep.subr.mxu0 0.0
        %4419 = vmatpush1.msra.mxu0 %v4213
        %4420 = vmatprep.subr.mxu0 0.0
        %4421 = vmatpush1.msra.mxu0 %v4212
        %4422 = vmatprep.subr.mxu0 0.0
        %4423 = vmatpush2.msra.mxu0 0.0
        %4424 = vmatprep.subr.mxu0 0.0
        %4425 = vmatpush2.msra.mxu0 0.0
        %4426 = vmatprep.subr.mxu0 0.0
        %4427 = vmatpush2.msra.mxu0 0.0
        %4428 = vmatprep.subr.mxu0 0.0
        %4429 = vmatpush2.msra.mxu0 0.0
        %4430 = vmatprep.subr.mxu0 0.0
        %4431 = vmatpush2.msra.mxu0 0.0
        %4432 = vmatprep.subr.mxu0 0.0
        %4433 = vmatpush2.msra.mxu0 0.0
        %4434 = vmatprep.subr.mxu0 0.0
        %4435 = vmatpush2.msra.mxu0 0.0
        %4436 = vmatprep.subr.mxu0 0.0
        %4437 = vmatpush2.msra.mxu0 0.0
        %4438 = vmatprep.subr.mxu0 0.0
        %4439 = vmatpush2.msra.mxu0 0.0
        %4440 = vmatprep.subr.mxu0 0.0
        %4441 = vmatpush2.msra.mxu0 0.0
        %4442 = vmatprep.subr.mxu0 0.0
        %4443 = vmatpush2.msra.mxu0 0.0
        %4444 = vmatprep.subr.mxu0 0.0
        %4445 = vmatpush2.msra.mxu0 0.0
        %4446 = vmatprep.subr.mxu0 0.0
        %4447 = vmatpush2.msra.mxu0 0.0
        %4448 = vmatprep.subr.mxu0 0.0
        %4449 = vmatpush2.msra.mxu0 0.0
        %4450 = vmatprep.subr.mxu0 0.0
        %4451 = vmatpush2.msra.mxu0 0.0
        %4452 = vmatprep.subr.mxu0 0.0
        %4453 = vmatpush2.msra.mxu0 0.0
        %4454 = vmatprep.mubr.f32.mxu0 0.0
        %4455 = vmatmul.mubr.f32.gmra.mxu0 %v4388
        %v4456 = vpop.f32.mrf.mxu0
        %v4457 = vadd.f32 0.0, %v4456
        %v4458 = vpop.f32.mrf.mxu0
        %4459 = vdwg.mxu0
        %s4460 = scalar_lea.vmem [#allocation23], 32
        %v4461 = vld [vmem:[%s4460] sm:$0xff]
        %v4462 = vld [vmem:[%s4460 + $0x8] sm:$0xff]
        %v4463 = vld [vmem:[%s4460 + $0x10] sm:$0xff]
        %v4464 = vld [vmem:[%s4460 + $0x18] sm:$0xff]
        %v4466 = vsel %vm1636, %v4205, 0
        %v4469 = vsel %vm1636, %v4457, 0
        %4471 = vmatprep.subr.mxu0 0.0
        %4472 = vmatpush1.msra.mxu0 0.0
        %4473 = vmatprep.subr.mxu0 0.0
        %4474 = vmatpush1.msra.mxu0 0.0
        %4475 = vmatprep.subr.mxu0 0.0
        %4476 = vmatpush1.msra.mxu0 0.0
        %4477 = vmatprep.subr.mxu0 0.0
        %4478 = vmatpush1.msra.mxu0 0.0
        %4479 = vmatprep.subr.mxu0 0.0
        %4480 = vmatpush1.msra.mxu0 0.0
        %4481 = vmatprep.subr.mxu0 0.0
        %4482 = vmatpush1.msra.mxu0 0.0
        %4483 = vmatprep.subr.mxu0 0.0
        %4484 = vmatpush1.msra.mxu0 0.0
        %4485 = vmatprep.subr.mxu0 0.0
        %4486 = vmatpush1.msra.mxu0 0.0
        %4487 = vmatprep.subr.mxu0 0.0
        %4488 = vmatpush1.msra.mxu0 0.0
        %4489 = vmatprep.subr.mxu0 0.0
        %4490 = vmatpush1.msra.mxu0 0.0
        %4491 = vmatprep.subr.mxu0 0.0
        %4492 = vmatpush1.msra.mxu0 0.0
        %4493 = vmatprep.subr.mxu0 0.0
        %4494 = vmatpush1.msra.mxu0 0.0
        %4495 = vmatprep.subr.mxu0 0.0
        %4496 = vmatpush1.msra.mxu0 %v4464
        %4497 = vmatprep.subr.mxu0 0.0
        %4498 = vmatpush1.msra.mxu0 %v4463
        %4499 = vmatprep.subr.mxu0 0.0
        %4500 = vmatpush1.msra.mxu0 %v4462
        %4501 = vmatprep.subr.mxu0 0.0
        %4502 = vmatpush1.msra.mxu0 %v4461
        %4503 = vmatprep.subr.mxu0 0.0
        %4504 = vmatpush2.msra.mxu0 0.0
        %4505 = vmatprep.subr.mxu0 0.0
        %4506 = vmatpush2.msra.mxu0 0.0
        %4507 = vmatprep.subr.mxu0 0.0
        %4508 = vmatpush2.msra.mxu0 0.0
        %4509 = vmatprep.subr.mxu0 0.0
        %4510 = vmatpush2.msra.mxu0 0.0
        %4511 = vmatprep.subr.mxu0 0.0
        %4512 = vmatpush2.msra.mxu0 0.0
        %4513 = vmatprep.subr.mxu0 0.0
        %4514 = vmatpush2.msra.mxu0 0.0
        %4515 = vmatprep.subr.mxu0 0.0
        %4516 = vmatpush2.msra.mxu0 0.0
        %4517 = vmatprep.subr.mxu0 0.0
        %4518 = vmatpush2.msra.mxu0 0.0
        %4519 = vmatprep.subr.mxu0 0.0
        %4520 = vmatpush2.msra.mxu0 0.0
        %4521 = vmatprep.subr.mxu0 0.0
        %4522 = vmatpush2.msra.mxu0 0.0
        %4523 = vmatprep.subr.mxu0 0.0
        %4524 = vmatpush2.msra.mxu0 0.0
        %4525 = vmatprep.subr.mxu0 0.0
        %4526 = vmatpush2.msra.mxu0 0.0
        %4527 = vmatprep.subr.mxu0 0.0
        %4528 = vmatpush2.msra.mxu0 0.0
        %4529 = vmatprep.subr.mxu0 0.0
        %4530 = vmatpush2.msra.mxu0 0.0
        %4531 = vmatprep.subr.mxu0 0.0
        %4532 = vmatpush2.msra.mxu0 0.0
        %4533 = vmatprep.subr.mxu0 0.0
        %4534 = vmatpush2.msra.mxu0 0.0
        %4535 = vmatprep.mubr.f32.mxu0 0.0
        %4536 = vmatmul.mubr.f32.gmra.mxu0 %v4466
        %v4537 = vpop.f32.mrf.mxu0
        %v4538 = vadd.f32 0.0, %v4537
        %v4539 = vpop.f32.mrf.mxu0
        %4540 = vmatprep.mubr.f32.mxu0 0.0
        %4541 = vmatmul.mubr.f32.gmra.mxu0 %v4469
        %v4542 = vpop.f32.mrf.mxu0
        %v4543 = vadd.f32 0.0, %v4542
        %v4544 = vpop.f32.mrf.mxu0
        %4545 = vdwg.mxu0
        %v4546 = vadd.f32 %v3684, %v4538
        %v4547 = vadd.f32 %v3685, %v4543
        %s4548 = scalar_lea.vmem [#allocation25], 1
        %v4549 = vld [vmem:[%s4548] sm:$0x1]
        %v4551 = vlaneseq
        %v4552 = vshrl.u32 %v4551, 7
        %v4553 = vsub.s32 0, %v4552
        %v4554 = vrot.slane %v4549, %v4553
        %v4556 = vadd.f32 %v4546, %v4554
        %v4557 = vadd.f32 %v4547, %v4554
        %s4558 = scalar_lea.vmem %s61, 1
        %v4559 = vld [vmem:[%s4558] sm:$0x1]
        %s4560 = scalar_lea.vmem %s63, 1
        %v4561 = vld [vmem:[%s4560] sm:$0x1]
        %v4562 = vsel %vm1636, %v4556, 0.0
        %4563 = vadd.xlane.f32.xlu0 %v4562
        %v4564 = vpop.xlane.xlu0 %4563
        %v4565 = vsel %vm1636, %v4557, 0.0
        %4566 = vadd.xlane.f32.xlu0 %v4565
        %v4567 = vpop.xlane.xlu0 %4566
        %v4568 = vmul.f32 %v4564, %v2498
        %v4569 = vmul.f32 %v4567, %v2498
        %v4570 = vsub.f32 %v4556, %v4568
        %v4571 = vsub.f32 %v4557, %v4569
        %v4572 = vmul.f32 %v4570, %v4570
        %v4573 = vmul.f32 %v4571, %v4571
        %v4574 = vsel %vm1636, %v4572, 0.0
        %4575 = vadd.xlane.f32.xlu0 %v4574
        %v4576 = vpop.xlane.xlu0 %4575
        %v4577 = vsel %vm1636, %v4573, 0.0
        %4578 = vadd.xlane.f32.xlu0 %v4577
        %v4579 = vpop.xlane.xlu0 %4578
        %v4580 = vmul.f32 %v4576, %v2498
        %v4581 = vmul.f32 %v4579, %v2498
        %v4582 = vadd.f32 %v4580, 1e-05
        %v4583 = vadd.f32 %v4581, 1e-05
        %v4584 = vrsqrt.pop %v4582
        %v4585 = vrsqrt.pop %v4583
        %v4586 = vmul.f32 %v4570, %v4584
        %v4587 = vmul.f32 %v4571, %v4585
        %v4589 = vlaneseq
        %v4590 = vshrl.u32 %v4589, 7
        %v4591 = vsub.s32 0, %v4590
        %v4592 = vrot.slane %v4559, %v4591
        %v4594 = vmul.f32 %v4586, %v4592
        %v4595 = vmul.f32 %v4587, %v4592
        %v4597 = vlaneseq
        %v4598 = vshrl.u32 %v4597, 7
        %v4599 = vsub.s32 0, %v4598
        %v4600 = vrot.slane %v4561, %v4599
        %v4602 = vadd.f32 %v4594, %v4600
        %v4603 = vadd.f32 %v4595, %v4600
        %s4604 = scalar_lea.vmem [#allocation26], 32
        %v4605 = vld [vmem:[%s4604] sm:$0xff]
        %v4606 = vld [vmem:[%s4604 + $0x8] sm:$0xff]
        %v4607 = vld [vmem:[%s4604 + $0x10] sm:$0xff]
        %v4608 = vld [vmem:[%s4604 + $0x18] sm:$0xff]
        %s4609 = scalar_lea.vmem [#allocation28], 1
        %v4610 = vld [vmem:[%s4609] sm:$0x1]
        %v4612 = vlaneseq
        %v4613 = vshrl.u32 %v4612, 7
        %v4614 = vsub.s32 0, %v4613
        %v4615 = vrot.slane %v4610, %v4614
        %v4618 = vsel %vm1636, %v4602, 0
        %v4621 = vsel %vm1636, %v4603, 0
        %4623 = vmatprep.subr.mxu0 0.0
        %4624 = vmatpush1.msra.mxu0 0.0
        %4625 = vmatprep.subr.mxu0 0.0
        %4626 = vmatpush1.msra.mxu0 0.0
        %4627 = vmatprep.subr.mxu0 0.0
        %4628 = vmatpush1.msra.mxu0 0.0
        %4629 = vmatprep.subr.mxu0 0.0
        %4630 = vmatpush1.msra.mxu0 0.0
        %4631 = vmatprep.subr.mxu0 0.0
        %4632 = vmatpush1.msra.mxu0 0.0
        %4633 = vmatprep.subr.mxu0 0.0
        %4634 = vmatpush1.msra.mxu0 0.0
        %4635 = vmatprep.subr.mxu0 0.0
        %4636 = vmatpush1.msra.mxu0 0.0
        %4637 = vmatprep.subr.mxu0 0.0
        %4638 = vmatpush1.msra.mxu0 0.0
        %4639 = vmatprep.subr.mxu0 0.0
        %4640 = vmatpush1.msra.mxu0 0.0
        %4641 = vmatprep.subr.mxu0 0.0
        %4642 = vmatpush1.msra.mxu0 0.0
        %4643 = vmatprep.subr.mxu0 0.0
        %4644 = vmatpush1.msra.mxu0 0.0
        %4645 = vmatprep.subr.mxu0 0.0
        %4646 = vmatpush1.msra.mxu0 0.0
        %4647 = vmatprep.subr.mxu0 0.0
        %4648 = vmatpush1.msra.mxu0 %v4608
        %4649 = vmatprep.subr.mxu0 0.0
        %4650 = vmatpush1.msra.mxu0 %v4607
        %4651 = vmatprep.subr.mxu0 0.0
        %4652 = vmatpush1.msra.mxu0 %v4606
        %4653 = vmatprep.subr.mxu0 0.0
        %4654 = vmatpush1.msra.mxu0 %v4605
        %4655 = vmatprep.subr.mxu0 0.0
        %4656 = vmatpush2.msra.mxu0 0.0
        %4657 = vmatprep.subr.mxu0 0.0
        %4658 = vmatpush2.msra.mxu0 0.0
        %4659 = vmatprep.subr.mxu0 0.0
        %4660 = vmatpush2.msra.mxu0 0.0
        %4661 = vmatprep.subr.mxu0 0.0
        %4662 = vmatpush2.msra.mxu0 0.0
        %4663 = vmatprep.subr.mxu0 0.0
        %4664 = vmatpush2.msra.mxu0 0.0
        %4665 = vmatprep.subr.mxu0 0.0
        %4666 = vmatpush2.msra.mxu0 0.0
        %4667 = vmatprep.subr.mxu0 0.0
        %4668 = vmatpush2.msra.mxu0 0.0
        %4669 = vmatprep.subr.mxu0 0.0
        %4670 = vmatpush2.msra.mxu0 0.0
        %4671 = vmatprep.subr.mxu0 0.0
        %4672 = vmatpush2.msra.mxu0 0.0
        %4673 = vmatprep.subr.mxu0 0.0
        %4674 = vmatpush2.msra.mxu0 0.0
        %4675 = vmatprep.subr.mxu0 0.0
        %4676 = vmatpush2.msra.mxu0 0.0
        %4677 = vmatprep.subr.mxu0 0.0
        %4678 = vmatpush2.msra.mxu0 0.0
        %4679 = vmatprep.subr.mxu0 0.0
        %4680 = vmatpush2.msra.mxu0 0.0
        %4681 = vmatprep.subr.mxu0 0.0
        %4682 = vmatpush2.msra.mxu0 0.0
        %4683 = vmatprep.subr.mxu0 0.0
        %4684 = vmatpush2.msra.mxu0 0.0
        %4685 = vmatprep.subr.mxu0 0.0
        %4686 = vmatpush2.msra.mxu0 0.0
        %4687 = vmatprep.mubr.f32.mxu0 0.0
        %4688 = vmatmul.mubr.f32.gmra.mxu0 %v4618
        %v4689 = vpop.f32.mrf.mxu0
        %v4690 = vadd.f32 %v4615, %v4689
        %v4691 = vpop.f32.mrf.mxu0
        %4692 = vmatprep.mubr.f32.mxu0 0.0
        %4693 = vmatmul.mubr.f32.gmra.mxu0 %v4621
        %v4694 = vpop.f32.mrf.mxu0
        %v4695 = vadd.f32 %v4615, %v4694
        %v4696 = vpop.f32.mrf.mxu0
        %4697 = vdwg.mxu0
        %s4698 = scalar_lea.vmem [#allocation29], 32
        %v4699 = vld [vmem:[%s4698] sm:$0xff]
        %v4700 = vld [vmem:[%s4698 + $0x8] sm:$0xff]
        %v4701 = vld [vmem:[%s4698 + $0x10] sm:$0xff]
        %v4702 = vld [vmem:[%s4698 + $0x18] sm:$0xff]
        %s4703 = scalar_lea.vmem %s43, 1
        %v4704 = vld [vmem:[%s4703] sm:$0x1]
        %v4706 = vlaneseq
        %v4707 = vshrl.u32 %v4706, 7
        %v4708 = vsub.s32 0, %v4707
        %v4709 = vrot.slane %v4704, %v4708
        %4711 = vmatprep.subr.mxu0 0.0
        %4712 = vmatpush1.msra.mxu0 0.0
        %4713 = vmatprep.subr.mxu0 0.0
        %4714 = vmatpush1.msra.mxu0 0.0
        %4715 = vmatprep.subr.mxu0 0.0
        %4716 = vmatpush1.msra.mxu0 0.0
        %4717 = vmatprep.subr.mxu0 0.0
        %4718 = vmatpush1.msra.mxu0 0.0
        %4719 = vmatprep.subr.mxu0 0.0
        %4720 = vmatpush1.msra.mxu0 0.0
        %4721 = vmatprep.subr.mxu0 0.0
        %4722 = vmatpush1.msra.mxu0 0.0
        %4723 = vmatprep.subr.mxu0 0.0
        %4724 = vmatpush1.msra.mxu0 0.0
        %4725 = vmatprep.subr.mxu0 0.0
        %4726 = vmatpush1.msra.mxu0 0.0
        %4727 = vmatprep.subr.mxu0 0.0
        %4728 = vmatpush1.msra.mxu0 0.0
        %4729 = vmatprep.subr.mxu0 0.0
        %4730 = vmatpush1.msra.mxu0 0.0
        %4731 = vmatprep.subr.mxu0 0.0
        %4732 = vmatpush1.msra.mxu0 0.0
        %4733 = vmatprep.subr.mxu0 0.0
        %4734 = vmatpush1.msra.mxu0 0.0
        %4735 = vmatprep.subr.mxu0 0.0
        %4736 = vmatpush1.msra.mxu0 %v4702
        %4737 = vmatprep.subr.mxu0 0.0
        %4738 = vmatpush1.msra.mxu0 %v4701
        %4739 = vmatprep.subr.mxu0 0.0
        %4740 = vmatpush1.msra.mxu0 %v4700
        %4741 = vmatprep.subr.mxu0 0.0
        %4742 = vmatpush1.msra.mxu0 %v4699
        %4743 = vmatprep.subr.mxu0 0.0
        %4744 = vmatpush2.msra.mxu0 0.0
        %4745 = vmatprep.subr.mxu0 0.0
        %4746 = vmatpush2.msra.mxu0 0.0
        %4747 = vmatprep.subr.mxu0 0.0
        %4748 = vmatpush2.msra.mxu0 0.0
        %4749 = vmatprep.subr.mxu0 0.0
        %4750 = vmatpush2.msra.mxu0 0.0
        %4751 = vmatprep.subr.mxu0 0.0
        %4752 = vmatpush2.msra.mxu0 0.0
        %4753 = vmatprep.subr.mxu0 0.0
        %4754 = vmatpush2.msra.mxu0 0.0
        %4755 = vmatprep.subr.mxu0 0.0
        %4756 = vmatpush2.msra.mxu0 0.0
        %4757 = vmatprep.subr.mxu0 0.0
        %4758 = vmatpush2.msra.mxu0 0.0
        %4759 = vmatprep.subr.mxu0 0.0
        %4760 = vmatpush2.msra.mxu0 0.0
        %4761 = vmatprep.subr.mxu0 0.0
        %4762 = vmatpush2.msra.mxu0 0.0
        %4763 = vmatprep.subr.mxu0 0.0
        %4764 = vmatpush2.msra.mxu0 0.0
        %4765 = vmatprep.subr.mxu0 0.0
        %4766 = vmatpush2.msra.mxu0 0.0
        %4767 = vmatprep.subr.mxu0 0.0
        %4768 = vmatpush2.msra.mxu0 0.0
        %4769 = vmatprep.subr.mxu0 0.0
        %4770 = vmatpush2.msra.mxu0 0.0
        %4771 = vmatprep.subr.mxu0 0.0
        %4772 = vmatpush2.msra.mxu0 0.0
        %4773 = vmatprep.subr.mxu0 0.0
        %4774 = vmatpush2.msra.mxu0 0.0
        %4775 = vmatprep.mubr.f32.mxu0 0.0
        %4776 = vmatmul.mubr.f32.gmra.mxu0 %v2639
        %v4777 = vpop.f32.mrf.mxu0
        %v4778 = vadd.f32 %v4709, %v4777
        %v4779 = vpop.f32.mrf.mxu0
        %4780 = vmatprep.mubr.f32.mxu0 0.0
        %4781 = vmatmul.mubr.f32.gmra.mxu0 %v2642
        %v4782 = vpop.f32.mrf.mxu0
        %v4783 = vadd.f32 %v4709, %v4782
        %v4784 = vpop.f32.mrf.mxu0
        %4785 = vdwg.mxu0
        %s4786 = scalar_lea.vmem [#allocation31], 32
        %v4787 = vld [vmem:[%s4786] sm:$0xff]
        %v4788 = vld [vmem:[%s4786 + $0x8] sm:$0xff]
        %v4789 = vld [vmem:[%s4786 + $0x10] sm:$0xff]
        %v4790 = vld [vmem:[%s4786 + $0x18] sm:$0xff]
        %s4791 = scalar_lea.vmem %s47, 1
        %v4792 = vld [vmem:[%s4791] sm:$0x1]
        %v4794 = vlaneseq
        %v4795 = vshrl.u32 %v4794, 7
        %v4796 = vsub.s32 0, %v4795
        %v4797 = vrot.slane %v4792, %v4796
        %4799 = vmatprep.subr.mxu0 0.0
        %4800 = vmatpush1.msra.mxu0 0.0
        %4801 = vmatprep.subr.mxu0 0.0
        %4802 = vmatpush1.msra.mxu0 0.0
        %4803 = vmatprep.subr.mxu0 0.0
        %4804 = vmatpush1.msra.mxu0 0.0
        %4805 = vmatprep.subr.mxu0 0.0
        %4806 = vmatpush1.msra.mxu0 0.0
        %4807 = vmatprep.subr.mxu0 0.0
        %4808 = vmatpush1.msra.mxu0 0.0
        %4809 = vmatprep.subr.mxu0 0.0
        %4810 = vmatpush1.msra.mxu0 0.0
        %4811 = vmatprep.subr.mxu0 0.0
        %4812 = vmatpush1.msra.mxu0 0.0
        %4813 = vmatprep.subr.mxu0 0.0
        %4814 = vmatpush1.msra.mxu0 0.0
        %4815 = vmatprep.subr.mxu0 0.0
        %4816 = vmatpush1.msra.mxu0 0.0
        %4817 = vmatprep.subr.mxu0 0.0
        %4818 = vmatpush1.msra.mxu0 0.0
        %4819 = vmatprep.subr.mxu0 0.0
        %4820 = vmatpush1.msra.mxu0 0.0
        %4821 = vmatprep.subr.mxu0 0.0
        %4822 = vmatpush1.msra.mxu0 0.0
        %4823 = vmatprep.subr.mxu0 0.0
        %4824 = vmatpush1.msra.mxu0 %v4790
        %4825 = vmatprep.subr.mxu0 0.0
        %4826 = vmatpush1.msra.mxu0 %v4789
        %4827 = vmatprep.subr.mxu0 0.0
        %4828 = vmatpush1.msra.mxu0 %v4788
        %4829 = vmatprep.subr.mxu0 0.0
        %4830 = vmatpush1.msra.mxu0 %v4787
        %4831 = vmatprep.subr.mxu0 0.0
        %4832 = vmatpush2.msra.mxu0 0.0
        %4833 = vmatprep.subr.mxu0 0.0
        %4834 = vmatpush2.msra.mxu0 0.0
        %4835 = vmatprep.subr.mxu0 0.0
        %4836 = vmatpush2.msra.mxu0 0.0
        %4837 = vmatprep.subr.mxu0 0.0
        %4838 = vmatpush2.msra.mxu0 0.0
        %4839 = vmatprep.subr.mxu0 0.0
        %4840 = vmatpush2.msra.mxu0 0.0
        %4841 = vmatprep.subr.mxu0 0.0
        %4842 = vmatpush2.msra.mxu0 0.0
        %4843 = vmatprep.subr.mxu0 0.0
        %4844 = vmatpush2.msra.mxu0 0.0
        %4845 = vmatprep.subr.mxu0 0.0
        %4846 = vmatpush2.msra.mxu0 0.0
        %4847 = vmatprep.subr.mxu0 0.0
        %4848 = vmatpush2.msra.mxu0 0.0
        %4849 = vmatprep.subr.mxu0 0.0
        %4850 = vmatpush2.msra.mxu0 0.0
        %4851 = vmatprep.subr.mxu0 0.0
        %4852 = vmatpush2.msra.mxu0 0.0
        %4853 = vmatprep.subr.mxu0 0.0
        %4854 = vmatpush2.msra.mxu0 0.0
        %4855 = vmatprep.subr.mxu0 0.0
        %4856 = vmatpush2.msra.mxu0 0.0
        %4857 = vmatprep.subr.mxu0 0.0
        %4858 = vmatpush2.msra.mxu0 0.0
        %4859 = vmatprep.subr.mxu0 0.0
        %4860 = vmatpush2.msra.mxu0 0.0
        %4861 = vmatprep.subr.mxu0 0.0
        %4862 = vmatpush2.msra.mxu0 0.0
        %4863 = vmatprep.mubr.f32.mxu0 0.0
        %4864 = vmatmul.mubr.f32.gmra.mxu0 %v2639
        %v4865 = vpop.f32.mrf.mxu0
        %v4866 = vadd.f32 %v4797, %v4865
        %v4867 = vpop.f32.mrf.mxu0
        %4868 = vmatprep.mubr.f32.mxu0 0.0
        %4869 = vmatmul.mubr.f32.gmra.mxu0 %v2642
        %v4870 = vpop.f32.mrf.mxu0
        %v4871 = vadd.f32 %v4797, %v4870
        %v4872 = vpop.f32.mrf.mxu0
        %4873 = vdwg.mxu0
        %v4874 = vmul.f32 %v4778, %v1617
        %v4875 = vmul.f32 %v4778, %v1618
        %v4876 = vmul.f32 %v4778, %v1619
        %v4877 = vmul.f32 %v4778, %v1620
        %v4878 = vmul.f32 %v4866, %v1617
        %v4879 = vmul.f32 %v4866, %v1618
        %v4880 = vmul.f32 %v4866, %v1619
        %v4881 = vmul.f32 %v4866, %v1620
        %v4883 = vsel %vm1636, %v4690, 0
        %v4886 = vsel %vm1636, %v4874, 0
        %v4889 = vsel %vm1636, %v4875, 0
        %v4892 = vsel %vm1636, %v4876, 0
        %v4895 = vsel %vm1636, %v4877, 0
        %4897 = vmatprep.subr.mxu0 0.0
        %4898 = vmatpush1.xpose.msra.mxu0 0.0
        %4899 = vmatprep.subr.mxu0 0.0
        %4900 = vmatpush1.xpose.msra.mxu0 0.0
        %4901 = vmatprep.subr.mxu0 0.0
        %4902 = vmatpush1.xpose.msra.mxu0 0.0
        %4903 = vmatprep.subr.mxu0 0.0
        %4904 = vmatpush1.xpose.msra.mxu0 0.0
        %4905 = vmatprep.subr.mxu0 0.0
        %4906 = vmatpush1.xpose.msra.mxu0 0.0
        %4907 = vmatprep.subr.mxu0 0.0
        %4908 = vmatpush1.xpose.msra.mxu0 0.0
        %4909 = vmatprep.subr.mxu0 0.0
        %4910 = vmatpush1.xpose.msra.mxu0 0.0
        %4911 = vmatprep.subr.mxu0 0.0
        %4912 = vmatpush1.xpose.msra.mxu0 0.0
        %4913 = vmatprep.subr.mxu0 0.0
        %4914 = vmatpush1.xpose.msra.mxu0 0.0
        %4915 = vmatprep.subr.mxu0 0.0
        %4916 = vmatpush1.xpose.msra.mxu0 0.0
        %4917 = vmatprep.subr.mxu0 0.0
        %4918 = vmatpush1.xpose.msra.mxu0 0.0
        %4919 = vmatprep.subr.mxu0 0.0
        %4920 = vmatpush1.xpose.msra.mxu0 0.0
        %4921 = vmatprep.subr.mxu0 0.0
        %4922 = vmatpush1.xpose.msra.mxu0 %v4895
        %4923 = vmatprep.subr.mxu0 0.0
        %4924 = vmatpush1.xpose.msra.mxu0 %v4892
        %4925 = vmatprep.subr.mxu0 0.0
        %4926 = vmatpush1.xpose.msra.mxu0 %v4889
        %4927 = vmatprep.subr.mxu0 0.0
        %4928 = vmatpush1.xpose.msra.mxu0 %v4886
        %4929 = vmatprep.subr.mxu0 0.0
        %4930 = vmatpush2.xpose.msra.mxu0 0.0
        %4931 = vmatprep.subr.mxu0 0.0
        %4932 = vmatpush2.xpose.msra.mxu0 0.0
        %4933 = vmatprep.subr.mxu0 0.0
        %4934 = vmatpush2.xpose.msra.mxu0 0.0
        %4935 = vmatprep.subr.mxu0 0.0
        %4936 = vmatpush2.xpose.msra.mxu0 0.0
        %4937 = vmatprep.subr.mxu0 0.0
        %4938 = vmatpush2.xpose.msra.mxu0 0.0
        %4939 = vmatprep.subr.mxu0 0.0
        %4940 = vmatpush2.xpose.msra.mxu0 0.0
        %4941 = vmatprep.subr.mxu0 0.0
        %4942 = vmatpush2.xpose.msra.mxu0 0.0
        %4943 = vmatprep.subr.mxu0 0.0
        %4944 = vmatpush2.xpose.msra.mxu0 0.0
        %4945 = vmatprep.subr.mxu0 0.0
        %4946 = vmatpush2.xpose.msra.mxu0 0.0
        %4947 = vmatprep.subr.mxu0 0.0
        %4948 = vmatpush2.xpose.msra.mxu0 0.0
        %4949 = vmatprep.subr.mxu0 0.0
        %4950 = vmatpush2.xpose.msra.mxu0 0.0
        %4951 = vmatprep.subr.mxu0 0.0
        %4952 = vmatpush2.xpose.msra.mxu0 0.0
        %4953 = vmatprep.subr.mxu0 0.0
        %4954 = vmatpush2.xpose.msra.mxu0 0.0
        %4955 = vmatprep.subr.mxu0 0.0
        %4956 = vmatpush2.xpose.msra.mxu0 0.0
        %4957 = vmatprep.subr.mxu0 0.0
        %4958 = vmatpush2.xpose.msra.mxu0 0.0
        %4959 = vmatprep.subr.mxu0 0.0
        %4960 = vmatpush2.xpose.msra.mxu0 0.0
        %4961 = vmatprep.mubr.f32.mxu0 0.0
        %4962 = vmatmul.mubr.f32.gmra.mxu0 %v4883
        %v4963 = vpop.f32.mrf.mxu0
        %v4964 = vadd.f32 0.0, %v4963
        %v4965 = vpop.f32.mrf.mxu0
        %4966 = vdwg.mxu0
        %v4967 = vmul.f32 %v4964, 0.35355338
        %v4968 = vsel %vm1636, %v4967, -inf
        %4969 = vmax.xlane.f32.xlu0 %v4968
        %v4970 = vpop.xlane.xlu0 %4969
        %v4971 = vsub.f32 %v4967, %v4970
        %v4972 = vmul.f32 %v4971, 1.442695
        %v4973 = vpow.pop %v4972
        %v4975 = vsel %vm1636, %v4973, 0
        %4977 = vmatprep.subr.mxu0 0.0
        %4978 = vmatpush1.msra.mxu0 0.0
        %4979 = vmatprep.subr.mxu0 0.0
        %4980 = vmatpush1.msra.mxu0 0.0
        %4981 = vmatprep.subr.mxu0 0.0
        %4982 = vmatpush1.msra.mxu0 0.0
        %4983 = vmatprep.subr.mxu0 0.0
        %4984 = vmatpush1.msra.mxu0 0.0
        %4985 = vmatprep.subr.mxu0 0.0
        %4986 = vmatpush1.msra.mxu0 0.0
        %4987 = vmatprep.subr.mxu0 0.0
        %4988 = vmatpush1.msra.mxu0 0.0
        %4989 = vmatprep.subr.mxu0 0.0
        %4990 = vmatpush1.msra.mxu0 0.0
        %4991 = vmatprep.subr.mxu0 0.0
        %4992 = vmatpush1.msra.mxu0 0.0
        %4993 = vmatprep.subr.mxu0 0.0
        %4994 = vmatpush1.msra.mxu0 0.0
        %4995 = vmatprep.subr.mxu0 0.0
        %4996 = vmatpush1.msra.mxu0 0.0
        %4997 = vmatprep.subr.mxu0 0.0
        %4998 = vmatpush1.msra.mxu0 0.0
        %4999 = vmatprep.subr.mxu0 0.0
        %5000 = vmatpush1.msra.mxu0 0.0
        %5001 = vmatprep.subr.mxu0 0.0
        %5002 = vmatpush1.msra.mxu0 %v1624
        %5003 = vmatprep.subr.mxu0 0.0
        %5004 = vmatpush1.msra.mxu0 %v1623
        %5005 = vmatprep.subr.mxu0 0.0
        %5006 = vmatpush1.msra.mxu0 %v1622
        %5007 = vmatprep.subr.mxu0 0.0
        %5008 = vmatpush1.msra.mxu0 %v1621
        %5009 = vmatprep.subr.mxu0 0.0
        %5010 = vmatpush2.msra.mxu0 0.0
        %5011 = vmatprep.subr.mxu0 0.0
        %5012 = vmatpush2.msra.mxu0 0.0
        %5013 = vmatprep.subr.mxu0 0.0
        %5014 = vmatpush2.msra.mxu0 0.0
        %5015 = vmatprep.subr.mxu0 0.0
        %5016 = vmatpush2.msra.mxu0 0.0
        %5017 = vmatprep.subr.mxu0 0.0
        %5018 = vmatpush2.msra.mxu0 0.0
        %5019 = vmatprep.subr.mxu0 0.0
        %5020 = vmatpush2.msra.mxu0 0.0
        %5021 = vmatprep.subr.mxu0 0.0
        %5022 = vmatpush2.msra.mxu0 0.0
        %5023 = vmatprep.subr.mxu0 0.0
        %5024 = vmatpush2.msra.mxu0 0.0
        %5025 = vmatprep.subr.mxu0 0.0
        %5026 = vmatpush2.msra.mxu0 0.0
        %5027 = vmatprep.subr.mxu0 0.0
        %5028 = vmatpush2.msra.mxu0 0.0
        %5029 = vmatprep.subr.mxu0 0.0
        %5030 = vmatpush2.msra.mxu0 0.0
        %5031 = vmatprep.subr.mxu0 0.0
        %5032 = vmatpush2.msra.mxu0 0.0
        %5033 = vmatprep.subr.mxu0 0.0
        %5034 = vmatpush2.msra.mxu0 0.0
        %5035 = vmatprep.subr.mxu0 0.0
        %5036 = vmatpush2.msra.mxu0 0.0
        %5037 = vmatprep.subr.mxu0 0.0
        %5038 = vmatpush2.msra.mxu0 0.0
        %5039 = vmatprep.subr.mxu0 0.0
        %5040 = vmatpush2.msra.mxu0 0.0
        %5041 = vmatprep.mubr.f32.mxu0 0.0
        %5042 = vmatmul.mubr.f32.gmra.mxu0 %v4975
        %v5043 = vpop.f32.mrf.mxu0
        %v5044 = vadd.f32 0.0, %v5043
        %v5045 = vpop.f32.mrf.mxu0
        %5046 = vdwg.mxu0
        %v5047 = vrcp.pop %v5044
        %v5048 = vmul.f32 %v5044, %v5047
        %v5049 = vsub.f32 2.0, %v5048
        %v5050 = vmul.f32 %v5047, %v5049
        %v5051 = vmul.f32 %v4973, %v5050
        %v5053 = vsel %vm1636, %v5051, 0
        %5055 = vmatprep.subr.mxu0 0.0
        %5056 = vmatpush1.msra.mxu0 0.0
        %5057 = vmatprep.subr.mxu0 0.0
        %5058 = vmatpush1.msra.mxu0 0.0
        %5059 = vmatprep.subr.mxu0 0.0
        %5060 = vmatpush1.msra.mxu0 0.0
        %5061 = vmatprep.subr.mxu0 0.0
        %5062 = vmatpush1.msra.mxu0 0.0
        %5063 = vmatprep.subr.mxu0 0.0
        %5064 = vmatpush1.msra.mxu0 0.0
        %5065 = vmatprep.subr.mxu0 0.0
        %5066 = vmatpush1.msra.mxu0 0.0
        %5067 = vmatprep.subr.mxu0 0.0
        %5068 = vmatpush1.msra.mxu0 0.0
        %5069 = vmatprep.subr.mxu0 0.0
        %5070 = vmatpush1.msra.mxu0 0.0
        %5071 = vmatprep.subr.mxu0 0.0
        %5072 = vmatpush1.msra.mxu0 0.0
        %5073 = vmatprep.subr.mxu0 0.0
        %5074 = vmatpush1.msra.mxu0 0.0
        %5075 = vmatprep.subr.mxu0 0.0
        %5076 = vmatpush1.msra.mxu0 0.0
        %5077 = vmatprep.subr.mxu0 0.0
        %5078 = vmatpush1.msra.mxu0 0.0
        %5079 = vmatprep.subr.mxu0 0.0
        %5080 = vmatpush1.msra.mxu0 %v4881
        %5081 = vmatprep.subr.mxu0 0.0
        %5082 = vmatpush1.msra.mxu0 %v4880
        %5083 = vmatprep.subr.mxu0 0.0
        %5084 = vmatpush1.msra.mxu0 %v4879
        %5085 = vmatprep.subr.mxu0 0.0
        %5086 = vmatpush1.msra.mxu0 %v4878
        %5087 = vmatprep.subr.mxu0 0.0
        %5088 = vmatpush2.msra.mxu0 0.0
        %5089 = vmatprep.subr.mxu0 0.0
        %5090 = vmatpush2.msra.mxu0 0.0
        %5091 = vmatprep.subr.mxu0 0.0
        %5092 = vmatpush2.msra.mxu0 0.0
        %5093 = vmatprep.subr.mxu0 0.0
        %5094 = vmatpush2.msra.mxu0 0.0
        %5095 = vmatprep.subr.mxu0 0.0
        %5096 = vmatpush2.msra.mxu0 0.0
        %5097 = vmatprep.subr.mxu0 0.0
        %5098 = vmatpush2.msra.mxu0 0.0
        %5099 = vmatprep.subr.mxu0 0.0
        %5100 = vmatpush2.msra.mxu0 0.0
        %5101 = vmatprep.subr.mxu0 0.0
        %5102 = vmatpush2.msra.mxu0 0.0
        %5103 = vmatprep.subr.mxu0 0.0
        %5104 = vmatpush2.msra.mxu0 0.0
        %5105 = vmatprep.subr.mxu0 0.0
        %5106 = vmatpush2.msra.mxu0 0.0
        %5107 = vmatprep.subr.mxu0 0.0
        %5108 = vmatpush2.msra.mxu0 0.0
        %5109 = vmatprep.subr.mxu0 0.0
        %5110 = vmatpush2.msra.mxu0 0.0
        %5111 = vmatprep.subr.mxu0 0.0
        %5112 = vmatpush2.msra.mxu0 0.0
        %5113 = vmatprep.subr.mxu0 0.0
        %5114 = vmatpush2.msra.mxu0 0.0
        %5115 = vmatprep.subr.mxu0 0.0
        %5116 = vmatpush2.msra.mxu0 0.0
        %5117 = vmatprep.subr.mxu0 0.0
        %5118 = vmatpush2.msra.mxu0 0.0
        %5119 = vmatprep.mubr.f32.mxu0 0.0
        %5120 = vmatmul.mubr.f32.gmra.mxu0 %v5053
        %v5121 = vpop.f32.mrf.mxu0
        %v5122 = vadd.f32 0.0, %v5121
        %v5123 = vpop.f32.mrf.mxu0
        %5124 = vdwg.mxu0
        %v5125 = vmul.f32 %v4783, %v1617
        %v5126 = vmul.f32 %v4783, %v1618
        %v5127 = vmul.f32 %v4783, %v1619
        %v5128 = vmul.f32 %v4783, %v1620
        %v5129 = vmul.f32 %v4871, %v1617
        %v5130 = vmul.f32 %v4871, %v1618
        %v5131 = vmul.f32 %v4871, %v1619
        %v5132 = vmul.f32 %v4871, %v1620
        %v5134 = vsel %vm1636, %v4695, 0
        %v5137 = vsel %vm1636, %v5125, 0
        %v5140 = vsel %vm1636, %v5126, 0
        %v5143 = vsel %vm1636, %v5127, 0
        %v5146 = vsel %vm1636, %v5128, 0
        %5148 = vmatprep.subr.mxu0 0.0
        %5149 = vmatpush1.xpose.msra.mxu0 0.0
        %5150 = vmatprep.subr.mxu0 0.0
        %5151 = vmatpush1.xpose.msra.mxu0 0.0
        %5152 = vmatprep.subr.mxu0 0.0
        %5153 = vmatpush1.xpose.msra.mxu0 0.0
        %5154 = vmatprep.subr.mxu0 0.0
        %5155 = vmatpush1.xpose.msra.mxu0 0.0
        %5156 = vmatprep.subr.mxu0 0.0
        %5157 = vmatpush1.xpose.msra.mxu0 0.0
        %5158 = vmatprep.subr.mxu0 0.0
        %5159 = vmatpush1.xpose.msra.mxu0 0.0
        %5160 = vmatprep.subr.mxu0 0.0
        %5161 = vmatpush1.xpose.msra.mxu0 0.0
        %5162 = vmatprep.subr.mxu0 0.0
        %5163 = vmatpush1.xpose.msra.mxu0 0.0
        %5164 = vmatprep.subr.mxu0 0.0
        %5165 = vmatpush1.xpose.msra.mxu0 0.0
        %5166 = vmatprep.subr.mxu0 0.0
        %5167 = vmatpush1.xpose.msra.mxu0 0.0
        %5168 = vmatprep.subr.mxu0 0.0
        %5169 = vmatpush1.xpose.msra.mxu0 0.0
        %5170 = vmatprep.subr.mxu0 0.0
        %5171 = vmatpush1.xpose.msra.mxu0 0.0
        %5172 = vmatprep.subr.mxu0 0.0
        %5173 = vmatpush1.xpose.msra.mxu0 %v5146
        %5174 = vmatprep.subr.mxu0 0.0
        %5175 = vmatpush1.xpose.msra.mxu0 %v5143
        %5176 = vmatprep.subr.mxu0 0.0
        %5177 = vmatpush1.xpose.msra.mxu0 %v5140
        %5178 = vmatprep.subr.mxu0 0.0
        %5179 = vmatpush1.xpose.msra.mxu0 %v5137
        %5180 = vmatprep.subr.mxu0 0.0
        %5181 = vmatpush2.xpose.msra.mxu0 0.0
        %5182 = vmatprep.subr.mxu0 0.0
        %5183 = vmatpush2.xpose.msra.mxu0 0.0
        %5184 = vmatprep.subr.mxu0 0.0
        %5185 = vmatpush2.xpose.msra.mxu0 0.0
        %5186 = vmatprep.subr.mxu0 0.0
        %5187 = vmatpush2.xpose.msra.mxu0 0.0
        %5188 = vmatprep.subr.mxu0 0.0
        %5189 = vmatpush2.xpose.msra.mxu0 0.0
        %5190 = vmatprep.subr.mxu0 0.0
        %5191 = vmatpush2.xpose.msra.mxu0 0.0
        %5192 = vmatprep.subr.mxu0 0.0
        %5193 = vmatpush2.xpose.msra.mxu0 0.0
        %5194 = vmatprep.subr.mxu0 0.0
        %5195 = vmatpush2.xpose.msra.mxu0 0.0
        %5196 = vmatprep.subr.mxu0 0.0
        %5197 = vmatpush2.xpose.msra.mxu0 0.0
        %5198 = vmatprep.subr.mxu0 0.0
        %5199 = vmatpush2.xpose.msra.mxu0 0.0
        %5200 = vmatprep.subr.mxu0 0.0
        %5201 = vmatpush2.xpose.msra.mxu0 0.0
        %5202 = vmatprep.subr.mxu0 0.0
        %5203 = vmatpush2.xpose.msra.mxu0 0.0
        %5204 = vmatprep.subr.mxu0 0.0
        %5205 = vmatpush2.xpose.msra.mxu0 0.0
        %5206 = vmatprep.subr.mxu0 0.0
        %5207 = vmatpush2.xpose.msra.mxu0 0.0
        %5208 = vmatprep.subr.mxu0 0.0
        %5209 = vmatpush2.xpose.msra.mxu0 0.0
        %5210 = vmatprep.subr.mxu0 0.0
        %5211 = vmatpush2.xpose.msra.mxu0 0.0
        %5212 = vmatprep.mubr.f32.mxu0 0.0
        %5213 = vmatmul.mubr.f32.gmra.mxu0 %v5134
        %v5214 = vpop.f32.mrf.mxu0
        %v5215 = vadd.f32 0.0, %v5214
        %v5216 = vpop.f32.mrf.mxu0
        %5217 = vdwg.mxu0
        %v5218 = vmul.f32 %v5215, 0.35355338
        %v5219 = vsel %vm1636, %v5218, -inf
        %5220 = vmax.xlane.f32.xlu0 %v5219
        %v5221 = vpop.xlane.xlu0 %5220
        %v5222 = vsub.f32 %v5218, %v5221
        %v5223 = vmul.f32 %v5222, 1.442695
        %v5224 = vpow.pop %v5223
        %v5226 = vsel %vm1636, %v5224, 0
        %5228 = vmatprep.subr.mxu0 0.0
        %5229 = vmatpush1.msra.mxu0 0.0
        %5230 = vmatprep.subr.mxu0 0.0
        %5231 = vmatpush1.msra.mxu0 0.0
        %5232 = vmatprep.subr.mxu0 0.0
        %5233 = vmatpush1.msra.mxu0 0.0
        %5234 = vmatprep.subr.mxu0 0.0
        %5235 = vmatpush1.msra.mxu0 0.0
        %5236 = vmatprep.subr.mxu0 0.0
        %5237 = vmatpush1.msra.mxu0 0.0
        %5238 = vmatprep.subr.mxu0 0.0
        %5239 = vmatpush1.msra.mxu0 0.0
        %5240 = vmatprep.subr.mxu0 0.0
        %5241 = vmatpush1.msra.mxu0 0.0
        %5242 = vmatprep.subr.mxu0 0.0
        %5243 = vmatpush1.msra.mxu0 0.0
        %5244 = vmatprep.subr.mxu0 0.0
        %5245 = vmatpush1.msra.mxu0 0.0
        %5246 = vmatprep.subr.mxu0 0.0
        %5247 = vmatpush1.msra.mxu0 0.0
        %5248 = vmatprep.subr.mxu0 0.0
        %5249 = vmatpush1.msra.mxu0 0.0
        %5250 = vmatprep.subr.mxu0 0.0
        %5251 = vmatpush1.msra.mxu0 0.0
        %5252 = vmatprep.subr.mxu0 0.0
        %5253 = vmatpush1.msra.mxu0 %v1624
        %5254 = vmatprep.subr.mxu0 0.0
        %5255 = vmatpush1.msra.mxu0 %v1623
        %5256 = vmatprep.subr.mxu0 0.0
        %5257 = vmatpush1.msra.mxu0 %v1622
        %5258 = vmatprep.subr.mxu0 0.0
        %5259 = vmatpush1.msra.mxu0 %v1621
        %5260 = vmatprep.subr.mxu0 0.0
        %5261 = vmatpush2.msra.mxu0 0.0
        %5262 = vmatprep.subr.mxu0 0.0
        %5263 = vmatpush2.msra.mxu0 0.0
        %5264 = vmatprep.subr.mxu0 0.0
        %5265 = vmatpush2.msra.mxu0 0.0
        %5266 = vmatprep.subr.mxu0 0.0
        %5267 = vmatpush2.msra.mxu0 0.0
        %5268 = vmatprep.subr.mxu0 0.0
        %5269 = vmatpush2.msra.mxu0 0.0
        %5270 = vmatprep.subr.mxu0 0.0
        %5271 = vmatpush2.msra.mxu0 0.0
        %5272 = vmatprep.subr.mxu0 0.0
        %5273 = vmatpush2.msra.mxu0 0.0
        %5274 = vmatprep.subr.mxu0 0.0
        %5275 = vmatpush2.msra.mxu0 0.0
        %5276 = vmatprep.subr.mxu0 0.0
        %5277 = vmatpush2.msra.mxu0 0.0
        %5278 = vmatprep.subr.mxu0 0.0
        %5279 = vmatpush2.msra.mxu0 0.0
        %5280 = vmatprep.subr.mxu0 0.0
        %5281 = vmatpush2.msra.mxu0 0.0
        %5282 = vmatprep.subr.mxu0 0.0
        %5283 = vmatpush2.msra.mxu0 0.0
        %5284 = vmatprep.subr.mxu0 0.0
        %5285 = vmatpush2.msra.mxu0 0.0
        %5286 = vmatprep.subr.mxu0 0.0
        %5287 = vmatpush2.msra.mxu0 0.0
        %5288 = vmatprep.subr.mxu0 0.0
        %5289 = vmatpush2.msra.mxu0 0.0
        %5290 = vmatprep.subr.mxu0 0.0
        %5291 = vmatpush2.msra.mxu0 0.0
        %5292 = vmatprep.mubr.f32.mxu0 0.0
        %5293 = vmatmul.mubr.f32.gmra.mxu0 %v5226
        %v5294 = vpop.f32.mrf.mxu0
        %v5295 = vadd.f32 0.0, %v5294
        %v5296 = vpop.f32.mrf.mxu0
        %5297 = vdwg.mxu0
        %v5298 = vrcp.pop %v5295
        %v5299 = vmul.f32 %v5295, %v5298
        %v5300 = vsub.f32 2.0, %v5299
        %v5301 = vmul.f32 %v5298, %v5300
        %v5302 = vmul.f32 %v5224, %v5301
        %v5304 = vsel %vm1636, %v5302, 0
        %5306 = vmatprep.subr.mxu0 0.0
        %5307 = vmatpush1.msra.mxu0 0.0
        %5308 = vmatprep.subr.mxu0 0.0
        %5309 = vmatpush1.msra.mxu0 0.0
        %5310 = vmatprep.subr.mxu0 0.0
        %5311 = vmatpush1.msra.mxu0 0.0
        %5312 = vmatprep.subr.mxu0 0.0
        %5313 = vmatpush1.msra.mxu0 0.0
        %5314 = vmatprep.subr.mxu0 0.0
        %5315 = vmatpush1.msra.mxu0 0.0
        %5316 = vmatprep.subr.mxu0 0.0
        %5317 = vmatpush1.msra.mxu0 0.0
        %5318 = vmatprep.subr.mxu0 0.0
        %5319 = vmatpush1.msra.mxu0 0.0
        %5320 = vmatprep.subr.mxu0 0.0
        %5321 = vmatpush1.msra.mxu0 0.0
        %5322 = vmatprep.subr.mxu0 0.0
        %5323 = vmatpush1.msra.mxu0 0.0
        %5324 = vmatprep.subr.mxu0 0.0
        %5325 = vmatpush1.msra.mxu0 0.0
        %5326 = vmatprep.subr.mxu0 0.0
        %5327 = vmatpush1.msra.mxu0 0.0
        %5328 = vmatprep.subr.mxu0 0.0
        %5329 = vmatpush1.msra.mxu0 0.0
        %5330 = vmatprep.subr.mxu0 0.0
        %5331 = vmatpush1.msra.mxu0 %v5132
        %5332 = vmatprep.subr.mxu0 0.0
        %5333 = vmatpush1.msra.mxu0 %v5131
        %5334 = vmatprep.subr.mxu0 0.0
        %5335 = vmatpush1.msra.mxu0 %v5130
        %5336 = vmatprep.subr.mxu0 0.0
        %5337 = vmatpush1.msra.mxu0 %v5129
        %5338 = vmatprep.subr.mxu0 0.0
        %5339 = vmatpush2.msra.mxu0 0.0
        %5340 = vmatprep.subr.mxu0 0.0
        %5341 = vmatpush2.msra.mxu0 0.0
        %5342 = vmatprep.subr.mxu0 0.0
        %5343 = vmatpush2.msra.mxu0 0.0
        %5344 = vmatprep.subr.mxu0 0.0
        %5345 = vmatpush2.msra.mxu0 0.0
        %5346 = vmatprep.subr.mxu0 0.0
        %5347 = vmatpush2.msra.mxu0 0.0
        %5348 = vmatprep.subr.mxu0 0.0
        %5349 = vmatpush2.msra.mxu0 0.0
        %5350 = vmatprep.subr.mxu0 0.0
        %5351 = vmatpush2.msra.mxu0 0.0
        %5352 = vmatprep.subr.mxu0 0.0
        %5353 = vmatpush2.msra.mxu0 0.0
        %5354 = vmatprep.subr.mxu0 0.0
        %5355 = vmatpush2.msra.mxu0 0.0
        %5356 = vmatprep.subr.mxu0 0.0
        %5357 = vmatpush2.msra.mxu0 0.0
        %5358 = vmatprep.subr.mxu0 0.0
        %5359 = vmatpush2.msra.mxu0 0.0
        %5360 = vmatprep.subr.mxu0 0.0
        %5361 = vmatpush2.msra.mxu0 0.0
        %5362 = vmatprep.subr.mxu0 0.0
        %5363 = vmatpush2.msra.mxu0 0.0
        %5364 = vmatprep.subr.mxu0 0.0
        %5365 = vmatpush2.msra.mxu0 0.0
        %5366 = vmatprep.subr.mxu0 0.0
        %5367 = vmatpush2.msra.mxu0 0.0
        %5368 = vmatprep.subr.mxu0 0.0
        %5369 = vmatpush2.msra.mxu0 0.0
        %5370 = vmatprep.mubr.f32.mxu0 0.0
        %5371 = vmatmul.mubr.f32.gmra.mxu0 %v5304
        %v5372 = vpop.f32.mrf.mxu0
        %v5373 = vadd.f32 0.0, %v5372
        %v5374 = vpop.f32.mrf.mxu0
        %5375 = vdwg.mxu0
        %s5376 = scalar_lea.vmem [#allocation32], 32
        %v5377 = vld [vmem:[%s5376] sm:$0xff]
        %v5378 = vld [vmem:[%s5376 + $0x8] sm:$0xff]
        %v5379 = vld [vmem:[%s5376 + $0x10] sm:$0xff]
        %v5380 = vld [vmem:[%s5376 + $0x18] sm:$0xff]
        %v5382 = vsel %vm1636, %v5122, 0
        %v5385 = vsel %vm1636, %v5373, 0
        %5387 = vmatprep.subr.mxu0 0.0
        %5388 = vmatpush1.msra.mxu0 0.0
        %5389 = vmatprep.subr.mxu0 0.0
        %5390 = vmatpush1.msra.mxu0 0.0
        %5391 = vmatprep.subr.mxu0 0.0
        %5392 = vmatpush1.msra.mxu0 0.0
        %5393 = vmatprep.subr.mxu0 0.0
        %5394 = vmatpush1.msra.mxu0 0.0
        %5395 = vmatprep.subr.mxu0 0.0
        %5396 = vmatpush1.msra.mxu0 0.0
        %5397 = vmatprep.subr.mxu0 0.0
        %5398 = vmatpush1.msra.mxu0 0.0
        %5399 = vmatprep.subr.mxu0 0.0
        %5400 = vmatpush1.msra.mxu0 0.0
        %5401 = vmatprep.subr.mxu0 0.0
        %5402 = vmatpush1.msra.mxu0 0.0
        %5403 = vmatprep.subr.mxu0 0.0
        %5404 = vmatpush1.msra.mxu0 0.0
        %5405 = vmatprep.subr.mxu0 0.0
        %5406 = vmatpush1.msra.mxu0 0.0
        %5407 = vmatprep.subr.mxu0 0.0
        %5408 = vmatpush1.msra.mxu0 0.0
        %5409 = vmatprep.subr.mxu0 0.0
        %5410 = vmatpush1.msra.mxu0 0.0
        %5411 = vmatprep.subr.mxu0 0.0
        %5412 = vmatpush1.msra.mxu0 %v5380
        %5413 = vmatprep.subr.mxu0 0.0
        %5414 = vmatpush1.msra.mxu0 %v5379
        %5415 = vmatprep.subr.mxu0 0.0
        %5416 = vmatpush1.msra.mxu0 %v5378
        %5417 = vmatprep.subr.mxu0 0.0
        %5418 = vmatpush1.msra.mxu0 %v5377
        %5419 = vmatprep.subr.mxu0 0.0
        %5420 = vmatpush2.msra.mxu0 0.0
        %5421 = vmatprep.subr.mxu0 0.0
        %5422 = vmatpush2.msra.mxu0 0.0
        %5423 = vmatprep.subr.mxu0 0.0
        %5424 = vmatpush2.msra.mxu0 0.0
        %5425 = vmatprep.subr.mxu0 0.0
        %5426 = vmatpush2.msra.mxu0 0.0
        %5427 = vmatprep.subr.mxu0 0.0
        %5428 = vmatpush2.msra.mxu0 0.0
        %5429 = vmatprep.subr.mxu0 0.0
        %5430 = vmatpush2.msra.mxu0 0.0
        %5431 = vmatprep.subr.mxu0 0.0
        %5432 = vmatpush2.msra.mxu0 0.0
        %5433 = vmatprep.subr.mxu0 0.0
        %5434 = vmatpush2.msra.mxu0 0.0
        %5435 = vmatprep.subr.mxu0 0.0
        %5436 = vmatpush2.msra.mxu0 0.0
        %5437 = vmatprep.subr.mxu0 0.0
        %5438 = vmatpush2.msra.mxu0 0.0
        %5439 = vmatprep.subr.mxu0 0.0
        %5440 = vmatpush2.msra.mxu0 0.0
        %5441 = vmatprep.subr.mxu0 0.0
        %5442 = vmatpush2.msra.mxu0 0.0
        %5443 = vmatprep.subr.mxu0 0.0
        %5444 = vmatpush2.msra.mxu0 0.0
        %5445 = vmatprep.subr.mxu0 0.0
        %5446 = vmatpush2.msra.mxu0 0.0
        %5447 = vmatprep.subr.mxu0 0.0
        %5448 = vmatpush2.msra.mxu0 0.0
        %5449 = vmatprep.subr.mxu0 0.0
        %5450 = vmatpush2.msra.mxu0 0.0
        %5451 = vmatprep.mubr.f32.mxu0 0.0
        %5452 = vmatmul.mubr.f32.gmra.mxu0 %v5382
        %v5453 = vpop.f32.mrf.mxu0
        %v5454 = vadd.f32 0.0, %v5453
        %v5455 = vpop.f32.mrf.mxu0
        %5456 = vmatprep.mubr.f32.mxu0 0.0
        %5457 = vmatmul.mubr.f32.gmra.mxu0 %v5385
        %v5458 = vpop.f32.mrf.mxu0
        %v5459 = vadd.f32 0.0, %v5458
        %v5460 = vpop.f32.mrf.mxu0
        %5461 = vdwg.mxu0
        %v5462 = vadd.f32 %v4602, %v5454
        %v5463 = vadd.f32 %v4603, %v5459
        %s5464 = scalar_lea.vmem %s51, 1
        %v5465 = vld [vmem:[%s5464] sm:$0x1]
        %v5467 = vlaneseq
        %v5468 = vshrl.u32 %v5467, 7
        %v5469 = vsub.s32 0, %v5468
        %v5470 = vrot.slane %v5465, %v5469
        %v5472 = vadd.f32 %v5462, %v5470
        %v5473 = vadd.f32 %v5463, %v5470
        %s5474 = scalar_lea.vmem %s65, 1
        %v5475 = vld [vmem:[%s5474] sm:$0x1]
        %s5476 = scalar_lea.vmem %s67, 1
        %v5477 = vld [vmem:[%s5476] sm:$0x1]
        %v5478 = vsel %vm1636, %v5472, 0.0
        %5479 = vadd.xlane.f32.xlu0 %v5478
        %v5480 = vpop.xlane.xlu0 %5479
        %v5481 = vsel %vm1636, %v5473, 0.0
        %5482 = vadd.xlane.f32.xlu0 %v5481
        %v5483 = vpop.xlane.xlu0 %5482
        %v5484 = vmul.f32 %v5480, %v2498
        %v5485 = vmul.f32 %v5483, %v2498
        %v5486 = vsub.f32 %v5472, %v5484
        %v5487 = vsub.f32 %v5473, %v5485
        %v5488 = vmul.f32 %v5486, %v5486
        %v5489 = vmul.f32 %v5487, %v5487
        %v5490 = vsel %vm1636, %v5488, 0.0
        %5491 = vadd.xlane.f32.xlu0 %v5490
        %v5492 = vpop.xlane.xlu0 %5491
        %v5493 = vsel %vm1636, %v5489, 0.0
        %5494 = vadd.xlane.f32.xlu0 %v5493
        %v5495 = vpop.xlane.xlu0 %5494
        %v5496 = vmul.f32 %v5492, %v2498
        %v5497 = vmul.f32 %v5495, %v2498
        %v5498 = vadd.f32 %v5496, 1e-05
        %v5499 = vadd.f32 %v5497, 1e-05
        %v5500 = vrsqrt.pop %v5498
        %v5501 = vrsqrt.pop %v5499
        %v5502 = vmul.f32 %v5486, %v5500
        %v5503 = vmul.f32 %v5487, %v5501
        %v5505 = vlaneseq
        %v5506 = vshrl.u32 %v5505, 7
        %v5507 = vsub.s32 0, %v5506
        %v5508 = vrot.slane %v5475, %v5507
        %v5510 = vmul.f32 %v5502, %v5508
        %v5511 = vmul.f32 %v5503, %v5508
        %v5513 = vlaneseq
        %v5514 = vshrl.u32 %v5513, 7
        %v5515 = vsub.s32 0, %v5514
        %v5516 = vrot.slane %v5477, %v5515
        %v5518 = vadd.f32 %v5510, %v5516
        %v5519 = vadd.f32 %v5511, %v5516
        %s5520 = scalar_lea.vmem [#allocation34], 32
        %v5521 = vld [vmem:[%s5520] sm:$0xff]
        %v5522 = vld [vmem:[%s5520 + $0x8] sm:$0xff]
        %v5523 = vld [vmem:[%s5520 + $0x10] sm:$0xff]
        %v5524 = vld [vmem:[%s5520 + $0x18] sm:$0xff]
        %s5525 = scalar_lea.vmem %s55, 1
        %v5526 = vld [vmem:[%s5525] sm:$0x1]
        %v5528 = vlaneseq
        %v5529 = vshrl.u32 %v5528, 7
        %v5530 = vsub.s32 0, %v5529
        %v5531 = vrot.slane %v5526, %v5530
        %v5534 = vsel %vm1636, %v5518, 0
        %v5537 = vsel %vm1636, %v5519, 0
        %5539 = vmatprep.subr.mxu0 0.0
        %5540 = vmatpush1.msra.mxu0 0.0
        %5541 = vmatprep.subr.mxu0 0.0
        %5542 = vmatpush1.msra.mxu0 0.0
        %5543 = vmatprep.subr.mxu0 0.0
        %5544 = vmatpush1.msra.mxu0 0.0
        %5545 = vmatprep.subr.mxu0 0.0
        %5546 = vmatpush1.msra.mxu0 0.0
        %5547 = vmatprep.subr.mxu0 0.0
        %5548 = vmatpush1.msra.mxu0 0.0
        %5549 = vmatprep.subr.mxu0 0.0
        %5550 = vmatpush1.msra.mxu0 0.0
        %5551 = vmatprep.subr.mxu0 0.0
        %5552 = vmatpush1.msra.mxu0 0.0
        %5553 = vmatprep.subr.mxu0 0.0
        %5554 = vmatpush1.msra.mxu0 0.0
        %5555 = vmatprep.subr.mxu0 0.0
        %5556 = vmatpush1.msra.mxu0 0.0
        %5557 = vmatprep.subr.mxu0 0.0
        %5558 = vmatpush1.msra.mxu0 0.0
        %5559 = vmatprep.subr.mxu0 0.0
        %5560 = vmatpush1.msra.mxu0 0.0
        %5561 = vmatprep.subr.mxu0 0.0
        %5562 = vmatpush1.msra.mxu0 0.0
        %5563 = vmatprep.subr.mxu0 0.0
        %5564 = vmatpush1.msra.mxu0 %v5524
        %5565 = vmatprep.subr.mxu0 0.0
        %5566 = vmatpush1.msra.mxu0 %v5523
        %5567 = vmatprep.subr.mxu0 0.0
        %5568 = vmatpush1.msra.mxu0 %v5522
        %5569 = vmatprep.subr.mxu0 0.0
        %5570 = vmatpush1.msra.mxu0 %v5521
        %5571 = vmatprep.subr.mxu0 0.0
        %5572 = vmatpush2.msra.mxu0 0.0
        %5573 = vmatprep.subr.mxu0 0.0
        %5574 = vmatpush2.msra.mxu0 0.0
        %5575 = vmatprep.subr.mxu0 0.0
        %5576 = vmatpush2.msra.mxu0 0.0
        %5577 = vmatprep.subr.mxu0 0.0
        %5578 = vmatpush2.msra.mxu0 0.0
        %5579 = vmatprep.subr.mxu0 0.0
        %5580 = vmatpush2.msra.mxu0 0.0
        %5581 = vmatprep.subr.mxu0 0.0
        %5582 = vmatpush2.msra.mxu0 0.0
        %5583 = vmatprep.subr.mxu0 0.0
        %5584 = vmatpush2.msra.mxu0 0.0
        %5585 = vmatprep.subr.mxu0 0.0
        %5586 = vmatpush2.msra.mxu0 0.0
        %5587 = vmatprep.subr.mxu0 0.0
        %5588 = vmatpush2.msra.mxu0 0.0
        %5589 = vmatprep.subr.mxu0 0.0
        %5590 = vmatpush2.msra.mxu0 0.0
        %5591 = vmatprep.subr.mxu0 0.0
        %5592 = vmatpush2.msra.mxu0 0.0
        %5593 = vmatprep.subr.mxu0 0.0
        %5594 = vmatpush2.msra.mxu0 0.0
        %5595 = vmatprep.subr.mxu0 0.0
        %5596 = vmatpush2.msra.mxu0 0.0
        %5597 = vmatprep.subr.mxu0 0.0
        %5598 = vmatpush2.msra.mxu0 0.0
        %5599 = vmatprep.subr.mxu0 0.0
        %5600 = vmatpush2.msra.mxu0 0.0
        %5601 = vmatprep.subr.mxu0 0.0
        %5602 = vmatpush2.msra.mxu0 0.0
        %5603 = vmatprep.mubr.f32.mxu0 0.0
        %5604 = vmatmul.mubr.f32.gmra.mxu0 %v5534
        %v5605 = vpop.f32.mrf.mxu0
        %v5606 = vadd.f32 %v5531, %v5605
        %v5607 = vpop.f32.mrf.mxu0
        %5608 = vmatprep.mubr.f32.mxu0 0.0
        %5609 = vmatmul.mubr.f32.gmra.mxu0 %v5537
        %v5610 = vpop.f32.mrf.mxu0
        %v5611 = vadd.f32 %v5531, %v5610
        %v5612 = vpop.f32.mrf.mxu0
        %5613 = vdwg.mxu0
        %v5614 = vmax.f32 %v5606, 0.0
        %v5615 = vmax.f32 %v5611, 0.0
        %s5616 = scalar_lea.vmem %s57, 64
        %v5617 = vld [vmem:[%s5616] sm:$0xff]
        %v5618 = vld [vmem:[%s5616 + $0x8] sm:$0xff]
        %v5619 = vld [vmem:[%s5616 + $0x10] sm:$0xff]
        %v5620 = vld [vmem:[%s5616 + $0x18] sm:$0xff]
        %v5621 = vld [vmem:[%s5616 + $0x20] sm:$0xff]
        %v5622 = vld [vmem:[%s5616 + $0x28] sm:$0xff]
        %v5623 = vld [vmem:[%s5616 + $0x30] sm:$0xff]
        %v5624 = vld [vmem:[%s5616 + $0x38] sm:$0xff]
        %v5626 = vsel %vm3549, %v5614, 0
        %v5629 = vsel %vm3549, %v5615, 0
        %5631 = vmatprep.subr.mxu0 0.0
        %5632 = vmatpush1.msra.mxu0 0.0
        %5633 = vmatprep.subr.mxu0 0.0
        %5634 = vmatpush1.msra.mxu0 0.0
        %5635 = vmatprep.subr.mxu0 0.0
        %5636 = vmatpush1.msra.mxu0 0.0
        %5637 = vmatprep.subr.mxu0 0.0
        %5638 = vmatpush1.msra.mxu0 0.0
        %5639 = vmatprep.subr.mxu0 0.0
        %5640 = vmatpush1.msra.mxu0 0.0
        %5641 = vmatprep.subr.mxu0 0.0
        %5642 = vmatpush1.msra.mxu0 0.0
        %5643 = vmatprep.subr.mxu0 0.0
        %5644 = vmatpush1.msra.mxu0 0.0
        %5645 = vmatprep.subr.mxu0 0.0
        %5646 = vmatpush1.msra.mxu0 0.0
        %5647 = vmatprep.subr.mxu0 0.0
        %5648 = vmatpush1.msra.mxu0 %v5624
        %5649 = vmatprep.subr.mxu0 0.0
        %5650 = vmatpush1.msra.mxu0 %v5623
        %5651 = vmatprep.subr.mxu0 0.0
        %5652 = vmatpush1.msra.mxu0 %v5622
        %5653 = vmatprep.subr.mxu0 0.0
        %5654 = vmatpush1.msra.mxu0 %v5621
        %5655 = vmatprep.subr.mxu0 0.0
        %5656 = vmatpush1.msra.mxu0 %v5620
        %5657 = vmatprep.subr.mxu0 0.0
        %5658 = vmatpush1.msra.mxu0 %v5619
        %5659 = vmatprep.subr.mxu0 0.0
        %5660 = vmatpush1.msra.mxu0 %v5618
        %5661 = vmatprep.subr.mxu0 0.0
        %5662 = vmatpush1.msra.mxu0 %v5617
        %5663 = vmatprep.subr.mxu0 0.0
        %5664 = vmatpush2.msra.mxu0 0.0
        %5665 = vmatprep.subr.mxu0 0.0
        %5666 = vmatpush2.msra.mxu0 0.0
        %5667 = vmatprep.subr.mxu0 0.0
        %5668 = vmatpush2.msra.mxu0 0.0
        %5669 = vmatprep.subr.mxu0 0.0
        %5670 = vmatpush2.msra.mxu0 0.0
        %5671 = vmatprep.subr.mxu0 0.0
        %5672 = vmatpush2.msra.mxu0 0.0
        %5673 = vmatprep.subr.mxu0 0.0
        %5674 = vmatpush2.msra.mxu0 0.0
        %5675 = vmatprep.subr.mxu0 0.0
        %5676 = vmatpush2.msra.mxu0 0.0
        %5677 = vmatprep.subr.mxu0 0.0
        %5678 = vmatpush2.msra.mxu0 0.0
        %5679 = vmatprep.subr.mxu0 0.0
        %5680 = vmatpush2.msra.mxu0 0.0
        %5681 = vmatprep.subr.mxu0 0.0
        %5682 = vmatpush2.msra.mxu0 0.0
        %5683 = vmatprep.subr.mxu0 0.0
        %5684 = vmatpush2.msra.mxu0 0.0
        %5685 = vmatprep.subr.mxu0 0.0
        %5686 = vmatpush2.msra.mxu0 0.0
        %5687 = vmatprep.subr.mxu0 0.0
        %5688 = vmatpush2.msra.mxu0 0.0
        %5689 = vmatprep.subr.mxu0 0.0
        %5690 = vmatpush2.msra.mxu0 0.0
        %5691 = vmatprep.subr.mxu0 0.0
        %5692 = vmatpush2.msra.mxu0 0.0
        %5693 = vmatprep.subr.mxu0 0.0
        %5694 = vmatpush2.msra.mxu0 0.0
        %5695 = vmatprep.mubr.f32.mxu0 0.0
        %5696 = vmatmul.mubr.f32.gmra.mxu0 %v5626
        %v5697 = vpop.f32.mrf.mxu0
        %v5698 = vadd.f32 0.0, %v5697
        %v5699 = vpop.f32.mrf.mxu0
        %5700 = vmatprep.mubr.f32.mxu0 0.0
        %5701 = vmatmul.mubr.f32.gmra.mxu0 %v5629
        %v5702 = vpop.f32.mrf.mxu0
        %v5703 = vadd.f32 0.0, %v5702
        %v5704 = vpop.f32.mrf.mxu0
        %5705 = vdwg.mxu0
        %v5706 = vadd.f32 %v5518, %v5698
        %v5707 = vadd.f32 %v5519, %v5703
        %s5708 = scalar_lea.vmem %s59, 1
        %v5709 = vld [vmem:[%s5708] sm:$0x1]
        %v5711 = vlaneseq
        %v5712 = vshrl.u32 %v5711, 7
        %v5713 = vsub.s32 0, %v5712
        %v5714 = vrot.slane %v5709, %v5713
        %v5716 = vadd.f32 %v5706, %v5714
        %v5717 = vadd.f32 %v5707, %v5714
        %s5718 = scalar_lea.vmem %s69, 1
        %v5719 = vld [vmem:[%s5718] sm:$0x1]
        %s5720 = scalar_lea.vmem %s71, 1
        %v5721 = vld [vmem:[%s5720] sm:$0x1]
        %v5722 = vsel %vm1636, %v5716, 0.0
        %5723 = vadd.xlane.f32.xlu0 %v5722
        %v5724 = vpop.xlane.xlu0 %5723
        %v5725 = vsel %vm1636, %v5717, 0.0
        %5726 = vadd.xlane.f32.xlu0 %v5725
        %v5727 = vpop.xlane.xlu0 %5726
        %v5728 = vmul.f32 %v5724, %v2498
        %v5729 = vmul.f32 %v5727, %v2498
        %v5730 = vsub.f32 %v5716, %v5728
        %v5731 = vsub.f32 %v5717, %v5729
        %v5732 = vmul.f32 %v5730, %v5730
        %v5733 = vmul.f32 %v5731, %v5731
        %v5734 = vsel %vm1636, %v5732, 0.0
        %5735 = vadd.xlane.f32.xlu0 %v5734
        %v5736 = vpop.xlane.xlu0 %5735
        %v5737 = vsel %vm1636, %v5733, 0.0
        %5738 = vadd.xlane.f32.xlu0 %v5737
        %v5739 = vpop.xlane.xlu0 %5738
        %v5740 = vmul.f32 %v5736, %v2498
        %v5741 = vmul.f32 %v5739, %v2498
        %v5742 = vadd.f32 %v5740, 1e-05
        %v5743 = vadd.f32 %v5741, 1e-05
        %v5744 = vrsqrt.pop %v5742
        %v5745 = vrsqrt.pop %v5743
        %v5746 = vmul.f32 %v5730, %v5744
        %v5747 = vmul.f32 %v5731, %v5745
        %v5749 = vlaneseq
        %v5750 = vshrl.u32 %v5749, 7
        %v5751 = vsub.s32 0, %v5750
        %v5752 = vrot.slane %v5719, %v5751
        %v5754 = vmul.f32 %v5746, %v5752
        %v5755 = vmul.f32 %v5747, %v5752
        %v5757 = vlaneseq
        %v5758 = vshrl.u32 %v5757, 7
        %v5759 = vsub.s32 0, %v5758
        %v5760 = vrot.slane %v5721, %v5759
        %v5762 = vadd.f32 %v5754, %v5760
        %v5763 = vadd.f32 %v5755, %v5760
        %v5764 = vld [vmem:[%s73] sm:$0xff]
        %v5765 = vld [vmem:[%s73 + $0x8] sm:$0xff]
        %v5766 = vld [vmem:[%s73 + $0x10] sm:$0xff]
        %v5767 = vld [vmem:[%s73 + $0x18] sm:$0xff]
        %v5768 = vld [vmem:[%s75] sm:$0x1]
        %v5770 = vlaneseq
        %v5771 = vshrl.u32 %v5770, 7
        %v5772 = vsub.s32 0, %v5771
        %v5773 = vrot.slane %v5768, %v5772
        %v5776 = vsel %vm1636, %v5762, 0
        %v5779 = vsel %vm1636, %v5763, 0
        %5781 = vmatprep.subr.mxu0 0.0
        %5782 = vmatpush1.msra.mxu0 0.0
        %5783 = vmatprep.subr.mxu0 0.0
        %5784 = vmatpush1.msra.mxu0 0.0
        %5785 = vmatprep.subr.mxu0 0.0
        %5786 = vmatpush1.msra.mxu0 0.0
        %5787 = vmatprep.subr.mxu0 0.0
        %5788 = vmatpush1.msra.mxu0 0.0
        %5789 = vmatprep.subr.mxu0 0.0
        %5790 = vmatpush1.msra.mxu0 0.0
        %5791 = vmatprep.subr.mxu0 0.0
        %5792 = vmatpush1.msra.mxu0 0.0
        %5793 = vmatprep.subr.mxu0 0.0
        %5794 = vmatpush1.msra.mxu0 0.0
        %5795 = vmatprep.subr.mxu0 0.0
        %5796 = vmatpush1.msra.mxu0 0.0
        %5797 = vmatprep.subr.mxu0 0.0
        %5798 = vmatpush1.msra.mxu0 0.0
        %5799 = vmatprep.subr.mxu0 0.0
        %5800 = vmatpush1.msra.mxu0 0.0
        %5801 = vmatprep.subr.mxu0 0.0
        %5802 = vmatpush1.msra.mxu0 0.0
        %5803 = vmatprep.subr.mxu0 0.0
        %5804 = vmatpush1.msra.mxu0 0.0
        %5805 = vmatprep.subr.mxu0 0.0
        %5806 = vmatpush1.msra.mxu0 %v5767
        %5807 = vmatprep.subr.mxu0 0.0
        %5808 = vmatpush1.msra.mxu0 %v5766
        %5809 = vmatprep.subr.mxu0 0.0
        %5810 = vmatpush1.msra.mxu0 %v5765
        %5811 = vmatprep.subr.mxu0 0.0
        %5812 = vmatpush1.msra.mxu0 %v5764
        %5813 = vmatprep.subr.mxu0 0.0
        %5814 = vmatpush2.msra.mxu0 0.0
        %5815 = vmatprep.subr.mxu0 0.0
        %5816 = vmatpush2.msra.mxu0 0.0
        %5817 = vmatprep.subr.mxu0 0.0
        %5818 = vmatpush2.msra.mxu0 0.0
        %5819 = vmatprep.subr.mxu0 0.0
        %5820 = vmatpush2.msra.mxu0 0.0
        %5821 = vmatprep.subr.mxu0 0.0
        %5822 = vmatpush2.msra.mxu0 0.0
        %5823 = vmatprep.subr.mxu0 0.0
        %5824 = vmatpush2.msra.mxu0 0.0
        %5825 = vmatprep.subr.mxu0 0.0
        %5826 = vmatpush2.msra.mxu0 0.0
        %5827 = vmatprep.subr.mxu0 0.0
        %5828 = vmatpush2.msra.mxu0 0.0
        %5829 = vmatprep.subr.mxu0 0.0
        %5830 = vmatpush2.msra.mxu0 0.0
        %5831 = vmatprep.subr.mxu0 0.0
        %5832 = vmatpush2.msra.mxu0 0.0
        %5833 = vmatprep.subr.mxu0 0.0
        %5834 = vmatpush2.msra.mxu0 0.0
        %5835 = vmatprep.subr.mxu0 0.0
        %5836 = vmatpush2.msra.mxu0 0.0
        %5837 = vmatprep.subr.mxu0 0.0
        %5838 = vmatpush2.msra.mxu0 0.0
        %5839 = vmatprep.subr.mxu0 0.0
        %5840 = vmatpush2.msra.mxu0 0.0
        %5841 = vmatprep.subr.mxu0 0.0
        %5842 = vmatpush2.msra.mxu0 0.0
        %5843 = vmatprep.subr.mxu0 0.0
        %5844 = vmatpush2.msra.mxu0 0.0
        %5845 = vmatprep.mubr.f32.mxu0 0.0
        %5846 = vmatmul.mubr.f32.gmra.mxu0 %v5776
        %v5847 = vpop.f32.mrf.mxu0
        %v5848 = vadd.f32 %v5773, %v5847
        %v5849 = vpop.f32.mrf.mxu0
        %5850 = vmatprep.mubr.f32.mxu0 0.0
        %5851 = vmatmul.mubr.f32.gmra.mxu0 %v5779
        %v5852 = vpop.f32.mrf.mxu0
        %v5853 = vadd.f32 %v5773, %v5852
        %v5854 = vpop.f32.mrf.mxu0
        %5855 = vdwg.mxu0
        %5856 = vst [vmem:[%s1508] sm:$0xff] %v5848
        %s5857 = scalar_lea.vmem %s1508, 8 [#allocation35]
        %5858 = vst [vmem:[%s5857] sm:$0xff] %v5853
        %s5859 = sand.u32 %s929, 1
        %s5860 = scalar_lea.sflag [#allocation4], %s5859
        %s5861 = sand.u32 %s929, 1
        %s5862 = smul.addr %s5861, 16
        %s5863 = scalar_lea.vmem [#allocation35], %s5862
        // Predicated region
        $region257: #{tpu_custom_call.1} parent=171 // pred_check
          %p5864 = pneg %p939
        $region258: #{tpu_custom_call.1} parent=171 // pred_check_branch
          %5866 = sbr.rel (%p5864) target = $region260
        $region259: #{tpu_custom_call.1} parent=171 // pred_region
          %s5867 = smul.u32 2, %s108
          %s5869 = ssub.s32 256, 256
          %5870 = vsyncadd %s5860, %s5869
          %s5871 = smul.addr %s5867, 128
          %s5872 = scalar_lea.hbm %s77, %s5871
          %s5873 = sshll.u32 %s5863, 4
          %s5874 = int_to_ptr.vmem [resolvable:$true] %s5873
          %5879 = dma.vmem_to_hbm [thread:$0]  %s5874, 256, %s5872, %s5860, 128, 128, 8
        $region260: #{tpu_custom_call.1} parent=171 // pred_fallthru
          _
      $region172: #{tpu_custom_call.1} parent=5 // pred_fallthru
        _
      %p5880 = scmp.le.s32.totalorder 2, %s103
      // Predicated region
      $region261: #{tpu_custom_call.1} parent=5 // pred_check
        %p5881 = pneg %p5880
      $region262: #{tpu_custom_call.1} parent=5 // pred_check_branch
        %5883 = sbr.rel (%p5881) target = $region264
      $region263: #{tpu_custom_call.1} parent=5 // pred_region
        %s5884 = ssub.s32 %s103, 2
        // Predicated region
        $region265: #{tpu_custom_call.1} parent=263 // pred_check
          %p5885 = pneg %p945
        $region266: #{tpu_custom_call.1} parent=263 // pred_check_branch
          %5887 = sbr.rel (%p5885) target = $region268
        $region267: #{tpu_custom_call.1} parent=263 // pred_region
          %s5888 = sand.u32 %s930, 1
          %s5889 = scalar_lea.sflag [#allocation4], %s5888
          %s5890 = sand.u32 %s930, 1
          %s5891 = smul.addr %s5890, 16
          %s5892 = scalar_lea.vmem [#allocation35], %s5891
          %5893 = dma.done %s5889, 256
        $region268: #{tpu_custom_call.1} parent=263 // pred_fallthru
          _
      $region264: #{tpu_custom_call.1} parent=5 // pred_fallthru
        _
    $region6: #{tpu_custom_call.1} parent=1 // loop_footer
      %s107 = sadd.s32 1, %s103
    $region7: #{tpu_custom_call.1} parent=1 // loop_footer_branch
      %102 = sbr.rel target = $region3
    $region8: #{tpu_custom_call.1} parent=1 // loop_exit
      _
    %5894 = vsyncpa [#allocation3], 1
    %s5895 = scalar_lea.sflag [#allocation3], 1
    %5896 = vsyncpa %s5895, 1
    %5897 = vsyncpa [#allocation6], 1
    %s5898 = scalar_lea.sflag [#allocation6], 1
    %5899 = vsyncpa %s5898, 1
    %5900 = vsyncpa [#allocation9], 1
    %s5901 = scalar_lea.sflag [#allocation9], 1
    %5902 = vsyncpa %s5901, 1
    %5903 = vsyncpa [#allocation12], 1
    %5904 = vsyncpa [#allocation15], 1
    %5905 = vsyncpa [#allocation18], 1
    %5906 = vsyncpa [#allocation21], 1
    %5907 = vsyncpa [#allocation24], 1
    %5908 = vsyncpa [#allocation27], 1
    %5909 = vsyncpa [#allocation30], 1
    %5910 = vsyncpa [#allocation33], 1
    %5911 = vsyncpa [#allocation4], 1
    %s5912 = scalar_lea.sflag [#allocation4], 1
    %5913 = vsyncpa %s5912, 1

</llo_original>
